<compile_context>
chip_gen: v6e
topology: v6e:2x2x1
jax: 0.10.0
libtpu: 0.0.40
codegen_flags: <defaults>
</compile_context>

<pallas_src>
import functools

import jax
import jax.numpy as jnp
from jax.experimental import pallas as pl
from jax.experimental.pallas import tpu as pltpu


def _round_up(v, m):
    return (v + m - 1) // m * m


def _stage_shifted(stage_ref, v_bf16, H, W, Cp):
    """Write v (H, W, Cp) into the three dx-shifted lane groups of stage_ref.

    Lane group k holds, at staging position (row i+1, col c), the input pixel
    (i, c + k - 2); i.e. the image placed at column offset (2 - k).  The halo
    (zeroed once per grid step) provides the conv's zero padding.
    """
    for k in range(3):
        stage_ref[1:1 + H, 2 - k:2 - k + W, k * Cp:(k + 1) * Cp] = v_bf16


def _conv3x3_merged(stage_ref, w_ref, H, Wp, Cp):
    """3x3 'SAME' conv as 3 MXU matmuls with K = 3*Cp (dx taps lane-merged).

    stage_ref: (H+2, Wp, 3*Cp) bf16 staging scratch (see _stage_shifted).
    w_ref:     (3, 3*Cp, Cp) bf16 merged weights; row block k of w_ref[dy] is
               the (Cin, Cout) matrix of tap (dy, dx=k).
    Returns an (H*Wp, Cp) f32 accumulator; valid output pixels live at columns
    [1, 1+W) of every Wp-row, the remaining columns are garbage (never read).
    """
    M = H * Wp
    acc = None
    for dy in range(3):
        # Contiguous whole-row slice (leading dim) -> no strided copy; the
        # reshape is layout-free because Wp % 8 == 0 and 3*Cp % 128 == 0.
        patch = stage_ref[dy:dy + H, :, :].reshape(M, 3 * Cp)
        part = jnp.dot(patch, w_ref[dy], preferred_element_type=jnp.float32)
        acc = part if acc is None else acc + part
    return acc


def _resblock_kernel(x_ref, w1_ref, w2_ref, o_ref, stage_ref, *, H, W, Wp, Cp):
    z = jnp.bfloat16

    # Zero only the halo of the staging scratch.  Done every grid step so the
    # kernel is safe under megacore/"parallel" scheduling; the interiors are
    # fully overwritten by the staging writes below.
    stage_ref[0:1, :, :] = jnp.zeros((1, Wp, 3 * Cp), z)
    stage_ref[H + 1:H + 2, :, :] = jnp.zeros((1, Wp, 3 * Cp), z)
    stage_ref[1:1 + H, 0:2, :] = jnp.zeros((H, 2, 3 * Cp), z)
    stage_ref[1:1 + H, W:Wp, :] = jnp.zeros((H, Wp - W, 3 * Cp), z)

    # ---- conv1 + ReLU ------------------------------------------------------
    x = x_ref[0]                                   # (H, W, Cp) f32, read once
    _stage_shifted(stage_ref, x.astype(z), H, W, Cp)
    acc1 = _conv3x3_merged(stage_ref, w1_ref, H, Wp, Cp)        # (H*Wp, Cp)
    y = jnp.maximum(acc1.reshape(H, Wp, Cp)[:, 1:1 + W, :], 0.0)  # (H, W, Cp)

    # ---- conv2 + residual + ReLU -------------------------------------------
    _stage_shifted(stage_ref, y.astype(z), H, W, Cp)
    acc2 = _conv3x3_merged(stage_ref, w2_ref, H, Wp, Cp)
    out = acc2.reshape(H, Wp, Cp)[:, 1:1 + W, :] + x            # residual (f32)
    o_ref[0] = jnp.maximum(out, 0.0).astype(o_ref.dtype)


def _weight_spec(Cp):
    """Grid-invariant (3, 3*Cp, Cp) weight spec, single-buffered if supported."""
    try:
        return pl.BlockSpec((3, 3 * Cp, Cp), lambda n: (0, 0, 0),
                            pipeline_mode=pl.Buffered(1))
    except (TypeError, AttributeError):
        return pl.BlockSpec((3, 3 * Cp, Cp), lambda n: (0, 0, 0))


def resblock_nhwc(x_nhwc, w1_merged, w2_merged):
    """x_nhwc: (N, H, W, Cp) lane-dense f32; w*_merged: (3, 3*Cp, Cp) bf16."""
    N, H, W, Cp = x_nhwc.shape
    Wp = _round_up(W + 2, 8)
    kern = functools.partial(_resblock_kernel, H=H, W=W, Wp=Wp, Cp=Cp)

    # VMEM budget from the actual buffer footprint (+generous headroom),
    # instead of relying on the per-chip default scoped limit.
    act_bytes = H * W * Cp * 4            # one (1,H,W,Cp) f32 block
    w_bytes = 2 * 3 * (3 * Cp) * Cp * 2   # both bf16 weight slabs
    stage_bytes = (H + 2) * Wp * 3 * Cp * 2
    needed = 4 * act_bytes + 2 * w_bytes + stage_bytes
    vmem_limit = int(min(64 << 20, max(2 * needed, 16 << 20)))

    return pl.pallas_call(
        kern,
        out_shape=jax.ShapeDtypeStruct((N, H, W, Cp), x_nhwc.dtype),
        grid_spec=pltpu.PrefetchScalarGridSpec(
            num_scalar_prefetch=0,
            grid=(N,),
            in_specs=[
                pl.BlockSpec((1, H, W, Cp), lambda n: (n, 0, 0, 0)),
                _weight_spec(Cp),
                _weight_spec(Cp),
            ],
            out_specs=pl.BlockSpec((1, H, W, Cp), lambda n: (n, 0, 0, 0)),
            scratch_shapes=[pltpu.VMEM((H + 2, Wp, 3 * Cp), jnp.bfloat16)],
        ),
        compiler_params=pltpu.CompilerParams(
            dimension_semantics=("parallel",),
            vmem_limit_bytes=vmem_limit),
    )(x_nhwc, w1_merged, w2_merged)


def resblock_nchw(x_nchw, w1_oihw, w2_oihw):
    """PyTorch-convention entry point (NCHW activations, OIHW weights)."""
    N, C, H, W = x_nchw.shape
    Cp = max(128, _round_up(C, 128))

    # Activations: NCHW -> NHWC, channels zero-padded to the lane width.
    x_nhwc = jnp.transpose(x_nchw, (0, 2, 3, 1))
    if Cp != C:
        x_nhwc = jnp.pad(x_nhwc, ((0, 0), (0, 0), (0, 0), (0, Cp - C)))

    # Weights: OIHW -> merged-dx bf16 slabs (3, 3*Cp, Cp), row block dx holds
    # the (Cin, Cout) matrix of tap (dy, dx).
    def prep_w(w):
        w = jnp.transpose(w, (2, 3, 1, 0))                 # (dy, dx, Cin, Cout)
        w = jnp.pad(w, ((0, 0), (0, 0), (0, Cp - C), (0, Cp - C)))
        return w.reshape(3, 3 * Cp, Cp).astype(jnp.bfloat16)

    out_nhwc = resblock_nhwc(x_nhwc, prep_w(w1_oihw), prep_w(w2_oihw))
    out_nhwc = out_nhwc[..., :C]
    return jnp.transpose(out_nhwc, (0, 3, 1, 2))


def _reference_nchw(x, w1, w2):
    dn = ("NCHW", "OIHW", "NCHW")
    hp = jax.lax.Precision.HIGHEST
    y = jax.lax.conv_general_dilated(x, w1, (1, 1), "SAME",
                                     dimension_numbers=dn, precision=hp)
    y = jnp.maximum(y, 0.0)
    z = jax.lax.conv_general_dilated(y, w2, (1, 1), "SAME",
                                     dimension_numbers=dn, precision=hp)
    return jnp.maximum(z + x, 0.0)


if __name__ == "__main__":
    N, C, H, W = 2, 4, 16, 16
    key = jax.random.PRNGKey(0)
    kx, k1, k2 = jax.random.split(key, 3)
    # Deterministic synthetic parameters (nn.Conv2d(C, C, 3, bias=False) twice).
    x = jax.random.normal(kx, (N, C, H, W), dtype=jnp.float32)
    w1 = jax.random.normal(k1, (C, C, 3, 3), dtype=jnp.float32) * 0.2
    w2 = jax.random.normal(k2, (C, C, 3, 3), dtype=jnp.float32) * 0.2

    out = jax.jit(resblock_nchw)(x, w1, w2)
    out = jax.block_until_ready(out)

    ref = _reference_nchw(x, w1, w2)
    # Tolerance covers bf16 MXU operands (f32 accumulation) vs the f32 reference.
    err = float(jnp.max(jnp.abs(out - ref)))
    if not jnp.allclose(out, ref, atol=1e-1, rtol=1e-1):
        raise AssertionError(f"Pallas ResBlock mismatch, max|diff|={err}")
    print("KERNEL_OK")
</pallas_src>

<mosaic_0001>
module attributes {stable_mosaic.version = 11 : i64} {
  func.func @_resblock_kernel(%arg0: i32, %arg1: memref<1x16x16x128xf32, #tpu.memory_space<vmem>>, %arg2: memref<3x384x128xbf16, #tpu.memory_space<vmem>>, %arg3: memref<3x384x128xbf16, #tpu.memory_space<vmem>>, %arg4: memref<1x16x16x128xf32, #tpu.memory_space<vmem>>, %arg5: memref<18x24x384xbf16, #tpu.memory_space<vmem>>) attributes {dimension_semantics = [#tpu.dimension_semantics<parallel>], iteration_bounds = array<i64: 2>, scalar_prefetch = 0 : i64, scratch_operands = 1 : i64, tpu.core_type = #tpu.core_type<tc>, window_params = [{transform_indices = @transform_0, window_bounds = array<i64: 1, 16, 16, 128>}, {pipeline_mode = #tpu.pipeline_mode<synchronous>, transform_indices = @transform_1, window_bounds = array<i64: 3, 384, 128>}, {pipeline_mode = #tpu.pipeline_mode<synchronous>, transform_indices = @transform_2, window_bounds = array<i64: 3, 384, 128>}, {transform_indices = @transform_3, window_bounds = array<i64: 1, 16, 16, 128>}]} {
    %cst = arith.constant 0.000000e+00 : bf16
    %0 = vector.broadcast %cst : bf16 to vector<1x24x384xbf16>
    %c0 = arith.constant 0 : index
    %c0_0 = arith.constant 0 : index
    %c0_1 = arith.constant 0 : index
    %1 = vector.load %arg5[%c0, %c0_0, %c0_1] : memref<18x24x384xbf16, #tpu.memory_space<vmem>>, vector<1x24x384xbf16>
    tpu.vector_store %arg5[%c0, %c0_0, %c0_1], %0 {strides = array<i32>} : memref<18x24x384xbf16, #tpu.memory_space<vmem>>, vector<1x24x384xbf16>,
    %cst_2 = arith.constant 0.000000e+00 : bf16
    %2 = vector.broadcast %cst_2 : bf16 to vector<1x24x384xbf16>
    %c17 = arith.constant 17 : index
    %c0_3 = arith.constant 0 : index
    %c0_4 = arith.constant 0 : index
    %3 = vector.load %arg5[%c17, %c0_3, %c0_4] : memref<18x24x384xbf16, #tpu.memory_space<vmem>>, vector<1x24x384xbf16>
    tpu.vector_store %arg5[%c17, %c0_3, %c0_4], %2 {strides = array<i32>} : memref<18x24x384xbf16, #tpu.memory_space<vmem>>, vector<1x24x384xbf16>,
    %cst_5 = arith.constant 0.000000e+00 : bf16
    %4 = vector.broadcast %cst_5 : bf16 to vector<16x2x384xbf16>
    %c1 = arith.constant 1 : index
    %c0_6 = arith.constant 0 : index
    %c0_7 = arith.constant 0 : index
    %5 = vector.load %arg5[%c1, %c0_6, %c0_7] : memref<18x24x384xbf16, #tpu.memory_space<vmem>>, vector<16x2x384xbf16>
    tpu.vector_store %arg5[%c1, %c0_6, %c0_7], %4 {strides = array<i32>} : memref<18x24x384xbf16, #tpu.memory_space<vmem>>, vector<16x2x384xbf16>,
    %cst_8 = arith.constant 0.000000e+00 : bf16
    %6 = vector.broadcast %cst_8 : bf16 to vector<16x8x384xbf16>
    %c1_9 = arith.constant 1 : index
    %c16 = arith.constant 16 : index
    %c0_10 = arith.constant 0 : index
    %7 = vector.load %arg5[%c1_9, %c16, %c0_10] : memref<18x24x384xbf16, #tpu.memory_space<vmem>>, vector<16x8x384xbf16>
    tpu.vector_store %arg5[%c1_9, %c16, %c0_10], %6 {strides = array<i32>} : memref<18x24x384xbf16, #tpu.memory_space<vmem>>, vector<16x8x384xbf16>,
    %c0_11 = arith.constant 0 : index
    %c0_12 = arith.constant 0 : index
    %c0_13 = arith.constant 0 : index
    %c0_14 = arith.constant 0 : index
    %8 = vector.load %arg1[%c0_11, %c0_12, %c0_13, %c0_14] : memref<1x16x16x128xf32, #tpu.memory_space<vmem>>, vector<1x16x16x128xf32>
    %9 = vector.shape_cast %8 : vector<1x16x16x128xf32> to vector<16x16x128xf32>
    %10 = arith.truncf %9 : vector<16x16x128xf32> to vector<16x16x128xbf16>
    %c1_15 = arith.constant 1 : index
    %c2 = arith.constant 2 : index
    %c0_16 = arith.constant 0 : index
    %11 = vector.load %arg5[%c1_15, %c2, %c0_16] : memref<18x24x384xbf16, #tpu.memory_space<vmem>>, vector<16x16x128xbf16>
    tpu.vector_store %arg5[%c1_15, %c2, %c0_16], %10 {strides = array<i32>} : memref<18x24x384xbf16, #tpu.memory_space<vmem>>, vector<16x16x128xbf16>,
    %c1_17 = arith.constant 1 : index
    %c1_18 = arith.constant 1 : index
    %c128 = arith.constant 128 : index
    %12 = vector.load %arg5[%c1_17, %c1_18, %c128] : memref<18x24x384xbf16, #tpu.memory_space<vmem>>, vector<16x16x128xbf16>
    tpu.vector_store %arg5[%c1_17, %c1_18, %c128], %10 {strides = array<i32>} : memref<18x24x384xbf16, #tpu.memory_space<vmem>>, vector<16x16x128xbf16>,
    %c1_19 = arith.constant 1 : index
    %c0_20 = arith.constant 0 : index
    %c256 = arith.constant 256 : index
    %13 = vector.load %arg5[%c1_19, %c0_20, %c256] : memref<18x24x384xbf16, #tpu.memory_space<vmem>>, vector<16x16x128xbf16>
    tpu.vector_store %arg5[%c1_19, %c0_20, %c256], %10 {strides = array<i32>} : memref<18x24x384xbf16, #tpu.memory_space<vmem>>, vector<16x16x128xbf16>,
    %c0_21 = arith.constant 0 : index
    %c0_22 = arith.constant 0 : index
    %c0_23 = arith.constant 0 : index
    %14 = vector.load %arg5[%c0_21, %c0_22, %c0_23] : memref<18x24x384xbf16, #tpu.memory_space<vmem>>, vector<16x24x384xbf16>
    %15 = vector.shape_cast %14 : vector<16x24x384xbf16> to vector<384x384xbf16>
    %c0_24 = arith.constant 0 : index
    %c0_25 = arith.constant 0 : index
    %c0_26 = arith.constant 0 : index
    %16 = vector.load %arg2[%c0_24, %c0_25, %c0_26] : memref<3x384x128xbf16, #tpu.memory_space<vmem>>, vector<1x384x128xbf16>
    %17 = vector.shape_cast %16 : vector<1x384x128xbf16> to vector<384x128xbf16>
    %cst_27 = arith.constant dense<0.000000e+00> : vector<384x128xf32>
    %18 = tpu.matmul %15, %17, %cst_27 {dimension_numbers = #tpu.dot_dimension_numbers<[1], [0], [0], [1], [0, 0, 1, 1], [], []>} : vector<384x384xbf16>, vector<384x128xbf16>, vector<384x128xf32> -> vector<384x128xf32>
    %c1_28 = arith.constant 1 : index
    %c0_29 = arith.constant 0 : index
    %c0_30 = arith.constant 0 : index
    %19 = vector.load %arg5[%c1_28, %c0_29, %c0_30] : memref<18x24x384xbf16, #tpu.memory_space<vmem>>, vector<16x24x384xbf16>
    %20 = vector.shape_cast %19 : vector<16x24x384xbf16> to vector<384x384xbf16>
    %c1_31 = arith.constant 1 : index
    %c0_32 = arith.constant 0 : index
    %c0_33 = arith.constant 0 : index
    %21 = vector.load %arg2[%c1_31, %c0_32, %c0_33] : memref<3x384x128xbf16, #tpu.memory_space<vmem>>, vector<1x384x128xbf16>
    %22 = vector.shape_cast %21 : vector<1x384x128xbf16> to vector<384x128xbf16>
    %cst_34 = arith.constant dense<0.000000e+00> : vector<384x128xf32>
    %23 = tpu.matmul %20, %22, %cst_34 {dimension_numbers = #tpu.dot_dimension_numbers<[1], [0], [0], [1], [0, 0, 1, 1], [], []>} : vector<384x384xbf16>, vector<384x128xbf16>, vector<384x128xf32> -> vector<384x128xf32>
    %24 = arith.addf %18, %23 : vector<384x128xf32>
    %c2_35 = arith.constant 2 : index
    %c0_36 = arith.constant 0 : index
    %c0_37 = arith.constant 0 : index
    %25 = vector.load %arg5[%c2_35, %c0_36, %c0_37] : memref<18x24x384xbf16, #tpu.memory_space<vmem>>, vector<16x24x384xbf16>
    %26 = vector.shape_cast %25 : vector<16x24x384xbf16> to vector<384x384xbf16>
    %c2_38 = arith.constant 2 : index
    %c0_39 = arith.constant 0 : index
    %c0_40 = arith.constant 0 : index
    %27 = vector.load %arg2[%c2_38, %c0_39, %c0_40] : memref<3x384x128xbf16, #tpu.memory_space<vmem>>, vector<1x384x128xbf16>
    %28 = vector.shape_cast %27 : vector<1x384x128xbf16> to vector<384x128xbf16>
    %cst_41 = arith.constant dense<0.000000e+00> : vector<384x128xf32>
    %29 = tpu.matmul %26, %28, %cst_41 {dimension_numbers = #tpu.dot_dimension_numbers<[1], [0], [0], [1], [0, 0, 1, 1], [], []>} : vector<384x384xbf16>, vector<384x128xbf16>, vector<384x128xf32> -> vector<384x128xf32>
    %30 = arith.addf %24, %29 : vector<384x128xf32>
    %31 = vector.shape_cast %30 : vector<384x128xf32> to vector<16x24x128xf32>
    %32 = vector.extract_strided_slice %31 {offsets = [0, 1, 0], sizes = [16, 16, 128], strides = [1, 1, 1]} : vector<16x24x128xf32> to vector<16x16x128xf32>
    %cst_42 = arith.constant 0.000000e+00 : f32
    %33 = vector.broadcast %cst_42 : f32 to vector<16x16x128xf32>
    %34 = arith.maximumf %32, %33 : vector<16x16x128xf32>
    %35 = arith.truncf %34 : vector<16x16x128xf32> to vector<16x16x128xbf16>
    %c1_43 = arith.constant 1 : index
    %c2_44 = arith.constant 2 : index
    %c0_45 = arith.constant 0 : index
    %36 = vector.load %arg5[%c1_43, %c2_44, %c0_45] : memref<18x24x384xbf16, #tpu.memory_space<vmem>>, vector<16x16x128xbf16>
    tpu.vector_store %arg5[%c1_43, %c2_44, %c0_45], %35 {strides = array<i32>} : memref<18x24x384xbf16, #tpu.memory_space<vmem>>, vector<16x16x128xbf16>,
    %c1_46 = arith.constant 1 : index
    %c1_47 = arith.constant 1 : index
    %c128_48 = arith.constant 128 : index
    %37 = vector.load %arg5[%c1_46, %c1_47, %c128_48] : memref<18x24x384xbf16, #tpu.memory_space<vmem>>, vector<16x16x128xbf16>
    tpu.vector_store %arg5[%c1_46, %c1_47, %c128_48], %35 {strides = array<i32>} : memref<18x24x384xbf16, #tpu.memory_space<vmem>>, vector<16x16x128xbf16>,
    %c1_49 = arith.constant 1 : index
    %c0_50 = arith.constant 0 : index
    %c256_51 = arith.constant 256 : index
    %38 = vector.load %arg5[%c1_49, %c0_50, %c256_51] : memref<18x24x384xbf16, #tpu.memory_space<vmem>>, vector<16x16x128xbf16>
    tpu.vector_store %arg5[%c1_49, %c0_50, %c256_51], %35 {strides = array<i32>} : memref<18x24x384xbf16, #tpu.memory_space<vmem>>, vector<16x16x128xbf16>,
    %c0_52 = arith.constant 0 : index
    %c0_53 = arith.constant 0 : index
    %c0_54 = arith.constant 0 : index
    %39 = vector.load %arg5[%c0_52, %c0_53, %c0_54] : memref<18x24x384xbf16, #tpu.memory_space<vmem>>, vector<16x24x384xbf16>
    %40 = vector.shape_cast %39 : vector<16x24x384xbf16> to vector<384x384xbf16>
    %c0_55 = arith.constant 0 : index
    %c0_56 = arith.constant 0 : index
    %c0_57 = arith.constant 0 : index
    %41 = vector.load %arg3[%c0_55, %c0_56, %c0_57] : memref<3x384x128xbf16, #tpu.memory_space<vmem>>, vector<1x384x128xbf16>
    %42 = vector.shape_cast %41 : vector<1x384x128xbf16> to vector<384x128xbf16>
    %cst_58 = arith.constant dense<0.000000e+00> : vector<384x128xf32>
    %43 = tpu.matmul %40, %42, %cst_58 {dimension_numbers = #tpu.dot_dimension_numbers<[1], [0], [0], [1], [0, 0, 1, 1], [], []>} : vector<384x384xbf16>, vector<384x128xbf16>, vector<384x128xf32> -> vector<384x128xf32>
    %c1_59 = arith.constant 1 : index
    %c0_60 = arith.constant 0 : index
    %c0_61 = arith.constant 0 : index
    %44 = vector.load %arg5[%c1_59, %c0_60, %c0_61] : memref<18x24x384xbf16, #tpu.memory_space<vmem>>, vector<16x24x384xbf16>
    %45 = vector.shape_cast %44 : vector<16x24x384xbf16> to vector<384x384xbf16>
    %c1_62 = arith.constant 1 : index
    %c0_63 = arith.constant 0 : index
    %c0_64 = arith.constant 0 : index
    %46 = vector.load %arg3[%c1_62, %c0_63, %c0_64] : memref<3x384x128xbf16, #tpu.memory_space<vmem>>, vector<1x384x128xbf16>
    %47 = vector.shape_cast %46 : vector<1x384x128xbf16> to vector<384x128xbf16>
    %cst_65 = arith.constant dense<0.000000e+00> : vector<384x128xf32>
    %48 = tpu.matmul %45, %47, %cst_65 {dimension_numbers = #tpu.dot_dimension_numbers<[1], [0], [0], [1], [0, 0, 1, 1], [], []>} : vector<384x384xbf16>, vector<384x128xbf16>, vector<384x128xf32> -> vector<384x128xf32>
    %49 = arith.addf %43, %48 : vector<384x128xf32>
    %c2_66 = arith.constant 2 : index
    %c0_67 = arith.constant 0 : index
    %c0_68 = arith.constant 0 : index
    %50 = vector.load %arg5[%c2_66, %c0_67, %c0_68] : memref<18x24x384xbf16, #tpu.memory_space<vmem>>, vector<16x24x384xbf16>
    %51 = vector.shape_cast %50 : vector<16x24x384xbf16> to vector<384x384xbf16>
    %c2_69 = arith.constant 2 : index
    %c0_70 = arith.constant 0 : index
    %c0_71 = arith.constant 0 : index
    %52 = vector.load %arg3[%c2_69, %c0_70, %c0_71] : memref<3x384x128xbf16, #tpu.memory_space<vmem>>, vector<1x384x128xbf16>
    %53 = vector.shape_cast %52 : vector<1x384x128xbf16> to vector<384x128xbf16>
    %cst_72 = arith.constant dense<0.000000e+00> : vector<384x128xf32>
    %54 = tpu.matmul %51, %53, %cst_72 {dimension_numbers = #tpu.dot_dimension_numbers<[1], [0], [0], [1], [0, 0, 1, 1], [], []>} : vector<384x384xbf16>, vector<384x128xbf16>, vector<384x128xf32> -> vector<384x128xf32>
    %55 = arith.addf %49, %54 : vector<384x128xf32>
    %56 = vector.shape_cast %55 : vector<384x128xf32> to vector<16x24x128xf32>
    %57 = vector.extract_strided_slice %56 {offsets = [0, 1, 0], sizes = [16, 16, 128], strides = [1, 1, 1]} : vector<16x24x128xf32> to vector<16x16x128xf32>
    %58 = arith.addf %57, %9 : vector<16x16x128xf32>
    %cst_73 = arith.constant 0.000000e+00 : f32
    %59 = vector.broadcast %cst_73 : f32 to vector<16x16x128xf32>
    %60 = arith.maximumf %58, %59 : vector<16x16x128xf32>
    %c0_74 = arith.constant 0 : index
    %c0_75 = arith.constant 0 : index
    %c0_76 = arith.constant 0 : index
    %c0_77 = arith.constant 0 : index
    %61 = vector.load %arg4[%c0_74, %c0_75, %c0_76, %c0_77] : memref<1x16x16x128xf32, #tpu.memory_space<vmem>>, vector<1x16x16x128xf32>
    %62 = vector.shape_cast %61 : vector<1x16x16x128xf32> to vector<16x16x128xf32>
    %63 = vector.shape_cast %60 : vector<16x16x128xf32> to vector<1x16x16x128xf32>
    tpu.vector_store %arg4[%c0_74, %c0_75, %c0_76, %c0_77], %63 {strides = array<i32>} : memref<1x16x16x128xf32, #tpu.memory_space<vmem>>, vector<1x16x16x128xf32>,
    return
  }
  func.func @transform_0(%arg0: i32) -> (i32, i32, i32, i32) {
    %c0_i32 = arith.constant 0 : i32
    %c0_i32_0 = arith.constant 0 : i32
    %c0_i32_1 = arith.constant 0 : i32
    %c0_i32_2 = arith.constant 0 : i32
    return %arg0, %c0_i32, %c0_i32_0, %c0_i32_1 : i32, i32, i32, i32
  }
  func.func @transform_1(%arg0: i32) -> (i32, i32, i32) {
    %c0_i32 = arith.constant 0 : i32
    %c0_i32_0 = arith.constant 0 : i32
    %c0_i32_1 = arith.constant 0 : i32
    %c0_i32_2 = arith.constant 0 : i32
    return %c0_i32, %c0_i32_0, %c0_i32_1 : i32, i32, i32
  }
  func.func @transform_2(%arg0: i32) -> (i32, i32, i32) {
    %c0_i32 = arith.constant 0 : i32
    %c0_i32_0 = arith.constant 0 : i32
    %c0_i32_1 = arith.constant 0 : i32
    %c0_i32_2 = arith.constant 0 : i32
    return %c0_i32, %c0_i32_0, %c0_i32_1 : i32, i32, i32
  }
  func.func @transform_3(%arg0: i32) -> (i32, i32, i32, i32) {
    %c0_i32 = arith.constant 0 : i32
    %c0_i32_0 = arith.constant 0 : i32
    %c0_i32_1 = arith.constant 0 : i32
    %c0_i32_2 = arith.constant 0 : i32
    return %arg0, %c0_i32, %c0_i32_0, %c0_i32_1 : i32, i32, i32, i32
  }
}

</mosaic_0001>

<llo_original>
// kernel: resblock_nchw.1
$region0: #{resblock_nchw.1}
  #allocation0 [shape = 'u32[]', space=smem, size = 0x4, offset = 0x4, fixed_abs, tag = 'smem constant byte address 0x4 - core index']
  #allocation1 [shape = 'u32[144,128]{1,0:T(1,128)}', space=vmem, size = 0x12000, scoped, tag = 'internal scratch']
  #allocation2 [shape = 'bf16[18,24,384]{2,1,0:T(8,128)(2,1)}', space=vmem, size = 0x51000, scoped, tag = 'scratch operand']
  %s0 = inlined_call_operand.vmem [shape: f32[2,16,16,128], index: 0, kind: input, shape index: {}]
  %s1 = inlined_call_operand.vmem [shape: bf16[3,384,128], index: 1, kind: input, shape index: {}]
  %s2 = inlined_call_operand.vmem [shape: bf16[3,384,128], index: 2, kind: input, shape index: {}]
  %s3 = inlined_call_operand.vmem [shape: f32[2,16,16,128], index: 3, kind: output, shape index: {}]
  %s4 = sld [smem:[#allocation0]]
  $region45: #{resblock_nchw.1} parent=0
    _
  %s6 = ssub.s32 1, %s4
  %s7 = scalar_select 0, %s6, %s4
  loop: start=0, step=1, limit=4
  $region2: #{resblock_nchw.1} parent=0 // loop_pre_header
    _
  $region3: #{resblock_nchw.1} parent=0 // loop_header
    %s9 = sphi 0, %s13
    %p10 = scmp.ge.s32.totalorder %s9, 4
    %s19 = sphi 0, %s21
    %s22 = sphi 0, %s19
    %s23 = sphi 0, %s22
    %s39 = sphi 0, %s23
    %s43 = sphi 0, %s43
    %s45 = sphi 0, %s43
    %s46 = sphi 0, %s45
    %s60 = sphi 0, %s46
    %s64 = sphi 0, %s64
    %s66 = sphi 0, %s64
    %s67 = sphi 0, %s66
    %s81 = sphi 0, %s67
    %s87 = sphi 0, %s89
    %s90 = sphi 0, %s87
    %s91 = sphi 0, %s90
    %s107 = sphi 0, %s91
  $region4: #{resblock_nchw.1} parent=0 // loop_header_branch
    %12 = sbr.rel (%p10) target = $region8
  $region5: #{resblock_nchw.1} parent=0 // loop_body
    %s14 = ssub.s32 %s9, 1
    %s15 = ssub.s32 %s9, 2
    %s16 = sadd.s32 %s9, 1
    %s17 = ssub.s32 %s9, %s16
    %p18 = scmp.eq.s32.totalorder %s17, 0
    %s20 = sadd.s32 %s19, 1
    %s21 = scalar_select %p18, %s19, %s20
    %p24 = pneg %p18
    %p25 = scmp.eq.s32.totalorder %s9, 1
    %p26 = por %p24, %p25
    %p27 = scmp.ne.s32.totalorder %s19, %s22
    %p28 = scmp.eq.s32.totalorder %s9, 0
    %p29 = por %p27, %p28
    %p30 = scmp.ne.s32.totalorder %s19, %s22
    %p31 = scmp.eq.s32.totalorder %s14, 1
    %p32 = por %p30, %p31
    %p33 = scmp.ne.s32.totalorder %s22, %s23
    %p34 = scmp.eq.s32.totalorder %s14, 0
    %p35 = por %p33, %p34
    %p36 = scmp.ne.s32.totalorder %s22, %s23
    %p37 = scmp.eq.s32.totalorder %s15, 1
    %p38 = por %p36, %p37
    %p40 = scmp.ne.s32.totalorder %s23, %s39
    %p41 = scmp.eq.s32.totalorder %s15, 0
    %p42 = por %p40, %p41
    %s44 = sadd.s32 %s43, 1
    %p47 = scmp.eq.s32.totalorder %s9, 1
    %p48 = scmp.ne.s32.totalorder %s43, %s45
    %p49 = scmp.eq.s32.totalorder %s9, 0
    %p50 = por %p48, %p49
    %p51 = scmp.ne.s32.totalorder %s43, %s45
    %p52 = scmp.eq.s32.totalorder %s14, 1
    %p53 = por %p51, %p52
    %p54 = scmp.ne.s32.totalorder %s45, %s46
    %p55 = scmp.eq.s32.totalorder %s14, 0
    %p56 = por %p54, %p55
    %p57 = scmp.ne.s32.totalorder %s45, %s46
    %p58 = scmp.eq.s32.totalorder %s15, 1
    %p59 = por %p57, %p58
    %p61 = scmp.ne.s32.totalorder %s46, %s60
    %p62 = scmp.eq.s32.totalorder %s15, 0
    %p63 = por %p61, %p62
    %s65 = sadd.s32 %s64, 1
    %p68 = scmp.eq.s32.totalorder %s9, 1
    %p69 = scmp.ne.s32.totalorder %s64, %s66
    %p70 = scmp.eq.s32.totalorder %s9, 0
    %p71 = por %p69, %p70
    %p72 = scmp.ne.s32.totalorder %s64, %s66
    %p73 = scmp.eq.s32.totalorder %s14, 1
    %p74 = por %p72, %p73
    %p75 = scmp.ne.s32.totalorder %s66, %s67
    %p76 = scmp.eq.s32.totalorder %s14, 0
    %p77 = por %p75, %p76
    %p78 = scmp.ne.s32.totalorder %s66, %s67
    %p79 = scmp.eq.s32.totalorder %s15, 1
    %p80 = por %p78, %p79
    %p82 = scmp.ne.s32.totalorder %s67, %s81
    %p83 = scmp.eq.s32.totalorder %s15, 0
    %p84 = por %p82, %p83
    %s85 = ssub.s32 %s9, %s16
    %p86 = scmp.eq.s32.totalorder %s85, 0
    %s88 = sadd.s32 %s87, 1
    %s89 = scalar_select %p86, %s87, %s88
    %p92 = pneg %p86
    %p93 = scmp.eq.s32.totalorder %s9, 1
    %p94 = por %p92, %p93
    %p95 = scmp.ne.s32.totalorder %s87, %s90
    %p96 = scmp.eq.s32.totalorder %s9, 0
    %p97 = por %p95, %p96
    %p98 = scmp.ne.s32.totalorder %s87, %s90
    %p99 = scmp.eq.s32.totalorder %s14, 1
    %p100 = por %p98, %p99
    %p101 = scmp.ne.s32.totalorder %s90, %s91
    %p102 = scmp.eq.s32.totalorder %s14, 0
    %p103 = por %p101, %p102
    %p104 = scmp.ne.s32.totalorder %s90, %s91
    %p105 = scmp.eq.s32.totalorder %s15, 1
    %p106 = por %p104, %p105
    %p108 = scmp.ne.s32.totalorder %s91, %s107
    %p109 = scmp.eq.s32.totalorder %s15, 0
    %p110 = por %p108, %p109
    %p111 = scmp.le.s32.totalorder 1, %s9
    %p112 = scmp.lt.s32.totalorder %s9, 3
    %p113 = pnand %p111, %p112
    %p114 = pneg %p113
    // Predicated region
    $region9: #{resblock_nchw.1} parent=5 // pred_check
      _
    $region10: #{resblock_nchw.1} parent=5 // pred_check_branch
      %116 = sbr.rel (%p113) target = $region12
    $region11: #{resblock_nchw.1} parent=5 // pred_region
      %s117 = ssub.s32 %s9, 1
      // Predicated region
      $region13: #{resblock_nchw.1} parent=11 // pred_check
        %p118 = pneg %p56
      $region14: #{resblock_nchw.1} parent=11 // pred_check_branch
        %120 = sbr.rel (%p118) target = $region16
      $region15: #{resblock_nchw.1} parent=11 // pred_region
        _
      $region16: #{resblock_nchw.1} parent=11 // pred_fallthru
        _
      // Predicated region
      $region17: #{resblock_nchw.1} parent=11 // pred_check
        %p121 = pneg %p77
      $region18: #{resblock_nchw.1} parent=11 // pred_check_branch
        %123 = sbr.rel (%p121) target = $region20
      $region19: #{resblock_nchw.1} parent=11 // pred_region
        _
      $region20: #{resblock_nchw.1} parent=11 // pred_fallthru
        _
    $region12: #{resblock_nchw.1} parent=5 // pred_fallthru
      _
    %p124 = scmp.lt.s32.totalorder %s9, 2
    // Predicated region
    $region21: #{resblock_nchw.1} parent=5 // pred_check
      %p125 = pneg %p124
    $region22: #{resblock_nchw.1} parent=5 // pred_check_branch
      %127 = sbr.rel (%p125) target = $region24
    $region23: #{resblock_nchw.1} parent=5 // pred_region
      // Predicated region
      $region25: #{resblock_nchw.1} parent=23 // pred_check
        %p128 = pneg %p29
      $region26: #{resblock_nchw.1} parent=23 // pred_check_branch
        %130 = sbr.rel (%p128) target = $region28
      $region27: #{resblock_nchw.1} parent=23 // pred_region
        %p131 = scmp.lt.s32.totalorder %s9, 1
        %s132 = scalar_select %p131, %s9, 1
        %s133 = smul.addr %s132, 32
        %s134 = smul.addr %s133, 8
        %s135 = scalar_lea.vmem %s0, %s134
      $region28: #{resblock_nchw.1} parent=23 // pred_fallthru
        _
    $region24: #{resblock_nchw.1} parent=5 // pred_fallthru
      _
    %p136 = scmp.le.s32.totalorder 1, %s9
    %p137 = scmp.lt.s32.totalorder %s9, 3
    %p138 = pnand %p136, %p137
    %p139 = pneg %p138
    // Predicated region
    $region29: #{resblock_nchw.1} parent=5 // pred_check
      _
    $region30: #{resblock_nchw.1} parent=5 // pred_check_branch
      %141 = sbr.rel (%p138) target = $region32
    $region31: #{resblock_nchw.1} parent=5 // pred_region
      %s142 = ssub.s32 %s9, 1
      %p143 = scmp.lt.s32.totalorder %s14, 1
      %s144 = scalar_select %p143, %s14, 1
      %s145 = smul.addr %s144, 32
      %s146 = smul.addr %s145, 8
      %s147 = scalar_lea.vmem %s0, %s146
      %p148 = pneg %p35
      %p149 = pneg %p32
      %p150 = pneg %p56
      %p151 = pneg %p53
      %p152 = pneg %p77
      %p153 = pneg %p74
      %p154 = pneg %p103
      %p155 = pneg %p100
      %p156 = scmp.lt.s32.totalorder %s14, 1
      %s157 = scalar_select %p156, %s14, 1
      %s158 = smul.addr %s157, 32
      %s159 = smul.addr %s158, 8
      %s160 = scalar_lea.vmem %s3, %s159
      %p161 = scmp.lt.s32.totalorder %s14, 1
      %s162 = scalar_select %p161, %s14, 1
      %s163 = smul.addr %s162, 32
      %s164 = smul.addr %s163, 8
      %s165 = scalar_lea.vmem %s0, %s164
      %p166 = scmp.lt.s32.totalorder %s14, 1
      %s167 = scalar_select %p166, %s14, 1
      %s168 = smul.addr %s167, 32
      %s169 = smul.addr %s168, 8
      %s170 = scalar_lea.vmem %s3, %s169
      %172 = vst [vmem:[#allocation2] sm:$0xff] 0
      %173 = vst [vmem:[#allocation2 + $0x8] sm:$0xf] 0
      %174 = vst [vmem:[#allocation2 + $0xc] sm:$0xff] 0
      %175 = vst [vmem:[#allocation2 + $0x14] sm:$0xf] 0
      %176 = vst [vmem:[#allocation2 + $0x18] sm:$0xff] 0
      %177 = vst [vmem:[#allocation2 + $0x20] sm:$0xf] 0
      %s178 = scalar_lea.vmem [#allocation2], 612
      %179 = vst [vmem:[%s178] sm:$0xff] 0
      %180 = vst [vmem:[%s178 + $0x8] sm:$0xf] 0
      %181 = vst [vmem:[%s178 + $0xc] sm:$0xff] 0
      %182 = vst [vmem:[%s178 + $0x14] sm:$0xf] 0
      %183 = vst [vmem:[%s178 + $0x18] sm:$0xff] 0
      %184 = vst [vmem:[%s178 + $0x20] sm:$0xf] 0
      %s185 = scalar_lea.vmem [#allocation2], 36
      %186 = vst [vmem:[%s185] sm:$0x11] 0
      %187 = vst [vmem:[%s185 + $0x8] sm:$0x1] 0
      %188 = vst [vmem:[%s185 + $0x24] sm:$0x11] 0
      %189 = vst [vmem:[%s185 + $0x2c] sm:$0x1] 0
      %190 = vst [vmem:[%s185 + $0x48] sm:$0x11] 0
      %191 = vst [vmem:[%s185 + $0x50] sm:$0x1] 0
      %192 = vst [vmem:[%s185 + $0x6c] sm:$0x11] 0
      %193 = vst [vmem:[%s185 + $0x74] sm:$0x1] 0
      %194 = vst [vmem:[%s185 + $0x90] sm:$0x11] 0
      %195 = vst [vmem:[%s185 + $0x98] sm:$0x1] 0
      %196 = vst [vmem:[%s185 + $0xb4] sm:$0x11] 0
      %197 = vst [vmem:[%s185 + $0xbc] sm:$0x1] 0
      %198 = vst [vmem:[%s185 + $0xd8] sm:$0x11] 0
      %199 = vst [vmem:[%s185 + $0xe0] sm:$0x1] 0
      %200 = vst [vmem:[%s185 + $0xfc] sm:$0x11] 0
      %201 = vst [vmem:[%s185 + $0x104] sm:$0x1] 0
      %202 = vst [vmem:[%s185 + $0x120] sm:$0x11] 0
      %203 = vst [vmem:[%s185 + $0x128] sm:$0x1] 0
      %204 = vst [vmem:[%s185 + $0x144] sm:$0x11] 0
      %205 = vst [vmem:[%s185 + $0x14c] sm:$0x1] 0
      %206 = vst [vmem:[%s185 + $0x168] sm:$0x11] 0
      %207 = vst [vmem:[%s185 + $0x170] sm:$0x1] 0
      %208 = vst [vmem:[%s185 + $0x18c] sm:$0x11] 0
      %209 = vst [vmem:[%s185 + $0x194] sm:$0x1] 0
      %210 = vst [vmem:[%s185 + $0x1b0] sm:$0x11] 0
      %211 = vst [vmem:[%s185 + $0x1b8] sm:$0x1] 0
      %212 = vst [vmem:[%s185 + $0x1d4] sm:$0x11] 0
      %213 = vst [vmem:[%s185 + $0x1dc] sm:$0x1] 0
      %214 = vst [vmem:[%s185 + $0x1f8] sm:$0x11] 0
      %215 = vst [vmem:[%s185 + $0x200] sm:$0x1] 0
      %216 = vst [vmem:[%s185 + $0x21c] sm:$0x11] 0
      %217 = vst [vmem:[%s185 + $0x224] sm:$0x1] 0
      %218 = vst [vmem:[%s185 + $0x18] sm:$0xff] 0
      %219 = vst [vmem:[%s185 + $0x20] sm:$0xf] 0
      %220 = vst [vmem:[%s185 + $0x3c] sm:$0xff] 0
      %221 = vst [vmem:[%s185 + $0x44] sm:$0xf] 0
      %222 = vst [vmem:[%s185 + $0x60] sm:$0xff] 0
      %223 = vst [vmem:[%s185 + $0x68] sm:$0xf] 0
      %224 = vst [vmem:[%s185 + $0x84] sm:$0xff] 0
      %225 = vst [vmem:[%s185 + $0x8c] sm:$0xf] 0
      %226 = vst [vmem:[%s185 + $0xa8] sm:$0xff] 0
      %227 = vst [vmem:[%s185 + $0xb0] sm:$0xf] 0
      %228 = vst [vmem:[%s185 + $0xcc] sm:$0xff] 0
      %229 = vst [vmem:[%s185 + $0xd4] sm:$0xf] 0
      %230 = vst [vmem:[%s185 + $0xf0] sm:$0xff] 0
      %231 = vst [vmem:[%s185 + $0xf8] sm:$0xf] 0
      %232 = vst [vmem:[%s185 + $0x114] sm:$0xff] 0
      %233 = vst [vmem:[%s185 + $0x11c] sm:$0xf] 0
      %234 = vst [vmem:[%s185 + $0x138] sm:$0xff] 0
      %235 = vst [vmem:[%s185 + $0x140] sm:$0xf] 0
      %236 = vst [vmem:[%s185 + $0x15c] sm:$0xff] 0
      %237 = vst [vmem:[%s185 + $0x164] sm:$0xf] 0
      %238 = vst [vmem:[%s185 + $0x180] sm:$0xff] 0
      %239 = vst [vmem:[%s185 + $0x188] sm:$0xf] 0
      %240 = vst [vmem:[%s185 + $0x1a4] sm:$0xff] 0
      %241 = vst [vmem:[%s185 + $0x1ac] sm:$0xf] 0
      %242 = vst [vmem:[%s185 + $0x1c8] sm:$0xff] 0
      %243 = vst [vmem:[%s185 + $0x1d0] sm:$0xf] 0
      %244 = vst [vmem:[%s185 + $0x1ec] sm:$0xff] 0
      %245 = vst [vmem:[%s185 + $0x1f4] sm:$0xf] 0
      %246 = vst [vmem:[%s185 + $0x210] sm:$0xff] 0
      %247 = vst [vmem:[%s185 + $0x218] sm:$0xf] 0
      %248 = vst [vmem:[%s185 + $0x234] sm:$0xff] 0
      %249 = vst [vmem:[%s185 + $0x23c] sm:$0xf] 0
      %v250 = vld [vmem:[%s165] sm:$0xff]
      %v251 = vld [vmem:[%s165 + $0x8] sm:$0xff]
      %v252 = vld [vmem:[%s165 + $0x10] sm:$0xff]
      %v253 = vld [vmem:[%s165 + $0x18] sm:$0xff]
      %v254 = vld [vmem:[%s165 + $0x20] sm:$0xff]
      %v255 = vld [vmem:[%s165 + $0x28] sm:$0xff]
      %v256 = vld [vmem:[%s165 + $0x30] sm:$0xff]
      %v257 = vld [vmem:[%s165 + $0x38] sm:$0xff]
      %v258 = vld [vmem:[%s165 + $0x40] sm:$0xff]
      %v259 = vld [vmem:[%s165 + $0x48] sm:$0xff]
      %v260 = vld [vmem:[%s165 + $0x50] sm:$0xff]
      %v261 = vld [vmem:[%s165 + $0x58] sm:$0xff]
      %v262 = vld [vmem:[%s165 + $0x60] sm:$0xff]
      %v263 = vld [vmem:[%s165 + $0x68] sm:$0xff]
      %v264 = vld [vmem:[%s165 + $0x70] sm:$0xff]
      %v265 = vld [vmem:[%s165 + $0x78] sm:$0xff]
      %v266 = vld [vmem:[%s165 + $0x80] sm:$0xff]
      %v267 = vld [vmem:[%s165 + $0x88] sm:$0xff]
      %v268 = vld [vmem:[%s165 + $0x90] sm:$0xff]
      %v269 = vld [vmem:[%s165 + $0x98] sm:$0xff]
      %v270 = vld [vmem:[%s165 + $0xa0] sm:$0xff]
      %v271 = vld [vmem:[%s165 + $0xa8] sm:$0xff]
      %v272 = vld [vmem:[%s165 + $0xb0] sm:$0xff]
      %v273 = vld [vmem:[%s165 + $0xb8] sm:$0xff]
      %v274 = vld [vmem:[%s165 + $0xc0] sm:$0xff]
      %v275 = vld [vmem:[%s165 + $0xc8] sm:$0xff]
      %v276 = vld [vmem:[%s165 + $0xd0] sm:$0xff]
      %v277 = vld [vmem:[%s165 + $0xd8] sm:$0xff]
      %v278 = vld [vmem:[%s165 + $0xe0] sm:$0xff]
      %v279 = vld [vmem:[%s165 + $0xe8] sm:$0xff]
      %v280 = vld [vmem:[%s165 + $0xf0] sm:$0xff]
      %v281 = vld [vmem:[%s165 + $0xf8] sm:$0xff]
      %v282 = vpack.c.bf16 %v251, %v250
      %v283 = vpack.c.bf16 %v253, %v252
      %v284 = vpack.c.bf16 %v255, %v254
      %v285 = vpack.c.bf16 %v257, %v256
      %v286 = vpack.c.bf16 %v259, %v258
      %v287 = vpack.c.bf16 %v261, %v260
      %v288 = vpack.c.bf16 %v263, %v262
      %v289 = vpack.c.bf16 %v265, %v264
      %v290 = vpack.c.bf16 %v267, %v266
      %v291 = vpack.c.bf16 %v269, %v268
      %v292 = vpack.c.bf16 %v271, %v270
      %v293 = vpack.c.bf16 %v273, %v272
      %v294 = vpack.c.bf16 %v275, %v274
      %v295 = vpack.c.bf16 %v277, %v276
      %v296 = vpack.c.bf16 %v279, %v278
      %v297 = vpack.c.bf16 %v281, %v280
      %v314 = vunpack.c.l.b16 %v282
      %v315 = vunpack.c.h.b16 %v282
      %v316 = vunpack.c.l.b16 %v283
      %v317 = vunpack.c.h.b16 %v283
      %v318 = vunpack.c.l.b16 %v284
      %v319 = vunpack.c.h.b16 %v284
      %v320 = vunpack.c.l.b16 %v285
      %v321 = vunpack.c.h.b16 %v285
      %v322 = vunpack.c.l.b16 %v286
      %v323 = vunpack.c.h.b16 %v286
      %v324 = vunpack.c.l.b16 %v287
      %v325 = vunpack.c.h.b16 %v287
      %v326 = vunpack.c.l.b16 %v288
      %v327 = vunpack.c.h.b16 %v288
      %v328 = vunpack.c.l.b16 %v289
      %v329 = vunpack.c.h.b16 %v289
      %v330 = vunpack.c.l.b16 %v290
      %v331 = vunpack.c.h.b16 %v290
      %v332 = vunpack.c.l.b16 %v291
      %v333 = vunpack.c.h.b16 %v291
      %v334 = vunpack.c.l.b16 %v292
      %v335 = vunpack.c.h.b16 %v292
      %v336 = vunpack.c.l.b16 %v293
      %v337 = vunpack.c.h.b16 %v293
      %v338 = vunpack.c.l.b16 %v294
      %v339 = vunpack.c.h.b16 %v294
      %v340 = vunpack.c.l.b16 %v295
      %v341 = vunpack.c.h.b16 %v295
      %v342 = vunpack.c.l.b16 %v296
      %v343 = vunpack.c.h.b16 %v296
      %v344 = vunpack.c.l.b16 %v297
      %v345 = vunpack.c.h.b16 %v297
      %v346 = vpack.c.b16 %v314, %v314
      %v347 = vpack.c.b16 %v315, %v315
      %v348 = vpack.c.b16 %v316, %v316
      %v349 = vpack.c.b16 %v317, %v317
      %v350 = vpack.c.b16 %v318, %v318
      %v351 = vpack.c.b16 %v319, %v319
      %v352 = vpack.c.b16 %v320, %v320
      %v353 = vpack.c.b16 %v321, %v321
      %v354 = vpack.c.b16 %v322, %v322
      %v355 = vpack.c.b16 %v323, %v323
      %v356 = vpack.c.b16 %v324, %v324
      %v357 = vpack.c.b16 %v325, %v325
      %v358 = vpack.c.b16 %v326, %v326
      %v359 = vpack.c.b16 %v327, %v327
      %v360 = vpack.c.b16 %v328, %v328
      %v361 = vpack.c.b16 %v329, %v329
      %v362 = vpack.c.b16 %v330, %v330
      %v363 = vpack.c.b16 %v331, %v331
      %v364 = vpack.c.b16 %v332, %v332
      %v365 = vpack.c.b16 %v333, %v333
      %v366 = vpack.c.b16 %v334, %v334
      %v367 = vpack.c.b16 %v335, %v335
      %v368 = vpack.c.b16 %v336, %v336
      %v369 = vpack.c.b16 %v337, %v337
      %v370 = vpack.c.b16 %v338, %v338
      %v371 = vpack.c.b16 %v339, %v339
      %v372 = vpack.c.b16 %v340, %v340
      %v373 = vpack.c.b16 %v341, %v341
      %v374 = vpack.c.b16 %v342, %v342
      %v375 = vpack.c.b16 %v343, %v343
      %v376 = vpack.c.b16 %v344, %v344
      %v377 = vpack.c.b16 %v345, %v345
      %vm378 = vcmask 1040384
      %vm379 = vcmask 1044484
      %vm380 = vmor %vm378, %vm379
      %v381 = vrot.slane %v346, 7
      %v382 = vrot.slane %v381, 4
      %v383 = vrot.slane %v347, 7
      %v384 = vsel %vm380, %v382, %v383
      %v385 = vrot.slane %v383, 4
      %v386 = vrot.slane %v348, 7
      %v387 = vrot.slane %v386, 4
      %v388 = vrot.slane %v349, 7
      %v389 = vsel %vm380, %v387, %v388
      %v390 = vrot.slane %v388, 4
      %v391 = vrot.slane %v350, 7
      %v392 = vrot.slane %v391, 4
      %v393 = vrot.slane %v351, 7
      %v394 = vsel %vm380, %v392, %v393
      %v395 = vrot.slane %v393, 4
      %v396 = vrot.slane %v352, 7
      %v397 = vrot.slane %v396, 4
      %v398 = vrot.slane %v353, 7
      %v399 = vsel %vm380, %v397, %v398
      %v400 = vrot.slane %v398, 4
      %v401 = vrot.slane %v354, 7
      %v402 = vrot.slane %v401, 4
      %v403 = vrot.slane %v355, 7
      %v404 = vsel %vm380, %v402, %v403
      %v405 = vrot.slane %v403, 4
      %v406 = vrot.slane %v356, 7
      %v407 = vrot.slane %v406, 4
      %v408 = vrot.slane %v357, 7
      %v409 = vsel %vm380, %v407, %v408
      %v410 = vrot.slane %v408, 4
      %v411 = vrot.slane %v358, 7
      %v412 = vrot.slane %v411, 4
      %v413 = vrot.slane %v359, 7
      %v414 = vsel %vm380, %v412, %v413
      %v415 = vrot.slane %v413, 4
      %v416 = vrot.slane %v360, 7
      %v417 = vrot.slane %v416, 4
      %v418 = vrot.slane %v361, 7
      %v419 = vsel %vm380, %v417, %v418
      %v420 = vrot.slane %v418, 4
      %v421 = vrot.slane %v362, 7
      %v422 = vrot.slane %v421, 4
      %v423 = vrot.slane %v363, 7
      %v424 = vsel %vm380, %v422, %v423
      %v425 = vrot.slane %v423, 4
      %v426 = vrot.slane %v364, 7
      %v427 = vrot.slane %v426, 4
      %v428 = vrot.slane %v365, 7
      %v429 = vsel %vm380, %v427, %v428
      %v430 = vrot.slane %v428, 4
      %v431 = vrot.slane %v366, 7
      %v432 = vrot.slane %v431, 4
      %v433 = vrot.slane %v367, 7
      %v434 = vsel %vm380, %v432, %v433
      %v435 = vrot.slane %v433, 4
      %v436 = vrot.slane %v368, 7
      %v437 = vrot.slane %v436, 4
      %v438 = vrot.slane %v369, 7
      %v439 = vsel %vm380, %v437, %v438
      %v440 = vrot.slane %v438, 4
      %v441 = vrot.slane %v370, 7
      %v442 = vrot.slane %v441, 4
      %v443 = vrot.slane %v371, 7
      %v444 = vsel %vm380, %v442, %v443
      %v445 = vrot.slane %v443, 4
      %v446 = vrot.slane %v372, 7
      %v447 = vrot.slane %v446, 4
      %v448 = vrot.slane %v373, 7
      %v449 = vsel %vm380, %v447, %v448
      %v450 = vrot.slane %v448, 4
      %v451 = vrot.slane %v374, 7
      %v452 = vrot.slane %v451, 4
      %v453 = vrot.slane %v375, 7
      %v454 = vsel %vm380, %v452, %v453
      %v455 = vrot.slane %v453, 4
      %v456 = vrot.slane %v376, 7
      %v457 = vrot.slane %v456, 4
      %v458 = vrot.slane %v377, 7
      %v459 = vsel %vm380, %v457, %v458
      %v460 = vrot.slane %v458, 4
      %509 = vst [vmem:[%s185] sm:$0xe] %v381
      %510 = vst [vmem:[%s185 + $0xc] sm:$0xf] %v384
      %511 = vst [vmem:[%s185 + $0x18] sm:$0x1] %v385
      %512 = vst [vmem:[%s185 + $0x24] sm:$0xe] %v386
      %513 = vst [vmem:[%s185 + $0x30] sm:$0xf] %v389
      %514 = vst [vmem:[%s185 + $0x3c] sm:$0x1] %v390
      %515 = vst [vmem:[%s185 + $0x48] sm:$0xe] %v391
      %516 = vst [vmem:[%s185 + $0x54] sm:$0xf] %v394
      %517 = vst [vmem:[%s185 + $0x60] sm:$0x1] %v395
      %518 = vst [vmem:[%s185 + $0x6c] sm:$0xe] %v396
      %519 = vst [vmem:[%s185 + $0x78] sm:$0xf] %v399
      %520 = vst [vmem:[%s185 + $0x84] sm:$0x1] %v400
      %521 = vst [vmem:[%s185 + $0x90] sm:$0xe] %v401
      %522 = vst [vmem:[%s185 + $0x9c] sm:$0xf] %v404
      %523 = vst [vmem:[%s185 + $0xa8] sm:$0x1] %v405
      %524 = vst [vmem:[%s185 + $0xb4] sm:$0xe] %v406
      %525 = vst [vmem:[%s185 + $0xc0] sm:$0xf] %v409
      %526 = vst [vmem:[%s185 + $0xcc] sm:$0x1] %v410
      %527 = vst [vmem:[%s185 + $0xd8] sm:$0xe] %v411
      %528 = vst [vmem:[%s185 + $0xe4] sm:$0xf] %v414
      %529 = vst [vmem:[%s185 + $0xf0] sm:$0x1] %v415
      %530 = vst [vmem:[%s185 + $0xfc] sm:$0xe] %v416
      %531 = vst [vmem:[%s185 + $0x108] sm:$0xf] %v419
      %532 = vst [vmem:[%s185 + $0x114] sm:$0x1] %v420
      %533 = vst [vmem:[%s185 + $0x120] sm:$0xe] %v421
      %534 = vst [vmem:[%s185 + $0x12c] sm:$0xf] %v424
      %535 = vst [vmem:[%s185 + $0x138] sm:$0x1] %v425
      %536 = vst [vmem:[%s185 + $0x144] sm:$0xe] %v426
      %537 = vst [vmem:[%s185 + $0x150] sm:$0xf] %v429
      %538 = vst [vmem:[%s185 + $0x15c] sm:$0x1] %v430
      %539 = vst [vmem:[%s185 + $0x168] sm:$0xe] %v431
      %540 = vst [vmem:[%s185 + $0x174] sm:$0xf] %v434
      %541 = vst [vmem:[%s185 + $0x180] sm:$0x1] %v435
      %542 = vst [vmem:[%s185 + $0x18c] sm:$0xe] %v436
      %543 = vst [vmem:[%s185 + $0x198] sm:$0xf] %v439
      %544 = vst [vmem:[%s185 + $0x1a4] sm:$0x1] %v440
      %545 = vst [vmem:[%s185 + $0x1b0] sm:$0xe] %v441
      %546 = vst [vmem:[%s185 + $0x1bc] sm:$0xf] %v444
      %547 = vst [vmem:[%s185 + $0x1c8] sm:$0x1] %v445
      %548 = vst [vmem:[%s185 + $0x1d4] sm:$0xe] %v446
      %549 = vst [vmem:[%s185 + $0x1e0] sm:$0xf] %v449
      %550 = vst [vmem:[%s185 + $0x1ec] sm:$0x1] %v450
      %551 = vst [vmem:[%s185 + $0x1f8] sm:$0xe] %v451
      %552 = vst [vmem:[%s185 + $0x204] sm:$0xf] %v454
      %553 = vst [vmem:[%s185 + $0x210] sm:$0x1] %v455
      %554 = vst [vmem:[%s185 + $0x21c] sm:$0xe] %v456
      %555 = vst [vmem:[%s185 + $0x228] sm:$0xf] %v459
      %556 = vst [vmem:[%s185 + $0x234] sm:$0x1] %v460
      %vm557 = vsmask.f32 256
      %vm558 = vsmask.f32 4368
      %vm559 = vmor %vm557, %vm558
      %v561 = vshrl.u32 %v346, 16
      %v563 = vrot.slane %v561, 7
      %v564 = vshll.u32 %v346, 16
      %v566 = vor.u32 %v563, %v564
      %v567 = vrot.slane %v563, 4
      %v569 = vshrl.u32 %v347, 16
      %v571 = vrot.slane %v569, 7
      %v572 = vshll.u32 %v347, 16
      %v574 = vor.u32 %v571, %v572
      %v575 = vsel %vm559, %v567, %v574
      %v576 = vrot.slane %v571, 4
      %v578 = vshrl.u32 %v348, 16
      %v580 = vrot.slane %v578, 7
      %v581 = vshll.u32 %v348, 16
      %v583 = vor.u32 %v580, %v581
      %v584 = vrot.slane %v580, 4
      %v586 = vshrl.u32 %v349, 16
      %v588 = vrot.slane %v586, 7
      %v589 = vshll.u32 %v349, 16
      %v591 = vor.u32 %v588, %v589
      %v592 = vsel %vm559, %v584, %v591
      %v593 = vrot.slane %v588, 4
      %v595 = vshrl.u32 %v350, 16
      %v597 = vrot.slane %v595, 7
      %v598 = vshll.u32 %v350, 16
      %v600 = vor.u32 %v597, %v598
      %v601 = vrot.slane %v597, 4
      %v603 = vshrl.u32 %v351, 16
      %v605 = vrot.slane %v603, 7
      %v606 = vshll.u32 %v351, 16
      %v608 = vor.u32 %v605, %v606
      %v609 = vsel %vm559, %v601, %v608
      %v610 = vrot.slane %v605, 4
      %v612 = vshrl.u32 %v352, 16
      %v614 = vrot.slane %v612, 7
      %v615 = vshll.u32 %v352, 16
      %v617 = vor.u32 %v614, %v615
      %v618 = vrot.slane %v614, 4
      %v620 = vshrl.u32 %v353, 16
      %v622 = vrot.slane %v620, 7
      %v623 = vshll.u32 %v353, 16
      %v625 = vor.u32 %v622, %v623
      %v626 = vsel %vm559, %v618, %v625
      %v627 = vrot.slane %v622, 4
      %v629 = vshrl.u32 %v354, 16
      %v631 = vrot.slane %v629, 7
      %v632 = vshll.u32 %v354, 16
      %v634 = vor.u32 %v631, %v632
      %v635 = vrot.slane %v631, 4
      %v637 = vshrl.u32 %v355, 16
      %v639 = vrot.slane %v637, 7
      %v640 = vshll.u32 %v355, 16
      %v642 = vor.u32 %v639, %v640
      %v643 = vsel %vm559, %v635, %v642
      %v644 = vrot.slane %v639, 4
      %v646 = vshrl.u32 %v356, 16
      %v648 = vrot.slane %v646, 7
      %v649 = vshll.u32 %v356, 16
      %v651 = vor.u32 %v648, %v649
      %v652 = vrot.slane %v648, 4
      %v654 = vshrl.u32 %v357, 16
      %v656 = vrot.slane %v654, 7
      %v657 = vshll.u32 %v357, 16
      %v659 = vor.u32 %v656, %v657
      %v660 = vsel %vm559, %v652, %v659
      %v661 = vrot.slane %v656, 4
      %v663 = vshrl.u32 %v358, 16
      %v665 = vrot.slane %v663, 7
      %v666 = vshll.u32 %v358, 16
      %v668 = vor.u32 %v665, %v666
      %v669 = vrot.slane %v665, 4
      %v671 = vshrl.u32 %v359, 16
      %v673 = vrot.slane %v671, 7
      %v674 = vshll.u32 %v359, 16
      %v676 = vor.u32 %v673, %v674
      %v677 = vsel %vm559, %v669, %v676
      %v678 = vrot.slane %v673, 4
      %v680 = vshrl.u32 %v360, 16
      %v682 = vrot.slane %v680, 7
      %v683 = vshll.u32 %v360, 16
      %v685 = vor.u32 %v682, %v683
      %v686 = vrot.slane %v682, 4
      %v688 = vshrl.u32 %v361, 16
      %v690 = vrot.slane %v688, 7
      %v691 = vshll.u32 %v361, 16
      %v693 = vor.u32 %v690, %v691
      %v694 = vsel %vm559, %v686, %v693
      %v695 = vrot.slane %v690, 4
      %v697 = vshrl.u32 %v362, 16
      %v699 = vrot.slane %v697, 7
      %v700 = vshll.u32 %v362, 16
      %v702 = vor.u32 %v699, %v700
      %v703 = vrot.slane %v699, 4
      %v705 = vshrl.u32 %v363, 16
      %v707 = vrot.slane %v705, 7
      %v708 = vshll.u32 %v363, 16
      %v710 = vor.u32 %v707, %v708
      %v711 = vsel %vm559, %v703, %v710
      %v712 = vrot.slane %v707, 4
      %v714 = vshrl.u32 %v364, 16
      %v716 = vrot.slane %v714, 7
      %v717 = vshll.u32 %v364, 16
      %v719 = vor.u32 %v716, %v717
      %v720 = vrot.slane %v716, 4
      %v722 = vshrl.u32 %v365, 16
      %v724 = vrot.slane %v722, 7
      %v725 = vshll.u32 %v365, 16
      %v727 = vor.u32 %v724, %v725
      %v728 = vsel %vm559, %v720, %v727
      %v729 = vrot.slane %v724, 4
      %v731 = vshrl.u32 %v366, 16
      %v733 = vrot.slane %v731, 7
      %v734 = vshll.u32 %v366, 16
      %v736 = vor.u32 %v733, %v734
      %v737 = vrot.slane %v733, 4
      %v739 = vshrl.u32 %v367, 16
      %v741 = vrot.slane %v739, 7
      %v742 = vshll.u32 %v367, 16
      %v744 = vor.u32 %v741, %v742
      %v745 = vsel %vm559, %v737, %v744
      %v746 = vrot.slane %v741, 4
      %v748 = vshrl.u32 %v368, 16
      %v750 = vrot.slane %v748, 7
      %v751 = vshll.u32 %v368, 16
      %v753 = vor.u32 %v750, %v751
      %v754 = vrot.slane %v750, 4
      %v756 = vshrl.u32 %v369, 16
      %v758 = vrot.slane %v756, 7
      %v759 = vshll.u32 %v369, 16
      %v761 = vor.u32 %v758, %v759
      %v762 = vsel %vm559, %v754, %v761
      %v763 = vrot.slane %v758, 4
      %v765 = vshrl.u32 %v370, 16
      %v767 = vrot.slane %v765, 7
      %v768 = vshll.u32 %v370, 16
      %v770 = vor.u32 %v767, %v768
      %v771 = vrot.slane %v767, 4
      %v773 = vshrl.u32 %v371, 16
      %v775 = vrot.slane %v773, 7
      %v776 = vshll.u32 %v371, 16
      %v778 = vor.u32 %v775, %v776
      %v779 = vsel %vm559, %v771, %v778
      %v780 = vrot.slane %v775, 4
      %v782 = vshrl.u32 %v372, 16
      %v784 = vrot.slane %v782, 7
      %v785 = vshll.u32 %v372, 16
      %v787 = vor.u32 %v784, %v785
      %v788 = vrot.slane %v784, 4
      %v790 = vshrl.u32 %v373, 16
      %v792 = vrot.slane %v790, 7
      %v793 = vshll.u32 %v373, 16
      %v795 = vor.u32 %v792, %v793
      %v796 = vsel %vm559, %v788, %v795
      %v797 = vrot.slane %v792, 4
      %v799 = vshrl.u32 %v374, 16
      %v801 = vrot.slane %v799, 7
      %v802 = vshll.u32 %v374, 16
      %v804 = vor.u32 %v801, %v802
      %v805 = vrot.slane %v801, 4
      %v807 = vshrl.u32 %v375, 16
      %v809 = vrot.slane %v807, 7
      %v810 = vshll.u32 %v375, 16
      %v812 = vor.u32 %v809, %v810
      %v813 = vsel %vm559, %v805, %v812
      %v814 = vrot.slane %v809, 4
      %v816 = vshrl.u32 %v376, 16
      %v818 = vrot.slane %v816, 7
      %v819 = vshll.u32 %v376, 16
      %v821 = vor.u32 %v818, %v819
      %v822 = vrot.slane %v818, 4
      %v824 = vshrl.u32 %v377, 16
      %v826 = vrot.slane %v824, 7
      %v827 = vshll.u32 %v377, 16
      %v829 = vor.u32 %v826, %v827
      %v830 = vsel %vm559, %v822, %v829
      %v831 = vrot.slane %v826, 4
      %vm880 = vcmask 1043456
      %vm881 = vsmask.f32 7938
      %vm882 = vmand %vm880, %vm881
      %v883 = vld [vmem:[%s185 + $0x4] sm:$0xf]
      %v884 = vsel %vm882, %v566, %v883
      %885 = vst [vmem:[%s185 + $0x4] sm:$0xf] %v884
      %886 = vst [vmem:[%s185 + $0x10] sm:$0xf] %v575
      %vm887 = vmand %vm378, %vm557
      %v888 = vld [vmem:[%s185 + $0x1c] sm:$0x1]
      %v889 = vsel %vm887, %v576, %v888
      %890 = vst [vmem:[%s185 + $0x1c] sm:$0x1] %v889
      %v891 = vld [vmem:[%s185 + $0x28] sm:$0xf]
      %v892 = vsel %vm882, %v583, %v891
      %893 = vst [vmem:[%s185 + $0x28] sm:$0xf] %v892
      %894 = vst [vmem:[%s185 + $0x34] sm:$0xf] %v592
      %v895 = vld [vmem:[%s185 + $0x40] sm:$0x1]
      %v896 = vsel %vm887, %v593, %v895
      %897 = vst [vmem:[%s185 + $0x40] sm:$0x1] %v896
      %v898 = vld [vmem:[%s185 + $0x4c] sm:$0xf]
      %v899 = vsel %vm882, %v600, %v898
      %900 = vst [vmem:[%s185 + $0x4c] sm:$0xf] %v899
      %901 = vst [vmem:[%s185 + $0x58] sm:$0xf] %v609
      %v902 = vld [vmem:[%s185 + $0x64] sm:$0x1]
      %v903 = vsel %vm887, %v610, %v902
      %904 = vst [vmem:[%s185 + $0x64] sm:$0x1] %v903
      %v905 = vld [vmem:[%s185 + $0x70] sm:$0xf]
      %v906 = vsel %vm882, %v617, %v905
      %907 = vst [vmem:[%s185 + $0x70] sm:$0xf] %v906
      %908 = vst [vmem:[%s185 + $0x7c] sm:$0xf] %v626
      %v909 = vld [vmem:[%s185 + $0x88] sm:$0x1]
      %v910 = vsel %vm887, %v627, %v909
      %911 = vst [vmem:[%s185 + $0x88] sm:$0x1] %v910
      %v912 = vld [vmem:[%s185 + $0x94] sm:$0xf]
      %v913 = vsel %vm882, %v634, %v912
      %914 = vst [vmem:[%s185 + $0x94] sm:$0xf] %v913
      %915 = vst [vmem:[%s185 + $0xa0] sm:$0xf] %v643
      %v916 = vld [vmem:[%s185 + $0xac] sm:$0x1]
      %v917 = vsel %vm887, %v644, %v916
      %918 = vst [vmem:[%s185 + $0xac] sm:$0x1] %v917
      %v919 = vld [vmem:[%s185 + $0xb8] sm:$0xf]
      %v920 = vsel %vm882, %v651, %v919
      %921 = vst [vmem:[%s185 + $0xb8] sm:$0xf] %v920
      %922 = vst [vmem:[%s185 + $0xc4] sm:$0xf] %v660
      %v923 = vld [vmem:[%s185 + $0xd0] sm:$0x1]
      %v924 = vsel %vm887, %v661, %v923
      %925 = vst [vmem:[%s185 + $0xd0] sm:$0x1] %v924
      %v926 = vld [vmem:[%s185 + $0xdc] sm:$0xf]
      %v927 = vsel %vm882, %v668, %v926
      %928 = vst [vmem:[%s185 + $0xdc] sm:$0xf] %v927
      %929 = vst [vmem:[%s185 + $0xe8] sm:$0xf] %v677
      %v930 = vld [vmem:[%s185 + $0xf4] sm:$0x1]
      %v931 = vsel %vm887, %v678, %v930
      %932 = vst [vmem:[%s185 + $0xf4] sm:$0x1] %v931
      %v933 = vld [vmem:[%s185 + $0x100] sm:$0xf]
      %v934 = vsel %vm882, %v685, %v933
      %935 = vst [vmem:[%s185 + $0x100] sm:$0xf] %v934
      %936 = vst [vmem:[%s185 + $0x10c] sm:$0xf] %v694
      %v937 = vld [vmem:[%s185 + $0x118] sm:$0x1]
      %v938 = vsel %vm887, %v695, %v937
      %939 = vst [vmem:[%s185 + $0x118] sm:$0x1] %v938
      %v940 = vld [vmem:[%s185 + $0x124] sm:$0xf]
      %v941 = vsel %vm882, %v702, %v940
      %942 = vst [vmem:[%s185 + $0x124] sm:$0xf] %v941
      %943 = vst [vmem:[%s185 + $0x130] sm:$0xf] %v711
      %v944 = vld [vmem:[%s185 + $0x13c] sm:$0x1]
      %v945 = vsel %vm887, %v712, %v944
      %946 = vst [vmem:[%s185 + $0x13c] sm:$0x1] %v945
      %v947 = vld [vmem:[%s185 + $0x148] sm:$0xf]
      %v948 = vsel %vm882, %v719, %v947
      %949 = vst [vmem:[%s185 + $0x148] sm:$0xf] %v948
      %950 = vst [vmem:[%s185 + $0x154] sm:$0xf] %v728
      %v951 = vld [vmem:[%s185 + $0x160] sm:$0x1]
      %v952 = vsel %vm887, %v729, %v951
      %953 = vst [vmem:[%s185 + $0x160] sm:$0x1] %v952
      %v954 = vld [vmem:[%s185 + $0x16c] sm:$0xf]
      %v955 = vsel %vm882, %v736, %v954
      %956 = vst [vmem:[%s185 + $0x16c] sm:$0xf] %v955
      %957 = vst [vmem:[%s185 + $0x178] sm:$0xf] %v745
      %v958 = vld [vmem:[%s185 + $0x184] sm:$0x1]
      %v959 = vsel %vm887, %v746, %v958
      %960 = vst [vmem:[%s185 + $0x184] sm:$0x1] %v959
      %v961 = vld [vmem:[%s185 + $0x190] sm:$0xf]
      %v962 = vsel %vm882, %v753, %v961
      %963 = vst [vmem:[%s185 + $0x190] sm:$0xf] %v962
      %964 = vst [vmem:[%s185 + $0x19c] sm:$0xf] %v762
      %v965 = vld [vmem:[%s185 + $0x1a8] sm:$0x1]
      %v966 = vsel %vm887, %v763, %v965
      %967 = vst [vmem:[%s185 + $0x1a8] sm:$0x1] %v966
      %v968 = vld [vmem:[%s185 + $0x1b4] sm:$0xf]
      %v969 = vsel %vm882, %v770, %v968
      %970 = vst [vmem:[%s185 + $0x1b4] sm:$0xf] %v969
      %971 = vst [vmem:[%s185 + $0x1c0] sm:$0xf] %v779
      %v972 = vld [vmem:[%s185 + $0x1cc] sm:$0x1]
      %v973 = vsel %vm887, %v780, %v972
      %974 = vst [vmem:[%s185 + $0x1cc] sm:$0x1] %v973
      %v975 = vld [vmem:[%s185 + $0x1d8] sm:$0xf]
      %v976 = vsel %vm882, %v787, %v975
      %977 = vst [vmem:[%s185 + $0x1d8] sm:$0xf] %v976
      %978 = vst [vmem:[%s185 + $0x1e4] sm:$0xf] %v796
      %v979 = vld [vmem:[%s185 + $0x1f0] sm:$0x1]
      %v980 = vsel %vm887, %v797, %v979
      %981 = vst [vmem:[%s185 + $0x1f0] sm:$0x1] %v980
      %v982 = vld [vmem:[%s185 + $0x1fc] sm:$0xf]
      %v983 = vsel %vm882, %v804, %v982
      %984 = vst [vmem:[%s185 + $0x1fc] sm:$0xf] %v983
      %985 = vst [vmem:[%s185 + $0x208] sm:$0xf] %v813
      %v986 = vld [vmem:[%s185 + $0x214] sm:$0x1]
      %v987 = vsel %vm887, %v814, %v986
      %988 = vst [vmem:[%s185 + $0x214] sm:$0x1] %v987
      %v989 = vld [vmem:[%s185 + $0x220] sm:$0xf]
      %v990 = vsel %vm882, %v821, %v989
      %991 = vst [vmem:[%s185 + $0x220] sm:$0xf] %v990
      %992 = vst [vmem:[%s185 + $0x22c] sm:$0xf] %v830
      %v993 = vld [vmem:[%s185 + $0x238] sm:$0x1]
      %v994 = vsel %vm887, %v831, %v993
      %995 = vst [vmem:[%s185 + $0x238] sm:$0x1] %v994
      %1028 = vst [vmem:[%s185 + $0x8] sm:$0xf] %v346
      %1029 = vst [vmem:[%s185 + $0x14] sm:$0xf] %v347
      %1030 = vst [vmem:[%s185 + $0x2c] sm:$0xf] %v348
      %1031 = vst [vmem:[%s185 + $0x38] sm:$0xf] %v349
      %1032 = vst [vmem:[%s185 + $0x50] sm:$0xf] %v350
      %1033 = vst [vmem:[%s185 + $0x5c] sm:$0xf] %v351
      %1034 = vst [vmem:[%s185 + $0x74] sm:$0xf] %v352
      %1035 = vst [vmem:[%s185 + $0x80] sm:$0xf] %v353
      %1036 = vst [vmem:[%s185 + $0x98] sm:$0xf] %v354
      %1037 = vst [vmem:[%s185 + $0xa4] sm:$0xf] %v355
      %1038 = vst [vmem:[%s185 + $0xbc] sm:$0xf] %v356
      %1039 = vst [vmem:[%s185 + $0xc8] sm:$0xf] %v357
      %1040 = vst [vmem:[%s185 + $0xe0] sm:$0xf] %v358
      %1041 = vst [vmem:[%s185 + $0xec] sm:$0xf] %v359
      %1042 = vst [vmem:[%s185 + $0x104] sm:$0xf] %v360
      %1043 = vst [vmem:[%s185 + $0x110] sm:$0xf] %v361
      %1044 = vst [vmem:[%s185 + $0x128] sm:$0xf] %v362
      %1045 = vst [vmem:[%s185 + $0x134] sm:$0xf] %v363
      %1046 = vst [vmem:[%s185 + $0x14c] sm:$0xf] %v364
      %1047 = vst [vmem:[%s185 + $0x158] sm:$0xf] %v365
      %1048 = vst [vmem:[%s185 + $0x170] sm:$0xf] %v366
      %1049 = vst [vmem:[%s185 + $0x17c] sm:$0xf] %v367
      %1050 = vst [vmem:[%s185 + $0x194] sm:$0xf] %v368
      %1051 = vst [vmem:[%s185 + $0x1a0] sm:$0xf] %v369
      %1052 = vst [vmem:[%s185 + $0x1b8] sm:$0xf] %v370
      %1053 = vst [vmem:[%s185 + $0x1c4] sm:$0xf] %v371
      %1054 = vst [vmem:[%s185 + $0x1dc] sm:$0xf] %v372
      %1055 = vst [vmem:[%s185 + $0x1e8] sm:$0xf] %v373
      %1056 = vst [vmem:[%s185 + $0x200] sm:$0xf] %v374
      %1057 = vst [vmem:[%s185 + $0x20c] sm:$0xf] %v375
      %1058 = vst [vmem:[%s185 + $0x224] sm:$0xf] %v376
      %1059 = vst [vmem:[%s185 + $0x230] sm:$0xf] %v377
      %v1060 = vld [vmem:[#allocation2] sm:$0xff]
      %v1061 = vld [vmem:[#allocation2 + $0x8] sm:$0xf]
      %v1062 = vld [vmem:[#allocation2 + $0xc] sm:$0xff]
      %v1063 = vld [vmem:[#allocation2 + $0x14] sm:$0xf]
      %v1064 = vld [vmem:[#allocation2 + $0x18] sm:$0xff]
      %v1065 = vld [vmem:[#allocation2 + $0x20] sm:$0xf]
      %v1066 = vld [vmem:[#allocation2 + $0x24] sm:$0xff]
      %v1067 = vld [vmem:[#allocation2 + $0x2c] sm:$0xf]
      %v1068 = vld [vmem:[#allocation2 + $0x30] sm:$0xff]
      %v1069 = vld [vmem:[#allocation2 + $0x38] sm:$0xf]
      %v1070 = vld [vmem:[#allocation2 + $0x3c] sm:$0xff]
      %v1071 = vld [vmem:[#allocation2 + $0x44] sm:$0xf]
      %v1072 = vld [vmem:[#allocation2 + $0x48] sm:$0xff]
      %v1073 = vld [vmem:[#allocation2 + $0x50] sm:$0xf]
      %v1074 = vld [vmem:[#allocation2 + $0x54] sm:$0xff]
      %v1075 = vld [vmem:[#allocation2 + $0x5c] sm:$0xf]
      %v1076 = vld [vmem:[#allocation2 + $0x60] sm:$0xff]
      %v1077 = vld [vmem:[#allocation2 + $0x68] sm:$0xf]
      %v1078 = vld [vmem:[#allocation2 + $0x6c] sm:$0xff]
      %v1079 = vld [vmem:[#allocation2 + $0x74] sm:$0xf]
      %v1080 = vld [vmem:[#allocation2 + $0x78] sm:$0xff]
      %v1081 = vld [vmem:[#allocation2 + $0x80] sm:$0xf]
      %v1082 = vld [vmem:[#allocation2 + $0x84] sm:$0xff]
      %v1083 = vld [vmem:[#allocation2 + $0x8c] sm:$0xf]
      %v1084 = vld [vmem:[#allocation2 + $0x90] sm:$0xff]
      %v1085 = vld [vmem:[#allocation2 + $0x98] sm:$0xf]
      %v1086 = vld [vmem:[#allocation2 + $0x9c] sm:$0xff]
      %v1087 = vld [vmem:[#allocation2 + $0xa4] sm:$0xf]
      %v1088 = vld [vmem:[#allocation2 + $0xa8] sm:$0xff]
      %v1089 = vld [vmem:[#allocation2 + $0xb0] sm:$0xf]
      %v1090 = vld [vmem:[#allocation2 + $0xb4] sm:$0xff]
      %v1091 = vld [vmem:[#allocation2 + $0xbc] sm:$0xf]
      %v1092 = vld [vmem:[#allocation2 + $0xc0] sm:$0xff]
      %v1093 = vld [vmem:[#allocation2 + $0xc8] sm:$0xf]
      %v1094 = vld [vmem:[#allocation2 + $0xcc] sm:$0xff]
      %v1095 = vld [vmem:[#allocation2 + $0xd4] sm:$0xf]
      %v1096 = vld [vmem:[#allocation2 + $0xd8] sm:$0xff]
      %v1097 = vld [vmem:[#allocation2 + $0xe0] sm:$0xf]
      %v1098 = vld [vmem:[#allocation2 + $0xe4] sm:$0xff]
      %v1099 = vld [vmem:[#allocation2 + $0xec] sm:$0xf]
      %v1100 = vld [vmem:[#allocation2 + $0xf0] sm:$0xff]
      %v1101 = vld [vmem:[#allocation2 + $0xf8] sm:$0xf]
      %v1102 = vld [vmem:[#allocation2 + $0xfc] sm:$0xff]
      %v1103 = vld [vmem:[#allocation2 + $0x104] sm:$0xf]
      %v1104 = vld [vmem:[#allocation2 + $0x108] sm:$0xff]
      %v1105 = vld [vmem:[#allocation2 + $0x110] sm:$0xf]
      %v1106 = vld [vmem:[#allocation2 + $0x114] sm:$0xff]
      %v1107 = vld [vmem:[#allocation2 + $0x11c] sm:$0xf]
      %v1108 = vld [vmem:[#allocation2 + $0x120] sm:$0xff]
      %v1109 = vld [vmem:[#allocation2 + $0x128] sm:$0xf]
      %v1110 = vld [vmem:[#allocation2 + $0x12c] sm:$0xff]
      %v1111 = vld [vmem:[#allocation2 + $0x134] sm:$0xf]
      %v1112 = vld [vmem:[#allocation2 + $0x138] sm:$0xff]
      %v1113 = vld [vmem:[#allocation2 + $0x140] sm:$0xf]
      %v1114 = vld [vmem:[#allocation2 + $0x144] sm:$0xff]
      %v1115 = vld [vmem:[#allocation2 + $0x14c] sm:$0xf]
      %v1116 = vld [vmem:[#allocation2 + $0x150] sm:$0xff]
      %v1117 = vld [vmem:[#allocation2 + $0x158] sm:$0xf]
      %v1118 = vld [vmem:[#allocation2 + $0x15c] sm:$0xff]
      %v1119 = vld [vmem:[#allocation2 + $0x164] sm:$0xf]
      %v1120 = vld [vmem:[#allocation2 + $0x168] sm:$0xff]
      %v1121 = vld [vmem:[#allocation2 + $0x170] sm:$0xf]
      %v1122 = vld [vmem:[#allocation2 + $0x174] sm:$0xff]
      %v1123 = vld [vmem:[#allocation2 + $0x17c] sm:$0xf]
      %v1124 = vld [vmem:[#allocation2 + $0x180] sm:$0xff]
      %v1125 = vld [vmem:[#allocation2 + $0x188] sm:$0xf]
      %v1126 = vld [vmem:[#allocation2 + $0x18c] sm:$0xff]
      %v1127 = vld [vmem:[#allocation2 + $0x194] sm:$0xf]
      %v1128 = vld [vmem:[#allocation2 + $0x198] sm:$0xff]
      %v1129 = vld [vmem:[#allocation2 + $0x1a0] sm:$0xf]
      %v1130 = vld [vmem:[#allocation2 + $0x1a4] sm:$0xff]
      %v1131 = vld [vmem:[#allocation2 + $0x1ac] sm:$0xf]
      %v1132 = vld [vmem:[#allocation2 + $0x1b0] sm:$0xff]
      %v1133 = vld [vmem:[#allocation2 + $0x1b8] sm:$0xf]
      %v1134 = vld [vmem:[#allocation2 + $0x1bc] sm:$0xff]
      %v1135 = vld [vmem:[#allocation2 + $0x1c4] sm:$0xf]
      %v1136 = vld [vmem:[#allocation2 + $0x1c8] sm:$0xff]
      %v1137 = vld [vmem:[#allocation2 + $0x1d0] sm:$0xf]
      %v1138 = vld [vmem:[#allocation2 + $0x1d4] sm:$0xff]
      %v1139 = vld [vmem:[#allocation2 + $0x1dc] sm:$0xf]
      %v1140 = vld [vmem:[#allocation2 + $0x1e0] sm:$0xff]
      %v1141 = vld [vmem:[#allocation2 + $0x1e8] sm:$0xf]
      %v1142 = vld [vmem:[#allocation2 + $0x1ec] sm:$0xff]
      %v1143 = vld [vmem:[#allocation2 + $0x1f4] sm:$0xf]
      %v1144 = vld [vmem:[#allocation2 + $0x1f8] sm:$0xff]
      %v1145 = vld [vmem:[#allocation2 + $0x200] sm:$0xf]
      %v1146 = vld [vmem:[#allocation2 + $0x204] sm:$0xff]
      %v1147 = vld [vmem:[#allocation2 + $0x20c] sm:$0xf]
      %v1148 = vld [vmem:[#allocation2 + $0x210] sm:$0xff]
      %v1149 = vld [vmem:[#allocation2 + $0x218] sm:$0xf]
      %v1150 = vld [vmem:[#allocation2 + $0x21c] sm:$0xff]
      %v1151 = vld [vmem:[#allocation2 + $0x224] sm:$0xf]
      %v1152 = vld [vmem:[#allocation2 + $0x228] sm:$0xff]
      %v1153 = vld [vmem:[#allocation2 + $0x230] sm:$0xf]
      %v1154 = vld [vmem:[#allocation2 + $0x234] sm:$0xff]
      %v1155 = vld [vmem:[#allocation2 + $0x23c] sm:$0xf]
      %v1156 = vld [vmem:[%s1] sm:$0xf]
      %v1157 = vld [vmem:[%s1 + $0x4] sm:$0xf]
      %v1158 = vld [vmem:[%s1 + $0x8] sm:$0xf]
      %v1159 = vld [vmem:[%s1 + $0xc] sm:$0xf]
      %v1160 = vld [vmem:[%s1 + $0x10] sm:$0xf]
      %v1161 = vld [vmem:[%s1 + $0x14] sm:$0xf]
      %v1162 = vld [vmem:[%s1 + $0x18] sm:$0xf]
      %v1163 = vld [vmem:[%s1 + $0x1c] sm:$0xf]
      %v1164 = vld [vmem:[%s1 + $0x20] sm:$0xf]
      %v1165 = vld [vmem:[%s1 + $0x24] sm:$0xf]
      %v1166 = vld [vmem:[%s1 + $0x28] sm:$0xf]
      %v1167 = vld [vmem:[%s1 + $0x2c] sm:$0xf]
      %v1168 = vld [vmem:[%s1 + $0x30] sm:$0xf]
      %v1169 = vld [vmem:[%s1 + $0x34] sm:$0xf]
      %v1170 = vld [vmem:[%s1 + $0x38] sm:$0xf]
      %v1171 = vld [vmem:[%s1 + $0x3c] sm:$0xf]
      %v1172 = vld [vmem:[%s1 + $0x40] sm:$0xf]
      %v1173 = vld [vmem:[%s1 + $0x44] sm:$0xf]
      %v1174 = vld [vmem:[%s1 + $0x48] sm:$0xf]
      %v1175 = vld [vmem:[%s1 + $0x4c] sm:$0xf]
      %v1176 = vld [vmem:[%s1 + $0x50] sm:$0xf]
      %v1177 = vld [vmem:[%s1 + $0x54] sm:$0xf]
      %v1178 = vld [vmem:[%s1 + $0x58] sm:$0xf]
      %v1179 = vld [vmem:[%s1 + $0x5c] sm:$0xf]
      %v1180 = vld [vmem:[%s1 + $0x60] sm:$0xf]
      %v1181 = vld [vmem:[%s1 + $0x64] sm:$0xf]
      %v1182 = vld [vmem:[%s1 + $0x68] sm:$0xf]
      %v1183 = vld [vmem:[%s1 + $0x6c] sm:$0xf]
      %v1184 = vld [vmem:[%s1 + $0x70] sm:$0xf]
      %v1185 = vld [vmem:[%s1 + $0x74] sm:$0xf]
      %v1186 = vld [vmem:[%s1 + $0x78] sm:$0xf]
      %v1187 = vld [vmem:[%s1 + $0x7c] sm:$0xf]
      %v1188 = vld [vmem:[%s1 + $0x80] sm:$0xf]
      %v1189 = vld [vmem:[%s1 + $0x84] sm:$0xf]
      %v1190 = vld [vmem:[%s1 + $0x88] sm:$0xf]
      %v1191 = vld [vmem:[%s1 + $0x8c] sm:$0xf]
      %v1192 = vld [vmem:[%s1 + $0x90] sm:$0xf]
      %v1193 = vld [vmem:[%s1 + $0x94] sm:$0xf]
      %v1194 = vld [vmem:[%s1 + $0x98] sm:$0xf]
      %v1195 = vld [vmem:[%s1 + $0x9c] sm:$0xf]
      %v1196 = vld [vmem:[%s1 + $0xa0] sm:$0xf]
      %v1197 = vld [vmem:[%s1 + $0xa4] sm:$0xf]
      %v1198 = vld [vmem:[%s1 + $0xa8] sm:$0xf]
      %v1199 = vld [vmem:[%s1 + $0xac] sm:$0xf]
      %v1200 = vld [vmem:[%s1 + $0xb0] sm:$0xf]
      %v1201 = vld [vmem:[%s1 + $0xb4] sm:$0xf]
      %v1202 = vld [vmem:[%s1 + $0xb8] sm:$0xf]
      %v1203 = vld [vmem:[%s1 + $0xbc] sm:$0xf]
      %v1204 = vld [vmem:[%s185] sm:$0xff]
      %v1205 = vld [vmem:[%s185 + $0x8] sm:$0xf]
      %v1206 = vld [vmem:[%s185 + $0xc] sm:$0xff]
      %v1207 = vld [vmem:[%s185 + $0x14] sm:$0xf]
      %v1208 = vld [vmem:[%s185 + $0x18] sm:$0xff]
      %v1209 = vld [vmem:[%s185 + $0x20] sm:$0xf]
      %v1210 = vld [vmem:[%s185 + $0x24] sm:$0xff]
      %v1211 = vld [vmem:[%s185 + $0x2c] sm:$0xf]
      %v1212 = vld [vmem:[%s185 + $0x30] sm:$0xff]
      %v1213 = vld [vmem:[%s185 + $0x38] sm:$0xf]
      %v1214 = vld [vmem:[%s185 + $0x3c] sm:$0xff]
      %v1215 = vld [vmem:[%s185 + $0x44] sm:$0xf]
      %v1216 = vld [vmem:[%s185 + $0x48] sm:$0xff]
      %v1217 = vld [vmem:[%s185 + $0x50] sm:$0xf]
      %v1218 = vld [vmem:[%s185 + $0x54] sm:$0xff]
      %v1219 = vld [vmem:[%s185 + $0x5c] sm:$0xf]
      %v1220 = vld [vmem:[%s185 + $0x60] sm:$0xff]
      %v1221 = vld [vmem:[%s185 + $0x68] sm:$0xf]
      %v1222 = vld [vmem:[%s185 + $0x6c] sm:$0xff]
      %v1223 = vld [vmem:[%s185 + $0x74] sm:$0xf]
      %v1224 = vld [vmem:[%s185 + $0x78] sm:$0xff]
      %v1225 = vld [vmem:[%s185 + $0x80] sm:$0xf]
      %v1226 = vld [vmem:[%s185 + $0x84] sm:$0xff]
      %v1227 = vld [vmem:[%s185 + $0x8c] sm:$0xf]
      %v1228 = vld [vmem:[%s185 + $0x90] sm:$0xff]
      %v1229 = vld [vmem:[%s185 + $0x98] sm:$0xf]
      %v1230 = vld [vmem:[%s185 + $0x9c] sm:$0xff]
      %v1231 = vld [vmem:[%s185 + $0xa4] sm:$0xf]
      %v1232 = vld [vmem:[%s185 + $0xa8] sm:$0xff]
      %v1233 = vld [vmem:[%s185 + $0xb0] sm:$0xf]
      %v1234 = vld [vmem:[%s185 + $0xb4] sm:$0xff]
      %v1235 = vld [vmem:[%s185 + $0xbc] sm:$0xf]
      %v1236 = vld [vmem:[%s185 + $0xc0] sm:$0xff]
      %v1237 = vld [vmem:[%s185 + $0xc8] sm:$0xf]
      %v1238 = vld [vmem:[%s185 + $0xcc] sm:$0xff]
      %v1239 = vld [vmem:[%s185 + $0xd4] sm:$0xf]
      %v1240 = vld [vmem:[%s185 + $0xd8] sm:$0xff]
      %v1241 = vld [vmem:[%s185 + $0xe0] sm:$0xf]
      %v1242 = vld [vmem:[%s185 + $0xe4] sm:$0xff]
      %v1243 = vld [vmem:[%s185 + $0xec] sm:$0xf]
      %v1244 = vld [vmem:[%s185 + $0xf0] sm:$0xff]
      %v1245 = vld [vmem:[%s185 + $0xf8] sm:$0xf]
      %v1246 = vld [vmem:[%s185 + $0xfc] sm:$0xff]
      %v1247 = vld [vmem:[%s185 + $0x104] sm:$0xf]
      %v1248 = vld [vmem:[%s185 + $0x108] sm:$0xff]
      %v1249 = vld [vmem:[%s185 + $0x110] sm:$0xf]
      %v1250 = vld [vmem:[%s185 + $0x114] sm:$0xff]
      %v1251 = vld [vmem:[%s185 + $0x11c] sm:$0xf]
      %v1252 = vld [vmem:[%s185 + $0x120] sm:$0xff]
      %v1253 = vld [vmem:[%s185 + $0x128] sm:$0xf]
      %v1254 = vld [vmem:[%s185 + $0x12c] sm:$0xff]
      %v1255 = vld [vmem:[%s185 + $0x134] sm:$0xf]
      %v1256 = vld [vmem:[%s185 + $0x138] sm:$0xff]
      %v1257 = vld [vmem:[%s185 + $0x140] sm:$0xf]
      %v1258 = vld [vmem:[%s185 + $0x144] sm:$0xff]
      %v1259 = vld [vmem:[%s185 + $0x14c] sm:$0xf]
      %v1260 = vld [vmem:[%s185 + $0x150] sm:$0xff]
      %v1261 = vld [vmem:[%s185 + $0x158] sm:$0xf]
      %v1262 = vld [vmem:[%s185 + $0x15c] sm:$0xff]
      %v1263 = vld [vmem:[%s185 + $0x164] sm:$0xf]
      %v1264 = vld [vmem:[%s185 + $0x168] sm:$0xff]
      %v1265 = vld [vmem:[%s185 + $0x170] sm:$0xf]
      %v1266 = vld [vmem:[%s185 + $0x174] sm:$0xff]
      %v1267 = vld [vmem:[%s185 + $0x17c] sm:$0xf]
      %v1268 = vld [vmem:[%s185 + $0x180] sm:$0xff]
      %v1269 = vld [vmem:[%s185 + $0x188] sm:$0xf]
      %v1270 = vld [vmem:[%s185 + $0x18c] sm:$0xff]
      %v1271 = vld [vmem:[%s185 + $0x194] sm:$0xf]
      %v1272 = vld [vmem:[%s185 + $0x198] sm:$0xff]
      %v1273 = vld [vmem:[%s185 + $0x1a0] sm:$0xf]
      %v1274 = vld [vmem:[%s185 + $0x1a4] sm:$0xff]
      %v1275 = vld [vmem:[%s185 + $0x1ac] sm:$0xf]
      %v1276 = vld [vmem:[%s185 + $0x1b0] sm:$0xff]
      %v1277 = vld [vmem:[%s185 + $0x1b8] sm:$0xf]
      %v1278 = vld [vmem:[%s185 + $0x1bc] sm:$0xff]
      %v1279 = vld [vmem:[%s185 + $0x1c4] sm:$0xf]
      %v1280 = vld [vmem:[%s185 + $0x1c8] sm:$0xff]
      %v1281 = vld [vmem:[%s185 + $0x1d0] sm:$0xf]
      %v1282 = vld [vmem:[%s185 + $0x1d4] sm:$0xff]
      %v1283 = vld [vmem:[%s185 + $0x1dc] sm:$0xf]
      %v1284 = vld [vmem:[%s185 + $0x1e0] sm:$0xff]
      %v1285 = vld [vmem:[%s185 + $0x1e8] sm:$0xf]
      %v1286 = vld [vmem:[%s185 + $0x1ec] sm:$0xff]
      %v1287 = vld [vmem:[%s185 + $0x1f4] sm:$0xf]
      %v1288 = vld [vmem:[%s185 + $0x1f8] sm:$0xff]
      %v1289 = vld [vmem:[%s185 + $0x200] sm:$0xf]
      %v1290 = vld [vmem:[%s185 + $0x204] sm:$0xff]
      %v1291 = vld [vmem:[%s185 + $0x20c] sm:$0xf]
      %v1292 = vld [vmem:[%s185 + $0x210] sm:$0xff]
      %v1293 = vld [vmem:[%s185 + $0x218] sm:$0xf]
      %v1294 = vld [vmem:[%s185 + $0x21c] sm:$0xff]
      %v1295 = vld [vmem:[%s185 + $0x224] sm:$0xf]
      %v1296 = vld [vmem:[%s185 + $0x228] sm:$0xff]
      %v1297 = vld [vmem:[%s185 + $0x230] sm:$0xf]
      %v1298 = vld [vmem:[%s185 + $0x234] sm:$0xff]
      %v1299 = vld [vmem:[%s185 + $0x23c] sm:$0xf]
      %s1300 = scalar_lea.vmem %s1, 192
      %v1301 = vld [vmem:[%s1300] sm:$0xf]
      %v1302 = vld [vmem:[%s1300 + $0x4] sm:$0xf]
      %v1303 = vld [vmem:[%s1300 + $0x8] sm:$0xf]
      %v1304 = vld [vmem:[%s1300 + $0xc] sm:$0xf]
      %v1305 = vld [vmem:[%s1300 + $0x10] sm:$0xf]
      %v1306 = vld [vmem:[%s1300 + $0x14] sm:$0xf]
      %v1307 = vld [vmem:[%s1300 + $0x18] sm:$0xf]
      %v1308 = vld [vmem:[%s1300 + $0x1c] sm:$0xf]
      %v1309 = vld [vmem:[%s1300 + $0x20] sm:$0xf]
      %v1310 = vld [vmem:[%s1300 + $0x24] sm:$0xf]
      %v1311 = vld [vmem:[%s1300 + $0x28] sm:$0xf]
      %v1312 = vld [vmem:[%s1300 + $0x2c] sm:$0xf]
      %v1313 = vld [vmem:[%s1300 + $0x30] sm:$0xf]
      %v1314 = vld [vmem:[%s1300 + $0x34] sm:$0xf]
      %v1315 = vld [vmem:[%s1300 + $0x38] sm:$0xf]
      %v1316 = vld [vmem:[%s1300 + $0x3c] sm:$0xf]
      %v1317 = vld [vmem:[%s1300 + $0x40] sm:$0xf]
      %v1318 = vld [vmem:[%s1300 + $0x44] sm:$0xf]
      %v1319 = vld [vmem:[%s1300 + $0x48] sm:$0xf]
      %v1320 = vld [vmem:[%s1300 + $0x4c] sm:$0xf]
      %v1321 = vld [vmem:[%s1300 + $0x50] sm:$0xf]
      %v1322 = vld [vmem:[%s1300 + $0x54] sm:$0xf]
      %v1323 = vld [vmem:[%s1300 + $0x58] sm:$0xf]
      %v1324 = vld [vmem:[%s1300 + $0x5c] sm:$0xf]
      %v1325 = vld [vmem:[%s1300 + $0x60] sm:$0xf]
      %v1326 = vld [vmem:[%s1300 + $0x64] sm:$0xf]
      %v1327 = vld [vmem:[%s1300 + $0x68] sm:$0xf]
      %v1328 = vld [vmem:[%s1300 + $0x6c] sm:$0xf]
      %v1329 = vld [vmem:[%s1300 + $0x70] sm:$0xf]
      %v1330 = vld [vmem:[%s1300 + $0x74] sm:$0xf]
      %v1331 = vld [vmem:[%s1300 + $0x78] sm:$0xf]
      %v1332 = vld [vmem:[%s1300 + $0x7c] sm:$0xf]
      %v1333 = vld [vmem:[%s1300 + $0x80] sm:$0xf]
      %v1334 = vld [vmem:[%s1300 + $0x84] sm:$0xf]
      %v1335 = vld [vmem:[%s1300 + $0x88] sm:$0xf]
      %v1336 = vld [vmem:[%s1300 + $0x8c] sm:$0xf]
      %v1337 = vld [vmem:[%s1300 + $0x90] sm:$0xf]
      %v1338 = vld [vmem:[%s1300 + $0x94] sm:$0xf]
      %v1339 = vld [vmem:[%s1300 + $0x98] sm:$0xf]
      %v1340 = vld [vmem:[%s1300 + $0x9c] sm:$0xf]
      %v1341 = vld [vmem:[%s1300 + $0xa0] sm:$0xf]
      %v1342 = vld [vmem:[%s1300 + $0xa4] sm:$0xf]
      %v1343 = vld [vmem:[%s1300 + $0xa8] sm:$0xf]
      %v1344 = vld [vmem:[%s1300 + $0xac] sm:$0xf]
      %v1345 = vld [vmem:[%s1300 + $0xb0] sm:$0xf]
      %v1346 = vld [vmem:[%s1300 + $0xb4] sm:$0xf]
      %v1347 = vld [vmem:[%s1300 + $0xb8] sm:$0xf]
      %v1348 = vld [vmem:[%s1300 + $0xbc] sm:$0xf]
      %v1445 = vunpack.c.l.b16 %v1204
      %v1446 = vunpack.c.h.b16 %v1204
      %v1447 = vunpack.c.l.b16 %v1205
      %v1448 = vunpack.c.l.b16 %v1206
      %v1449 = vunpack.c.h.b16 %v1206
      %v1450 = vunpack.c.l.b16 %v1207
      %v1451 = vunpack.c.l.b16 %v1208
      %v1452 = vunpack.c.h.b16 %v1208
      %v1453 = vunpack.c.l.b16 %v1209
      %v1454 = vunpack.c.l.b16 %v1210
      %v1455 = vunpack.c.h.b16 %v1210
      %v1456 = vunpack.c.l.b16 %v1211
      %v1457 = vunpack.c.l.b16 %v1212
      %v1458 = vunpack.c.h.b16 %v1212
      %v1459 = vunpack.c.l.b16 %v1213
      %v1460 = vunpack.c.l.b16 %v1214
      %v1461 = vunpack.c.h.b16 %v1214
      %v1462 = vunpack.c.l.b16 %v1215
      %v1463 = vunpack.c.l.b16 %v1216
      %v1464 = vunpack.c.h.b16 %v1216
      %v1465 = vunpack.c.l.b16 %v1217
      %v1466 = vunpack.c.l.b16 %v1218
      %v1467 = vunpack.c.h.b16 %v1218
      %v1468 = vunpack.c.l.b16 %v1219
      %v1469 = vunpack.c.l.b16 %v1220
      %v1470 = vunpack.c.h.b16 %v1220
      %v1471 = vunpack.c.l.b16 %v1221
      %v1472 = vunpack.c.l.b16 %v1222
      %v1473 = vunpack.c.h.b16 %v1222
      %v1474 = vunpack.c.l.b16 %v1223
      %v1475 = vunpack.c.l.b16 %v1224
      %v1476 = vunpack.c.h.b16 %v1224
      %v1477 = vunpack.c.l.b16 %v1225
      %v1478 = vunpack.c.l.b16 %v1226
      %v1479 = vunpack.c.h.b16 %v1226
      %v1480 = vunpack.c.l.b16 %v1227
      %v1481 = vunpack.c.l.b16 %v1228
      %v1482 = vunpack.c.h.b16 %v1228
      %v1483 = vunpack.c.l.b16 %v1229
      %v1484 = vunpack.c.l.b16 %v1230
      %v1485 = vunpack.c.h.b16 %v1230
      %v1486 = vunpack.c.l.b16 %v1231
      %v1487 = vunpack.c.l.b16 %v1232
      %v1488 = vunpack.c.h.b16 %v1232
      %v1489 = vunpack.c.l.b16 %v1233
      %v1490 = vunpack.c.l.b16 %v1234
      %v1491 = vunpack.c.h.b16 %v1234
      %v1492 = vunpack.c.l.b16 %v1235
      %v1493 = vunpack.c.l.b16 %v1236
      %v1494 = vunpack.c.h.b16 %v1236
      %v1495 = vunpack.c.l.b16 %v1237
      %v1496 = vunpack.c.l.b16 %v1238
      %v1497 = vunpack.c.h.b16 %v1238
      %v1498 = vunpack.c.l.b16 %v1239
      %v1499 = vunpack.c.l.b16 %v1240
      %v1500 = vunpack.c.h.b16 %v1240
      %v1501 = vunpack.c.l.b16 %v1241
      %v1502 = vunpack.c.l.b16 %v1242
      %v1503 = vunpack.c.h.b16 %v1242
      %v1504 = vunpack.c.l.b16 %v1243
      %v1505 = vunpack.c.l.b16 %v1244
      %v1506 = vunpack.c.h.b16 %v1244
      %v1507 = vunpack.c.l.b16 %v1245
      %v1508 = vunpack.c.l.b16 %v1246
      %v1509 = vunpack.c.h.b16 %v1246
      %v1510 = vunpack.c.l.b16 %v1247
      %v1511 = vunpack.c.l.b16 %v1248
      %v1512 = vunpack.c.h.b16 %v1248
      %v1513 = vunpack.c.l.b16 %v1249
      %v1514 = vunpack.c.l.b16 %v1250
      %v1515 = vunpack.c.h.b16 %v1250
      %v1516 = vunpack.c.l.b16 %v1251
      %v1517 = vunpack.c.l.b16 %v1252
      %v1518 = vunpack.c.h.b16 %v1252
      %v1519 = vunpack.c.l.b16 %v1253
      %v1520 = vunpack.c.l.b16 %v1254
      %v1521 = vunpack.c.h.b16 %v1254
      %v1522 = vunpack.c.l.b16 %v1255
      %v1523 = vunpack.c.l.b16 %v1256
      %v1524 = vunpack.c.h.b16 %v1256
      %v1525 = vunpack.c.l.b16 %v1257
      %v1526 = vunpack.c.l.b16 %v1258
      %v1527 = vunpack.c.h.b16 %v1258
      %v1528 = vunpack.c.l.b16 %v1259
      %v1529 = vunpack.c.l.b16 %v1260
      %v1530 = vunpack.c.h.b16 %v1260
      %v1531 = vunpack.c.l.b16 %v1261
      %v1532 = vunpack.c.l.b16 %v1262
      %v1533 = vunpack.c.h.b16 %v1262
      %v1534 = vunpack.c.l.b16 %v1263
      %v1535 = vunpack.c.l.b16 %v1264
      %v1536 = vunpack.c.h.b16 %v1264
      %v1537 = vunpack.c.l.b16 %v1265
      %v1538 = vunpack.c.l.b16 %v1266
      %v1539 = vunpack.c.h.b16 %v1266
      %v1540 = vunpack.c.l.b16 %v1267
      %v1541 = vunpack.c.l.b16 %v1268
      %v1542 = vunpack.c.h.b16 %v1268
      %v1543 = vunpack.c.l.b16 %v1269
      %v1544 = vunpack.c.l.b16 %v1270
      %v1545 = vunpack.c.h.b16 %v1270
      %v1546 = vunpack.c.l.b16 %v1271
      %v1547 = vunpack.c.l.b16 %v1272
      %v1548 = vunpack.c.h.b16 %v1272
      %v1549 = vunpack.c.l.b16 %v1273
      %v1550 = vunpack.c.l.b16 %v1274
      %v1551 = vunpack.c.h.b16 %v1274
      %v1552 = vunpack.c.l.b16 %v1275
      %v1553 = vunpack.c.l.b16 %v1276
      %v1554 = vunpack.c.h.b16 %v1276
      %v1555 = vunpack.c.l.b16 %v1277
      %v1556 = vunpack.c.l.b16 %v1278
      %v1557 = vunpack.c.h.b16 %v1278
      %v1558 = vunpack.c.l.b16 %v1279
      %v1559 = vunpack.c.l.b16 %v1280
      %v1560 = vunpack.c.h.b16 %v1280
      %v1561 = vunpack.c.l.b16 %v1281
      %v1562 = vunpack.c.l.b16 %v1282
      %v1563 = vunpack.c.h.b16 %v1282
      %v1564 = vunpack.c.l.b16 %v1283
      %v1565 = vunpack.c.l.b16 %v1284
      %v1566 = vunpack.c.h.b16 %v1284
      %v1567 = vunpack.c.l.b16 %v1285
      %v1568 = vunpack.c.l.b16 %v1286
      %v1569 = vunpack.c.h.b16 %v1286
      %v1570 = vunpack.c.l.b16 %v1287
      %v1571 = vunpack.c.l.b16 %v1288
      %v1572 = vunpack.c.h.b16 %v1288
      %v1573 = vunpack.c.l.b16 %v1289
      %v1574 = vunpack.c.l.b16 %v1290
      %v1575 = vunpack.c.h.b16 %v1290
      %v1576 = vunpack.c.l.b16 %v1291
      %v1577 = vunpack.c.l.b16 %v1292
      %v1578 = vunpack.c.h.b16 %v1292
      %v1579 = vunpack.c.l.b16 %v1293
      %v1580 = vunpack.c.l.b16 %v1294
      %v1581 = vunpack.c.h.b16 %v1294
      %v1582 = vunpack.c.l.b16 %v1295
      %v1583 = vunpack.c.l.b16 %v1296
      %v1584 = vunpack.c.h.b16 %v1296
      %v1585 = vunpack.c.l.b16 %v1297
      %v1586 = vunpack.c.l.b16 %v1298
      %v1587 = vunpack.c.h.b16 %v1298
      %v1588 = vunpack.c.l.b16 %v1299
      %v1589 = vpack.c.b16 %v1448, %v1445
      %v1590 = vpack.c.b16 %v1449, %v1446
      %v1591 = vpack.c.b16 %v1450, %v1447
      %v1592 = vpack.c.b16 %v1454, %v1451
      %v1593 = vpack.c.b16 %v1455, %v1452
      %v1594 = vpack.c.b16 %v1456, %v1453
      %v1595 = vpack.c.b16 %v1460, %v1457
      %v1596 = vpack.c.b16 %v1461, %v1458
      %v1597 = vpack.c.b16 %v1462, %v1459
      %v1598 = vpack.c.b16 %v1466, %v1463
      %v1599 = vpack.c.b16 %v1467, %v1464
      %v1600 = vpack.c.b16 %v1468, %v1465
      %v1601 = vpack.c.b16 %v1472, %v1469
      %v1602 = vpack.c.b16 %v1473, %v1470
      %v1603 = vpack.c.b16 %v1474, %v1471
      %v1604 = vpack.c.b16 %v1478, %v1475
      %v1605 = vpack.c.b16 %v1479, %v1476
      %v1606 = vpack.c.b16 %v1480, %v1477
      %v1607 = vpack.c.b16 %v1484, %v1481
      %v1608 = vpack.c.b16 %v1485, %v1482
      %v1609 = vpack.c.b16 %v1486, %v1483
      %v1610 = vpack.c.b16 %v1490, %v1487
      %v1611 = vpack.c.b16 %v1491, %v1488
      %v1612 = vpack.c.b16 %v1492, %v1489
      %v1613 = vpack.c.b16 %v1496, %v1493
      %v1614 = vpack.c.b16 %v1497, %v1494
      %v1615 = vpack.c.b16 %v1498, %v1495
      %v1616 = vpack.c.b16 %v1502, %v1499
      %v1617 = vpack.c.b16 %v1503, %v1500
      %v1618 = vpack.c.b16 %v1504, %v1501
      %v1619 = vpack.c.b16 %v1508, %v1505
      %v1620 = vpack.c.b16 %v1509, %v1506
      %v1621 = vpack.c.b16 %v1510, %v1507
      %v1622 = vpack.c.b16 %v1514, %v1511
      %v1623 = vpack.c.b16 %v1515, %v1512
      %v1624 = vpack.c.b16 %v1516, %v1513
      %v1625 = vpack.c.b16 %v1520, %v1517
      %v1626 = vpack.c.b16 %v1521, %v1518
      %v1627 = vpack.c.b16 %v1522, %v1519
      %v1628 = vpack.c.b16 %v1526, %v1523
      %v1629 = vpack.c.b16 %v1527, %v1524
      %v1630 = vpack.c.b16 %v1528, %v1525
      %v1631 = vpack.c.b16 %v1532, %v1529
      %v1632 = vpack.c.b16 %v1533, %v1530
      %v1633 = vpack.c.b16 %v1534, %v1531
      %v1634 = vpack.c.b16 %v1538, %v1535
      %v1635 = vpack.c.b16 %v1539, %v1536
      %v1636 = vpack.c.b16 %v1540, %v1537
      %v1637 = vpack.c.b16 %v1544, %v1541
      %v1638 = vpack.c.b16 %v1545, %v1542
      %v1639 = vpack.c.b16 %v1546, %v1543
      %v1640 = vpack.c.b16 %v1550, %v1547
      %v1641 = vpack.c.b16 %v1551, %v1548
      %v1642 = vpack.c.b16 %v1552, %v1549
      %v1643 = vpack.c.b16 %v1556, %v1553
      %v1644 = vpack.c.b16 %v1557, %v1554
      %v1645 = vpack.c.b16 %v1558, %v1555
      %v1646 = vpack.c.b16 %v1562, %v1559
      %v1647 = vpack.c.b16 %v1563, %v1560
      %v1648 = vpack.c.b16 %v1564, %v1561
      %v1649 = vpack.c.b16 %v1568, %v1565
      %v1650 = vpack.c.b16 %v1569, %v1566
      %v1651 = vpack.c.b16 %v1570, %v1567
      %v1652 = vpack.c.b16 %v1574, %v1571
      %v1653 = vpack.c.b16 %v1575, %v1572
      %v1654 = vpack.c.b16 %v1576, %v1573
      %v1655 = vpack.c.b16 %v1580, %v1577
      %v1656 = vpack.c.b16 %v1581, %v1578
      %v1657 = vpack.c.b16 %v1582, %v1579
      %v1658 = vpack.c.b16 %v1586, %v1583
      %v1659 = vpack.c.b16 %v1587, %v1584
      %v1660 = vpack.c.b16 %v1588, %v1585
      %v1781 = vunpack.c.l.b16 %v1301
      %v1782 = vunpack.c.l.b16 %v1302
      %v1783 = vunpack.c.l.b16 %v1303
      %v1784 = vunpack.c.l.b16 %v1304
      %v1785 = vunpack.c.l.b16 %v1305
      %v1786 = vunpack.c.l.b16 %v1306
      %v1787 = vunpack.c.l.b16 %v1307
      %v1788 = vunpack.c.l.b16 %v1308
      %v1789 = vunpack.c.l.b16 %v1309
      %v1790 = vunpack.c.l.b16 %v1310
      %v1791 = vunpack.c.l.b16 %v1311
      %v1792 = vunpack.c.l.b16 %v1312
      %v1793 = vunpack.c.l.b16 %v1313
      %v1794 = vunpack.c.l.b16 %v1314
      %v1795 = vunpack.c.l.b16 %v1315
      %v1796 = vunpack.c.l.b16 %v1316
      %v1797 = vunpack.c.l.b16 %v1317
      %v1798 = vunpack.c.l.b16 %v1318
      %v1799 = vunpack.c.l.b16 %v1319
      %v1800 = vunpack.c.l.b16 %v1320
      %v1801 = vunpack.c.l.b16 %v1321
      %v1802 = vunpack.c.l.b16 %v1322
      %v1803 = vunpack.c.l.b16 %v1323
      %v1804 = vunpack.c.l.b16 %v1324
      %v1805 = vunpack.c.l.b16 %v1325
      %v1806 = vunpack.c.l.b16 %v1326
      %v1807 = vunpack.c.l.b16 %v1327
      %v1808 = vunpack.c.l.b16 %v1328
      %v1809 = vunpack.c.l.b16 %v1329
      %v1810 = vunpack.c.l.b16 %v1330
      %v1811 = vunpack.c.l.b16 %v1331
      %v1812 = vunpack.c.l.b16 %v1332
      %v1813 = vunpack.c.l.b16 %v1333
      %v1814 = vunpack.c.l.b16 %v1334
      %v1815 = vunpack.c.l.b16 %v1335
      %v1816 = vunpack.c.l.b16 %v1336
      %v1817 = vunpack.c.l.b16 %v1337
      %v1818 = vunpack.c.l.b16 %v1338
      %v1819 = vunpack.c.l.b16 %v1339
      %v1820 = vunpack.c.l.b16 %v1340
      %v1821 = vunpack.c.l.b16 %v1341
      %v1822 = vunpack.c.l.b16 %v1342
      %v1823 = vunpack.c.l.b16 %v1343
      %v1824 = vunpack.c.l.b16 %v1344
      %v1825 = vunpack.c.l.b16 %v1345
      %v1826 = vunpack.c.l.b16 %v1346
      %v1827 = vunpack.c.l.b16 %v1347
      %v1828 = vunpack.c.l.b16 %v1348
      %v1829 = vpack.c.b16 %v1782, %v1781
      %v1830 = vpack.c.b16 %v1784, %v1783
      %v1831 = vpack.c.b16 %v1786, %v1785
      %v1832 = vpack.c.b16 %v1788, %v1787
      %v1833 = vpack.c.b16 %v1790, %v1789
      %v1834 = vpack.c.b16 %v1792, %v1791
      %v1835 = vpack.c.b16 %v1794, %v1793
      %v1836 = vpack.c.b16 %v1796, %v1795
      %v1837 = vpack.c.b16 %v1798, %v1797
      %v1838 = vpack.c.b16 %v1800, %v1799
      %v1839 = vpack.c.b16 %v1802, %v1801
      %v1840 = vpack.c.b16 %v1804, %v1803
      %v1841 = vpack.c.b16 %v1806, %v1805
      %v1842 = vpack.c.b16 %v1808, %v1807
      %v1843 = vpack.c.b16 %v1810, %v1809
      %v1844 = vpack.c.b16 %v1812, %v1811
      %v1845 = vpack.c.b16 %v1814, %v1813
      %v1846 = vpack.c.b16 %v1816, %v1815
      %v1847 = vpack.c.b16 %v1818, %v1817
      %v1848 = vpack.c.b16 %v1820, %v1819
      %v1849 = vpack.c.b16 %v1822, %v1821
      %v1850 = vpack.c.b16 %v1824, %v1823
      %v1851 = vpack.c.b16 %v1826, %v1825
      %v1852 = vpack.c.b16 %v1828, %v1827
      %1877 = vmatprep.subr.bf16.mxu0 0
      %1878 = vmatpush1.bf16.msra.mxu0 %v1836
      %1879 = vmatprep.subr.bf16.mxu0 0
      %1880 = vmatpush1.bf16.msra.mxu0 %v1835
      %1881 = vmatprep.subr.bf16.mxu0 0
      %1882 = vmatpush1.bf16.msra.mxu0 %v1834
      %1883 = vmatprep.subr.bf16.mxu0 0
      %1884 = vmatpush1.bf16.msra.mxu0 %v1833
      %1885 = vmatprep.subr.bf16.mxu0 0
      %1886 = vmatpush1.bf16.msra.mxu0 %v1832
      %1887 = vmatprep.subr.bf16.mxu0 0
      %1888 = vmatpush1.bf16.msra.mxu0 %v1831
      %1889 = vmatprep.subr.bf16.mxu0 0
      %1890 = vmatpush1.bf16.msra.mxu0 %v1830
      %1891 = vmatprep.subr.bf16.mxu0 0
      %1892 = vmatpush1.bf16.msra.mxu0 %v1829
      %1893 = vmatprep.subr.bf16.mxu0 0
      %1894 = vmatpush2.bf16.msra.mxu0 %v1844
      %1895 = vmatprep.subr.bf16.mxu0 0
      %1896 = vmatpush2.bf16.msra.mxu0 %v1843
      %1897 = vmatprep.subr.bf16.mxu0 0
      %1898 = vmatpush2.bf16.msra.mxu0 %v1842
      %1899 = vmatprep.subr.bf16.mxu0 0
      %1900 = vmatpush2.bf16.msra.mxu0 %v1841
      %1901 = vmatprep.subr.bf16.mxu0 0
      %1902 = vmatpush2.bf16.msra.mxu0 %v1840
      %1903 = vmatprep.subr.bf16.mxu0 0
      %1904 = vmatpush2.bf16.msra.mxu0 %v1839
      %1905 = vmatprep.subr.bf16.mxu0 0
      %1906 = vmatpush2.bf16.msra.mxu0 %v1838
      %1907 = vmatprep.subr.bf16.mxu0 0
      %1908 = vmatpush2.bf16.msra.mxu0 %v1837
      %1909 = vmatprep.mubr.bf16.mxu0 %v1590
      %1910 = vmatmul.mubr.bf16.gmra.mxu0 %v1589
      %v1911 = vpop.f32.mrf.mxu0
      %v1912 = vadd.f32 0.0, %v1911
      %v1913 = vpop.f32.mrf.mxu0
      %v1914 = vpop.f32.mrf.mxu0
      %v1915 = vadd.f32 0.0, %v1914
      %v1916 = vpop.f32.mrf.mxu0
      %1917 = vmatprep.mubr.bf16.mxu0 %v1593
      %1918 = vmatmul.mubr.bf16.gmra.mxu0 %v1592
      %v1919 = vpop.f32.mrf.mxu0
      %v1920 = vadd.f32 0.0, %v1919
      %v1921 = vpop.f32.mrf.mxu0
      %v1922 = vpop.f32.mrf.mxu0
      %v1923 = vadd.f32 0.0, %v1922
      %v1924 = vpop.f32.mrf.mxu0
      %1925 = vmatprep.mubr.bf16.mxu0 %v1596
      %1926 = vmatmul.mubr.bf16.gmra.mxu0 %v1595
      %v1927 = vpop.f32.mrf.mxu0
      %v1928 = vadd.f32 0.0, %v1927
      %v1929 = vpop.f32.mrf.mxu0
      %v1930 = vpop.f32.mrf.mxu0
      %v1931 = vadd.f32 0.0, %v1930
      %v1932 = vpop.f32.mrf.mxu0
      %1933 = vmatprep.mubr.bf16.mxu0 %v1599
      %1934 = vmatmul.mubr.bf16.gmra.mxu0 %v1598
      %v1935 = vpop.f32.mrf.mxu0
      %v1936 = vadd.f32 0.0, %v1935
      %v1937 = vpop.f32.mrf.mxu0
      %v1938 = vpop.f32.mrf.mxu0
      %v1939 = vadd.f32 0.0, %v1938
      %v1940 = vpop.f32.mrf.mxu0
      %1941 = vmatprep.mubr.bf16.mxu0 %v1602
      %1942 = vmatmul.mubr.bf16.gmra.mxu0 %v1601
      %v1943 = vpop.f32.mrf.mxu0
      %v1944 = vadd.f32 0.0, %v1943
      %v1945 = vpop.f32.mrf.mxu0
      %v1946 = vpop.f32.mrf.mxu0
      %v1947 = vadd.f32 0.0, %v1946
      %v1948 = vpop.f32.mrf.mxu0
      %1949 = vmatprep.mubr.bf16.mxu0 %v1605
      %1950 = vmatmul.mubr.bf16.gmra.mxu0 %v1604
      %v1951 = vpop.f32.mrf.mxu0
      %v1952 = vadd.f32 0.0, %v1951
      %v1953 = vpop.f32.mrf.mxu0
      %v1954 = vpop.f32.mrf.mxu0
      %v1955 = vadd.f32 0.0, %v1954
      %v1956 = vpop.f32.mrf.mxu0
      %1957 = vmatprep.mubr.bf16.mxu0 %v1608
      %1958 = vmatmul.mubr.bf16.gmra.mxu0 %v1607
      %v1959 = vpop.f32.mrf.mxu0
      %v1960 = vadd.f32 0.0, %v1959
      %v1961 = vpop.f32.mrf.mxu0
      %v1962 = vpop.f32.mrf.mxu0
      %v1963 = vadd.f32 0.0, %v1962
      %v1964 = vpop.f32.mrf.mxu0
      %1965 = vmatprep.mubr.bf16.mxu0 %v1611
      %1966 = vmatmul.mubr.bf16.gmra.mxu0 %v1610
      %v1967 = vpop.f32.mrf.mxu0
      %v1968 = vadd.f32 0.0, %v1967
      %v1969 = vpop.f32.mrf.mxu0
      %v1970 = vpop.f32.mrf.mxu0
      %v1971 = vadd.f32 0.0, %v1970
      %v1972 = vpop.f32.mrf.mxu0
      %1973 = vmatprep.mubr.bf16.mxu0 %v1614
      %1974 = vmatmul.mubr.bf16.gmra.mxu0 %v1613
      %v1975 = vpop.f32.mrf.mxu0
      %v1976 = vadd.f32 0.0, %v1975
      %v1977 = vpop.f32.mrf.mxu0
      %v1978 = vpop.f32.mrf.mxu0
      %v1979 = vadd.f32 0.0, %v1978
      %v1980 = vpop.f32.mrf.mxu0
      %1981 = vmatprep.mubr.bf16.mxu0 %v1617
      %1982 = vmatmul.mubr.bf16.gmra.mxu0 %v1616
      %v1983 = vpop.f32.mrf.mxu0
      %v1984 = vadd.f32 0.0, %v1983
      %v1985 = vpop.f32.mrf.mxu0
      %v1986 = vpop.f32.mrf.mxu0
      %v1987 = vadd.f32 0.0, %v1986
      %v1988 = vpop.f32.mrf.mxu0
      %1989 = vmatprep.mubr.bf16.mxu0 %v1620
      %1990 = vmatmul.mubr.bf16.gmra.mxu0 %v1619
      %v1991 = vpop.f32.mrf.mxu0
      %v1992 = vadd.f32 0.0, %v1991
      %v1993 = vpop.f32.mrf.mxu0
      %v1994 = vpop.f32.mrf.mxu0
      %v1995 = vadd.f32 0.0, %v1994
      %v1996 = vpop.f32.mrf.mxu0
      %1997 = vmatprep.mubr.bf16.mxu0 %v1623
      %1998 = vmatmul.mubr.bf16.gmra.mxu0 %v1622
      %v1999 = vpop.f32.mrf.mxu0
      %v2000 = vadd.f32 0.0, %v1999
      %v2001 = vpop.f32.mrf.mxu0
      %v2002 = vpop.f32.mrf.mxu0
      %v2003 = vadd.f32 0.0, %v2002
      %v2004 = vpop.f32.mrf.mxu0
      %2005 = vmatprep.mubr.bf16.mxu0 %v1626
      %2006 = vmatmul.mubr.bf16.gmra.mxu0 %v1625
      %v2007 = vpop.f32.mrf.mxu0
      %v2008 = vadd.f32 0.0, %v2007
      %v2009 = vpop.f32.mrf.mxu0
      %v2010 = vpop.f32.mrf.mxu0
      %v2011 = vadd.f32 0.0, %v2010
      %v2012 = vpop.f32.mrf.mxu0
      %2013 = vmatprep.mubr.bf16.mxu0 %v1629
      %2014 = vmatmul.mubr.bf16.gmra.mxu0 %v1628
      %v2015 = vpop.f32.mrf.mxu0
      %v2016 = vadd.f32 0.0, %v2015
      %v2017 = vpop.f32.mrf.mxu0
      %v2018 = vpop.f32.mrf.mxu0
      %v2019 = vadd.f32 0.0, %v2018
      %v2020 = vpop.f32.mrf.mxu0
      %2021 = vmatprep.mubr.bf16.mxu0 %v1632
      %2022 = vmatmul.mubr.bf16.gmra.mxu0 %v1631
      %v2023 = vpop.f32.mrf.mxu0
      %v2024 = vadd.f32 0.0, %v2023
      %v2025 = vpop.f32.mrf.mxu0
      %v2026 = vpop.f32.mrf.mxu0
      %v2027 = vadd.f32 0.0, %v2026
      %v2028 = vpop.f32.mrf.mxu0
      %2029 = vmatprep.mubr.bf16.mxu0 %v1635
      %2030 = vmatmul.mubr.bf16.gmra.mxu0 %v1634
      %v2031 = vpop.f32.mrf.mxu0
      %v2032 = vadd.f32 0.0, %v2031
      %v2033 = vpop.f32.mrf.mxu0
      %v2034 = vpop.f32.mrf.mxu0
      %v2035 = vadd.f32 0.0, %v2034
      %v2036 = vpop.f32.mrf.mxu0
      %2037 = vmatprep.mubr.bf16.mxu0 %v1638
      %2038 = vmatmul.mubr.bf16.gmra.mxu0 %v1637
      %v2039 = vpop.f32.mrf.mxu0
      %v2040 = vadd.f32 0.0, %v2039
      %v2041 = vpop.f32.mrf.mxu0
      %v2042 = vpop.f32.mrf.mxu0
      %v2043 = vadd.f32 0.0, %v2042
      %v2044 = vpop.f32.mrf.mxu0
      %2045 = vmatprep.mubr.bf16.mxu0 %v1641
      %2046 = vmatmul.mubr.bf16.gmra.mxu0 %v1640
      %v2047 = vpop.f32.mrf.mxu0
      %v2048 = vadd.f32 0.0, %v2047
      %v2049 = vpop.f32.mrf.mxu0
      %v2050 = vpop.f32.mrf.mxu0
      %v2051 = vadd.f32 0.0, %v2050
      %v2052 = vpop.f32.mrf.mxu0
      %2053 = vmatprep.mubr.bf16.mxu0 %v1644
      %2054 = vmatmul.mubr.bf16.gmra.mxu0 %v1643
      %v2055 = vpop.f32.mrf.mxu0
      %v2056 = vadd.f32 0.0, %v2055
      %v2057 = vpop.f32.mrf.mxu0
      %v2058 = vpop.f32.mrf.mxu0
      %v2059 = vadd.f32 0.0, %v2058
      %v2060 = vpop.f32.mrf.mxu0
      %2061 = vmatprep.mubr.bf16.mxu0 %v1647
      %2062 = vmatmul.mubr.bf16.gmra.mxu0 %v1646
      %v2063 = vpop.f32.mrf.mxu0
      %v2064 = vadd.f32 0.0, %v2063
      %v2065 = vpop.f32.mrf.mxu0
      %v2066 = vpop.f32.mrf.mxu0
      %v2067 = vadd.f32 0.0, %v2066
      %v2068 = vpop.f32.mrf.mxu0
      %2069 = vmatprep.mubr.bf16.mxu0 %v1650
      %2070 = vmatmul.mubr.bf16.gmra.mxu0 %v1649
      %v2071 = vpop.f32.mrf.mxu0
      %v2072 = vadd.f32 0.0, %v2071
      %v2073 = vpop.f32.mrf.mxu0
      %v2074 = vpop.f32.mrf.mxu0
      %v2075 = vadd.f32 0.0, %v2074
      %v2076 = vpop.f32.mrf.mxu0
      %2077 = vmatprep.mubr.bf16.mxu0 %v1653
      %2078 = vmatmul.mubr.bf16.gmra.mxu0 %v1652
      %v2079 = vpop.f32.mrf.mxu0
      %v2080 = vadd.f32 0.0, %v2079
      %v2081 = vpop.f32.mrf.mxu0
      %v2082 = vpop.f32.mrf.mxu0
      %v2083 = vadd.f32 0.0, %v2082
      %v2084 = vpop.f32.mrf.mxu0
      %2085 = vmatprep.mubr.bf16.mxu0 %v1656
      %2086 = vmatmul.mubr.bf16.gmra.mxu0 %v1655
      %v2087 = vpop.f32.mrf.mxu0
      %v2088 = vadd.f32 0.0, %v2087
      %v2089 = vpop.f32.mrf.mxu0
      %v2090 = vpop.f32.mrf.mxu0
      %v2091 = vadd.f32 0.0, %v2090
      %v2092 = vpop.f32.mrf.mxu0
      %2093 = vmatprep.mubr.bf16.mxu0 %v1659
      %2094 = vmatmul.mubr.bf16.gmra.mxu0 %v1658
      %v2095 = vpop.f32.mrf.mxu0
      %v2096 = vadd.f32 0.0, %v2095
      %v2097 = vpop.f32.mrf.mxu0
      %v2098 = vpop.f32.mrf.mxu0
      %v2099 = vadd.f32 0.0, %v2098
      %v2100 = vpop.f32.mrf.mxu0
      %2101 = vdwg.mxu0
      %2102 = vmatprep.subr.bf16.mxu0 0
      %2103 = vmatpush1.bf16.msra.mxu0 %v1852
      %2104 = vmatprep.subr.bf16.mxu0 0
      %2105 = vmatpush1.bf16.msra.mxu0 %v1851
      %2106 = vmatprep.subr.bf16.mxu0 0
      %2107 = vmatpush1.bf16.msra.mxu0 %v1850
      %2108 = vmatprep.subr.bf16.mxu0 0
      %2109 = vmatpush1.bf16.msra.mxu0 %v1849
      %2110 = vmatprep.subr.bf16.mxu0 0
      %2111 = vmatpush1.bf16.msra.mxu0 %v1848
      %2112 = vmatprep.subr.bf16.mxu0 0
      %2113 = vmatpush1.bf16.msra.mxu0 %v1847
      %2114 = vmatprep.subr.bf16.mxu0 0
      %2115 = vmatpush1.bf16.msra.mxu0 %v1846
      %2116 = vmatprep.subr.bf16.mxu0 0
      %2117 = vmatpush1.bf16.msra.mxu0 %v1845
      %2118 = vmatprep.subr.bf16.mxu0 0
      %2119 = vmatpush2.bf16.msra.mxu0 0
      %2120 = vmatprep.subr.bf16.mxu0 0
      %2121 = vmatpush2.bf16.msra.mxu0 0
      %2122 = vmatprep.subr.bf16.mxu0 0
      %2123 = vmatpush2.bf16.msra.mxu0 0
      %2124 = vmatprep.subr.bf16.mxu0 0
      %2125 = vmatpush2.bf16.msra.mxu0 0
      %2126 = vmatprep.subr.bf16.mxu0 0
      %2127 = vmatpush2.bf16.msra.mxu0 0
      %2128 = vmatprep.subr.bf16.mxu0 0
      %2129 = vmatpush2.bf16.msra.mxu0 0
      %2130 = vmatprep.subr.bf16.mxu0 0
      %2131 = vmatpush2.bf16.msra.mxu0 0
      %2132 = vmatprep.subr.bf16.mxu0 0
      %2133 = vmatpush2.bf16.msra.mxu0 0
      %2134 = vmatprep.mubr.bf16.mxu0 0
      %2135 = vmatmul.mubr.bf16.gmra.mxu0 %v1591
      %v2136 = vpop.f32.mrf.mxu0
      %v2137 = vadd.f32 %v1912, %v2136
      %v2138 = vpop.f32.mrf.mxu0
      %v2139 = vpop.f32.mrf.mxu0
      %v2140 = vadd.f32 %v1915, %v2139
      %v2141 = vpop.f32.mrf.mxu0
      %2142 = vmatprep.mubr.bf16.mxu0 0
      %2143 = vmatmul.mubr.bf16.gmra.mxu0 %v1594
      %v2144 = vpop.f32.mrf.mxu0
      %v2145 = vadd.f32 %v1920, %v2144
      %v2146 = vpop.f32.mrf.mxu0
      %v2147 = vpop.f32.mrf.mxu0
      %v2148 = vadd.f32 %v1923, %v2147
      %v2149 = vpop.f32.mrf.mxu0
      %2150 = vmatprep.mubr.bf16.mxu0 0
      %2151 = vmatmul.mubr.bf16.gmra.mxu0 %v1597
      %v2152 = vpop.f32.mrf.mxu0
      %v2153 = vadd.f32 %v1928, %v2152
      %v2154 = vpop.f32.mrf.mxu0
      %v2155 = vpop.f32.mrf.mxu0
      %v2156 = vadd.f32 %v1931, %v2155
      %v2157 = vpop.f32.mrf.mxu0
      %2158 = vmatprep.mubr.bf16.mxu0 0
      %2159 = vmatmul.mubr.bf16.gmra.mxu0 %v1600
      %v2160 = vpop.f32.mrf.mxu0
      %v2161 = vadd.f32 %v1936, %v2160
      %v2162 = vpop.f32.mrf.mxu0
      %v2163 = vpop.f32.mrf.mxu0
      %v2164 = vadd.f32 %v1939, %v2163
      %v2165 = vpop.f32.mrf.mxu0
      %2166 = vmatprep.mubr.bf16.mxu0 0
      %2167 = vmatmul.mubr.bf16.gmra.mxu0 %v1603
      %v2168 = vpop.f32.mrf.mxu0
      %v2169 = vadd.f32 %v1944, %v2168
      %v2170 = vpop.f32.mrf.mxu0
      %v2171 = vpop.f32.mrf.mxu0
      %v2172 = vadd.f32 %v1947, %v2171
      %v2173 = vpop.f32.mrf.mxu0
      %2174 = vmatprep.mubr.bf16.mxu0 0
      %2175 = vmatmul.mubr.bf16.gmra.mxu0 %v1606
      %v2176 = vpop.f32.mrf.mxu0
      %v2177 = vadd.f32 %v1952, %v2176
      %v2178 = vpop.f32.mrf.mxu0
      %v2179 = vpop.f32.mrf.mxu0
      %v2180 = vadd.f32 %v1955, %v2179
      %v2181 = vpop.f32.mrf.mxu0
      %2182 = vmatprep.mubr.bf16.mxu0 0
      %2183 = vmatmul.mubr.bf16.gmra.mxu0 %v1609
      %v2184 = vpop.f32.mrf.mxu0
      %v2185 = vadd.f32 %v1960, %v2184
      %v2186 = vpop.f32.mrf.mxu0
      %v2187 = vpop.f32.mrf.mxu0
      %v2188 = vadd.f32 %v1963, %v2187
      %v2189 = vpop.f32.mrf.mxu0
      %2190 = vmatprep.mubr.bf16.mxu0 0
      %2191 = vmatmul.mubr.bf16.gmra.mxu0 %v1612
      %v2192 = vpop.f32.mrf.mxu0
      %v2193 = vadd.f32 %v1968, %v2192
      %v2194 = vpop.f32.mrf.mxu0
      %v2195 = vpop.f32.mrf.mxu0
      %v2196 = vadd.f32 %v1971, %v2195
      %v2197 = vpop.f32.mrf.mxu0
      %2198 = vmatprep.mubr.bf16.mxu0 0
      %2199 = vmatmul.mubr.bf16.gmra.mxu0 %v1615
      %v2200 = vpop.f32.mrf.mxu0
      %v2201 = vadd.f32 %v1976, %v2200
      %v2202 = vpop.f32.mrf.mxu0
      %v2203 = vpop.f32.mrf.mxu0
      %v2204 = vadd.f32 %v1979, %v2203
      %v2205 = vpop.f32.mrf.mxu0
      %2206 = vmatprep.mubr.bf16.mxu0 0
      %2207 = vmatmul.mubr.bf16.gmra.mxu0 %v1618
      %v2208 = vpop.f32.mrf.mxu0
      %v2209 = vadd.f32 %v1984, %v2208
      %v2210 = vpop.f32.mrf.mxu0
      %v2211 = vpop.f32.mrf.mxu0
      %v2212 = vadd.f32 %v1987, %v2211
      %v2213 = vpop.f32.mrf.mxu0
      %2214 = vmatprep.mubr.bf16.mxu0 0
      %2215 = vmatmul.mubr.bf16.gmra.mxu0 %v1621
      %v2216 = vpop.f32.mrf.mxu0
      %v2217 = vadd.f32 %v1992, %v2216
      %v2218 = vpop.f32.mrf.mxu0
      %v2219 = vpop.f32.mrf.mxu0
      %v2220 = vadd.f32 %v1995, %v2219
      %v2221 = vpop.f32.mrf.mxu0
      %2222 = vmatprep.mubr.bf16.mxu0 0
      %2223 = vmatmul.mubr.bf16.gmra.mxu0 %v1624
      %v2224 = vpop.f32.mrf.mxu0
      %v2225 = vadd.f32 %v2000, %v2224
      %v2226 = vpop.f32.mrf.mxu0
      %v2227 = vpop.f32.mrf.mxu0
      %v2228 = vadd.f32 %v2003, %v2227
      %v2229 = vpop.f32.mrf.mxu0
      %2230 = vmatprep.mubr.bf16.mxu0 0
      %2231 = vmatmul.mubr.bf16.gmra.mxu0 %v1627
      %v2232 = vpop.f32.mrf.mxu0
      %v2233 = vadd.f32 %v2008, %v2232
      %v2234 = vpop.f32.mrf.mxu0
      %v2235 = vpop.f32.mrf.mxu0
      %v2236 = vadd.f32 %v2011, %v2235
      %v2237 = vpop.f32.mrf.mxu0
      %2238 = vmatprep.mubr.bf16.mxu0 0
      %2239 = vmatmul.mubr.bf16.gmra.mxu0 %v1630
      %v2240 = vpop.f32.mrf.mxu0
      %v2241 = vadd.f32 %v2016, %v2240
      %v2242 = vpop.f32.mrf.mxu0
      %v2243 = vpop.f32.mrf.mxu0
      %v2244 = vadd.f32 %v2019, %v2243
      %v2245 = vpop.f32.mrf.mxu0
      %2246 = vmatprep.mubr.bf16.mxu0 0
      %2247 = vmatmul.mubr.bf16.gmra.mxu0 %v1633
      %v2248 = vpop.f32.mrf.mxu0
      %v2249 = vadd.f32 %v2024, %v2248
      %v2250 = vpop.f32.mrf.mxu0
      %v2251 = vpop.f32.mrf.mxu0
      %v2252 = vadd.f32 %v2027, %v2251
      %v2253 = vpop.f32.mrf.mxu0
      %2254 = vmatprep.mubr.bf16.mxu0 0
      %2255 = vmatmul.mubr.bf16.gmra.mxu0 %v1636
      %v2256 = vpop.f32.mrf.mxu0
      %v2257 = vadd.f32 %v2032, %v2256
      %v2258 = vpop.f32.mrf.mxu0
      %v2259 = vpop.f32.mrf.mxu0
      %v2260 = vadd.f32 %v2035, %v2259
      %v2261 = vpop.f32.mrf.mxu0
      %2262 = vmatprep.mubr.bf16.mxu0 0
      %2263 = vmatmul.mubr.bf16.gmra.mxu0 %v1639
      %v2264 = vpop.f32.mrf.mxu0
      %v2265 = vadd.f32 %v2040, %v2264
      %v2266 = vpop.f32.mrf.mxu0
      %v2267 = vpop.f32.mrf.mxu0
      %v2268 = vadd.f32 %v2043, %v2267
      %v2269 = vpop.f32.mrf.mxu0
      %2270 = vmatprep.mubr.bf16.mxu0 0
      %2271 = vmatmul.mubr.bf16.gmra.mxu0 %v1642
      %v2272 = vpop.f32.mrf.mxu0
      %v2273 = vadd.f32 %v2048, %v2272
      %v2274 = vpop.f32.mrf.mxu0
      %v2275 = vpop.f32.mrf.mxu0
      %v2276 = vadd.f32 %v2051, %v2275
      %v2277 = vpop.f32.mrf.mxu0
      %2278 = vmatprep.mubr.bf16.mxu0 0
      %2279 = vmatmul.mubr.bf16.gmra.mxu0 %v1645
      %v2280 = vpop.f32.mrf.mxu0
      %v2281 = vadd.f32 %v2056, %v2280
      %v2282 = vpop.f32.mrf.mxu0
      %v2283 = vpop.f32.mrf.mxu0
      %v2284 = vadd.f32 %v2059, %v2283
      %v2285 = vpop.f32.mrf.mxu0
      %2286 = vmatprep.mubr.bf16.mxu0 0
      %2287 = vmatmul.mubr.bf16.gmra.mxu0 %v1648
      %v2288 = vpop.f32.mrf.mxu0
      %v2289 = vadd.f32 %v2064, %v2288
      %v2290 = vpop.f32.mrf.mxu0
      %v2291 = vpop.f32.mrf.mxu0
      %v2292 = vadd.f32 %v2067, %v2291
      %v2293 = vpop.f32.mrf.mxu0
      %2294 = vmatprep.mubr.bf16.mxu0 0
      %2295 = vmatmul.mubr.bf16.gmra.mxu0 %v1651
      %v2296 = vpop.f32.mrf.mxu0
      %v2297 = vadd.f32 %v2072, %v2296
      %v2298 = vpop.f32.mrf.mxu0
      %v2299 = vpop.f32.mrf.mxu0
      %v2300 = vadd.f32 %v2075, %v2299
      %v2301 = vpop.f32.mrf.mxu0
      %2302 = vmatprep.mubr.bf16.mxu0 0
      %2303 = vmatmul.mubr.bf16.gmra.mxu0 %v1654
      %v2304 = vpop.f32.mrf.mxu0
      %v2305 = vadd.f32 %v2080, %v2304
      %v2306 = vpop.f32.mrf.mxu0
      %v2307 = vpop.f32.mrf.mxu0
      %v2308 = vadd.f32 %v2083, %v2307
      %v2309 = vpop.f32.mrf.mxu0
      %2310 = vmatprep.mubr.bf16.mxu0 0
      %2311 = vmatmul.mubr.bf16.gmra.mxu0 %v1657
      %v2312 = vpop.f32.mrf.mxu0
      %v2313 = vadd.f32 %v2088, %v2312
      %v2314 = vpop.f32.mrf.mxu0
      %v2315 = vpop.f32.mrf.mxu0
      %v2316 = vadd.f32 %v2091, %v2315
      %v2317 = vpop.f32.mrf.mxu0
      %2318 = vmatprep.mubr.bf16.mxu0 0
      %2319 = vmatmul.mubr.bf16.gmra.mxu0 %v1660
      %v2320 = vpop.f32.mrf.mxu0
      %v2321 = vadd.f32 %v2096, %v2320
      %v2322 = vpop.f32.mrf.mxu0
      %v2323 = vpop.f32.mrf.mxu0
      %v2324 = vadd.f32 %v2099, %v2323
      %v2325 = vpop.f32.mrf.mxu0
      %2326 = vdwg.mxu0
      %v2423 = vunpack.c.l.b16 %v1060
      %v2424 = vunpack.c.h.b16 %v1060
      %v2425 = vunpack.c.l.b16 %v1061
      %v2426 = vunpack.c.l.b16 %v1062
      %v2427 = vunpack.c.h.b16 %v1062
      %v2428 = vunpack.c.l.b16 %v1063
      %v2429 = vunpack.c.l.b16 %v1064
      %v2430 = vunpack.c.h.b16 %v1064
      %v2431 = vunpack.c.l.b16 %v1065
      %v2432 = vunpack.c.l.b16 %v1066
      %v2433 = vunpack.c.h.b16 %v1066
      %v2434 = vunpack.c.l.b16 %v1067
      %v2435 = vunpack.c.l.b16 %v1068
      %v2436 = vunpack.c.h.b16 %v1068
      %v2437 = vunpack.c.l.b16 %v1069
      %v2438 = vunpack.c.l.b16 %v1070
      %v2439 = vunpack.c.h.b16 %v1070
      %v2440 = vunpack.c.l.b16 %v1071
      %v2441 = vunpack.c.l.b16 %v1072
      %v2442 = vunpack.c.h.b16 %v1072
      %v2443 = vunpack.c.l.b16 %v1073
      %v2444 = vunpack.c.l.b16 %v1074
      %v2445 = vunpack.c.h.b16 %v1074
      %v2446 = vunpack.c.l.b16 %v1075
      %v2447 = vunpack.c.l.b16 %v1076
      %v2448 = vunpack.c.h.b16 %v1076
      %v2449 = vunpack.c.l.b16 %v1077
      %v2450 = vunpack.c.l.b16 %v1078
      %v2451 = vunpack.c.h.b16 %v1078
      %v2452 = vunpack.c.l.b16 %v1079
      %v2453 = vunpack.c.l.b16 %v1080
      %v2454 = vunpack.c.h.b16 %v1080
      %v2455 = vunpack.c.l.b16 %v1081
      %v2456 = vunpack.c.l.b16 %v1082
      %v2457 = vunpack.c.h.b16 %v1082
      %v2458 = vunpack.c.l.b16 %v1083
      %v2459 = vunpack.c.l.b16 %v1084
      %v2460 = vunpack.c.h.b16 %v1084
      %v2461 = vunpack.c.l.b16 %v1085
      %v2462 = vunpack.c.l.b16 %v1086
      %v2463 = vunpack.c.h.b16 %v1086
      %v2464 = vunpack.c.l.b16 %v1087
      %v2465 = vunpack.c.l.b16 %v1088
      %v2466 = vunpack.c.h.b16 %v1088
      %v2467 = vunpack.c.l.b16 %v1089
      %v2468 = vunpack.c.l.b16 %v1090
      %v2469 = vunpack.c.h.b16 %v1090
      %v2470 = vunpack.c.l.b16 %v1091
      %v2471 = vunpack.c.l.b16 %v1092
      %v2472 = vunpack.c.h.b16 %v1092
      %v2473 = vunpack.c.l.b16 %v1093
      %v2474 = vunpack.c.l.b16 %v1094
      %v2475 = vunpack.c.h.b16 %v1094
      %v2476 = vunpack.c.l.b16 %v1095
      %v2477 = vunpack.c.l.b16 %v1096
      %v2478 = vunpack.c.h.b16 %v1096
      %v2479 = vunpack.c.l.b16 %v1097
      %v2480 = vunpack.c.l.b16 %v1098
      %v2481 = vunpack.c.h.b16 %v1098
      %v2482 = vunpack.c.l.b16 %v1099
      %v2483 = vunpack.c.l.b16 %v1100
      %v2484 = vunpack.c.h.b16 %v1100
      %v2485 = vunpack.c.l.b16 %v1101
      %v2486 = vunpack.c.l.b16 %v1102
      %v2487 = vunpack.c.h.b16 %v1102
      %v2488 = vunpack.c.l.b16 %v1103
      %v2489 = vunpack.c.l.b16 %v1104
      %v2490 = vunpack.c.h.b16 %v1104
      %v2491 = vunpack.c.l.b16 %v1105
      %v2492 = vunpack.c.l.b16 %v1106
      %v2493 = vunpack.c.h.b16 %v1106
      %v2494 = vunpack.c.l.b16 %v1107
      %v2495 = vunpack.c.l.b16 %v1108
      %v2496 = vunpack.c.h.b16 %v1108
      %v2497 = vunpack.c.l.b16 %v1109
      %v2498 = vunpack.c.l.b16 %v1110
      %v2499 = vunpack.c.h.b16 %v1110
      %v2500 = vunpack.c.l.b16 %v1111
      %v2501 = vunpack.c.l.b16 %v1112
      %v2502 = vunpack.c.h.b16 %v1112
      %v2503 = vunpack.c.l.b16 %v1113
      %v2504 = vunpack.c.l.b16 %v1114
      %v2505 = vunpack.c.h.b16 %v1114
      %v2506 = vunpack.c.l.b16 %v1115
      %v2507 = vunpack.c.l.b16 %v1116
      %v2508 = vunpack.c.h.b16 %v1116
      %v2509 = vunpack.c.l.b16 %v1117
      %v2510 = vunpack.c.l.b16 %v1118
      %v2511 = vunpack.c.h.b16 %v1118
      %v2512 = vunpack.c.l.b16 %v1119
      %v2513 = vunpack.c.l.b16 %v1120
      %v2514 = vunpack.c.h.b16 %v1120
      %v2515 = vunpack.c.l.b16 %v1121
      %v2516 = vunpack.c.l.b16 %v1122
      %v2517 = vunpack.c.h.b16 %v1122
      %v2518 = vunpack.c.l.b16 %v1123
      %v2519 = vunpack.c.l.b16 %v1124
      %v2520 = vunpack.c.h.b16 %v1124
      %v2521 = vunpack.c.l.b16 %v1125
      %v2522 = vunpack.c.l.b16 %v1126
      %v2523 = vunpack.c.h.b16 %v1126
      %v2524 = vunpack.c.l.b16 %v1127
      %v2525 = vunpack.c.l.b16 %v1128
      %v2526 = vunpack.c.h.b16 %v1128
      %v2527 = vunpack.c.l.b16 %v1129
      %v2528 = vunpack.c.l.b16 %v1130
      %v2529 = vunpack.c.h.b16 %v1130
      %v2530 = vunpack.c.l.b16 %v1131
      %v2531 = vunpack.c.l.b16 %v1132
      %v2532 = vunpack.c.h.b16 %v1132
      %v2533 = vunpack.c.l.b16 %v1133
      %v2534 = vunpack.c.l.b16 %v1134
      %v2535 = vunpack.c.h.b16 %v1134
      %v2536 = vunpack.c.l.b16 %v1135
      %v2537 = vunpack.c.l.b16 %v1136
      %v2538 = vunpack.c.h.b16 %v1136
      %v2539 = vunpack.c.l.b16 %v1137
      %v2540 = vunpack.c.l.b16 %v1138
      %v2541 = vunpack.c.h.b16 %v1138
      %v2542 = vunpack.c.l.b16 %v1139
      %v2543 = vunpack.c.l.b16 %v1140
      %v2544 = vunpack.c.h.b16 %v1140
      %v2545 = vunpack.c.l.b16 %v1141
      %v2546 = vunpack.c.l.b16 %v1142
      %v2547 = vunpack.c.h.b16 %v1142
      %v2548 = vunpack.c.l.b16 %v1143
      %v2549 = vunpack.c.l.b16 %v1144
      %v2550 = vunpack.c.h.b16 %v1144
      %v2551 = vunpack.c.l.b16 %v1145
      %v2552 = vunpack.c.l.b16 %v1146
      %v2553 = vunpack.c.h.b16 %v1146
      %v2554 = vunpack.c.l.b16 %v1147
      %v2555 = vunpack.c.l.b16 %v1148
      %v2556 = vunpack.c.h.b16 %v1148
      %v2557 = vunpack.c.l.b16 %v1149
      %v2558 = vunpack.c.l.b16 %v1150
      %v2559 = vunpack.c.h.b16 %v1150
      %v2560 = vunpack.c.l.b16 %v1151
      %v2561 = vunpack.c.l.b16 %v1152
      %v2562 = vunpack.c.h.b16 %v1152
      %v2563 = vunpack.c.l.b16 %v1153
      %v2564 = vunpack.c.l.b16 %v1154
      %v2565 = vunpack.c.h.b16 %v1154
      %v2566 = vunpack.c.l.b16 %v1155
      %v2567 = vpack.c.b16 %v2426, %v2423
      %v2568 = vpack.c.b16 %v2427, %v2424
      %v2569 = vpack.c.b16 %v2428, %v2425
      %v2570 = vpack.c.b16 %v2432, %v2429
      %v2571 = vpack.c.b16 %v2433, %v2430
      %v2572 = vpack.c.b16 %v2434, %v2431
      %v2573 = vpack.c.b16 %v2438, %v2435
      %v2574 = vpack.c.b16 %v2439, %v2436
      %v2575 = vpack.c.b16 %v2440, %v2437
      %v2576 = vpack.c.b16 %v2444, %v2441
      %v2577 = vpack.c.b16 %v2445, %v2442
      %v2578 = vpack.c.b16 %v2446, %v2443
      %v2579 = vpack.c.b16 %v2450, %v2447
      %v2580 = vpack.c.b16 %v2451, %v2448
      %v2581 = vpack.c.b16 %v2452, %v2449
      %v2582 = vpack.c.b16 %v2456, %v2453
      %v2583 = vpack.c.b16 %v2457, %v2454
      %v2584 = vpack.c.b16 %v2458, %v2455
      %v2585 = vpack.c.b16 %v2462, %v2459
      %v2586 = vpack.c.b16 %v2463, %v2460
      %v2587 = vpack.c.b16 %v2464, %v2461
      %v2588 = vpack.c.b16 %v2468, %v2465
      %v2589 = vpack.c.b16 %v2469, %v2466
      %v2590 = vpack.c.b16 %v2470, %v2467
      %v2591 = vpack.c.b16 %v2474, %v2471
      %v2592 = vpack.c.b16 %v2475, %v2472
      %v2593 = vpack.c.b16 %v2476, %v2473
      %v2594 = vpack.c.b16 %v2480, %v2477
      %v2595 = vpack.c.b16 %v2481, %v2478
      %v2596 = vpack.c.b16 %v2482, %v2479
      %v2597 = vpack.c.b16 %v2486, %v2483
      %v2598 = vpack.c.b16 %v2487, %v2484
      %v2599 = vpack.c.b16 %v2488, %v2485
      %v2600 = vpack.c.b16 %v2492, %v2489
      %v2601 = vpack.c.b16 %v2493, %v2490
      %v2602 = vpack.c.b16 %v2494, %v2491
      %v2603 = vpack.c.b16 %v2498, %v2495
      %v2604 = vpack.c.b16 %v2499, %v2496
      %v2605 = vpack.c.b16 %v2500, %v2497
      %v2606 = vpack.c.b16 %v2504, %v2501
      %v2607 = vpack.c.b16 %v2505, %v2502
      %v2608 = vpack.c.b16 %v2506, %v2503
      %v2609 = vpack.c.b16 %v2510, %v2507
      %v2610 = vpack.c.b16 %v2511, %v2508
      %v2611 = vpack.c.b16 %v2512, %v2509
      %v2612 = vpack.c.b16 %v2516, %v2513
      %v2613 = vpack.c.b16 %v2517, %v2514
      %v2614 = vpack.c.b16 %v2518, %v2515
      %v2615 = vpack.c.b16 %v2522, %v2519
      %v2616 = vpack.c.b16 %v2523, %v2520
      %v2617 = vpack.c.b16 %v2524, %v2521
      %v2618 = vpack.c.b16 %v2528, %v2525
      %v2619 = vpack.c.b16 %v2529, %v2526
      %v2620 = vpack.c.b16 %v2530, %v2527
      %v2621 = vpack.c.b16 %v2534, %v2531
      %v2622 = vpack.c.b16 %v2535, %v2532
      %v2623 = vpack.c.b16 %v2536, %v2533
      %v2624 = vpack.c.b16 %v2540, %v2537
      %v2625 = vpack.c.b16 %v2541, %v2538
      %v2626 = vpack.c.b16 %v2542, %v2539
      %v2627 = vpack.c.b16 %v2546, %v2543
      %v2628 = vpack.c.b16 %v2547, %v2544
      %v2629 = vpack.c.b16 %v2548, %v2545
      %v2630 = vpack.c.b16 %v2552, %v2549
      %v2631 = vpack.c.b16 %v2553, %v2550
      %v2632 = vpack.c.b16 %v2554, %v2551
      %v2633 = vpack.c.b16 %v2558, %v2555
      %v2634 = vpack.c.b16 %v2559, %v2556
      %v2635 = vpack.c.b16 %v2560, %v2557
      %v2636 = vpack.c.b16 %v2564, %v2561
      %v2637 = vpack.c.b16 %v2565, %v2562
      %v2638 = vpack.c.b16 %v2566, %v2563
      %v2759 = vunpack.c.l.b16 %v1156
      %v2760 = vunpack.c.l.b16 %v1157
      %v2761 = vunpack.c.l.b16 %v1158
      %v2762 = vunpack.c.l.b16 %v1159
      %v2763 = vunpack.c.l.b16 %v1160
      %v2764 = vunpack.c.l.b16 %v1161
      %v2765 = vunpack.c.l.b16 %v1162
      %v2766 = vunpack.c.l.b16 %v1163
      %v2767 = vunpack.c.l.b16 %v1164
      %v2768 = vunpack.c.l.b16 %v1165
      %v2769 = vunpack.c.l.b16 %v1166
      %v2770 = vunpack.c.l.b16 %v1167
      %v2771 = vunpack.c.l.b16 %v1168
      %v2772 = vunpack.c.l.b16 %v1169
      %v2773 = vunpack.c.l.b16 %v1170
      %v2774 = vunpack.c.l.b16 %v1171
      %v2775 = vunpack.c.l.b16 %v1172
      %v2776 = vunpack.c.l.b16 %v1173
      %v2777 = vunpack.c.l.b16 %v1174
      %v2778 = vunpack.c.l.b16 %v1175
      %v2779 = vunpack.c.l.b16 %v1176
      %v2780 = vunpack.c.l.b16 %v1177
      %v2781 = vunpack.c.l.b16 %v1178
      %v2782 = vunpack.c.l.b16 %v1179
      %v2783 = vunpack.c.l.b16 %v1180
      %v2784 = vunpack.c.l.b16 %v1181
      %v2785 = vunpack.c.l.b16 %v1182
      %v2786 = vunpack.c.l.b16 %v1183
      %v2787 = vunpack.c.l.b16 %v1184
      %v2788 = vunpack.c.l.b16 %v1185
      %v2789 = vunpack.c.l.b16 %v1186
      %v2790 = vunpack.c.l.b16 %v1187
      %v2791 = vunpack.c.l.b16 %v1188
      %v2792 = vunpack.c.l.b16 %v1189
      %v2793 = vunpack.c.l.b16 %v1190
      %v2794 = vunpack.c.l.b16 %v1191
      %v2795 = vunpack.c.l.b16 %v1192
      %v2796 = vunpack.c.l.b16 %v1193
      %v2797 = vunpack.c.l.b16 %v1194
      %v2798 = vunpack.c.l.b16 %v1195
      %v2799 = vunpack.c.l.b16 %v1196
      %v2800 = vunpack.c.l.b16 %v1197
      %v2801 = vunpack.c.l.b16 %v1198
      %v2802 = vunpack.c.l.b16 %v1199
      %v2803 = vunpack.c.l.b16 %v1200
      %v2804 = vunpack.c.l.b16 %v1201
      %v2805 = vunpack.c.l.b16 %v1202
      %v2806 = vunpack.c.l.b16 %v1203
      %v2807 = vpack.c.b16 %v2760, %v2759
      %v2808 = vpack.c.b16 %v2762, %v2761
      %v2809 = vpack.c.b16 %v2764, %v2763
      %v2810 = vpack.c.b16 %v2766, %v2765
      %v2811 = vpack.c.b16 %v2768, %v2767
      %v2812 = vpack.c.b16 %v2770, %v2769
      %v2813 = vpack.c.b16 %v2772, %v2771
      %v2814 = vpack.c.b16 %v2774, %v2773
      %v2815 = vpack.c.b16 %v2776, %v2775
      %v2816 = vpack.c.b16 %v2778, %v2777
      %v2817 = vpack.c.b16 %v2780, %v2779
      %v2818 = vpack.c.b16 %v2782, %v2781
      %v2819 = vpack.c.b16 %v2784, %v2783
      %v2820 = vpack.c.b16 %v2786, %v2785
      %v2821 = vpack.c.b16 %v2788, %v2787
      %v2822 = vpack.c.b16 %v2790, %v2789
      %v2823 = vpack.c.b16 %v2792, %v2791
      %v2824 = vpack.c.b16 %v2794, %v2793
      %v2825 = vpack.c.b16 %v2796, %v2795
      %v2826 = vpack.c.b16 %v2798, %v2797
      %v2827 = vpack.c.b16 %v2800, %v2799
      %v2828 = vpack.c.b16 %v2802, %v2801
      %v2829 = vpack.c.b16 %v2804, %v2803
      %v2830 = vpack.c.b16 %v2806, %v2805
      %2855 = vmatprep.subr.bf16.mxu0 0
      %2856 = vmatpush1.bf16.msra.mxu0 %v2814
      %2857 = vmatprep.subr.bf16.mxu0 0
      %2858 = vmatpush1.bf16.msra.mxu0 %v2813
      %2859 = vmatprep.subr.bf16.mxu0 0
      %2860 = vmatpush1.bf16.msra.mxu0 %v2812
      %2861 = vmatprep.subr.bf16.mxu0 0
      %2862 = vmatpush1.bf16.msra.mxu0 %v2811
      %2863 = vmatprep.subr.bf16.mxu0 0
      %2864 = vmatpush1.bf16.msra.mxu0 %v2810
      %2865 = vmatprep.subr.bf16.mxu0 0
      %2866 = vmatpush1.bf16.msra.mxu0 %v2809
      %2867 = vmatprep.subr.bf16.mxu0 0
      %2868 = vmatpush1.bf16.msra.mxu0 %v2808
      %2869 = vmatprep.subr.bf16.mxu0 0
      %2870 = vmatpush1.bf16.msra.mxu0 %v2807
      %2871 = vmatprep.subr.bf16.mxu0 0
      %2872 = vmatpush2.bf16.msra.mxu0 %v2822
      %2873 = vmatprep.subr.bf16.mxu0 0
      %2874 = vmatpush2.bf16.msra.mxu0 %v2821
      %2875 = vmatprep.subr.bf16.mxu0 0
      %2876 = vmatpush2.bf16.msra.mxu0 %v2820
      %2877 = vmatprep.subr.bf16.mxu0 0
      %2878 = vmatpush2.bf16.msra.mxu0 %v2819
      %2879 = vmatprep.subr.bf16.mxu0 0
      %2880 = vmatpush2.bf16.msra.mxu0 %v2818
      %2881 = vmatprep.subr.bf16.mxu0 0
      %2882 = vmatpush2.bf16.msra.mxu0 %v2817
      %2883 = vmatprep.subr.bf16.mxu0 0
      %2884 = vmatpush2.bf16.msra.mxu0 %v2816
      %2885 = vmatprep.subr.bf16.mxu0 0
      %2886 = vmatpush2.bf16.msra.mxu0 %v2815
      %2887 = vmatprep.mubr.bf16.mxu0 %v2568
      %2888 = vmatmul.mubr.bf16.gmra.mxu0 %v2567
      %v2889 = vpop.f32.mrf.mxu0
      %v2890 = vadd.f32 %v2137, %v2889
      %v2891 = vpop.f32.mrf.mxu0
      %v2892 = vpop.f32.mrf.mxu0
      %v2893 = vadd.f32 %v2140, %v2892
      %v2894 = vpop.f32.mrf.mxu0
      %2895 = vmatprep.mubr.bf16.mxu0 %v2571
      %2896 = vmatmul.mubr.bf16.gmra.mxu0 %v2570
      %v2897 = vpop.f32.mrf.mxu0
      %v2898 = vadd.f32 %v2145, %v2897
      %v2899 = vpop.f32.mrf.mxu0
      %v2900 = vpop.f32.mrf.mxu0
      %v2901 = vadd.f32 %v2148, %v2900
      %v2902 = vpop.f32.mrf.mxu0
      %2903 = vmatprep.mubr.bf16.mxu0 %v2574
      %2904 = vmatmul.mubr.bf16.gmra.mxu0 %v2573
      %v2905 = vpop.f32.mrf.mxu0
      %v2906 = vadd.f32 %v2153, %v2905
      %v2907 = vpop.f32.mrf.mxu0
      %v2908 = vpop.f32.mrf.mxu0
      %v2909 = vadd.f32 %v2156, %v2908
      %v2910 = vpop.f32.mrf.mxu0
      %2911 = vmatprep.mubr.bf16.mxu0 %v2577
      %2912 = vmatmul.mubr.bf16.gmra.mxu0 %v2576
      %v2913 = vpop.f32.mrf.mxu0
      %v2914 = vadd.f32 %v2161, %v2913
      %v2915 = vpop.f32.mrf.mxu0
      %v2916 = vpop.f32.mrf.mxu0
      %v2917 = vadd.f32 %v2164, %v2916
      %v2918 = vpop.f32.mrf.mxu0
      %2919 = vmatprep.mubr.bf16.mxu0 %v2580
      %2920 = vmatmul.mubr.bf16.gmra.mxu0 %v2579
      %v2921 = vpop.f32.mrf.mxu0
      %v2922 = vadd.f32 %v2169, %v2921
      %v2923 = vpop.f32.mrf.mxu0
      %v2924 = vpop.f32.mrf.mxu0
      %v2925 = vadd.f32 %v2172, %v2924
      %v2926 = vpop.f32.mrf.mxu0
      %2927 = vmatprep.mubr.bf16.mxu0 %v2583
      %2928 = vmatmul.mubr.bf16.gmra.mxu0 %v2582
      %v2929 = vpop.f32.mrf.mxu0
      %v2930 = vadd.f32 %v2177, %v2929
      %v2931 = vpop.f32.mrf.mxu0
      %v2932 = vpop.f32.mrf.mxu0
      %v2933 = vadd.f32 %v2180, %v2932
      %v2934 = vpop.f32.mrf.mxu0
      %2935 = vmatprep.mubr.bf16.mxu0 %v2586
      %2936 = vmatmul.mubr.bf16.gmra.mxu0 %v2585
      %v2937 = vpop.f32.mrf.mxu0
      %v2938 = vadd.f32 %v2185, %v2937
      %v2939 = vpop.f32.mrf.mxu0
      %v2940 = vpop.f32.mrf.mxu0
      %v2941 = vadd.f32 %v2188, %v2940
      %v2942 = vpop.f32.mrf.mxu0
      %2943 = vmatprep.mubr.bf16.mxu0 %v2589
      %2944 = vmatmul.mubr.bf16.gmra.mxu0 %v2588
      %v2945 = vpop.f32.mrf.mxu0
      %v2946 = vadd.f32 %v2193, %v2945
      %v2947 = vpop.f32.mrf.mxu0
      %v2948 = vpop.f32.mrf.mxu0
      %v2949 = vadd.f32 %v2196, %v2948
      %v2950 = vpop.f32.mrf.mxu0
      %2951 = vmatprep.mubr.bf16.mxu0 %v2592
      %2952 = vmatmul.mubr.bf16.gmra.mxu0 %v2591
      %v2953 = vpop.f32.mrf.mxu0
      %v2954 = vadd.f32 %v2201, %v2953
      %v2955 = vpop.f32.mrf.mxu0
      %v2956 = vpop.f32.mrf.mxu0
      %v2957 = vadd.f32 %v2204, %v2956
      %v2958 = vpop.f32.mrf.mxu0
      %2959 = vmatprep.mubr.bf16.mxu0 %v2595
      %2960 = vmatmul.mubr.bf16.gmra.mxu0 %v2594
      %v2961 = vpop.f32.mrf.mxu0
      %v2962 = vadd.f32 %v2209, %v2961
      %v2963 = vpop.f32.mrf.mxu0
      %v2964 = vpop.f32.mrf.mxu0
      %v2965 = vadd.f32 %v2212, %v2964
      %v2966 = vpop.f32.mrf.mxu0
      %2967 = vmatprep.mubr.bf16.mxu0 %v2598
      %2968 = vmatmul.mubr.bf16.gmra.mxu0 %v2597
      %v2969 = vpop.f32.mrf.mxu0
      %v2970 = vadd.f32 %v2217, %v2969
      %v2971 = vpop.f32.mrf.mxu0
      %v2972 = vpop.f32.mrf.mxu0
      %v2973 = vadd.f32 %v2220, %v2972
      %v2974 = vpop.f32.mrf.mxu0
      %2975 = vmatprep.mubr.bf16.mxu0 %v2601
      %2976 = vmatmul.mubr.bf16.gmra.mxu0 %v2600
      %v2977 = vpop.f32.mrf.mxu0
      %v2978 = vadd.f32 %v2225, %v2977
      %v2979 = vpop.f32.mrf.mxu0
      %v2980 = vpop.f32.mrf.mxu0
      %v2981 = vadd.f32 %v2228, %v2980
      %v2982 = vpop.f32.mrf.mxu0
      %2983 = vmatprep.mubr.bf16.mxu0 %v2604
      %2984 = vmatmul.mubr.bf16.gmra.mxu0 %v2603
      %v2985 = vpop.f32.mrf.mxu0
      %v2986 = vadd.f32 %v2233, %v2985
      %v2987 = vpop.f32.mrf.mxu0
      %v2988 = vpop.f32.mrf.mxu0
      %v2989 = vadd.f32 %v2236, %v2988
      %v2990 = vpop.f32.mrf.mxu0
      %2991 = vmatprep.mubr.bf16.mxu0 %v2607
      %2992 = vmatmul.mubr.bf16.gmra.mxu0 %v2606
      %v2993 = vpop.f32.mrf.mxu0
      %v2994 = vadd.f32 %v2241, %v2993
      %v2995 = vpop.f32.mrf.mxu0
      %v2996 = vpop.f32.mrf.mxu0
      %v2997 = vadd.f32 %v2244, %v2996
      %v2998 = vpop.f32.mrf.mxu0
      %2999 = vmatprep.mubr.bf16.mxu0 %v2610
      %3000 = vmatmul.mubr.bf16.gmra.mxu0 %v2609
      %v3001 = vpop.f32.mrf.mxu0
      %v3002 = vadd.f32 %v2249, %v3001
      %v3003 = vpop.f32.mrf.mxu0
      %v3004 = vpop.f32.mrf.mxu0
      %v3005 = vadd.f32 %v2252, %v3004
      %v3006 = vpop.f32.mrf.mxu0
      %3007 = vmatprep.mubr.bf16.mxu0 %v2613
      %3008 = vmatmul.mubr.bf16.gmra.mxu0 %v2612
      %v3009 = vpop.f32.mrf.mxu0
      %v3010 = vadd.f32 %v2257, %v3009
      %v3011 = vpop.f32.mrf.mxu0
      %v3012 = vpop.f32.mrf.mxu0
      %v3013 = vadd.f32 %v2260, %v3012
      %v3014 = vpop.f32.mrf.mxu0
      %3015 = vmatprep.mubr.bf16.mxu0 %v2616
      %3016 = vmatmul.mubr.bf16.gmra.mxu0 %v2615
      %v3017 = vpop.f32.mrf.mxu0
      %v3018 = vadd.f32 %v2265, %v3017
      %v3019 = vpop.f32.mrf.mxu0
      %v3020 = vpop.f32.mrf.mxu0
      %v3021 = vadd.f32 %v2268, %v3020
      %v3022 = vpop.f32.mrf.mxu0
      %3023 = vmatprep.mubr.bf16.mxu0 %v2619
      %3024 = vmatmul.mubr.bf16.gmra.mxu0 %v2618
      %v3025 = vpop.f32.mrf.mxu0
      %v3026 = vadd.f32 %v2273, %v3025
      %v3027 = vpop.f32.mrf.mxu0
      %v3028 = vpop.f32.mrf.mxu0
      %v3029 = vadd.f32 %v2276, %v3028
      %v3030 = vpop.f32.mrf.mxu0
      %3031 = vmatprep.mubr.bf16.mxu0 %v2622
      %3032 = vmatmul.mubr.bf16.gmra.mxu0 %v2621
      %v3033 = vpop.f32.mrf.mxu0
      %v3034 = vadd.f32 %v2281, %v3033
      %v3035 = vpop.f32.mrf.mxu0
      %v3036 = vpop.f32.mrf.mxu0
      %v3037 = vadd.f32 %v2284, %v3036
      %v3038 = vpop.f32.mrf.mxu0
      %3039 = vmatprep.mubr.bf16.mxu0 %v2625
      %3040 = vmatmul.mubr.bf16.gmra.mxu0 %v2624
      %v3041 = vpop.f32.mrf.mxu0
      %v3042 = vadd.f32 %v2289, %v3041
      %v3043 = vpop.f32.mrf.mxu0
      %v3044 = vpop.f32.mrf.mxu0
      %v3045 = vadd.f32 %v2292, %v3044
      %v3046 = vpop.f32.mrf.mxu0
      %3047 = vmatprep.mubr.bf16.mxu0 %v2628
      %3048 = vmatmul.mubr.bf16.gmra.mxu0 %v2627
      %v3049 = vpop.f32.mrf.mxu0
      %v3050 = vadd.f32 %v2297, %v3049
      %v3051 = vpop.f32.mrf.mxu0
      %v3052 = vpop.f32.mrf.mxu0
      %v3053 = vadd.f32 %v2300, %v3052
      %v3054 = vpop.f32.mrf.mxu0
      %3055 = vmatprep.mubr.bf16.mxu0 %v2631
      %3056 = vmatmul.mubr.bf16.gmra.mxu0 %v2630
      %v3057 = vpop.f32.mrf.mxu0
      %v3058 = vadd.f32 %v2305, %v3057
      %v3059 = vpop.f32.mrf.mxu0
      %v3060 = vpop.f32.mrf.mxu0
      %v3061 = vadd.f32 %v2308, %v3060
      %v3062 = vpop.f32.mrf.mxu0
      %3063 = vmatprep.mubr.bf16.mxu0 %v2634
      %3064 = vmatmul.mubr.bf16.gmra.mxu0 %v2633
      %v3065 = vpop.f32.mrf.mxu0
      %v3066 = vadd.f32 %v2313, %v3065
      %v3067 = vpop.f32.mrf.mxu0
      %v3068 = vpop.f32.mrf.mxu0
      %v3069 = vadd.f32 %v2316, %v3068
      %v3070 = vpop.f32.mrf.mxu0
      %3071 = vmatprep.mubr.bf16.mxu0 %v2637
      %3072 = vmatmul.mubr.bf16.gmra.mxu0 %v2636
      %v3073 = vpop.f32.mrf.mxu0
      %v3074 = vadd.f32 %v2321, %v3073
      %v3075 = vpop.f32.mrf.mxu0
      %v3076 = vpop.f32.mrf.mxu0
      %v3077 = vadd.f32 %v2324, %v3076
      %v3078 = vpop.f32.mrf.mxu0
      %3079 = vdwg.mxu0
      %3080 = vmatprep.subr.bf16.mxu0 0
      %3081 = vmatpush1.bf16.msra.mxu0 %v2830
      %3082 = vmatprep.subr.bf16.mxu0 0
      %3083 = vmatpush1.bf16.msra.mxu0 %v2829
      %3084 = vmatprep.subr.bf16.mxu0 0
      %3085 = vmatpush1.bf16.msra.mxu0 %v2828
      %3086 = vmatprep.subr.bf16.mxu0 0
      %3087 = vmatpush1.bf16.msra.mxu0 %v2827
      %3088 = vmatprep.subr.bf16.mxu0 0
      %3089 = vmatpush1.bf16.msra.mxu0 %v2826
      %3090 = vmatprep.subr.bf16.mxu0 0
      %3091 = vmatpush1.bf16.msra.mxu0 %v2825
      %3092 = vmatprep.subr.bf16.mxu0 0
      %3093 = vmatpush1.bf16.msra.mxu0 %v2824
      %3094 = vmatprep.subr.bf16.mxu0 0
      %3095 = vmatpush1.bf16.msra.mxu0 %v2823
      %3096 = vmatprep.subr.bf16.mxu0 0
      %3097 = vmatpush2.bf16.msra.mxu0 0
      %3098 = vmatprep.subr.bf16.mxu0 0
      %3099 = vmatpush2.bf16.msra.mxu0 0
      %3100 = vmatprep.subr.bf16.mxu0 0
      %3101 = vmatpush2.bf16.msra.mxu0 0
      %3102 = vmatprep.subr.bf16.mxu0 0
      %3103 = vmatpush2.bf16.msra.mxu0 0
      %3104 = vmatprep.subr.bf16.mxu0 0
      %3105 = vmatpush2.bf16.msra.mxu0 0
      %3106 = vmatprep.subr.bf16.mxu0 0
      %3107 = vmatpush2.bf16.msra.mxu0 0
      %3108 = vmatprep.subr.bf16.mxu0 0
      %3109 = vmatpush2.bf16.msra.mxu0 0
      %3110 = vmatprep.subr.bf16.mxu0 0
      %3111 = vmatpush2.bf16.msra.mxu0 0
      %3112 = vmatprep.mubr.bf16.mxu0 0
      %3113 = vmatmul.mubr.bf16.gmra.mxu0 %v2569
      %v3114 = vpop.f32.mrf.mxu0
      %v3115 = vadd.f32 %v2890, %v3114
      %v3116 = vpop.f32.mrf.mxu0
      %v3117 = vpop.f32.mrf.mxu0
      %v3118 = vadd.f32 %v2893, %v3117
      %v3119 = vpop.f32.mrf.mxu0
      %3120 = vmatprep.mubr.bf16.mxu0 0
      %3121 = vmatmul.mubr.bf16.gmra.mxu0 %v2572
      %v3122 = vpop.f32.mrf.mxu0
      %v3123 = vadd.f32 %v2898, %v3122
      %v3124 = vpop.f32.mrf.mxu0
      %v3125 = vpop.f32.mrf.mxu0
      %v3126 = vadd.f32 %v2901, %v3125
      %v3127 = vpop.f32.mrf.mxu0
      %3128 = vmatprep.mubr.bf16.mxu0 0
      %3129 = vmatmul.mubr.bf16.gmra.mxu0 %v2575
      %v3130 = vpop.f32.mrf.mxu0
      %v3131 = vadd.f32 %v2906, %v3130
      %v3132 = vpop.f32.mrf.mxu0
      %v3133 = vpop.f32.mrf.mxu0
      %v3134 = vadd.f32 %v2909, %v3133
      %v3135 = vpop.f32.mrf.mxu0
      %3136 = vmatprep.mubr.bf16.mxu0 0
      %3137 = vmatmul.mubr.bf16.gmra.mxu0 %v2578
      %v3138 = vpop.f32.mrf.mxu0
      %v3139 = vadd.f32 %v2914, %v3138
      %v3140 = vpop.f32.mrf.mxu0
      %v3141 = vpop.f32.mrf.mxu0
      %v3142 = vadd.f32 %v2917, %v3141
      %v3143 = vpop.f32.mrf.mxu0
      %3144 = vmatprep.mubr.bf16.mxu0 0
      %3145 = vmatmul.mubr.bf16.gmra.mxu0 %v2581
      %v3146 = vpop.f32.mrf.mxu0
      %v3147 = vadd.f32 %v2922, %v3146
      %v3148 = vpop.f32.mrf.mxu0
      %v3149 = vpop.f32.mrf.mxu0
      %v3150 = vadd.f32 %v2925, %v3149
      %v3151 = vpop.f32.mrf.mxu0
      %3152 = vmatprep.mubr.bf16.mxu0 0
      %3153 = vmatmul.mubr.bf16.gmra.mxu0 %v2584
      %v3154 = vpop.f32.mrf.mxu0
      %v3155 = vadd.f32 %v2930, %v3154
      %v3156 = vpop.f32.mrf.mxu0
      %v3157 = vpop.f32.mrf.mxu0
      %v3158 = vadd.f32 %v2933, %v3157
      %v3159 = vpop.f32.mrf.mxu0
      %3160 = vmatprep.mubr.bf16.mxu0 0
      %3161 = vmatmul.mubr.bf16.gmra.mxu0 %v2587
      %v3162 = vpop.f32.mrf.mxu0
      %v3163 = vadd.f32 %v2938, %v3162
      %v3164 = vpop.f32.mrf.mxu0
      %v3165 = vpop.f32.mrf.mxu0
      %v3166 = vadd.f32 %v2941, %v3165
      %v3167 = vpop.f32.mrf.mxu0
      %3168 = vmatprep.mubr.bf16.mxu0 0
      %3169 = vmatmul.mubr.bf16.gmra.mxu0 %v2590
      %v3170 = vpop.f32.mrf.mxu0
      %v3171 = vadd.f32 %v2946, %v3170
      %v3172 = vpop.f32.mrf.mxu0
      %v3173 = vpop.f32.mrf.mxu0
      %v3174 = vadd.f32 %v2949, %v3173
      %v3175 = vpop.f32.mrf.mxu0
      %3176 = vmatprep.mubr.bf16.mxu0 0
      %3177 = vmatmul.mubr.bf16.gmra.mxu0 %v2593
      %v3178 = vpop.f32.mrf.mxu0
      %v3179 = vadd.f32 %v2954, %v3178
      %v3180 = vpop.f32.mrf.mxu0
      %v3181 = vpop.f32.mrf.mxu0
      %v3182 = vadd.f32 %v2957, %v3181
      %v3183 = vpop.f32.mrf.mxu0
      %3184 = vmatprep.mubr.bf16.mxu0 0
      %3185 = vmatmul.mubr.bf16.gmra.mxu0 %v2596
      %v3186 = vpop.f32.mrf.mxu0
      %v3187 = vadd.f32 %v2962, %v3186
      %v3188 = vpop.f32.mrf.mxu0
      %v3189 = vpop.f32.mrf.mxu0
      %v3190 = vadd.f32 %v2965, %v3189
      %v3191 = vpop.f32.mrf.mxu0
      %3192 = vmatprep.mubr.bf16.mxu0 0
      %3193 = vmatmul.mubr.bf16.gmra.mxu0 %v2599
      %v3194 = vpop.f32.mrf.mxu0
      %v3195 = vadd.f32 %v2970, %v3194
      %v3196 = vpop.f32.mrf.mxu0
      %v3197 = vpop.f32.mrf.mxu0
      %v3198 = vadd.f32 %v2973, %v3197
      %v3199 = vpop.f32.mrf.mxu0
      %3200 = vmatprep.mubr.bf16.mxu0 0
      %3201 = vmatmul.mubr.bf16.gmra.mxu0 %v2602
      %v3202 = vpop.f32.mrf.mxu0
      %v3203 = vadd.f32 %v2978, %v3202
      %v3204 = vpop.f32.mrf.mxu0
      %v3205 = vpop.f32.mrf.mxu0
      %v3206 = vadd.f32 %v2981, %v3205
      %v3207 = vpop.f32.mrf.mxu0
      %3208 = vmatprep.mubr.bf16.mxu0 0
      %3209 = vmatmul.mubr.bf16.gmra.mxu0 %v2605
      %v3210 = vpop.f32.mrf.mxu0
      %v3211 = vadd.f32 %v2986, %v3210
      %v3212 = vpop.f32.mrf.mxu0
      %v3213 = vpop.f32.mrf.mxu0
      %v3214 = vadd.f32 %v2989, %v3213
      %v3215 = vpop.f32.mrf.mxu0
      %3216 = vmatprep.mubr.bf16.mxu0 0
      %3217 = vmatmul.mubr.bf16.gmra.mxu0 %v2608
      %v3218 = vpop.f32.mrf.mxu0
      %v3219 = vadd.f32 %v2994, %v3218
      %v3220 = vpop.f32.mrf.mxu0
      %v3221 = vpop.f32.mrf.mxu0
      %v3222 = vadd.f32 %v2997, %v3221
      %v3223 = vpop.f32.mrf.mxu0
      %3224 = vmatprep.mubr.bf16.mxu0 0
      %3225 = vmatmul.mubr.bf16.gmra.mxu0 %v2611
      %v3226 = vpop.f32.mrf.mxu0
      %v3227 = vadd.f32 %v3002, %v3226
      %v3228 = vpop.f32.mrf.mxu0
      %v3229 = vpop.f32.mrf.mxu0
      %v3230 = vadd.f32 %v3005, %v3229
      %v3231 = vpop.f32.mrf.mxu0
      %3232 = vmatprep.mubr.bf16.mxu0 0
      %3233 = vmatmul.mubr.bf16.gmra.mxu0 %v2614
      %v3234 = vpop.f32.mrf.mxu0
      %v3235 = vadd.f32 %v3010, %v3234
      %v3236 = vpop.f32.mrf.mxu0
      %v3237 = vpop.f32.mrf.mxu0
      %v3238 = vadd.f32 %v3013, %v3237
      %v3239 = vpop.f32.mrf.mxu0
      %3240 = vmatprep.mubr.bf16.mxu0 0
      %3241 = vmatmul.mubr.bf16.gmra.mxu0 %v2617
      %v3242 = vpop.f32.mrf.mxu0
      %v3243 = vadd.f32 %v3018, %v3242
      %v3244 = vpop.f32.mrf.mxu0
      %v3245 = vpop.f32.mrf.mxu0
      %v3246 = vadd.f32 %v3021, %v3245
      %v3247 = vpop.f32.mrf.mxu0
      %3248 = vmatprep.mubr.bf16.mxu0 0
      %3249 = vmatmul.mubr.bf16.gmra.mxu0 %v2620
      %v3250 = vpop.f32.mrf.mxu0
      %v3251 = vadd.f32 %v3026, %v3250
      %v3252 = vpop.f32.mrf.mxu0
      %v3253 = vpop.f32.mrf.mxu0
      %v3254 = vadd.f32 %v3029, %v3253
      %v3255 = vpop.f32.mrf.mxu0
      %3256 = vmatprep.mubr.bf16.mxu0 0
      %3257 = vmatmul.mubr.bf16.gmra.mxu0 %v2623
      %v3258 = vpop.f32.mrf.mxu0
      %v3259 = vadd.f32 %v3034, %v3258
      %v3260 = vpop.f32.mrf.mxu0
      %v3261 = vpop.f32.mrf.mxu0
      %v3262 = vadd.f32 %v3037, %v3261
      %v3263 = vpop.f32.mrf.mxu0
      %3264 = vmatprep.mubr.bf16.mxu0 0
      %3265 = vmatmul.mubr.bf16.gmra.mxu0 %v2626
      %v3266 = vpop.f32.mrf.mxu0
      %v3267 = vadd.f32 %v3042, %v3266
      %v3268 = vpop.f32.mrf.mxu0
      %v3269 = vpop.f32.mrf.mxu0
      %v3270 = vadd.f32 %v3045, %v3269
      %v3271 = vpop.f32.mrf.mxu0
      %3272 = vmatprep.mubr.bf16.mxu0 0
      %3273 = vmatmul.mubr.bf16.gmra.mxu0 %v2629
      %v3274 = vpop.f32.mrf.mxu0
      %v3275 = vadd.f32 %v3050, %v3274
      %v3276 = vpop.f32.mrf.mxu0
      %v3277 = vpop.f32.mrf.mxu0
      %v3278 = vadd.f32 %v3053, %v3277
      %v3279 = vpop.f32.mrf.mxu0
      %3280 = vmatprep.mubr.bf16.mxu0 0
      %3281 = vmatmul.mubr.bf16.gmra.mxu0 %v2632
      %v3282 = vpop.f32.mrf.mxu0
      %v3283 = vadd.f32 %v3058, %v3282
      %v3284 = vpop.f32.mrf.mxu0
      %v3285 = vpop.f32.mrf.mxu0
      %v3286 = vadd.f32 %v3061, %v3285
      %v3287 = vpop.f32.mrf.mxu0
      %3288 = vmatprep.mubr.bf16.mxu0 0
      %3289 = vmatmul.mubr.bf16.gmra.mxu0 %v2635
      %v3290 = vpop.f32.mrf.mxu0
      %v3291 = vadd.f32 %v3066, %v3290
      %v3292 = vpop.f32.mrf.mxu0
      %v3293 = vpop.f32.mrf.mxu0
      %v3294 = vadd.f32 %v3069, %v3293
      %v3295 = vpop.f32.mrf.mxu0
      %3296 = vmatprep.mubr.bf16.mxu0 0
      %3297 = vmatmul.mubr.bf16.gmra.mxu0 %v2638
      %v3298 = vpop.f32.mrf.mxu0
      %v3299 = vadd.f32 %v3074, %v3298
      %v3300 = vpop.f32.mrf.mxu0
      %v3301 = vpop.f32.mrf.mxu0
      %v3302 = vadd.f32 %v3077, %v3301
      %v3303 = vpop.f32.mrf.mxu0
      %3304 = vdwg.mxu0
      %s3305 = scalar_lea.vmem [#allocation2], 72
      %v3306 = vld [vmem:[%s3305] sm:$0xff]
      %v3307 = vld [vmem:[%s3305 + $0x8] sm:$0xf]
      %v3308 = vld [vmem:[%s3305 + $0xc] sm:$0xff]
      %v3309 = vld [vmem:[%s3305 + $0x14] sm:$0xf]
      %v3310 = vld [vmem:[%s3305 + $0x18] sm:$0xff]
      %v3311 = vld [vmem:[%s3305 + $0x20] sm:$0xf]
      %v3312 = vld [vmem:[%s3305 + $0x24] sm:$0xff]
      %v3313 = vld [vmem:[%s3305 + $0x2c] sm:$0xf]
      %v3314 = vld [vmem:[%s3305 + $0x30] sm:$0xff]
      %v3315 = vld [vmem:[%s3305 + $0x38] sm:$0xf]
      %v3316 = vld [vmem:[%s3305 + $0x3c] sm:$0xff]
      %v3317 = vld [vmem:[%s3305 + $0x44] sm:$0xf]
      %v3318 = vld [vmem:[%s3305 + $0x48] sm:$0xff]
      %v3319 = vld [vmem:[%s3305 + $0x50] sm:$0xf]
      %v3320 = vld [vmem:[%s3305 + $0x54] sm:$0xff]
      %v3321 = vld [vmem:[%s3305 + $0x5c] sm:$0xf]
      %v3322 = vld [vmem:[%s3305 + $0x60] sm:$0xff]
      %v3323 = vld [vmem:[%s3305 + $0x68] sm:$0xf]
      %v3324 = vld [vmem:[%s3305 + $0x6c] sm:$0xff]
      %v3325 = vld [vmem:[%s3305 + $0x74] sm:$0xf]
      %v3326 = vld [vmem:[%s3305 + $0x78] sm:$0xff]
      %v3327 = vld [vmem:[%s3305 + $0x80] sm:$0xf]
      %v3328 = vld [vmem:[%s3305 + $0x84] sm:$0xff]
      %v3329 = vld [vmem:[%s3305 + $0x8c] sm:$0xf]
      %v3330 = vld [vmem:[%s3305 + $0x90] sm:$0xff]
      %v3331 = vld [vmem:[%s3305 + $0x98] sm:$0xf]
      %v3332 = vld [vmem:[%s3305 + $0x9c] sm:$0xff]
      %v3333 = vld [vmem:[%s3305 + $0xa4] sm:$0xf]
      %v3334 = vld [vmem:[%s3305 + $0xa8] sm:$0xff]
      %v3335 = vld [vmem:[%s3305 + $0xb0] sm:$0xf]
      %v3336 = vld [vmem:[%s3305 + $0xb4] sm:$0xff]
      %v3337 = vld [vmem:[%s3305 + $0xbc] sm:$0xf]
      %v3338 = vld [vmem:[%s3305 + $0xc0] sm:$0xff]
      %v3339 = vld [vmem:[%s3305 + $0xc8] sm:$0xf]
      %v3340 = vld [vmem:[%s3305 + $0xcc] sm:$0xff]
      %v3341 = vld [vmem:[%s3305 + $0xd4] sm:$0xf]
      %v3342 = vld [vmem:[%s3305 + $0xd8] sm:$0xff]
      %v3343 = vld [vmem:[%s3305 + $0xe0] sm:$0xf]
      %v3344 = vld [vmem:[%s3305 + $0xe4] sm:$0xff]
      %v3345 = vld [vmem:[%s3305 + $0xec] sm:$0xf]
      %v3346 = vld [vmem:[%s3305 + $0xf0] sm:$0xff]
      %v3347 = vld [vmem:[%s3305 + $0xf8] sm:$0xf]
      %v3348 = vld [vmem:[%s3305 + $0xfc] sm:$0xff]
      %v3349 = vld [vmem:[%s3305 + $0x104] sm:$0xf]
      %v3350 = vld [vmem:[%s3305 + $0x108] sm:$0xff]
      %v3351 = vld [vmem:[%s3305 + $0x110] sm:$0xf]
      %v3352 = vld [vmem:[%s3305 + $0x114] sm:$0xff]
      %v3353 = vld [vmem:[%s3305 + $0x11c] sm:$0xf]
      %v3354 = vld [vmem:[%s3305 + $0x120] sm:$0xff]
      %v3355 = vld [vmem:[%s3305 + $0x128] sm:$0xf]
      %v3356 = vld [vmem:[%s3305 + $0x12c] sm:$0xff]
      %v3357 = vld [vmem:[%s3305 + $0x134] sm:$0xf]
      %v3358 = vld [vmem:[%s3305 + $0x138] sm:$0xff]
      %v3359 = vld [vmem:[%s3305 + $0x140] sm:$0xf]
      %v3360 = vld [vmem:[%s3305 + $0x144] sm:$0xff]
      %v3361 = vld [vmem:[%s3305 + $0x14c] sm:$0xf]
      %v3362 = vld [vmem:[%s3305 + $0x150] sm:$0xff]
      %v3363 = vld [vmem:[%s3305 + $0x158] sm:$0xf]
      %v3364 = vld [vmem:[%s3305 + $0x15c] sm:$0xff]
      %v3365 = vld [vmem:[%s3305 + $0x164] sm:$0xf]
      %v3366 = vld [vmem:[%s3305 + $0x168] sm:$0xff]
      %v3367 = vld [vmem:[%s3305 + $0x170] sm:$0xf]
      %v3368 = vld [vmem:[%s3305 + $0x174] sm:$0xff]
      %v3369 = vld [vmem:[%s3305 + $0x17c] sm:$0xf]
      %v3370 = vld [vmem:[%s3305 + $0x180] sm:$0xff]
      %v3371 = vld [vmem:[%s3305 + $0x188] sm:$0xf]
      %v3372 = vld [vmem:[%s3305 + $0x18c] sm:$0xff]
      %v3373 = vld [vmem:[%s3305 + $0x194] sm:$0xf]
      %v3374 = vld [vmem:[%s3305 + $0x198] sm:$0xff]
      %v3375 = vld [vmem:[%s3305 + $0x1a0] sm:$0xf]
      %v3376 = vld [vmem:[%s3305 + $0x1a4] sm:$0xff]
      %v3377 = vld [vmem:[%s3305 + $0x1ac] sm:$0xf]
      %v3378 = vld [vmem:[%s3305 + $0x1b0] sm:$0xff]
      %v3379 = vld [vmem:[%s3305 + $0x1b8] sm:$0xf]
      %v3380 = vld [vmem:[%s3305 + $0x1bc] sm:$0xff]
      %v3381 = vld [vmem:[%s3305 + $0x1c4] sm:$0xf]
      %v3382 = vld [vmem:[%s3305 + $0x1c8] sm:$0xff]
      %v3383 = vld [vmem:[%s3305 + $0x1d0] sm:$0xf]
      %v3384 = vld [vmem:[%s3305 + $0x1d4] sm:$0xff]
      %v3385 = vld [vmem:[%s3305 + $0x1dc] sm:$0xf]
      %v3386 = vld [vmem:[%s3305 + $0x1e0] sm:$0xff]
      %v3387 = vld [vmem:[%s3305 + $0x1e8] sm:$0xf]
      %v3388 = vld [vmem:[%s3305 + $0x1ec] sm:$0xff]
      %v3389 = vld [vmem:[%s3305 + $0x1f4] sm:$0xf]
      %v3390 = vld [vmem:[%s3305 + $0x1f8] sm:$0xff]
      %v3391 = vld [vmem:[%s3305 + $0x200] sm:$0xf]
      %v3392 = vld [vmem:[%s3305 + $0x204] sm:$0xff]
      %v3393 = vld [vmem:[%s3305 + $0x20c] sm:$0xf]
      %v3394 = vld [vmem:[%s3305 + $0x210] sm:$0xff]
      %v3395 = vld [vmem:[%s3305 + $0x218] sm:$0xf]
      %v3396 = vld [vmem:[%s3305 + $0x21c] sm:$0xff]
      %v3397 = vld [vmem:[%s3305 + $0x224] sm:$0xf]
      %v3398 = vld [vmem:[%s3305 + $0x228] sm:$0xff]
      %v3399 = vld [vmem:[%s3305 + $0x230] sm:$0xf]
      %v3400 = vld [vmem:[%s3305 + $0x234] sm:$0xff]
      %v3401 = vld [vmem:[%s3305 + $0x23c] sm:$0xf]
      %s3402 = scalar_lea.vmem %s1, 384
      %v3403 = vld [vmem:[%s3402] sm:$0xf]
      %v3404 = vld [vmem:[%s3402 + $0x4] sm:$0xf]
      %v3405 = vld [vmem:[%s3402 + $0x8] sm:$0xf]
      %v3406 = vld [vmem:[%s3402 + $0xc] sm:$0xf]
      %v3407 = vld [vmem:[%s3402 + $0x10] sm:$0xf]
      %v3408 = vld [vmem:[%s3402 + $0x14] sm:$0xf]
      %v3409 = vld [vmem:[%s3402 + $0x18] sm:$0xf]
      %v3410 = vld [vmem:[%s3402 + $0x1c] sm:$0xf]
      %v3411 = vld [vmem:[%s3402 + $0x20] sm:$0xf]
      %v3412 = vld [vmem:[%s3402 + $0x24] sm:$0xf]
      %v3413 = vld [vmem:[%s3402 + $0x28] sm:$0xf]
      %v3414 = vld [vmem:[%s3402 + $0x2c] sm:$0xf]
      %v3415 = vld [vmem:[%s3402 + $0x30] sm:$0xf]
      %v3416 = vld [vmem:[%s3402 + $0x34] sm:$0xf]
      %v3417 = vld [vmem:[%s3402 + $0x38] sm:$0xf]
      %v3418 = vld [vmem:[%s3402 + $0x3c] sm:$0xf]
      %v3419 = vld [vmem:[%s3402 + $0x40] sm:$0xf]
      %v3420 = vld [vmem:[%s3402 + $0x44] sm:$0xf]
      %v3421 = vld [vmem:[%s3402 + $0x48] sm:$0xf]
      %v3422 = vld [vmem:[%s3402 + $0x4c] sm:$0xf]
      %v3423 = vld [vmem:[%s3402 + $0x50] sm:$0xf]
      %v3424 = vld [vmem:[%s3402 + $0x54] sm:$0xf]
      %v3425 = vld [vmem:[%s3402 + $0x58] sm:$0xf]
      %v3426 = vld [vmem:[%s3402 + $0x5c] sm:$0xf]
      %v3427 = vld [vmem:[%s3402 + $0x60] sm:$0xf]
      %v3428 = vld [vmem:[%s3402 + $0x64] sm:$0xf]
      %v3429 = vld [vmem:[%s3402 + $0x68] sm:$0xf]
      %v3430 = vld [vmem:[%s3402 + $0x6c] sm:$0xf]
      %v3431 = vld [vmem:[%s3402 + $0x70] sm:$0xf]
      %v3432 = vld [vmem:[%s3402 + $0x74] sm:$0xf]
      %v3433 = vld [vmem:[%s3402 + $0x78] sm:$0xf]
      %v3434 = vld [vmem:[%s3402 + $0x7c] sm:$0xf]
      %v3435 = vld [vmem:[%s3402 + $0x80] sm:$0xf]
      %v3436 = vld [vmem:[%s3402 + $0x84] sm:$0xf]
      %v3437 = vld [vmem:[%s3402 + $0x88] sm:$0xf]
      %v3438 = vld [vmem:[%s3402 + $0x8c] sm:$0xf]
      %v3439 = vld [vmem:[%s3402 + $0x90] sm:$0xf]
      %v3440 = vld [vmem:[%s3402 + $0x94] sm:$0xf]
      %v3441 = vld [vmem:[%s3402 + $0x98] sm:$0xf]
      %v3442 = vld [vmem:[%s3402 + $0x9c] sm:$0xf]
      %v3443 = vld [vmem:[%s3402 + $0xa0] sm:$0xf]
      %v3444 = vld [vmem:[%s3402 + $0xa4] sm:$0xf]
      %v3445 = vld [vmem:[%s3402 + $0xa8] sm:$0xf]
      %v3446 = vld [vmem:[%s3402 + $0xac] sm:$0xf]
      %v3447 = vld [vmem:[%s3402 + $0xb0] sm:$0xf]
      %v3448 = vld [vmem:[%s3402 + $0xb4] sm:$0xf]
      %v3449 = vld [vmem:[%s3402 + $0xb8] sm:$0xf]
      %v3450 = vld [vmem:[%s3402 + $0xbc] sm:$0xf]
      %v3547 = vunpack.c.l.b16 %v3306
      %v3548 = vunpack.c.h.b16 %v3306
      %v3549 = vunpack.c.l.b16 %v3307
      %v3550 = vunpack.c.l.b16 %v3308
      %v3551 = vunpack.c.h.b16 %v3308
      %v3552 = vunpack.c.l.b16 %v3309
      %v3553 = vunpack.c.l.b16 %v3310
      %v3554 = vunpack.c.h.b16 %v3310
      %v3555 = vunpack.c.l.b16 %v3311
      %v3556 = vunpack.c.l.b16 %v3312
      %v3557 = vunpack.c.h.b16 %v3312
      %v3558 = vunpack.c.l.b16 %v3313
      %v3559 = vunpack.c.l.b16 %v3314
      %v3560 = vunpack.c.h.b16 %v3314
      %v3561 = vunpack.c.l.b16 %v3315
      %v3562 = vunpack.c.l.b16 %v3316
      %v3563 = vunpack.c.h.b16 %v3316
      %v3564 = vunpack.c.l.b16 %v3317
      %v3565 = vunpack.c.l.b16 %v3318
      %v3566 = vunpack.c.h.b16 %v3318
      %v3567 = vunpack.c.l.b16 %v3319
      %v3568 = vunpack.c.l.b16 %v3320
      %v3569 = vunpack.c.h.b16 %v3320
      %v3570 = vunpack.c.l.b16 %v3321
      %v3571 = vunpack.c.l.b16 %v3322
      %v3572 = vunpack.c.h.b16 %v3322
      %v3573 = vunpack.c.l.b16 %v3323
      %v3574 = vunpack.c.l.b16 %v3324
      %v3575 = vunpack.c.h.b16 %v3324
      %v3576 = vunpack.c.l.b16 %v3325
      %v3577 = vunpack.c.l.b16 %v3326
      %v3578 = vunpack.c.h.b16 %v3326
      %v3579 = vunpack.c.l.b16 %v3327
      %v3580 = vunpack.c.l.b16 %v3328
      %v3581 = vunpack.c.h.b16 %v3328
      %v3582 = vunpack.c.l.b16 %v3329
      %v3583 = vunpack.c.l.b16 %v3330
      %v3584 = vunpack.c.h.b16 %v3330
      %v3585 = vunpack.c.l.b16 %v3331
      %v3586 = vunpack.c.l.b16 %v3332
      %v3587 = vunpack.c.h.b16 %v3332
      %v3588 = vunpack.c.l.b16 %v3333
      %v3589 = vunpack.c.l.b16 %v3334
      %v3590 = vunpack.c.h.b16 %v3334
      %v3591 = vunpack.c.l.b16 %v3335
      %v3592 = vunpack.c.l.b16 %v3336
      %v3593 = vunpack.c.h.b16 %v3336
      %v3594 = vunpack.c.l.b16 %v3337
      %v3595 = vunpack.c.l.b16 %v3338
      %v3596 = vunpack.c.h.b16 %v3338
      %v3597 = vunpack.c.l.b16 %v3339
      %v3598 = vunpack.c.l.b16 %v3340
      %v3599 = vunpack.c.h.b16 %v3340
      %v3600 = vunpack.c.l.b16 %v3341
      %v3601 = vunpack.c.l.b16 %v3342
      %v3602 = vunpack.c.h.b16 %v3342
      %v3603 = vunpack.c.l.b16 %v3343
      %v3604 = vunpack.c.l.b16 %v3344
      %v3605 = vunpack.c.h.b16 %v3344
      %v3606 = vunpack.c.l.b16 %v3345
      %v3607 = vunpack.c.l.b16 %v3346
      %v3608 = vunpack.c.h.b16 %v3346
      %v3609 = vunpack.c.l.b16 %v3347
      %v3610 = vunpack.c.l.b16 %v3348
      %v3611 = vunpack.c.h.b16 %v3348
      %v3612 = vunpack.c.l.b16 %v3349
      %v3613 = vunpack.c.l.b16 %v3350
      %v3614 = vunpack.c.h.b16 %v3350
      %v3615 = vunpack.c.l.b16 %v3351
      %v3616 = vunpack.c.l.b16 %v3352
      %v3617 = vunpack.c.h.b16 %v3352
      %v3618 = vunpack.c.l.b16 %v3353
      %v3619 = vunpack.c.l.b16 %v3354
      %v3620 = vunpack.c.h.b16 %v3354
      %v3621 = vunpack.c.l.b16 %v3355
      %v3622 = vunpack.c.l.b16 %v3356
      %v3623 = vunpack.c.h.b16 %v3356
      %v3624 = vunpack.c.l.b16 %v3357
      %v3625 = vunpack.c.l.b16 %v3358
      %v3626 = vunpack.c.h.b16 %v3358
      %v3627 = vunpack.c.l.b16 %v3359
      %v3628 = vunpack.c.l.b16 %v3360
      %v3629 = vunpack.c.h.b16 %v3360
      %v3630 = vunpack.c.l.b16 %v3361
      %v3631 = vunpack.c.l.b16 %v3362
      %v3632 = vunpack.c.h.b16 %v3362
      %v3633 = vunpack.c.l.b16 %v3363
      %v3634 = vunpack.c.l.b16 %v3364
      %v3635 = vunpack.c.h.b16 %v3364
      %v3636 = vunpack.c.l.b16 %v3365
      %v3637 = vunpack.c.l.b16 %v3366
      %v3638 = vunpack.c.h.b16 %v3366
      %v3639 = vunpack.c.l.b16 %v3367
      %v3640 = vunpack.c.l.b16 %v3368
      %v3641 = vunpack.c.h.b16 %v3368
      %v3642 = vunpack.c.l.b16 %v3369
      %v3643 = vunpack.c.l.b16 %v3370
      %v3644 = vunpack.c.h.b16 %v3370
      %v3645 = vunpack.c.l.b16 %v3371
      %v3646 = vunpack.c.l.b16 %v3372
      %v3647 = vunpack.c.h.b16 %v3372
      %v3648 = vunpack.c.l.b16 %v3373
      %v3649 = vunpack.c.l.b16 %v3374
      %v3650 = vunpack.c.h.b16 %v3374
      %v3651 = vunpack.c.l.b16 %v3375
      %v3652 = vunpack.c.l.b16 %v3376
      %v3653 = vunpack.c.h.b16 %v3376
      %v3654 = vunpack.c.l.b16 %v3377
      %v3655 = vunpack.c.l.b16 %v3378
      %v3656 = vunpack.c.h.b16 %v3378
      %v3657 = vunpack.c.l.b16 %v3379
      %v3658 = vunpack.c.l.b16 %v3380
      %v3659 = vunpack.c.h.b16 %v3380
      %v3660 = vunpack.c.l.b16 %v3381
      %v3661 = vunpack.c.l.b16 %v3382
      %v3662 = vunpack.c.h.b16 %v3382
      %v3663 = vunpack.c.l.b16 %v3383
      %v3664 = vunpack.c.l.b16 %v3384
      %v3665 = vunpack.c.h.b16 %v3384
      %v3666 = vunpack.c.l.b16 %v3385
      %v3667 = vunpack.c.l.b16 %v3386
      %v3668 = vunpack.c.h.b16 %v3386
      %v3669 = vunpack.c.l.b16 %v3387
      %v3670 = vunpack.c.l.b16 %v3388
      %v3671 = vunpack.c.h.b16 %v3388
      %v3672 = vunpack.c.l.b16 %v3389
      %v3673 = vunpack.c.l.b16 %v3390
      %v3674 = vunpack.c.h.b16 %v3390
      %v3675 = vunpack.c.l.b16 %v3391
      %v3676 = vunpack.c.l.b16 %v3392
      %v3677 = vunpack.c.h.b16 %v3392
      %v3678 = vunpack.c.l.b16 %v3393
      %v3679 = vunpack.c.l.b16 %v3394
      %v3680 = vunpack.c.h.b16 %v3394
      %v3681 = vunpack.c.l.b16 %v3395
      %v3682 = vunpack.c.l.b16 %v3396
      %v3683 = vunpack.c.h.b16 %v3396
      %v3684 = vunpack.c.l.b16 %v3397
      %v3685 = vunpack.c.l.b16 %v3398
      %v3686 = vunpack.c.h.b16 %v3398
      %v3687 = vunpack.c.l.b16 %v3399
      %v3688 = vunpack.c.l.b16 %v3400
      %v3689 = vunpack.c.h.b16 %v3400
      %v3690 = vunpack.c.l.b16 %v3401
      %v3691 = vpack.c.b16 %v3550, %v3547
      %v3692 = vpack.c.b16 %v3551, %v3548
      %v3693 = vpack.c.b16 %v3552, %v3549
      %v3694 = vpack.c.b16 %v3556, %v3553
      %v3695 = vpack.c.b16 %v3557, %v3554
      %v3696 = vpack.c.b16 %v3558, %v3555
      %v3697 = vpack.c.b16 %v3562, %v3559
      %v3698 = vpack.c.b16 %v3563, %v3560
      %v3699 = vpack.c.b16 %v3564, %v3561
      %v3700 = vpack.c.b16 %v3568, %v3565
      %v3701 = vpack.c.b16 %v3569, %v3566
      %v3702 = vpack.c.b16 %v3570, %v3567
      %v3703 = vpack.c.b16 %v3574, %v3571
      %v3704 = vpack.c.b16 %v3575, %v3572
      %v3705 = vpack.c.b16 %v3576, %v3573
      %v3706 = vpack.c.b16 %v3580, %v3577
      %v3707 = vpack.c.b16 %v3581, %v3578
      %v3708 = vpack.c.b16 %v3582, %v3579
      %v3709 = vpack.c.b16 %v3586, %v3583
      %v3710 = vpack.c.b16 %v3587, %v3584
      %v3711 = vpack.c.b16 %v3588, %v3585
      %v3712 = vpack.c.b16 %v3592, %v3589
      %v3713 = vpack.c.b16 %v3593, %v3590
      %v3714 = vpack.c.b16 %v3594, %v3591
      %v3715 = vpack.c.b16 %v3598, %v3595
      %v3716 = vpack.c.b16 %v3599, %v3596
      %v3717 = vpack.c.b16 %v3600, %v3597
      %v3718 = vpack.c.b16 %v3604, %v3601
      %v3719 = vpack.c.b16 %v3605, %v3602
      %v3720 = vpack.c.b16 %v3606, %v3603
      %v3721 = vpack.c.b16 %v3610, %v3607
      %v3722 = vpack.c.b16 %v3611, %v3608
      %v3723 = vpack.c.b16 %v3612, %v3609
      %v3724 = vpack.c.b16 %v3616, %v3613
      %v3725 = vpack.c.b16 %v3617, %v3614
      %v3726 = vpack.c.b16 %v3618, %v3615
      %v3727 = vpack.c.b16 %v3622, %v3619
      %v3728 = vpack.c.b16 %v3623, %v3620
      %v3729 = vpack.c.b16 %v3624, %v3621
      %v3730 = vpack.c.b16 %v3628, %v3625
      %v3731 = vpack.c.b16 %v3629, %v3626
      %v3732 = vpack.c.b16 %v3630, %v3627
      %v3733 = vpack.c.b16 %v3634, %v3631
      %v3734 = vpack.c.b16 %v3635, %v3632
      %v3735 = vpack.c.b16 %v3636, %v3633
      %v3736 = vpack.c.b16 %v3640, %v3637
      %v3737 = vpack.c.b16 %v3641, %v3638
      %v3738 = vpack.c.b16 %v3642, %v3639
      %v3739 = vpack.c.b16 %v3646, %v3643
      %v3740 = vpack.c.b16 %v3647, %v3644
      %v3741 = vpack.c.b16 %v3648, %v3645
      %v3742 = vpack.c.b16 %v3652, %v3649
      %v3743 = vpack.c.b16 %v3653, %v3650
      %v3744 = vpack.c.b16 %v3654, %v3651
      %v3745 = vpack.c.b16 %v3658, %v3655
      %v3746 = vpack.c.b16 %v3659, %v3656
      %v3747 = vpack.c.b16 %v3660, %v3657
      %v3748 = vpack.c.b16 %v3664, %v3661
      %v3749 = vpack.c.b16 %v3665, %v3662
      %v3750 = vpack.c.b16 %v3666, %v3663
      %v3751 = vpack.c.b16 %v3670, %v3667
      %v3752 = vpack.c.b16 %v3671, %v3668
      %v3753 = vpack.c.b16 %v3672, %v3669
      %v3754 = vpack.c.b16 %v3676, %v3673
      %v3755 = vpack.c.b16 %v3677, %v3674
      %v3756 = vpack.c.b16 %v3678, %v3675
      %v3757 = vpack.c.b16 %v3682, %v3679
      %v3758 = vpack.c.b16 %v3683, %v3680
      %v3759 = vpack.c.b16 %v3684, %v3681
      %v3760 = vpack.c.b16 %v3688, %v3685
      %v3761 = vpack.c.b16 %v3689, %v3686
      %v3762 = vpack.c.b16 %v3690, %v3687
      %v3883 = vunpack.c.l.b16 %v3403
      %v3884 = vunpack.c.l.b16 %v3404
      %v3885 = vunpack.c.l.b16 %v3405
      %v3886 = vunpack.c.l.b16 %v3406
      %v3887 = vunpack.c.l.b16 %v3407
      %v3888 = vunpack.c.l.b16 %v3408
      %v3889 = vunpack.c.l.b16 %v3409
      %v3890 = vunpack.c.l.b16 %v3410
      %v3891 = vunpack.c.l.b16 %v3411
      %v3892 = vunpack.c.l.b16 %v3412
      %v3893 = vunpack.c.l.b16 %v3413
      %v3894 = vunpack.c.l.b16 %v3414
      %v3895 = vunpack.c.l.b16 %v3415
      %v3896 = vunpack.c.l.b16 %v3416
      %v3897 = vunpack.c.l.b16 %v3417
      %v3898 = vunpack.c.l.b16 %v3418
      %v3899 = vunpack.c.l.b16 %v3419
      %v3900 = vunpack.c.l.b16 %v3420
      %v3901 = vunpack.c.l.b16 %v3421
      %v3902 = vunpack.c.l.b16 %v3422
      %v3903 = vunpack.c.l.b16 %v3423
      %v3904 = vunpack.c.l.b16 %v3424
      %v3905 = vunpack.c.l.b16 %v3425
      %v3906 = vunpack.c.l.b16 %v3426
      %v3907 = vunpack.c.l.b16 %v3427
      %v3908 = vunpack.c.l.b16 %v3428
      %v3909 = vunpack.c.l.b16 %v3429
      %v3910 = vunpack.c.l.b16 %v3430
      %v3911 = vunpack.c.l.b16 %v3431
      %v3912 = vunpack.c.l.b16 %v3432
      %v3913 = vunpack.c.l.b16 %v3433
      %v3914 = vunpack.c.l.b16 %v3434
      %v3915 = vunpack.c.l.b16 %v3435
      %v3916 = vunpack.c.l.b16 %v3436
      %v3917 = vunpack.c.l.b16 %v3437
      %v3918 = vunpack.c.l.b16 %v3438
      %v3919 = vunpack.c.l.b16 %v3439
      %v3920 = vunpack.c.l.b16 %v3440
      %v3921 = vunpack.c.l.b16 %v3441
      %v3922 = vunpack.c.l.b16 %v3442
      %v3923 = vunpack.c.l.b16 %v3443
      %v3924 = vunpack.c.l.b16 %v3444
      %v3925 = vunpack.c.l.b16 %v3445
      %v3926 = vunpack.c.l.b16 %v3446
      %v3927 = vunpack.c.l.b16 %v3447
      %v3928 = vunpack.c.l.b16 %v3448
      %v3929 = vunpack.c.l.b16 %v3449
      %v3930 = vunpack.c.l.b16 %v3450
      %v3931 = vpack.c.b16 %v3884, %v3883
      %v3932 = vpack.c.b16 %v3886, %v3885
      %v3933 = vpack.c.b16 %v3888, %v3887
      %v3934 = vpack.c.b16 %v3890, %v3889
      %v3935 = vpack.c.b16 %v3892, %v3891
      %v3936 = vpack.c.b16 %v3894, %v3893
      %v3937 = vpack.c.b16 %v3896, %v3895
      %v3938 = vpack.c.b16 %v3898, %v3897
      %v3939 = vpack.c.b16 %v3900, %v3899
      %v3940 = vpack.c.b16 %v3902, %v3901
      %v3941 = vpack.c.b16 %v3904, %v3903
      %v3942 = vpack.c.b16 %v3906, %v3905
      %v3943 = vpack.c.b16 %v3908, %v3907
      %v3944 = vpack.c.b16 %v3910, %v3909
      %v3945 = vpack.c.b16 %v3912, %v3911
      %v3946 = vpack.c.b16 %v3914, %v3913
      %v3947 = vpack.c.b16 %v3916, %v3915
      %v3948 = vpack.c.b16 %v3918, %v3917
      %v3949 = vpack.c.b16 %v3920, %v3919
      %v3950 = vpack.c.b16 %v3922, %v3921
      %v3951 = vpack.c.b16 %v3924, %v3923
      %v3952 = vpack.c.b16 %v3926, %v3925
      %v3953 = vpack.c.b16 %v3928, %v3927
      %v3954 = vpack.c.b16 %v3930, %v3929
      %3979 = vmatprep.subr.bf16.mxu0 0
      %3980 = vmatpush1.bf16.msra.mxu0 %v3938
      %3981 = vmatprep.subr.bf16.mxu0 0
      %3982 = vmatpush1.bf16.msra.mxu0 %v3937
      %3983 = vmatprep.subr.bf16.mxu0 0
      %3984 = vmatpush1.bf16.msra.mxu0 %v3936
      %3985 = vmatprep.subr.bf16.mxu0 0
      %3986 = vmatpush1.bf16.msra.mxu0 %v3935
      %3987 = vmatprep.subr.bf16.mxu0 0
      %3988 = vmatpush1.bf16.msra.mxu0 %v3934
      %3989 = vmatprep.subr.bf16.mxu0 0
      %3990 = vmatpush1.bf16.msra.mxu0 %v3933
      %3991 = vmatprep.subr.bf16.mxu0 0
      %3992 = vmatpush1.bf16.msra.mxu0 %v3932
      %3993 = vmatprep.subr.bf16.mxu0 0
      %3994 = vmatpush1.bf16.msra.mxu0 %v3931
      %3995 = vmatprep.subr.bf16.mxu0 0
      %3996 = vmatpush2.bf16.msra.mxu0 %v3946
      %3997 = vmatprep.subr.bf16.mxu0 0
      %3998 = vmatpush2.bf16.msra.mxu0 %v3945
      %3999 = vmatprep.subr.bf16.mxu0 0
      %4000 = vmatpush2.bf16.msra.mxu0 %v3944
      %4001 = vmatprep.subr.bf16.mxu0 0
      %4002 = vmatpush2.bf16.msra.mxu0 %v3943
      %4003 = vmatprep.subr.bf16.mxu0 0
      %4004 = vmatpush2.bf16.msra.mxu0 %v3942
      %4005 = vmatprep.subr.bf16.mxu0 0
      %4006 = vmatpush2.bf16.msra.mxu0 %v3941
      %4007 = vmatprep.subr.bf16.mxu0 0
      %4008 = vmatpush2.bf16.msra.mxu0 %v3940
      %4009 = vmatprep.subr.bf16.mxu0 0
      %4010 = vmatpush2.bf16.msra.mxu0 %v3939
      %4011 = vmatprep.mubr.bf16.mxu0 %v3692
      %4012 = vmatmul.mubr.bf16.gmra.mxu0 %v3691
      %v4013 = vpop.f32.mrf.mxu0
      %v4014 = vadd.f32 0.0, %v4013
      %v4015 = vpop.f32.mrf.mxu0
      %v4016 = vpop.f32.mrf.mxu0
      %v4017 = vadd.f32 0.0, %v4016
      %v4018 = vpop.f32.mrf.mxu0
      %4019 = vmatprep.mubr.bf16.mxu0 %v3695
      %4020 = vmatmul.mubr.bf16.gmra.mxu0 %v3694
      %v4021 = vpop.f32.mrf.mxu0
      %v4022 = vadd.f32 0.0, %v4021
      %v4023 = vpop.f32.mrf.mxu0
      %v4024 = vpop.f32.mrf.mxu0
      %v4025 = vadd.f32 0.0, %v4024
      %v4026 = vpop.f32.mrf.mxu0
      %4027 = vmatprep.mubr.bf16.mxu0 %v3698
      %4028 = vmatmul.mubr.bf16.gmra.mxu0 %v3697
      %v4029 = vpop.f32.mrf.mxu0
      %v4030 = vadd.f32 0.0, %v4029
      %v4031 = vpop.f32.mrf.mxu0
      %v4032 = vpop.f32.mrf.mxu0
      %v4033 = vadd.f32 0.0, %v4032
      %v4034 = vpop.f32.mrf.mxu0
      %4035 = vmatprep.mubr.bf16.mxu0 %v3701
      %4036 = vmatmul.mubr.bf16.gmra.mxu0 %v3700
      %v4037 = vpop.f32.mrf.mxu0
      %v4038 = vadd.f32 0.0, %v4037
      %v4039 = vpop.f32.mrf.mxu0
      %v4040 = vpop.f32.mrf.mxu0
      %v4041 = vadd.f32 0.0, %v4040
      %v4042 = vpop.f32.mrf.mxu0
      %4043 = vmatprep.mubr.bf16.mxu0 %v3704
      %4044 = vmatmul.mubr.bf16.gmra.mxu0 %v3703
      %v4045 = vpop.f32.mrf.mxu0
      %v4046 = vadd.f32 0.0, %v4045
      %v4047 = vpop.f32.mrf.mxu0
      %v4048 = vpop.f32.mrf.mxu0
      %v4049 = vadd.f32 0.0, %v4048
      %v4050 = vpop.f32.mrf.mxu0
      %4051 = vmatprep.mubr.bf16.mxu0 %v3707
      %4052 = vmatmul.mubr.bf16.gmra.mxu0 %v3706
      %v4053 = vpop.f32.mrf.mxu0
      %v4054 = vadd.f32 0.0, %v4053
      %v4055 = vpop.f32.mrf.mxu0
      %v4056 = vpop.f32.mrf.mxu0
      %v4057 = vadd.f32 0.0, %v4056
      %v4058 = vpop.f32.mrf.mxu0
      %4059 = vmatprep.mubr.bf16.mxu0 %v3710
      %4060 = vmatmul.mubr.bf16.gmra.mxu0 %v3709
      %v4061 = vpop.f32.mrf.mxu0
      %v4062 = vadd.f32 0.0, %v4061
      %v4063 = vpop.f32.mrf.mxu0
      %v4064 = vpop.f32.mrf.mxu0
      %v4065 = vadd.f32 0.0, %v4064
      %v4066 = vpop.f32.mrf.mxu0
      %4067 = vmatprep.mubr.bf16.mxu0 %v3713
      %4068 = vmatmul.mubr.bf16.gmra.mxu0 %v3712
      %v4069 = vpop.f32.mrf.mxu0
      %v4070 = vadd.f32 0.0, %v4069
      %v4071 = vpop.f32.mrf.mxu0
      %v4072 = vpop.f32.mrf.mxu0
      %v4073 = vadd.f32 0.0, %v4072
      %v4074 = vpop.f32.mrf.mxu0
      %4075 = vmatprep.mubr.bf16.mxu0 %v3716
      %4076 = vmatmul.mubr.bf16.gmra.mxu0 %v3715
      %v4077 = vpop.f32.mrf.mxu0
      %v4078 = vadd.f32 0.0, %v4077
      %v4079 = vpop.f32.mrf.mxu0
      %v4080 = vpop.f32.mrf.mxu0
      %v4081 = vadd.f32 0.0, %v4080
      %v4082 = vpop.f32.mrf.mxu0
      %4083 = vmatprep.mubr.bf16.mxu0 %v3719
      %4084 = vmatmul.mubr.bf16.gmra.mxu0 %v3718
      %v4085 = vpop.f32.mrf.mxu0
      %v4086 = vadd.f32 0.0, %v4085
      %v4087 = vpop.f32.mrf.mxu0
      %v4088 = vpop.f32.mrf.mxu0
      %v4089 = vadd.f32 0.0, %v4088
      %v4090 = vpop.f32.mrf.mxu0
      %4091 = vmatprep.mubr.bf16.mxu0 %v3722
      %4092 = vmatmul.mubr.bf16.gmra.mxu0 %v3721
      %v4093 = vpop.f32.mrf.mxu0
      %v4094 = vadd.f32 0.0, %v4093
      %v4095 = vpop.f32.mrf.mxu0
      %v4096 = vpop.f32.mrf.mxu0
      %v4097 = vadd.f32 0.0, %v4096
      %v4098 = vpop.f32.mrf.mxu0
      %4099 = vmatprep.mubr.bf16.mxu0 %v3725
      %4100 = vmatmul.mubr.bf16.gmra.mxu0 %v3724
      %v4101 = vpop.f32.mrf.mxu0
      %v4102 = vadd.f32 0.0, %v4101
      %v4103 = vpop.f32.mrf.mxu0
      %v4104 = vpop.f32.mrf.mxu0
      %v4105 = vadd.f32 0.0, %v4104
      %v4106 = vpop.f32.mrf.mxu0
      %4107 = vmatprep.mubr.bf16.mxu0 %v3728
      %4108 = vmatmul.mubr.bf16.gmra.mxu0 %v3727
      %v4109 = vpop.f32.mrf.mxu0
      %v4110 = vadd.f32 0.0, %v4109
      %v4111 = vpop.f32.mrf.mxu0
      %v4112 = vpop.f32.mrf.mxu0
      %v4113 = vadd.f32 0.0, %v4112
      %v4114 = vpop.f32.mrf.mxu0
      %4115 = vmatprep.mubr.bf16.mxu0 %v3731
      %4116 = vmatmul.mubr.bf16.gmra.mxu0 %v3730
      %v4117 = vpop.f32.mrf.mxu0
      %v4118 = vadd.f32 0.0, %v4117
      %v4119 = vpop.f32.mrf.mxu0
      %v4120 = vpop.f32.mrf.mxu0
      %v4121 = vadd.f32 0.0, %v4120
      %v4122 = vpop.f32.mrf.mxu0
      %4123 = vmatprep.mubr.bf16.mxu0 %v3734
      %4124 = vmatmul.mubr.bf16.gmra.mxu0 %v3733
      %v4125 = vpop.f32.mrf.mxu0
      %v4126 = vadd.f32 0.0, %v4125
      %v4127 = vpop.f32.mrf.mxu0
      %v4128 = vpop.f32.mrf.mxu0
      %v4129 = vadd.f32 0.0, %v4128
      %v4130 = vpop.f32.mrf.mxu0
      %4131 = vmatprep.mubr.bf16.mxu0 %v3737
      %4132 = vmatmul.mubr.bf16.gmra.mxu0 %v3736
      %v4133 = vpop.f32.mrf.mxu0
      %v4134 = vadd.f32 0.0, %v4133
      %v4135 = vpop.f32.mrf.mxu0
      %v4136 = vpop.f32.mrf.mxu0
      %v4137 = vadd.f32 0.0, %v4136
      %v4138 = vpop.f32.mrf.mxu0
      %4139 = vmatprep.mubr.bf16.mxu0 %v3740
      %4140 = vmatmul.mubr.bf16.gmra.mxu0 %v3739
      %v4141 = vpop.f32.mrf.mxu0
      %v4142 = vadd.f32 0.0, %v4141
      %v4143 = vpop.f32.mrf.mxu0
      %v4144 = vpop.f32.mrf.mxu0
      %v4145 = vadd.f32 0.0, %v4144
      %v4146 = vpop.f32.mrf.mxu0
      %4147 = vmatprep.mubr.bf16.mxu0 %v3743
      %4148 = vmatmul.mubr.bf16.gmra.mxu0 %v3742
      %v4149 = vpop.f32.mrf.mxu0
      %v4150 = vadd.f32 0.0, %v4149
      %v4151 = vpop.f32.mrf.mxu0
      %v4152 = vpop.f32.mrf.mxu0
      %v4153 = vadd.f32 0.0, %v4152
      %v4154 = vpop.f32.mrf.mxu0
      %4155 = vmatprep.mubr.bf16.mxu0 %v3746
      %4156 = vmatmul.mubr.bf16.gmra.mxu0 %v3745
      %v4157 = vpop.f32.mrf.mxu0
      %v4158 = vadd.f32 0.0, %v4157
      %v4159 = vpop.f32.mrf.mxu0
      %v4160 = vpop.f32.mrf.mxu0
      %v4161 = vadd.f32 0.0, %v4160
      %v4162 = vpop.f32.mrf.mxu0
      %4163 = vmatprep.mubr.bf16.mxu0 %v3749
      %4164 = vmatmul.mubr.bf16.gmra.mxu0 %v3748
      %v4165 = vpop.f32.mrf.mxu0
      %v4166 = vadd.f32 0.0, %v4165
      %v4167 = vpop.f32.mrf.mxu0
      %v4168 = vpop.f32.mrf.mxu0
      %v4169 = vadd.f32 0.0, %v4168
      %v4170 = vpop.f32.mrf.mxu0
      %4171 = vmatprep.mubr.bf16.mxu0 %v3752
      %4172 = vmatmul.mubr.bf16.gmra.mxu0 %v3751
      %v4173 = vpop.f32.mrf.mxu0
      %v4174 = vadd.f32 0.0, %v4173
      %v4175 = vpop.f32.mrf.mxu0
      %v4176 = vpop.f32.mrf.mxu0
      %v4177 = vadd.f32 0.0, %v4176
      %v4178 = vpop.f32.mrf.mxu0
      %4179 = vmatprep.mubr.bf16.mxu0 %v3755
      %4180 = vmatmul.mubr.bf16.gmra.mxu0 %v3754
      %v4181 = vpop.f32.mrf.mxu0
      %v4182 = vadd.f32 0.0, %v4181
      %v4183 = vpop.f32.mrf.mxu0
      %v4184 = vpop.f32.mrf.mxu0
      %v4185 = vadd.f32 0.0, %v4184
      %v4186 = vpop.f32.mrf.mxu0
      %4187 = vmatprep.mubr.bf16.mxu0 %v3758
      %4188 = vmatmul.mubr.bf16.gmra.mxu0 %v3757
      %v4189 = vpop.f32.mrf.mxu0
      %v4190 = vadd.f32 0.0, %v4189
      %v4191 = vpop.f32.mrf.mxu0
      %v4192 = vpop.f32.mrf.mxu0
      %v4193 = vadd.f32 0.0, %v4192
      %v4194 = vpop.f32.mrf.mxu0
      %4195 = vmatprep.mubr.bf16.mxu0 %v3761
      %4196 = vmatmul.mubr.bf16.gmra.mxu0 %v3760
      %v4197 = vpop.f32.mrf.mxu0
      %v4198 = vadd.f32 0.0, %v4197
      %v4199 = vpop.f32.mrf.mxu0
      %v4200 = vpop.f32.mrf.mxu0
      %v4201 = vadd.f32 0.0, %v4200
      %v4202 = vpop.f32.mrf.mxu0
      %4203 = vdwg.mxu0
      %4204 = vmatprep.subr.bf16.mxu0 0
      %4205 = vmatpush1.bf16.msra.mxu0 %v3954
      %4206 = vmatprep.subr.bf16.mxu0 0
      %4207 = vmatpush1.bf16.msra.mxu0 %v3953
      %4208 = vmatprep.subr.bf16.mxu0 0
      %4209 = vmatpush1.bf16.msra.mxu0 %v3952
      %4210 = vmatprep.subr.bf16.mxu0 0
      %4211 = vmatpush1.bf16.msra.mxu0 %v3951
      %4212 = vmatprep.subr.bf16.mxu0 0
      %4213 = vmatpush1.bf16.msra.mxu0 %v3950
      %4214 = vmatprep.subr.bf16.mxu0 0
      %4215 = vmatpush1.bf16.msra.mxu0 %v3949
      %4216 = vmatprep.subr.bf16.mxu0 0
      %4217 = vmatpush1.bf16.msra.mxu0 %v3948
      %4218 = vmatprep.subr.bf16.mxu0 0
      %4219 = vmatpush1.bf16.msra.mxu0 %v3947
      %4220 = vmatprep.subr.bf16.mxu0 0
      %4221 = vmatpush2.bf16.msra.mxu0 0
      %4222 = vmatprep.subr.bf16.mxu0 0
      %4223 = vmatpush2.bf16.msra.mxu0 0
      %4224 = vmatprep.subr.bf16.mxu0 0
      %4225 = vmatpush2.bf16.msra.mxu0 0
      %4226 = vmatprep.subr.bf16.mxu0 0
      %4227 = vmatpush2.bf16.msra.mxu0 0
      %4228 = vmatprep.subr.bf16.mxu0 0
      %4229 = vmatpush2.bf16.msra.mxu0 0
      %4230 = vmatprep.subr.bf16.mxu0 0
      %4231 = vmatpush2.bf16.msra.mxu0 0
      %4232 = vmatprep.subr.bf16.mxu0 0
      %4233 = vmatpush2.bf16.msra.mxu0 0
      %4234 = vmatprep.subr.bf16.mxu0 0
      %4235 = vmatpush2.bf16.msra.mxu0 0
      %4236 = vmatprep.mubr.bf16.mxu0 0
      %4237 = vmatmul.mubr.bf16.gmra.mxu0 %v3693
      %v4238 = vpop.f32.mrf.mxu0
      %v4239 = vadd.f32 %v4014, %v4238
      %v4240 = vpop.f32.mrf.mxu0
      %v4241 = vpop.f32.mrf.mxu0
      %v4242 = vadd.f32 %v4017, %v4241
      %v4243 = vpop.f32.mrf.mxu0
      %4244 = vmatprep.mubr.bf16.mxu0 0
      %4245 = vmatmul.mubr.bf16.gmra.mxu0 %v3696
      %v4246 = vpop.f32.mrf.mxu0
      %v4247 = vadd.f32 %v4022, %v4246
      %v4248 = vpop.f32.mrf.mxu0
      %v4249 = vpop.f32.mrf.mxu0
      %v4250 = vadd.f32 %v4025, %v4249
      %v4251 = vpop.f32.mrf.mxu0
      %4252 = vmatprep.mubr.bf16.mxu0 0
      %4253 = vmatmul.mubr.bf16.gmra.mxu0 %v3699
      %v4254 = vpop.f32.mrf.mxu0
      %v4255 = vadd.f32 %v4030, %v4254
      %v4256 = vpop.f32.mrf.mxu0
      %v4257 = vpop.f32.mrf.mxu0
      %v4258 = vadd.f32 %v4033, %v4257
      %v4259 = vpop.f32.mrf.mxu0
      %4260 = vmatprep.mubr.bf16.mxu0 0
      %4261 = vmatmul.mubr.bf16.gmra.mxu0 %v3702
      %v4262 = vpop.f32.mrf.mxu0
      %v4263 = vadd.f32 %v4038, %v4262
      %v4264 = vpop.f32.mrf.mxu0
      %v4265 = vpop.f32.mrf.mxu0
      %v4266 = vadd.f32 %v4041, %v4265
      %v4267 = vpop.f32.mrf.mxu0
      %4268 = vmatprep.mubr.bf16.mxu0 0
      %4269 = vmatmul.mubr.bf16.gmra.mxu0 %v3705
      %v4270 = vpop.f32.mrf.mxu0
      %v4271 = vadd.f32 %v4046, %v4270
      %v4272 = vpop.f32.mrf.mxu0
      %v4273 = vpop.f32.mrf.mxu0
      %v4274 = vadd.f32 %v4049, %v4273
      %v4275 = vpop.f32.mrf.mxu0
      %4276 = vmatprep.mubr.bf16.mxu0 0
      %4277 = vmatmul.mubr.bf16.gmra.mxu0 %v3708
      %v4278 = vpop.f32.mrf.mxu0
      %v4279 = vadd.f32 %v4054, %v4278
      %v4280 = vpop.f32.mrf.mxu0
      %v4281 = vpop.f32.mrf.mxu0
      %v4282 = vadd.f32 %v4057, %v4281
      %v4283 = vpop.f32.mrf.mxu0
      %4284 = vmatprep.mubr.bf16.mxu0 0
      %4285 = vmatmul.mubr.bf16.gmra.mxu0 %v3711
      %v4286 = vpop.f32.mrf.mxu0
      %v4287 = vadd.f32 %v4062, %v4286
      %v4288 = vpop.f32.mrf.mxu0
      %v4289 = vpop.f32.mrf.mxu0
      %v4290 = vadd.f32 %v4065, %v4289
      %v4291 = vpop.f32.mrf.mxu0
      %4292 = vmatprep.mubr.bf16.mxu0 0
      %4293 = vmatmul.mubr.bf16.gmra.mxu0 %v3714
      %v4294 = vpop.f32.mrf.mxu0
      %v4295 = vadd.f32 %v4070, %v4294
      %v4296 = vpop.f32.mrf.mxu0
      %v4297 = vpop.f32.mrf.mxu0
      %v4298 = vadd.f32 %v4073, %v4297
      %v4299 = vpop.f32.mrf.mxu0
      %4300 = vmatprep.mubr.bf16.mxu0 0
      %4301 = vmatmul.mubr.bf16.gmra.mxu0 %v3717
      %v4302 = vpop.f32.mrf.mxu0
      %v4303 = vadd.f32 %v4078, %v4302
      %v4304 = vpop.f32.mrf.mxu0
      %v4305 = vpop.f32.mrf.mxu0
      %v4306 = vadd.f32 %v4081, %v4305
      %v4307 = vpop.f32.mrf.mxu0
      %4308 = vmatprep.mubr.bf16.mxu0 0
      %4309 = vmatmul.mubr.bf16.gmra.mxu0 %v3720
      %v4310 = vpop.f32.mrf.mxu0
      %v4311 = vadd.f32 %v4086, %v4310
      %v4312 = vpop.f32.mrf.mxu0
      %v4313 = vpop.f32.mrf.mxu0
      %v4314 = vadd.f32 %v4089, %v4313
      %v4315 = vpop.f32.mrf.mxu0
      %4316 = vmatprep.mubr.bf16.mxu0 0
      %4317 = vmatmul.mubr.bf16.gmra.mxu0 %v3723
      %v4318 = vpop.f32.mrf.mxu0
      %v4319 = vadd.f32 %v4094, %v4318
      %v4320 = vpop.f32.mrf.mxu0
      %v4321 = vpop.f32.mrf.mxu0
      %v4322 = vadd.f32 %v4097, %v4321
      %v4323 = vpop.f32.mrf.mxu0
      %4324 = vmatprep.mubr.bf16.mxu0 0
      %4325 = vmatmul.mubr.bf16.gmra.mxu0 %v3726
      %v4326 = vpop.f32.mrf.mxu0
      %v4327 = vadd.f32 %v4102, %v4326
      %v4328 = vpop.f32.mrf.mxu0
      %v4329 = vpop.f32.mrf.mxu0
      %v4330 = vadd.f32 %v4105, %v4329
      %v4331 = vpop.f32.mrf.mxu0
      %4332 = vmatprep.mubr.bf16.mxu0 0
      %4333 = vmatmul.mubr.bf16.gmra.mxu0 %v3729
      %v4334 = vpop.f32.mrf.mxu0
      %v4335 = vadd.f32 %v4110, %v4334
      %v4336 = vpop.f32.mrf.mxu0
      %v4337 = vpop.f32.mrf.mxu0
      %v4338 = vadd.f32 %v4113, %v4337
      %v4339 = vpop.f32.mrf.mxu0
      %4340 = vmatprep.mubr.bf16.mxu0 0
      %4341 = vmatmul.mubr.bf16.gmra.mxu0 %v3732
      %v4342 = vpop.f32.mrf.mxu0
      %v4343 = vadd.f32 %v4118, %v4342
      %v4344 = vpop.f32.mrf.mxu0
      %v4345 = vpop.f32.mrf.mxu0
      %v4346 = vadd.f32 %v4121, %v4345
      %v4347 = vpop.f32.mrf.mxu0
      %4348 = vmatprep.mubr.bf16.mxu0 0
      %4349 = vmatmul.mubr.bf16.gmra.mxu0 %v3735
      %v4350 = vpop.f32.mrf.mxu0
      %v4351 = vadd.f32 %v4126, %v4350
      %v4352 = vpop.f32.mrf.mxu0
      %v4353 = vpop.f32.mrf.mxu0
      %v4354 = vadd.f32 %v4129, %v4353
      %v4355 = vpop.f32.mrf.mxu0
      %4356 = vmatprep.mubr.bf16.mxu0 0
      %4357 = vmatmul.mubr.bf16.gmra.mxu0 %v3738
      %v4358 = vpop.f32.mrf.mxu0
      %v4359 = vadd.f32 %v4134, %v4358
      %v4360 = vpop.f32.mrf.mxu0
      %v4361 = vpop.f32.mrf.mxu0
      %v4362 = vadd.f32 %v4137, %v4361
      %v4363 = vpop.f32.mrf.mxu0
      %4364 = vmatprep.mubr.bf16.mxu0 0
      %4365 = vmatmul.mubr.bf16.gmra.mxu0 %v3741
      %v4366 = vpop.f32.mrf.mxu0
      %v4367 = vadd.f32 %v4142, %v4366
      %v4368 = vpop.f32.mrf.mxu0
      %v4369 = vpop.f32.mrf.mxu0
      %v4370 = vadd.f32 %v4145, %v4369
      %v4371 = vpop.f32.mrf.mxu0
      %4372 = vmatprep.mubr.bf16.mxu0 0
      %4373 = vmatmul.mubr.bf16.gmra.mxu0 %v3744
      %v4374 = vpop.f32.mrf.mxu0
      %v4375 = vadd.f32 %v4150, %v4374
      %v4376 = vpop.f32.mrf.mxu0
      %v4377 = vpop.f32.mrf.mxu0
      %v4378 = vadd.f32 %v4153, %v4377
      %v4379 = vpop.f32.mrf.mxu0
      %4380 = vmatprep.mubr.bf16.mxu0 0
      %4381 = vmatmul.mubr.bf16.gmra.mxu0 %v3747
      %v4382 = vpop.f32.mrf.mxu0
      %v4383 = vadd.f32 %v4158, %v4382
      %v4384 = vpop.f32.mrf.mxu0
      %v4385 = vpop.f32.mrf.mxu0
      %v4386 = vadd.f32 %v4161, %v4385
      %v4387 = vpop.f32.mrf.mxu0
      %4388 = vmatprep.mubr.bf16.mxu0 0
      %4389 = vmatmul.mubr.bf16.gmra.mxu0 %v3750
      %v4390 = vpop.f32.mrf.mxu0
      %v4391 = vadd.f32 %v4166, %v4390
      %v4392 = vpop.f32.mrf.mxu0
      %v4393 = vpop.f32.mrf.mxu0
      %v4394 = vadd.f32 %v4169, %v4393
      %v4395 = vpop.f32.mrf.mxu0
      %4396 = vmatprep.mubr.bf16.mxu0 0
      %4397 = vmatmul.mubr.bf16.gmra.mxu0 %v3753
      %v4398 = vpop.f32.mrf.mxu0
      %v4399 = vadd.f32 %v4174, %v4398
      %v4400 = vpop.f32.mrf.mxu0
      %v4401 = vpop.f32.mrf.mxu0
      %v4402 = vadd.f32 %v4177, %v4401
      %v4403 = vpop.f32.mrf.mxu0
      %4404 = vmatprep.mubr.bf16.mxu0 0
      %4405 = vmatmul.mubr.bf16.gmra.mxu0 %v3756
      %v4406 = vpop.f32.mrf.mxu0
      %v4407 = vadd.f32 %v4182, %v4406
      %v4408 = vpop.f32.mrf.mxu0
      %v4409 = vpop.f32.mrf.mxu0
      %v4410 = vadd.f32 %v4185, %v4409
      %v4411 = vpop.f32.mrf.mxu0
      %4412 = vmatprep.mubr.bf16.mxu0 0
      %4413 = vmatmul.mubr.bf16.gmra.mxu0 %v3759
      %v4414 = vpop.f32.mrf.mxu0
      %v4415 = vadd.f32 %v4190, %v4414
      %v4416 = vpop.f32.mrf.mxu0
      %v4417 = vpop.f32.mrf.mxu0
      %v4418 = vadd.f32 %v4193, %v4417
      %v4419 = vpop.f32.mrf.mxu0
      %4420 = vmatprep.mubr.bf16.mxu0 0
      %4421 = vmatmul.mubr.bf16.gmra.mxu0 %v3762
      %v4422 = vpop.f32.mrf.mxu0
      %v4423 = vadd.f32 %v4198, %v4422
      %v4424 = vpop.f32.mrf.mxu0
      %v4425 = vpop.f32.mrf.mxu0
      %v4426 = vadd.f32 %v4201, %v4425
      %v4427 = vpop.f32.mrf.mxu0
      %4428 = vdwg.mxu0
      %v4429 = vadd.f32 %v3115, %v4239
      %v4430 = vadd.f32 %v3118, %v4242
      %v4431 = vadd.f32 %v3123, %v4247
      %v4432 = vadd.f32 %v3126, %v4250
      %v4433 = vadd.f32 %v3131, %v4255
      %v4434 = vadd.f32 %v3134, %v4258
      %v4435 = vadd.f32 %v3139, %v4263
      %v4436 = vadd.f32 %v3142, %v4266
      %v4437 = vadd.f32 %v3147, %v4271
      %v4438 = vadd.f32 %v3150, %v4274
      %v4439 = vadd.f32 %v3155, %v4279
      %v4440 = vadd.f32 %v3158, %v4282
      %v4441 = vadd.f32 %v3163, %v4287
      %v4442 = vadd.f32 %v3166, %v4290
      %v4443 = vadd.f32 %v3171, %v4295
      %v4444 = vadd.f32 %v3174, %v4298
      %v4445 = vadd.f32 %v3179, %v4303
      %v4446 = vadd.f32 %v3182, %v4306
      %v4447 = vadd.f32 %v3187, %v4311
      %v4448 = vadd.f32 %v3190, %v4314
      %v4449 = vadd.f32 %v3195, %v4319
      %v4450 = vadd.f32 %v3198, %v4322
      %v4451 = vadd.f32 %v3203, %v4327
      %v4452 = vadd.f32 %v3206, %v4330
      %v4453 = vadd.f32 %v3211, %v4335
      %v4454 = vadd.f32 %v3214, %v4338
      %v4455 = vadd.f32 %v3219, %v4343
      %v4456 = vadd.f32 %v3222, %v4346
      %v4457 = vadd.f32 %v3227, %v4351
      %v4458 = vadd.f32 %v3230, %v4354
      %v4459 = vadd.f32 %v3235, %v4359
      %v4460 = vadd.f32 %v3238, %v4362
      %v4461 = vadd.f32 %v3243, %v4367
      %v4462 = vadd.f32 %v3246, %v4370
      %v4463 = vadd.f32 %v3251, %v4375
      %v4464 = vadd.f32 %v3254, %v4378
      %v4465 = vadd.f32 %v3259, %v4383
      %v4466 = vadd.f32 %v3262, %v4386
      %v4467 = vadd.f32 %v3267, %v4391
      %v4468 = vadd.f32 %v3270, %v4394
      %v4469 = vadd.f32 %v3275, %v4399
      %v4470 = vadd.f32 %v3278, %v4402
      %v4471 = vadd.f32 %v3283, %v4407
      %v4472 = vadd.f32 %v3286, %v4410
      %v4473 = vadd.f32 %v3291, %v4415
      %v4474 = vadd.f32 %v3294, %v4418
      %v4475 = vadd.f32 %v3299, %v4423
      %v4476 = vadd.f32 %v3302, %v4426
      %v4477 = vmax.f32 %v4429, 0.0
      %v4478 = vmax.f32 %v4430, 0.0
      %v4479 = vmax.f32 %v4431, 0.0
      %v4480 = vmax.f32 %v4432, 0.0
      %v4481 = vmax.f32 %v4433, 0.0
      %v4482 = vmax.f32 %v4434, 0.0
      %v4483 = vmax.f32 %v4435, 0.0
      %v4484 = vmax.f32 %v4436, 0.0
      %v4485 = vmax.f32 %v4437, 0.0
      %v4486 = vmax.f32 %v4438, 0.0
      %v4487 = vmax.f32 %v4439, 0.0
      %v4488 = vmax.f32 %v4440, 0.0
      %v4489 = vmax.f32 %v4441, 0.0
      %v4490 = vmax.f32 %v4442, 0.0
      %v4491 = vmax.f32 %v4443, 0.0
      %v4492 = vmax.f32 %v4444, 0.0
      %v4493 = vmax.f32 %v4445, 0.0
      %v4494 = vmax.f32 %v4446, 0.0
      %v4495 = vmax.f32 %v4447, 0.0
      %v4496 = vmax.f32 %v4448, 0.0
      %v4497 = vmax.f32 %v4449, 0.0
      %v4498 = vmax.f32 %v4450, 0.0
      %v4499 = vmax.f32 %v4451, 0.0
      %v4500 = vmax.f32 %v4452, 0.0
      %v4501 = vmax.f32 %v4453, 0.0
      %v4502 = vmax.f32 %v4454, 0.0
      %v4503 = vmax.f32 %v4455, 0.0
      %v4504 = vmax.f32 %v4456, 0.0
      %v4505 = vmax.f32 %v4457, 0.0
      %v4506 = vmax.f32 %v4458, 0.0
      %v4507 = vmax.f32 %v4459, 0.0
      %v4508 = vmax.f32 %v4460, 0.0
      %v4509 = vmax.f32 %v4461, 0.0
      %v4510 = vmax.f32 %v4462, 0.0
      %v4511 = vmax.f32 %v4463, 0.0
      %v4512 = vmax.f32 %v4464, 0.0
      %v4513 = vmax.f32 %v4465, 0.0
      %v4514 = vmax.f32 %v4466, 0.0
      %v4515 = vmax.f32 %v4467, 0.0
      %v4516 = vmax.f32 %v4468, 0.0
      %v4517 = vmax.f32 %v4469, 0.0
      %v4518 = vmax.f32 %v4470, 0.0
      %v4519 = vmax.f32 %v4471, 0.0
      %v4520 = vmax.f32 %v4472, 0.0
      %v4521 = vmax.f32 %v4473, 0.0
      %v4522 = vmax.f32 %v4474, 0.0
      %v4523 = vmax.f32 %v4475, 0.0
      %v4524 = vmax.f32 %v4476, 0.0
      %v4525 = vpack.c.bf16 %v4478, %v4477
      %v4526 = vpack.c.bf16 %v4479, %v4479
      %v4527 = vpack.c.bf16 %v4481, %v4480
      %v4528 = vpack.c.bf16 %v4482, %v4482
      %v4529 = vpack.c.bf16 %v4484, %v4483
      %v4530 = vpack.c.bf16 %v4485, %v4485
      %v4531 = vpack.c.bf16 %v4487, %v4486
      %v4532 = vpack.c.bf16 %v4488, %v4488
      %v4533 = vpack.c.bf16 %v4490, %v4489
      %v4534 = vpack.c.bf16 %v4491, %v4491
      %v4535 = vpack.c.bf16 %v4493, %v4492
      %v4536 = vpack.c.bf16 %v4494, %v4494
      %v4537 = vpack.c.bf16 %v4496, %v4495
      %v4538 = vpack.c.bf16 %v4497, %v4497
      %v4539 = vpack.c.bf16 %v4499, %v4498
      %v4540 = vpack.c.bf16 %v4500, %v4500
      %v4541 = vpack.c.bf16 %v4502, %v4501
      %v4542 = vpack.c.bf16 %v4503, %v4503
      %v4543 = vpack.c.bf16 %v4505, %v4504
      %v4544 = vpack.c.bf16 %v4506, %v4506
      %v4545 = vpack.c.bf16 %v4508, %v4507
      %v4546 = vpack.c.bf16 %v4509, %v4509
      %v4547 = vpack.c.bf16 %v4511, %v4510
      %v4548 = vpack.c.bf16 %v4512, %v4512
      %v4549 = vpack.c.bf16 %v4514, %v4513
      %v4550 = vpack.c.bf16 %v4515, %v4515
      %v4551 = vpack.c.bf16 %v4517, %v4516
      %v4552 = vpack.c.bf16 %v4518, %v4518
      %v4553 = vpack.c.bf16 %v4520, %v4519
      %v4554 = vpack.c.bf16 %v4521, %v4521
      %v4555 = vpack.c.bf16 %v4523, %v4522
      %v4556 = vpack.c.bf16 %v4524, %v4524
      %v4589 = vunpack.c.l.b16 %v4525
      %v4590 = vunpack.c.h.b16 %v4525
      %v4591 = vunpack.c.l.b16 %v4526
      %v4592 = vunpack.c.l.b16 %v4527
      %v4593 = vunpack.c.h.b16 %v4527
      %v4594 = vunpack.c.l.b16 %v4528
      %v4595 = vunpack.c.l.b16 %v4529
      %v4596 = vunpack.c.h.b16 %v4529
      %v4597 = vunpack.c.l.b16 %v4530
      %v4598 = vunpack.c.l.b16 %v4531
      %v4599 = vunpack.c.h.b16 %v4531
      %v4600 = vunpack.c.l.b16 %v4532
      %v4601 = vunpack.c.l.b16 %v4533
      %v4602 = vunpack.c.h.b16 %v4533
      %v4603 = vunpack.c.l.b16 %v4534
      %v4604 = vunpack.c.l.b16 %v4535
      %v4605 = vunpack.c.h.b16 %v4535
      %v4606 = vunpack.c.l.b16 %v4536
      %v4607 = vunpack.c.l.b16 %v4537
      %v4608 = vunpack.c.h.b16 %v4537
      %v4609 = vunpack.c.l.b16 %v4538
      %v4610 = vunpack.c.l.b16 %v4539
      %v4611 = vunpack.c.h.b16 %v4539
      %v4612 = vunpack.c.l.b16 %v4540
      %v4613 = vunpack.c.l.b16 %v4541
      %v4614 = vunpack.c.h.b16 %v4541
      %v4615 = vunpack.c.l.b16 %v4542
      %v4616 = vunpack.c.l.b16 %v4543
      %v4617 = vunpack.c.h.b16 %v4543
      %v4618 = vunpack.c.l.b16 %v4544
      %v4619 = vunpack.c.l.b16 %v4545
      %v4620 = vunpack.c.h.b16 %v4545
      %v4621 = vunpack.c.l.b16 %v4546
      %v4622 = vunpack.c.l.b16 %v4547
      %v4623 = vunpack.c.h.b16 %v4547
      %v4624 = vunpack.c.l.b16 %v4548
      %v4625 = vunpack.c.l.b16 %v4549
      %v4626 = vunpack.c.h.b16 %v4549
      %v4627 = vunpack.c.l.b16 %v4550
      %v4628 = vunpack.c.l.b16 %v4551
      %v4629 = vunpack.c.h.b16 %v4551
      %v4630 = vunpack.c.l.b16 %v4552
      %v4631 = vunpack.c.l.b16 %v4553
      %v4632 = vunpack.c.h.b16 %v4553
      %v4633 = vunpack.c.l.b16 %v4554
      %v4634 = vunpack.c.l.b16 %v4555
      %v4635 = vunpack.c.h.b16 %v4555
      %v4636 = vunpack.c.l.b16 %v4556
      %v4637 = vpack.c.b16 %v4589, %v4589
      %v4638 = vpack.c.b16 %v4590, %v4590
      %v4639 = vpack.c.b16 %v4591, %v4591
      %v4640 = vpack.c.b16 %v4592, %v4592
      %v4641 = vpack.c.b16 %v4593, %v4593
      %v4642 = vpack.c.b16 %v4594, %v4594
      %v4643 = vpack.c.b16 %v4595, %v4595
      %v4644 = vpack.c.b16 %v4596, %v4596
      %v4645 = vpack.c.b16 %v4597, %v4597
      %v4646 = vpack.c.b16 %v4598, %v4598
      %v4647 = vpack.c.b16 %v4599, %v4599
      %v4648 = vpack.c.b16 %v4600, %v4600
      %v4649 = vpack.c.b16 %v4601, %v4601
      %v4650 = vpack.c.b16 %v4602, %v4602
      %v4651 = vpack.c.b16 %v4603, %v4603
      %v4652 = vpack.c.b16 %v4604, %v4604
      %v4653 = vpack.c.b16 %v4605, %v4605
      %v4654 = vpack.c.b16 %v4606, %v4606
      %v4655 = vpack.c.b16 %v4607, %v4607
      %v4656 = vpack.c.b16 %v4608, %v4608
      %v4657 = vpack.c.b16 %v4609, %v4609
      %v4658 = vpack.c.b16 %v4610, %v4610
      %v4659 = vpack.c.b16 %v4611, %v4611
      %v4660 = vpack.c.b16 %v4612, %v4612
      %v4661 = vpack.c.b16 %v4613, %v4613
      %v4662 = vpack.c.b16 %v4614, %v4614
      %v4663 = vpack.c.b16 %v4615, %v4615
      %v4664 = vpack.c.b16 %v4616, %v4616
      %v4665 = vpack.c.b16 %v4617, %v4617
      %v4666 = vpack.c.b16 %v4618, %v4618
      %v4667 = vpack.c.b16 %v4619, %v4619
      %v4668 = vpack.c.b16 %v4620, %v4620
      %v4669 = vpack.c.b16 %v4621, %v4621
      %v4670 = vpack.c.b16 %v4622, %v4622
      %v4671 = vpack.c.b16 %v4623, %v4623
      %v4672 = vpack.c.b16 %v4624, %v4624
      %v4673 = vpack.c.b16 %v4625, %v4625
      %v4674 = vpack.c.b16 %v4626, %v4626
      %v4675 = vpack.c.b16 %v4627, %v4627
      %v4676 = vpack.c.b16 %v4628, %v4628
      %v4677 = vpack.c.b16 %v4629, %v4629
      %v4678 = vpack.c.b16 %v4630, %v4630
      %v4679 = vpack.c.b16 %v4631, %v4631
      %v4680 = vpack.c.b16 %v4632, %v4632
      %v4681 = vpack.c.b16 %v4633, %v4633
      %v4682 = vpack.c.b16 %v4634, %v4634
      %v4683 = vpack.c.b16 %v4635, %v4635
      %v4684 = vpack.c.b16 %v4636, %v4636
      %v4686 = vshrl.u32 %v4637, 16
      %v4688 = vrot.slane %v4686, 7
      %v4689 = vshll.u32 %v4637, 16
      %v4691 = vor.u32 %v4688, %v4689
      %v4692 = vrot.slane %v4688, 4
      %v4694 = vshrl.u32 %v4638, 16
      %v4696 = vrot.slane %v4694, 7
      %v4697 = vshll.u32 %v4638, 16
      %v4699 = vor.u32 %v4696, %v4697
      %v4700 = vsel %vm559, %v4692, %v4699
      %v4701 = vrot.slane %v4696, 4
      %v4703 = vshll.u32 %v4639, 16
      %v4705 = vsel %vm559, %v4701, %v4703
      %v4707 = vshrl.u32 %v4640, 16
      %v4709 = vrot.slane %v4707, 7
      %v4710 = vshll.u32 %v4640, 16
      %v4712 = vor.u32 %v4709, %v4710
      %v4713 = vrot.slane %v4709, 4
      %v4715 = vshrl.u32 %v4641, 16
      %v4717 = vrot.slane %v4715, 7
      %v4718 = vshll.u32 %v4641, 16
      %v4720 = vor.u32 %v4717, %v4718
      %v4721 = vsel %vm559, %v4713, %v4720
      %v4722 = vrot.slane %v4717, 4
      %v4724 = vshll.u32 %v4642, 16
      %v4726 = vsel %vm559, %v4722, %v4724
      %v4728 = vshrl.u32 %v4643, 16
      %v4730 = vrot.slane %v4728, 7
      %v4731 = vshll.u32 %v4643, 16
      %v4733 = vor.u32 %v4730, %v4731
      %v4734 = vrot.slane %v4730, 4
      %v4736 = vshrl.u32 %v4644, 16
      %v4738 = vrot.slane %v4736, 7
      %v4739 = vshll.u32 %v4644, 16
      %v4741 = vor.u32 %v4738, %v4739
      %v4742 = vsel %vm559, %v4734, %v4741
      %v4743 = vrot.slane %v4738, 4
      %v4745 = vshll.u32 %v4645, 16
      %v4747 = vsel %vm559, %v4743, %v4745
      %v4749 = vshrl.u32 %v4646, 16
      %v4751 = vrot.slane %v4749, 7
      %v4752 = vshll.u32 %v4646, 16
      %v4754 = vor.u32 %v4751, %v4752
      %v4755 = vrot.slane %v4751, 4
      %v4757 = vshrl.u32 %v4647, 16
      %v4759 = vrot.slane %v4757, 7
      %v4760 = vshll.u32 %v4647, 16
      %v4762 = vor.u32 %v4759, %v4760
      %v4763 = vsel %vm559, %v4755, %v4762
      %v4764 = vrot.slane %v4759, 4
      %v4766 = vshll.u32 %v4648, 16
      %v4768 = vsel %vm559, %v4764, %v4766
      %v4770 = vshrl.u32 %v4649, 16
      %v4772 = vrot.slane %v4770, 7
      %v4773 = vshll.u32 %v4649, 16
      %v4775 = vor.u32 %v4772, %v4773
      %v4776 = vrot.slane %v4772, 4
      %v4778 = vshrl.u32 %v4650, 16
      %v4780 = vrot.slane %v4778, 7
      %v4781 = vshll.u32 %v4650, 16
      %v4783 = vor.u32 %v4780, %v4781
      %v4784 = vsel %vm559, %v4776, %v4783
      %v4785 = vrot.slane %v4780, 4
      %v4787 = vshll.u32 %v4651, 16
      %v4789 = vsel %vm559, %v4785, %v4787
      %v4791 = vshrl.u32 %v4652, 16
      %v4793 = vrot.slane %v4791, 7
      %v4794 = vshll.u32 %v4652, 16
      %v4796 = vor.u32 %v4793, %v4794
      %v4797 = vrot.slane %v4793, 4
      %v4799 = vshrl.u32 %v4653, 16
      %v4801 = vrot.slane %v4799, 7
      %v4802 = vshll.u32 %v4653, 16
      %v4804 = vor.u32 %v4801, %v4802
      %v4805 = vsel %vm559, %v4797, %v4804
      %v4806 = vrot.slane %v4801, 4
      %v4808 = vshll.u32 %v4654, 16
      %v4810 = vsel %vm559, %v4806, %v4808
      %v4812 = vshrl.u32 %v4655, 16
      %v4814 = vrot.slane %v4812, 7
      %v4815 = vshll.u32 %v4655, 16
      %v4817 = vor.u32 %v4814, %v4815
      %v4818 = vrot.slane %v4814, 4
      %v4820 = vshrl.u32 %v4656, 16
      %v4822 = vrot.slane %v4820, 7
      %v4823 = vshll.u32 %v4656, 16
      %v4825 = vor.u32 %v4822, %v4823
      %v4826 = vsel %vm559, %v4818, %v4825
      %v4827 = vrot.slane %v4822, 4
      %v4829 = vshll.u32 %v4657, 16
      %v4831 = vsel %vm559, %v4827, %v4829
      %v4833 = vshrl.u32 %v4658, 16
      %v4835 = vrot.slane %v4833, 7
      %v4836 = vshll.u32 %v4658, 16
      %v4838 = vor.u32 %v4835, %v4836
      %v4839 = vrot.slane %v4835, 4
      %v4841 = vshrl.u32 %v4659, 16
      %v4843 = vrot.slane %v4841, 7
      %v4844 = vshll.u32 %v4659, 16
      %v4846 = vor.u32 %v4843, %v4844
      %v4847 = vsel %vm559, %v4839, %v4846
      %v4848 = vrot.slane %v4843, 4
      %v4850 = vshll.u32 %v4660, 16
      %v4852 = vsel %vm559, %v4848, %v4850
      %v4854 = vshrl.u32 %v4661, 16
      %v4856 = vrot.slane %v4854, 7
      %v4857 = vshll.u32 %v4661, 16
      %v4859 = vor.u32 %v4856, %v4857
      %v4860 = vrot.slane %v4856, 4
      %v4862 = vshrl.u32 %v4662, 16
      %v4864 = vrot.slane %v4862, 7
      %v4865 = vshll.u32 %v4662, 16
      %v4867 = vor.u32 %v4864, %v4865
      %v4868 = vsel %vm559, %v4860, %v4867
      %v4869 = vrot.slane %v4864, 4
      %v4871 = vshll.u32 %v4663, 16
      %v4873 = vsel %vm559, %v4869, %v4871
      %v4875 = vshrl.u32 %v4664, 16
      %v4877 = vrot.slane %v4875, 7
      %v4878 = vshll.u32 %v4664, 16
      %v4880 = vor.u32 %v4877, %v4878
      %v4881 = vrot.slane %v4877, 4
      %v4883 = vshrl.u32 %v4665, 16
      %v4885 = vrot.slane %v4883, 7
      %v4886 = vshll.u32 %v4665, 16
      %v4888 = vor.u32 %v4885, %v4886
      %v4889 = vsel %vm559, %v4881, %v4888
      %v4890 = vrot.slane %v4885, 4
      %v4892 = vshll.u32 %v4666, 16
      %v4894 = vsel %vm559, %v4890, %v4892
      %v4896 = vshrl.u32 %v4667, 16
      %v4898 = vrot.slane %v4896, 7
      %v4899 = vshll.u32 %v4667, 16
      %v4901 = vor.u32 %v4898, %v4899
      %v4902 = vrot.slane %v4898, 4
      %v4904 = vshrl.u32 %v4668, 16
      %v4906 = vrot.slane %v4904, 7
      %v4907 = vshll.u32 %v4668, 16
      %v4909 = vor.u32 %v4906, %v4907
      %v4910 = vsel %vm559, %v4902, %v4909
      %v4911 = vrot.slane %v4906, 4
      %v4913 = vshll.u32 %v4669, 16
      %v4915 = vsel %vm559, %v4911, %v4913
      %v4917 = vshrl.u32 %v4670, 16
      %v4919 = vrot.slane %v4917, 7
      %v4920 = vshll.u32 %v4670, 16
      %v4922 = vor.u32 %v4919, %v4920
      %v4923 = vrot.slane %v4919, 4
      %v4925 = vshrl.u32 %v4671, 16
      %v4927 = vrot.slane %v4925, 7
      %v4928 = vshll.u32 %v4671, 16
      %v4930 = vor.u32 %v4927, %v4928
      %v4931 = vsel %vm559, %v4923, %v4930
      %v4932 = vrot.slane %v4927, 4
      %v4934 = vshll.u32 %v4672, 16
      %v4936 = vsel %vm559, %v4932, %v4934
      %v4938 = vshrl.u32 %v4673, 16
      %v4940 = vrot.slane %v4938, 7
      %v4941 = vshll.u32 %v4673, 16
      %v4943 = vor.u32 %v4940, %v4941
      %v4944 = vrot.slane %v4940, 4
      %v4946 = vshrl.u32 %v4674, 16
      %v4948 = vrot.slane %v4946, 7
      %v4949 = vshll.u32 %v4674, 16
      %v4951 = vor.u32 %v4948, %v4949
      %v4952 = vsel %vm559, %v4944, %v4951
      %v4953 = vrot.slane %v4948, 4
      %v4955 = vshll.u32 %v4675, 16
      %v4957 = vsel %vm559, %v4953, %v4955
      %v4959 = vshrl.u32 %v4676, 16
      %v4961 = vrot.slane %v4959, 7
      %v4962 = vshll.u32 %v4676, 16
      %v4964 = vor.u32 %v4961, %v4962
      %v4965 = vrot.slane %v4961, 4
      %v4967 = vshrl.u32 %v4677, 16
      %v4969 = vrot.slane %v4967, 7
      %v4970 = vshll.u32 %v4677, 16
      %v4972 = vor.u32 %v4969, %v4970
      %v4973 = vsel %vm559, %v4965, %v4972
      %v4974 = vrot.slane %v4969, 4
      %v4976 = vshll.u32 %v4678, 16
      %v4978 = vsel %vm559, %v4974, %v4976
      %v4980 = vshrl.u32 %v4679, 16
      %v4982 = vrot.slane %v4980, 7
      %v4983 = vshll.u32 %v4679, 16
      %v4985 = vor.u32 %v4982, %v4983
      %v4986 = vrot.slane %v4982, 4
      %v4988 = vshrl.u32 %v4680, 16
      %v4990 = vrot.slane %v4988, 7
      %v4991 = vshll.u32 %v4680, 16
      %v4993 = vor.u32 %v4990, %v4991
      %v4994 = vsel %vm559, %v4986, %v4993
      %v4995 = vrot.slane %v4990, 4
      %v4997 = vshll.u32 %v4681, 16
      %v4999 = vsel %vm559, %v4995, %v4997
      %v5001 = vshrl.u32 %v4682, 16
      %v5003 = vrot.slane %v5001, 7
      %v5004 = vshll.u32 %v4682, 16
      %v5006 = vor.u32 %v5003, %v5004
      %v5007 = vrot.slane %v5003, 4
      %v5009 = vshrl.u32 %v4683, 16
      %v5011 = vrot.slane %v5009, 7
      %v5012 = vshll.u32 %v4683, 16
      %v5014 = vor.u32 %v5011, %v5012
      %v5015 = vsel %vm559, %v5007, %v5014
      %v5016 = vrot.slane %v5011, 4
      %v5018 = vshll.u32 %v4684, 16
      %v5020 = vsel %vm559, %v5016, %v5018
      %5069 = vst [vmem:[%s185] sm:$0xe] %v4691
      %5070 = vst [vmem:[%s185 + $0xc] sm:$0xf] %v4700
      %5071 = vst [vmem:[%s185 + $0x18] sm:$0x1] %v4705
      %5072 = vst [vmem:[%s185 + $0x24] sm:$0xe] %v4712
      %5073 = vst [vmem:[%s185 + $0x30] sm:$0xf] %v4721
      %5074 = vst [vmem:[%s185 + $0x3c] sm:$0x1] %v4726
      %5075 = vst [vmem:[%s185 + $0x48] sm:$0xe] %v4733
      %5076 = vst [vmem:[%s185 + $0x54] sm:$0xf] %v4742
      %5077 = vst [vmem:[%s185 + $0x60] sm:$0x1] %v4747
      %5078 = vst [vmem:[%s185 + $0x6c] sm:$0xe] %v4754
      %5079 = vst [vmem:[%s185 + $0x78] sm:$0xf] %v4763
      %5080 = vst [vmem:[%s185 + $0x84] sm:$0x1] %v4768
      %5081 = vst [vmem:[%s185 + $0x90] sm:$0xe] %v4775
      %5082 = vst [vmem:[%s185 + $0x9c] sm:$0xf] %v4784
      %5083 = vst [vmem:[%s185 + $0xa8] sm:$0x1] %v4789
      %5084 = vst [vmem:[%s185 + $0xb4] sm:$0xe] %v4796
      %5085 = vst [vmem:[%s185 + $0xc0] sm:$0xf] %v4805
      %5086 = vst [vmem:[%s185 + $0xcc] sm:$0x1] %v4810
      %5087 = vst [vmem:[%s185 + $0xd8] sm:$0xe] %v4817
      %5088 = vst [vmem:[%s185 + $0xe4] sm:$0xf] %v4826
      %5089 = vst [vmem:[%s185 + $0xf0] sm:$0x1] %v4831
      %5090 = vst [vmem:[%s185 + $0xfc] sm:$0xe] %v4838
      %5091 = vst [vmem:[%s185 + $0x108] sm:$0xf] %v4847
      %5092 = vst [vmem:[%s185 + $0x114] sm:$0x1] %v4852
      %5093 = vst [vmem:[%s185 + $0x120] sm:$0xe] %v4859
      %5094 = vst [vmem:[%s185 + $0x12c] sm:$0xf] %v4868
      %5095 = vst [vmem:[%s185 + $0x138] sm:$0x1] %v4873
      %5096 = vst [vmem:[%s185 + $0x144] sm:$0xe] %v4880
      %5097 = vst [vmem:[%s185 + $0x150] sm:$0xf] %v4889
      %5098 = vst [vmem:[%s185 + $0x15c] sm:$0x1] %v4894
      %5099 = vst [vmem:[%s185 + $0x168] sm:$0xe] %v4901
      %5100 = vst [vmem:[%s185 + $0x174] sm:$0xf] %v4910
      %5101 = vst [vmem:[%s185 + $0x180] sm:$0x1] %v4915
      %5102 = vst [vmem:[%s185 + $0x18c] sm:$0xe] %v4922
      %5103 = vst [vmem:[%s185 + $0x198] sm:$0xf] %v4931
      %5104 = vst [vmem:[%s185 + $0x1a4] sm:$0x1] %v4936
      %5105 = vst [vmem:[%s185 + $0x1b0] sm:$0xe] %v4943
      %5106 = vst [vmem:[%s185 + $0x1bc] sm:$0xf] %v4952
      %5107 = vst [vmem:[%s185 + $0x1c8] sm:$0x1] %v4957
      %5108 = vst [vmem:[%s185 + $0x1d4] sm:$0xe] %v4964
      %5109 = vst [vmem:[%s185 + $0x1e0] sm:$0xf] %v4973
      %5110 = vst [vmem:[%s185 + $0x1ec] sm:$0x1] %v4978
      %5111 = vst [vmem:[%s185 + $0x1f8] sm:$0xe] %v4985
      %5112 = vst [vmem:[%s185 + $0x204] sm:$0xf] %v4994
      %5113 = vst [vmem:[%s185 + $0x210] sm:$0x1] %v4999
      %5114 = vst [vmem:[%s185 + $0x21c] sm:$0xe] %v5006
      %5115 = vst [vmem:[%s185 + $0x228] sm:$0xf] %v5015
      %5116 = vst [vmem:[%s185 + $0x234] sm:$0x1] %v5020
      %v5165 = vld [vmem:[%s185 + $0x4] sm:$0xf]
      %v5166 = vsel %vm882, %v4637, %v5165
      %5167 = vst [vmem:[%s185 + $0x4] sm:$0xf] %v5166
      %5168 = vst [vmem:[%s185 + $0x10] sm:$0xf] %v4638
      %v5169 = vld [vmem:[%s185 + $0x1c] sm:$0x1]
      %v5170 = vsel %vm887, %v4639, %v5169
      %5171 = vst [vmem:[%s185 + $0x1c] sm:$0x1] %v5170
      %v5172 = vld [vmem:[%s185 + $0x28] sm:$0xf]
      %v5173 = vsel %vm882, %v4640, %v5172
      %5174 = vst [vmem:[%s185 + $0x28] sm:$0xf] %v5173
      %5175 = vst [vmem:[%s185 + $0x34] sm:$0xf] %v4641
      %v5176 = vld [vmem:[%s185 + $0x40] sm:$0x1]
      %v5177 = vsel %vm887, %v4642, %v5176
      %5178 = vst [vmem:[%s185 + $0x40] sm:$0x1] %v5177
      %v5179 = vld [vmem:[%s185 + $0x4c] sm:$0xf]
      %v5180 = vsel %vm882, %v4643, %v5179
      %5181 = vst [vmem:[%s185 + $0x4c] sm:$0xf] %v5180
      %5182 = vst [vmem:[%s185 + $0x58] sm:$0xf] %v4644
      %v5183 = vld [vmem:[%s185 + $0x64] sm:$0x1]
      %v5184 = vsel %vm887, %v4645, %v5183
      %5185 = vst [vmem:[%s185 + $0x64] sm:$0x1] %v5184
      %v5186 = vld [vmem:[%s185 + $0x70] sm:$0xf]
      %v5187 = vsel %vm882, %v4646, %v5186
      %5188 = vst [vmem:[%s185 + $0x70] sm:$0xf] %v5187
      %5189 = vst [vmem:[%s185 + $0x7c] sm:$0xf] %v4647
      %v5190 = vld [vmem:[%s185 + $0x88] sm:$0x1]
      %v5191 = vsel %vm887, %v4648, %v5190
      %5192 = vst [vmem:[%s185 + $0x88] sm:$0x1] %v5191
      %v5193 = vld [vmem:[%s185 + $0x94] sm:$0xf]
      %v5194 = vsel %vm882, %v4649, %v5193
      %5195 = vst [vmem:[%s185 + $0x94] sm:$0xf] %v5194
      %5196 = vst [vmem:[%s185 + $0xa0] sm:$0xf] %v4650
      %v5197 = vld [vmem:[%s185 + $0xac] sm:$0x1]
      %v5198 = vsel %vm887, %v4651, %v5197
      %5199 = vst [vmem:[%s185 + $0xac] sm:$0x1] %v5198
      %v5200 = vld [vmem:[%s185 + $0xb8] sm:$0xf]
      %v5201 = vsel %vm882, %v4652, %v5200
      %5202 = vst [vmem:[%s185 + $0xb8] sm:$0xf] %v5201
      %5203 = vst [vmem:[%s185 + $0xc4] sm:$0xf] %v4653
      %v5204 = vld [vmem:[%s185 + $0xd0] sm:$0x1]
      %v5205 = vsel %vm887, %v4654, %v5204
      %5206 = vst [vmem:[%s185 + $0xd0] sm:$0x1] %v5205
      %v5207 = vld [vmem:[%s185 + $0xdc] sm:$0xf]
      %v5208 = vsel %vm882, %v4655, %v5207
      %5209 = vst [vmem:[%s185 + $0xdc] sm:$0xf] %v5208
      %5210 = vst [vmem:[%s185 + $0xe8] sm:$0xf] %v4656
      %v5211 = vld [vmem:[%s185 + $0xf4] sm:$0x1]
      %v5212 = vsel %vm887, %v4657, %v5211
      %5213 = vst [vmem:[%s185 + $0xf4] sm:$0x1] %v5212
      %v5214 = vld [vmem:[%s185 + $0x100] sm:$0xf]
      %v5215 = vsel %vm882, %v4658, %v5214
      %5216 = vst [vmem:[%s185 + $0x100] sm:$0xf] %v5215
      %5217 = vst [vmem:[%s185 + $0x10c] sm:$0xf] %v4659
      %v5218 = vld [vmem:[%s185 + $0x118] sm:$0x1]
      %v5219 = vsel %vm887, %v4660, %v5218
      %5220 = vst [vmem:[%s185 + $0x118] sm:$0x1] %v5219
      %v5221 = vld [vmem:[%s185 + $0x124] sm:$0xf]
      %v5222 = vsel %vm882, %v4661, %v5221
      %5223 = vst [vmem:[%s185 + $0x124] sm:$0xf] %v5222
      %5224 = vst [vmem:[%s185 + $0x130] sm:$0xf] %v4662
      %v5225 = vld [vmem:[%s185 + $0x13c] sm:$0x1]
      %v5226 = vsel %vm887, %v4663, %v5225
      %5227 = vst [vmem:[%s185 + $0x13c] sm:$0x1] %v5226
      %v5228 = vld [vmem:[%s185 + $0x148] sm:$0xf]
      %v5229 = vsel %vm882, %v4664, %v5228
      %5230 = vst [vmem:[%s185 + $0x148] sm:$0xf] %v5229
      %5231 = vst [vmem:[%s185 + $0x154] sm:$0xf] %v4665
      %v5232 = vld [vmem:[%s185 + $0x160] sm:$0x1]
      %v5233 = vsel %vm887, %v4666, %v5232
      %5234 = vst [vmem:[%s185 + $0x160] sm:$0x1] %v5233
      %v5235 = vld [vmem:[%s185 + $0x16c] sm:$0xf]
      %v5236 = vsel %vm882, %v4667, %v5235
      %5237 = vst [vmem:[%s185 + $0x16c] sm:$0xf] %v5236
      %5238 = vst [vmem:[%s185 + $0x178] sm:$0xf] %v4668
      %v5239 = vld [vmem:[%s185 + $0x184] sm:$0x1]
      %v5240 = vsel %vm887, %v4669, %v5239
      %5241 = vst [vmem:[%s185 + $0x184] sm:$0x1] %v5240
      %v5242 = vld [vmem:[%s185 + $0x190] sm:$0xf]
      %v5243 = vsel %vm882, %v4670, %v5242
      %5244 = vst [vmem:[%s185 + $0x190] sm:$0xf] %v5243
      %5245 = vst [vmem:[%s185 + $0x19c] sm:$0xf] %v4671
      %v5246 = vld [vmem:[%s185 + $0x1a8] sm:$0x1]
      %v5247 = vsel %vm887, %v4672, %v5246
      %5248 = vst [vmem:[%s185 + $0x1a8] sm:$0x1] %v5247
      %v5249 = vld [vmem:[%s185 + $0x1b4] sm:$0xf]
      %v5250 = vsel %vm882, %v4673, %v5249
      %5251 = vst [vmem:[%s185 + $0x1b4] sm:$0xf] %v5250
      %5252 = vst [vmem:[%s185 + $0x1c0] sm:$0xf] %v4674
      %v5253 = vld [vmem:[%s185 + $0x1cc] sm:$0x1]
      %v5254 = vsel %vm887, %v4675, %v5253
      %5255 = vst [vmem:[%s185 + $0x1cc] sm:$0x1] %v5254
      %v5256 = vld [vmem:[%s185 + $0x1d8] sm:$0xf]
      %v5257 = vsel %vm882, %v4676, %v5256
      %5258 = vst [vmem:[%s185 + $0x1d8] sm:$0xf] %v5257
      %5259 = vst [vmem:[%s185 + $0x1e4] sm:$0xf] %v4677
      %v5260 = vld [vmem:[%s185 + $0x1f0] sm:$0x1]
      %v5261 = vsel %vm887, %v4678, %v5260
      %5262 = vst [vmem:[%s185 + $0x1f0] sm:$0x1] %v5261
      %v5263 = vld [vmem:[%s185 + $0x1fc] sm:$0xf]
      %v5264 = vsel %vm882, %v4679, %v5263
      %5265 = vst [vmem:[%s185 + $0x1fc] sm:$0xf] %v5264
      %5266 = vst [vmem:[%s185 + $0x208] sm:$0xf] %v4680
      %v5267 = vld [vmem:[%s185 + $0x214] sm:$0x1]
      %v5268 = vsel %vm887, %v4681, %v5267
      %5269 = vst [vmem:[%s185 + $0x214] sm:$0x1] %v5268
      %v5270 = vld [vmem:[%s185 + $0x220] sm:$0xf]
      %v5271 = vsel %vm882, %v4682, %v5270
      %5272 = vst [vmem:[%s185 + $0x220] sm:$0xf] %v5271
      %5273 = vst [vmem:[%s185 + $0x22c] sm:$0xf] %v4683
      %v5274 = vld [vmem:[%s185 + $0x238] sm:$0x1]
      %v5275 = vsel %vm887, %v4684, %v5274
      %5276 = vst [vmem:[%s185 + $0x238] sm:$0x1] %v5275
      %vm5277 = vsmask.f32 3328
      %vm5278 = vsmask.f32 7440
      %vm5279 = vmor %vm5277, %vm5278
      %v5280 = vrot.slane %v4686, 4
      %v5281 = vrot.slane %v4689, 5
      %v5282 = vor.u32 %v5280, %v5281
      %v5283 = vrot.slane %v5282, 4
      %v5284 = vrot.slane %v4697, 5
      %v5285 = vsel %vm5279, %v5283, %v5284
      %v5286 = vrot.slane %v4694, 4
      %v5287 = vor.u32 %v5286, %v5284
      %v5288 = vrot.slane %v5287, 4
      %v5289 = vrot.slane %v4703, 5
      %v5290 = vsel %vm5279, %v5288, %v5289
      %v5291 = vrot.slane %v4707, 4
      %v5292 = vrot.slane %v4710, 5
      %v5293 = vor.u32 %v5291, %v5292
      %v5294 = vrot.slane %v5293, 4
      %v5295 = vrot.slane %v4718, 5
      %v5296 = vsel %vm5279, %v5294, %v5295
      %v5297 = vrot.slane %v4715, 4
      %v5298 = vor.u32 %v5297, %v5295
      %v5299 = vrot.slane %v5298, 4
      %v5300 = vrot.slane %v4724, 5
      %v5301 = vsel %vm5279, %v5299, %v5300
      %v5302 = vrot.slane %v4728, 4
      %v5303 = vrot.slane %v4731, 5
      %v5304 = vor.u32 %v5302, %v5303
      %v5305 = vrot.slane %v5304, 4
      %v5306 = vrot.slane %v4739, 5
      %v5307 = vsel %vm5279, %v5305, %v5306
      %v5308 = vrot.slane %v4736, 4
      %v5309 = vor.u32 %v5308, %v5306
      %v5310 = vrot.slane %v5309, 4
      %v5311 = vrot.slane %v4745, 5
      %v5312 = vsel %vm5279, %v5310, %v5311
      %v5313 = vrot.slane %v4749, 4
      %v5314 = vrot.slane %v4752, 5
      %v5315 = vor.u32 %v5313, %v5314
      %v5316 = vrot.slane %v5315, 4
      %v5317 = vrot.slane %v4760, 5
      %v5318 = vsel %vm5279, %v5316, %v5317
      %v5319 = vrot.slane %v4757, 4
      %v5320 = vor.u32 %v5319, %v5317
      %v5321 = vrot.slane %v5320, 4
      %v5322 = vrot.slane %v4766, 5
      %v5323 = vsel %vm5279, %v5321, %v5322
      %v5324 = vrot.slane %v4770, 4
      %v5325 = vrot.slane %v4773, 5
      %v5326 = vor.u32 %v5324, %v5325
      %v5327 = vrot.slane %v5326, 4
      %v5328 = vrot.slane %v4781, 5
      %v5329 = vsel %vm5279, %v5327, %v5328
      %v5330 = vrot.slane %v4778, 4
      %v5331 = vor.u32 %v5330, %v5328
      %v5332 = vrot.slane %v5331, 4
      %v5333 = vrot.slane %v4787, 5
      %v5334 = vsel %vm5279, %v5332, %v5333
      %v5335 = vrot.slane %v4791, 4
      %v5336 = vrot.slane %v4794, 5
      %v5337 = vor.u32 %v5335, %v5336
      %v5338 = vrot.slane %v5337, 4
      %v5339 = vrot.slane %v4802, 5
      %v5340 = vsel %vm5279, %v5338, %v5339
      %v5341 = vrot.slane %v4799, 4
      %v5342 = vor.u32 %v5341, %v5339
      %v5343 = vrot.slane %v5342, 4
      %v5344 = vrot.slane %v4808, 5
      %v5345 = vsel %vm5279, %v5343, %v5344
      %v5346 = vrot.slane %v4812, 4
      %v5347 = vrot.slane %v4815, 5
      %v5348 = vor.u32 %v5346, %v5347
      %v5349 = vrot.slane %v5348, 4
      %v5350 = vrot.slane %v4823, 5
      %v5351 = vsel %vm5279, %v5349, %v5350
      %v5352 = vrot.slane %v4820, 4
      %v5353 = vor.u32 %v5352, %v5350
      %v5354 = vrot.slane %v5353, 4
      %v5355 = vrot.slane %v4829, 5
      %v5356 = vsel %vm5279, %v5354, %v5355
      %v5357 = vrot.slane %v4833, 4
      %v5358 = vrot.slane %v4836, 5
      %v5359 = vor.u32 %v5357, %v5358
      %v5360 = vrot.slane %v5359, 4
      %v5361 = vrot.slane %v4844, 5
      %v5362 = vsel %vm5279, %v5360, %v5361
      %v5363 = vrot.slane %v4841, 4
      %v5364 = vor.u32 %v5363, %v5361
      %v5365 = vrot.slane %v5364, 4
      %v5366 = vrot.slane %v4850, 5
      %v5367 = vsel %vm5279, %v5365, %v5366
      %v5368 = vrot.slane %v4854, 4
      %v5369 = vrot.slane %v4857, 5
      %v5370 = vor.u32 %v5368, %v5369
      %v5371 = vrot.slane %v5370, 4
      %v5372 = vrot.slane %v4865, 5
      %v5373 = vsel %vm5279, %v5371, %v5372
      %v5374 = vrot.slane %v4862, 4
      %v5375 = vor.u32 %v5374, %v5372
      %v5376 = vrot.slane %v5375, 4
      %v5377 = vrot.slane %v4871, 5
      %v5378 = vsel %vm5279, %v5376, %v5377
      %v5379 = vrot.slane %v4875, 4
      %v5380 = vrot.slane %v4878, 5
      %v5381 = vor.u32 %v5379, %v5380
      %v5382 = vrot.slane %v5381, 4
      %v5383 = vrot.slane %v4886, 5
      %v5384 = vsel %vm5279, %v5382, %v5383
      %v5385 = vrot.slane %v4883, 4
      %v5386 = vor.u32 %v5385, %v5383
      %v5387 = vrot.slane %v5386, 4
      %v5388 = vrot.slane %v4892, 5
      %v5389 = vsel %vm5279, %v5387, %v5388
      %v5390 = vrot.slane %v4896, 4
      %v5391 = vrot.slane %v4899, 5
      %v5392 = vor.u32 %v5390, %v5391
      %v5393 = vrot.slane %v5392, 4
      %v5394 = vrot.slane %v4907, 5
      %v5395 = vsel %vm5279, %v5393, %v5394
      %v5396 = vrot.slane %v4904, 4
      %v5397 = vor.u32 %v5396, %v5394
      %v5398 = vrot.slane %v5397, 4
      %v5399 = vrot.slane %v4913, 5
      %v5400 = vsel %vm5279, %v5398, %v5399
      %v5401 = vrot.slane %v4917, 4
      %v5402 = vrot.slane %v4920, 5
      %v5403 = vor.u32 %v5401, %v5402
      %v5404 = vrot.slane %v5403, 4
      %v5405 = vrot.slane %v4928, 5
      %v5406 = vsel %vm5279, %v5404, %v5405
      %v5407 = vrot.slane %v4925, 4
      %v5408 = vor.u32 %v5407, %v5405
      %v5409 = vrot.slane %v5408, 4
      %v5410 = vrot.slane %v4934, 5
      %v5411 = vsel %vm5279, %v5409, %v5410
      %v5412 = vrot.slane %v4938, 4
      %v5413 = vrot.slane %v4941, 5
      %v5414 = vor.u32 %v5412, %v5413
      %v5415 = vrot.slane %v5414, 4
      %v5416 = vrot.slane %v4949, 5
      %v5417 = vsel %vm5279, %v5415, %v5416
      %v5418 = vrot.slane %v4946, 4
      %v5419 = vor.u32 %v5418, %v5416
      %v5420 = vrot.slane %v5419, 4
      %v5421 = vrot.slane %v4955, 5
      %v5422 = vsel %vm5279, %v5420, %v5421
      %v5423 = vrot.slane %v4959, 4
      %v5424 = vrot.slane %v4962, 5
      %v5425 = vor.u32 %v5423, %v5424
      %v5426 = vrot.slane %v5425, 4
      %v5427 = vrot.slane %v4970, 5
      %v5428 = vsel %vm5279, %v5426, %v5427
      %v5429 = vrot.slane %v4967, 4
      %v5430 = vor.u32 %v5429, %v5427
      %v5431 = vrot.slane %v5430, 4
      %v5432 = vrot.slane %v4976, 5
      %v5433 = vsel %vm5279, %v5431, %v5432
      %v5434 = vrot.slane %v4980, 4
      %v5435 = vrot.slane %v4983, 5
      %v5436 = vor.u32 %v5434, %v5435
      %v5437 = vrot.slane %v5436, 4
      %v5438 = vrot.slane %v4991, 5
      %v5439 = vsel %vm5279, %v5437, %v5438
      %v5440 = vrot.slane %v4988, 4
      %v5441 = vor.u32 %v5440, %v5438
      %v5442 = vrot.slane %v5441, 4
      %v5443 = vrot.slane %v4997, 5
      %v5444 = vsel %vm5279, %v5442, %v5443
      %v5445 = vrot.slane %v5001, 4
      %v5446 = vrot.slane %v5004, 5
      %v5447 = vor.u32 %v5445, %v5446
      %v5448 = vrot.slane %v5447, 4
      %v5449 = vrot.slane %v5012, 5
      %v5450 = vsel %vm5279, %v5448, %v5449
      %v5451 = vrot.slane %v5009, 4
      %v5452 = vor.u32 %v5451, %v5449
      %v5453 = vrot.slane %v5452, 4
      %v5454 = vrot.slane %v5018, 5
      %v5455 = vsel %vm5279, %v5453, %v5454
      %5488 = vst [vmem:[%s185 + $0x8] sm:$0xf] %v5285
      %5489 = vst [vmem:[%s185 + $0x14] sm:$0xf] %v5290
      %5490 = vst [vmem:[%s185 + $0x2c] sm:$0xf] %v5296
      %5491 = vst [vmem:[%s185 + $0x38] sm:$0xf] %v5301
      %5492 = vst [vmem:[%s185 + $0x50] sm:$0xf] %v5307
      %5493 = vst [vmem:[%s185 + $0x5c] sm:$0xf] %v5312
      %5494 = vst [vmem:[%s185 + $0x74] sm:$0xf] %v5318
      %5495 = vst [vmem:[%s185 + $0x80] sm:$0xf] %v5323
      %5496 = vst [vmem:[%s185 + $0x98] sm:$0xf] %v5329
      %5497 = vst [vmem:[%s185 + $0xa4] sm:$0xf] %v5334
      %5498 = vst [vmem:[%s185 + $0xbc] sm:$0xf] %v5340
      %5499 = vst [vmem:[%s185 + $0xc8] sm:$0xf] %v5345
      %5500 = vst [vmem:[%s185 + $0xe0] sm:$0xf] %v5351
      %5501 = vst [vmem:[%s185 + $0xec] sm:$0xf] %v5356
      %5502 = vst [vmem:[%s185 + $0x104] sm:$0xf] %v5362
      %5503 = vst [vmem:[%s185 + $0x110] sm:$0xf] %v5367
      %5504 = vst [vmem:[%s185 + $0x128] sm:$0xf] %v5373
      %5505 = vst [vmem:[%s185 + $0x134] sm:$0xf] %v5378
      %5506 = vst [vmem:[%s185 + $0x14c] sm:$0xf] %v5384
      %5507 = vst [vmem:[%s185 + $0x158] sm:$0xf] %v5389
      %5508 = vst [vmem:[%s185 + $0x170] sm:$0xf] %v5395
      %5509 = vst [vmem:[%s185 + $0x17c] sm:$0xf] %v5400
      %5510 = vst [vmem:[%s185 + $0x194] sm:$0xf] %v5406
      %5511 = vst [vmem:[%s185 + $0x1a0] sm:$0xf] %v5411
      %5512 = vst [vmem:[%s185 + $0x1b8] sm:$0xf] %v5417
      %5513 = vst [vmem:[%s185 + $0x1c4] sm:$0xf] %v5422
      %5514 = vst [vmem:[%s185 + $0x1dc] sm:$0xf] %v5428
      %5515 = vst [vmem:[%s185 + $0x1e8] sm:$0xf] %v5433
      %5516 = vst [vmem:[%s185 + $0x200] sm:$0xf] %v5439
      %5517 = vst [vmem:[%s185 + $0x20c] sm:$0xf] %v5444
      %5518 = vst [vmem:[%s185 + $0x224] sm:$0xf] %v5450
      %5519 = vst [vmem:[%s185 + $0x230] sm:$0xf] %v5455
      %v5520 = vld [vmem:[#allocation2] sm:$0xff]
      %v5521 = vld [vmem:[#allocation2 + $0x8] sm:$0xf]
      %v5522 = vld [vmem:[#allocation2 + $0xc] sm:$0xff]
      %v5523 = vld [vmem:[#allocation2 + $0x14] sm:$0xf]
      %v5524 = vld [vmem:[#allocation2 + $0x18] sm:$0xff]
      %v5525 = vld [vmem:[#allocation2 + $0x20] sm:$0xf]
      %v5526 = vld [vmem:[#allocation2 + $0x24] sm:$0xff]
      %v5527 = vld [vmem:[#allocation2 + $0x2c] sm:$0xf]
      %v5528 = vld [vmem:[#allocation2 + $0x30] sm:$0xff]
      %v5529 = vld [vmem:[#allocation2 + $0x38] sm:$0xf]
      %v5530 = vld [vmem:[#allocation2 + $0x3c] sm:$0xff]
      %v5531 = vld [vmem:[#allocation2 + $0x44] sm:$0xf]
      %v5532 = vld [vmem:[#allocation2 + $0x48] sm:$0xff]
      %v5533 = vld [vmem:[#allocation2 + $0x50] sm:$0xf]
      %v5534 = vld [vmem:[#allocation2 + $0x54] sm:$0xff]
      %v5535 = vld [vmem:[#allocation2 + $0x5c] sm:$0xf]
      %v5536 = vld [vmem:[#allocation2 + $0x60] sm:$0xff]
      %v5537 = vld [vmem:[#allocation2 + $0x68] sm:$0xf]
      %v5538 = vld [vmem:[#allocation2 + $0x6c] sm:$0xff]
      %v5539 = vld [vmem:[#allocation2 + $0x74] sm:$0xf]
      %v5540 = vld [vmem:[#allocation2 + $0x78] sm:$0xff]
      %v5541 = vld [vmem:[#allocation2 + $0x80] sm:$0xf]
      %v5542 = vld [vmem:[#allocation2 + $0x84] sm:$0xff]
      %v5543 = vld [vmem:[#allocation2 + $0x8c] sm:$0xf]
      %v5544 = vld [vmem:[#allocation2 + $0x90] sm:$0xff]
      %v5545 = vld [vmem:[#allocation2 + $0x98] sm:$0xf]
      %v5546 = vld [vmem:[#allocation2 + $0x9c] sm:$0xff]
      %v5547 = vld [vmem:[#allocation2 + $0xa4] sm:$0xf]
      %v5548 = vld [vmem:[#allocation2 + $0xa8] sm:$0xff]
      %v5549 = vld [vmem:[#allocation2 + $0xb0] sm:$0xf]
      %v5550 = vld [vmem:[#allocation2 + $0xb4] sm:$0xff]
      %v5551 = vld [vmem:[#allocation2 + $0xbc] sm:$0xf]
      %v5552 = vld [vmem:[#allocation2 + $0xc0] sm:$0xff]
      %v5553 = vld [vmem:[#allocation2 + $0xc8] sm:$0xf]
      %v5554 = vld [vmem:[#allocation2 + $0xcc] sm:$0xff]
      %v5555 = vld [vmem:[#allocation2 + $0xd4] sm:$0xf]
      %v5556 = vld [vmem:[#allocation2 + $0xd8] sm:$0xff]
      %v5557 = vld [vmem:[#allocation2 + $0xe0] sm:$0xf]
      %v5558 = vld [vmem:[#allocation2 + $0xe4] sm:$0xff]
      %v5559 = vld [vmem:[#allocation2 + $0xec] sm:$0xf]
      %v5560 = vld [vmem:[#allocation2 + $0xf0] sm:$0xff]
      %v5561 = vld [vmem:[#allocation2 + $0xf8] sm:$0xf]
      %v5562 = vld [vmem:[#allocation2 + $0xfc] sm:$0xff]
      %v5563 = vld [vmem:[#allocation2 + $0x104] sm:$0xf]
      %v5564 = vld [vmem:[#allocation2 + $0x108] sm:$0xff]
      %v5565 = vld [vmem:[#allocation2 + $0x110] sm:$0xf]
      %v5566 = vld [vmem:[#allocation2 + $0x114] sm:$0xff]
      %v5567 = vld [vmem:[#allocation2 + $0x11c] sm:$0xf]
      %v5568 = vld [vmem:[#allocation2 + $0x120] sm:$0xff]
      %v5569 = vld [vmem:[#allocation2 + $0x128] sm:$0xf]
      %v5570 = vld [vmem:[#allocation2 + $0x12c] sm:$0xff]
      %v5571 = vld [vmem:[#allocation2 + $0x134] sm:$0xf]
      %v5572 = vld [vmem:[#allocation2 + $0x138] sm:$0xff]
      %v5573 = vld [vmem:[#allocation2 + $0x140] sm:$0xf]
      %v5574 = vld [vmem:[#allocation2 + $0x144] sm:$0xff]
      %v5575 = vld [vmem:[#allocation2 + $0x14c] sm:$0xf]
      %v5576 = vld [vmem:[#allocation2 + $0x150] sm:$0xff]
      %v5577 = vld [vmem:[#allocation2 + $0x158] sm:$0xf]
      %v5578 = vld [vmem:[#allocation2 + $0x15c] sm:$0xff]
      %v5579 = vld [vmem:[#allocation2 + $0x164] sm:$0xf]
      %v5580 = vld [vmem:[#allocation2 + $0x168] sm:$0xff]
      %v5581 = vld [vmem:[#allocation2 + $0x170] sm:$0xf]
      %v5582 = vld [vmem:[#allocation2 + $0x174] sm:$0xff]
      %v5583 = vld [vmem:[#allocation2 + $0x17c] sm:$0xf]
      %v5584 = vld [vmem:[#allocation2 + $0x180] sm:$0xff]
      %v5585 = vld [vmem:[#allocation2 + $0x188] sm:$0xf]
      %v5586 = vld [vmem:[#allocation2 + $0x18c] sm:$0xff]
      %v5587 = vld [vmem:[#allocation2 + $0x194] sm:$0xf]
      %v5588 = vld [vmem:[#allocation2 + $0x198] sm:$0xff]
      %v5589 = vld [vmem:[#allocation2 + $0x1a0] sm:$0xf]
      %v5590 = vld [vmem:[#allocation2 + $0x1a4] sm:$0xff]
      %v5591 = vld [vmem:[#allocation2 + $0x1ac] sm:$0xf]
      %v5592 = vld [vmem:[#allocation2 + $0x1b0] sm:$0xff]
      %v5593 = vld [vmem:[#allocation2 + $0x1b8] sm:$0xf]
      %v5594 = vld [vmem:[#allocation2 + $0x1bc] sm:$0xff]
      %v5595 = vld [vmem:[#allocation2 + $0x1c4] sm:$0xf]
      %v5596 = vld [vmem:[#allocation2 + $0x1c8] sm:$0xff]
      %v5597 = vld [vmem:[#allocation2 + $0x1d0] sm:$0xf]
      %v5598 = vld [vmem:[#allocation2 + $0x1d4] sm:$0xff]
      %v5599 = vld [vmem:[#allocation2 + $0x1dc] sm:$0xf]
      %v5600 = vld [vmem:[#allocation2 + $0x1e0] sm:$0xff]
      %v5601 = vld [vmem:[#allocation2 + $0x1e8] sm:$0xf]
      %v5602 = vld [vmem:[#allocation2 + $0x1ec] sm:$0xff]
      %v5603 = vld [vmem:[#allocation2 + $0x1f4] sm:$0xf]
      %v5604 = vld [vmem:[#allocation2 + $0x1f8] sm:$0xff]
      %v5605 = vld [vmem:[#allocation2 + $0x200] sm:$0xf]
      %v5606 = vld [vmem:[#allocation2 + $0x204] sm:$0xff]
      %v5607 = vld [vmem:[#allocation2 + $0x20c] sm:$0xf]
      %v5608 = vld [vmem:[#allocation2 + $0x210] sm:$0xff]
      %v5609 = vld [vmem:[#allocation2 + $0x218] sm:$0xf]
      %v5610 = vld [vmem:[#allocation2 + $0x21c] sm:$0xff]
      %v5611 = vld [vmem:[#allocation2 + $0x224] sm:$0xf]
      %v5612 = vld [vmem:[#allocation2 + $0x228] sm:$0xff]
      %v5613 = vld [vmem:[#allocation2 + $0x230] sm:$0xf]
      %v5614 = vld [vmem:[#allocation2 + $0x234] sm:$0xff]
      %v5615 = vld [vmem:[#allocation2 + $0x23c] sm:$0xf]
      %v5616 = vld [vmem:[%s2] sm:$0xf]
      %v5617 = vld [vmem:[%s2 + $0x4] sm:$0xf]
      %v5618 = vld [vmem:[%s2 + $0x8] sm:$0xf]
      %v5619 = vld [vmem:[%s2 + $0xc] sm:$0xf]
      %v5620 = vld [vmem:[%s2 + $0x10] sm:$0xf]
      %v5621 = vld [vmem:[%s2 + $0x14] sm:$0xf]
      %v5622 = vld [vmem:[%s2 + $0x18] sm:$0xf]
      %v5623 = vld [vmem:[%s2 + $0x1c] sm:$0xf]
      %v5624 = vld [vmem:[%s2 + $0x20] sm:$0xf]
      %v5625 = vld [vmem:[%s2 + $0x24] sm:$0xf]
      %v5626 = vld [vmem:[%s2 + $0x28] sm:$0xf]
      %v5627 = vld [vmem:[%s2 + $0x2c] sm:$0xf]
      %v5628 = vld [vmem:[%s2 + $0x30] sm:$0xf]
      %v5629 = vld [vmem:[%s2 + $0x34] sm:$0xf]
      %v5630 = vld [vmem:[%s2 + $0x38] sm:$0xf]
      %v5631 = vld [vmem:[%s2 + $0x3c] sm:$0xf]
      %v5632 = vld [vmem:[%s2 + $0x40] sm:$0xf]
      %v5633 = vld [vmem:[%s2 + $0x44] sm:$0xf]
      %v5634 = vld [vmem:[%s2 + $0x48] sm:$0xf]
      %v5635 = vld [vmem:[%s2 + $0x4c] sm:$0xf]
      %v5636 = vld [vmem:[%s2 + $0x50] sm:$0xf]
      %v5637 = vld [vmem:[%s2 + $0x54] sm:$0xf]
      %v5638 = vld [vmem:[%s2 + $0x58] sm:$0xf]
      %v5639 = vld [vmem:[%s2 + $0x5c] sm:$0xf]
      %v5640 = vld [vmem:[%s2 + $0x60] sm:$0xf]
      %v5641 = vld [vmem:[%s2 + $0x64] sm:$0xf]
      %v5642 = vld [vmem:[%s2 + $0x68] sm:$0xf]
      %v5643 = vld [vmem:[%s2 + $0x6c] sm:$0xf]
      %v5644 = vld [vmem:[%s2 + $0x70] sm:$0xf]
      %v5645 = vld [vmem:[%s2 + $0x74] sm:$0xf]
      %v5646 = vld [vmem:[%s2 + $0x78] sm:$0xf]
      %v5647 = vld [vmem:[%s2 + $0x7c] sm:$0xf]
      %v5648 = vld [vmem:[%s2 + $0x80] sm:$0xf]
      %v5649 = vld [vmem:[%s2 + $0x84] sm:$0xf]
      %v5650 = vld [vmem:[%s2 + $0x88] sm:$0xf]
      %v5651 = vld [vmem:[%s2 + $0x8c] sm:$0xf]
      %v5652 = vld [vmem:[%s2 + $0x90] sm:$0xf]
      %v5653 = vld [vmem:[%s2 + $0x94] sm:$0xf]
      %v5654 = vld [vmem:[%s2 + $0x98] sm:$0xf]
      %v5655 = vld [vmem:[%s2 + $0x9c] sm:$0xf]
      %v5656 = vld [vmem:[%s2 + $0xa0] sm:$0xf]
      %v5657 = vld [vmem:[%s2 + $0xa4] sm:$0xf]
      %v5658 = vld [vmem:[%s2 + $0xa8] sm:$0xf]
      %v5659 = vld [vmem:[%s2 + $0xac] sm:$0xf]
      %v5660 = vld [vmem:[%s2 + $0xb0] sm:$0xf]
      %v5661 = vld [vmem:[%s2 + $0xb4] sm:$0xf]
      %v5662 = vld [vmem:[%s2 + $0xb8] sm:$0xf]
      %v5663 = vld [vmem:[%s2 + $0xbc] sm:$0xf]
      %v5664 = vld [vmem:[%s185] sm:$0xff]
      %v5665 = vld [vmem:[%s185 + $0x8] sm:$0xf]
      %v5666 = vld [vmem:[%s185 + $0xc] sm:$0xff]
      %v5667 = vld [vmem:[%s185 + $0x14] sm:$0xf]
      %v5668 = vld [vmem:[%s185 + $0x18] sm:$0xff]
      %v5669 = vld [vmem:[%s185 + $0x20] sm:$0xf]
      %v5670 = vld [vmem:[%s185 + $0x24] sm:$0xff]
      %v5671 = vld [vmem:[%s185 + $0x2c] sm:$0xf]
      %v5672 = vld [vmem:[%s185 + $0x30] sm:$0xff]
      %v5673 = vld [vmem:[%s185 + $0x38] sm:$0xf]
      %v5674 = vld [vmem:[%s185 + $0x3c] sm:$0xff]
      %v5675 = vld [vmem:[%s185 + $0x44] sm:$0xf]
      %v5676 = vld [vmem:[%s185 + $0x48] sm:$0xff]
      %v5677 = vld [vmem:[%s185 + $0x50] sm:$0xf]
      %v5678 = vld [vmem:[%s185 + $0x54] sm:$0xff]
      %v5679 = vld [vmem:[%s185 + $0x5c] sm:$0xf]
      %v5680 = vld [vmem:[%s185 + $0x60] sm:$0xff]
      %v5681 = vld [vmem:[%s185 + $0x68] sm:$0xf]
      %v5682 = vld [vmem:[%s185 + $0x6c] sm:$0xff]
      %v5683 = vld [vmem:[%s185 + $0x74] sm:$0xf]
      %v5684 = vld [vmem:[%s185 + $0x78] sm:$0xff]
      %v5685 = vld [vmem:[%s185 + $0x80] sm:$0xf]
      %v5686 = vld [vmem:[%s185 + $0x84] sm:$0xff]
      %v5687 = vld [vmem:[%s185 + $0x8c] sm:$0xf]
      %v5688 = vld [vmem:[%s185 + $0x90] sm:$0xff]
      %v5689 = vld [vmem:[%s185 + $0x98] sm:$0xf]
      %v5690 = vld [vmem:[%s185 + $0x9c] sm:$0xff]
      %v5691 = vld [vmem:[%s185 + $0xa4] sm:$0xf]
      %v5692 = vld [vmem:[%s185 + $0xa8] sm:$0xff]
      %v5693 = vld [vmem:[%s185 + $0xb0] sm:$0xf]
      %v5694 = vld [vmem:[%s185 + $0xb4] sm:$0xff]
      %v5695 = vld [vmem:[%s185 + $0xbc] sm:$0xf]
      %v5696 = vld [vmem:[%s185 + $0xc0] sm:$0xff]
      %v5697 = vld [vmem:[%s185 + $0xc8] sm:$0xf]
      %v5698 = vld [vmem:[%s185 + $0xcc] sm:$0xff]
      %v5699 = vld [vmem:[%s185 + $0xd4] sm:$0xf]
      %v5700 = vld [vmem:[%s185 + $0xd8] sm:$0xff]
      %v5701 = vld [vmem:[%s185 + $0xe0] sm:$0xf]
      %v5702 = vld [vmem:[%s185 + $0xe4] sm:$0xff]
      %v5703 = vld [vmem:[%s185 + $0xec] sm:$0xf]
      %v5704 = vld [vmem:[%s185 + $0xf0] sm:$0xff]
      %v5705 = vld [vmem:[%s185 + $0xf8] sm:$0xf]
      %v5706 = vld [vmem:[%s185 + $0xfc] sm:$0xff]
      %v5707 = vld [vmem:[%s185 + $0x104] sm:$0xf]
      %v5708 = vld [vmem:[%s185 + $0x108] sm:$0xff]
      %v5709 = vld [vmem:[%s185 + $0x110] sm:$0xf]
      %v5710 = vld [vmem:[%s185 + $0x114] sm:$0xff]
      %v5711 = vld [vmem:[%s185 + $0x11c] sm:$0xf]
      %v5712 = vld [vmem:[%s185 + $0x120] sm:$0xff]
      %v5713 = vld [vmem:[%s185 + $0x128] sm:$0xf]
      %v5714 = vld [vmem:[%s185 + $0x12c] sm:$0xff]
      %v5715 = vld [vmem:[%s185 + $0x134] sm:$0xf]
      %v5716 = vld [vmem:[%s185 + $0x138] sm:$0xff]
      %v5717 = vld [vmem:[%s185 + $0x140] sm:$0xf]
      %v5718 = vld [vmem:[%s185 + $0x144] sm:$0xff]
      %v5719 = vld [vmem:[%s185 + $0x14c] sm:$0xf]
      %v5720 = vld [vmem:[%s185 + $0x150] sm:$0xff]
      %v5721 = vld [vmem:[%s185 + $0x158] sm:$0xf]
      %v5722 = vld [vmem:[%s185 + $0x15c] sm:$0xff]
      %v5723 = vld [vmem:[%s185 + $0x164] sm:$0xf]
      %v5724 = vld [vmem:[%s185 + $0x168] sm:$0xff]
      %v5725 = vld [vmem:[%s185 + $0x170] sm:$0xf]
      %v5726 = vld [vmem:[%s185 + $0x174] sm:$0xff]
      %v5727 = vld [vmem:[%s185 + $0x17c] sm:$0xf]
      %v5728 = vld [vmem:[%s185 + $0x180] sm:$0xff]
      %v5729 = vld [vmem:[%s185 + $0x188] sm:$0xf]
      %v5730 = vld [vmem:[%s185 + $0x18c] sm:$0xff]
      %v5731 = vld [vmem:[%s185 + $0x194] sm:$0xf]
      %v5732 = vld [vmem:[%s185 + $0x198] sm:$0xff]
      %v5733 = vld [vmem:[%s185 + $0x1a0] sm:$0xf]
      %v5734 = vld [vmem:[%s185 + $0x1a4] sm:$0xff]
      %v5735 = vld [vmem:[%s185 + $0x1ac] sm:$0xf]
      %v5736 = vld [vmem:[%s185 + $0x1b0] sm:$0xff]
      %v5737 = vld [vmem:[%s185 + $0x1b8] sm:$0xf]
      %v5738 = vld [vmem:[%s185 + $0x1bc] sm:$0xff]
      %v5739 = vld [vmem:[%s185 + $0x1c4] sm:$0xf]
      %v5740 = vld [vmem:[%s185 + $0x1c8] sm:$0xff]
      %v5741 = vld [vmem:[%s185 + $0x1d0] sm:$0xf]
      %v5742 = vld [vmem:[%s185 + $0x1d4] sm:$0xff]
      %v5743 = vld [vmem:[%s185 + $0x1dc] sm:$0xf]
      %v5744 = vld [vmem:[%s185 + $0x1e0] sm:$0xff]
      %v5745 = vld [vmem:[%s185 + $0x1e8] sm:$0xf]
      %v5746 = vld [vmem:[%s185 + $0x1ec] sm:$0xff]
      %v5747 = vld [vmem:[%s185 + $0x1f4] sm:$0xf]
      %v5748 = vld [vmem:[%s185 + $0x1f8] sm:$0xff]
      %v5749 = vld [vmem:[%s185 + $0x200] sm:$0xf]
      %v5750 = vld [vmem:[%s185 + $0x204] sm:$0xff]
      %v5751 = vld [vmem:[%s185 + $0x20c] sm:$0xf]
      %v5752 = vld [vmem:[%s185 + $0x210] sm:$0xff]
      %v5753 = vld [vmem:[%s185 + $0x218] sm:$0xf]
      %v5754 = vld [vmem:[%s185 + $0x21c] sm:$0xff]
      %v5755 = vld [vmem:[%s185 + $0x224] sm:$0xf]
      %v5756 = vld [vmem:[%s185 + $0x228] sm:$0xff]
      %v5757 = vld [vmem:[%s185 + $0x230] sm:$0xf]
      %v5758 = vld [vmem:[%s185 + $0x234] sm:$0xff]
      %v5759 = vld [vmem:[%s185 + $0x23c] sm:$0xf]
      %s5760 = scalar_lea.vmem %s2, 192
      %v5761 = vld [vmem:[%s5760] sm:$0xf]
      %v5762 = vld [vmem:[%s5760 + $0x4] sm:$0xf]
      %v5763 = vld [vmem:[%s5760 + $0x8] sm:$0xf]
      %v5764 = vld [vmem:[%s5760 + $0xc] sm:$0xf]
      %v5765 = vld [vmem:[%s5760 + $0x10] sm:$0xf]
      %v5766 = vld [vmem:[%s5760 + $0x14] sm:$0xf]
      %v5767 = vld [vmem:[%s5760 + $0x18] sm:$0xf]
      %v5768 = vld [vmem:[%s5760 + $0x1c] sm:$0xf]
      %v5769 = vld [vmem:[%s5760 + $0x20] sm:$0xf]
      %v5770 = vld [vmem:[%s5760 + $0x24] sm:$0xf]
      %v5771 = vld [vmem:[%s5760 + $0x28] sm:$0xf]
      %v5772 = vld [vmem:[%s5760 + $0x2c] sm:$0xf]
      %v5773 = vld [vmem:[%s5760 + $0x30] sm:$0xf]
      %v5774 = vld [vmem:[%s5760 + $0x34] sm:$0xf]
      %v5775 = vld [vmem:[%s5760 + $0x38] sm:$0xf]
      %v5776 = vld [vmem:[%s5760 + $0x3c] sm:$0xf]
      %v5777 = vld [vmem:[%s5760 + $0x40] sm:$0xf]
      %v5778 = vld [vmem:[%s5760 + $0x44] sm:$0xf]
      %v5779 = vld [vmem:[%s5760 + $0x48] sm:$0xf]
      %v5780 = vld [vmem:[%s5760 + $0x4c] sm:$0xf]
      %v5781 = vld [vmem:[%s5760 + $0x50] sm:$0xf]
      %v5782 = vld [vmem:[%s5760 + $0x54] sm:$0xf]
      %v5783 = vld [vmem:[%s5760 + $0x58] sm:$0xf]
      %v5784 = vld [vmem:[%s5760 + $0x5c] sm:$0xf]
      %v5785 = vld [vmem:[%s5760 + $0x60] sm:$0xf]
      %v5786 = vld [vmem:[%s5760 + $0x64] sm:$0xf]
      %v5787 = vld [vmem:[%s5760 + $0x68] sm:$0xf]
      %v5788 = vld [vmem:[%s5760 + $0x6c] sm:$0xf]
      %v5789 = vld [vmem:[%s5760 + $0x70] sm:$0xf]
      %v5790 = vld [vmem:[%s5760 + $0x74] sm:$0xf]
      %v5791 = vld [vmem:[%s5760 + $0x78] sm:$0xf]
      %v5792 = vld [vmem:[%s5760 + $0x7c] sm:$0xf]
      %v5793 = vld [vmem:[%s5760 + $0x80] sm:$0xf]
      %v5794 = vld [vmem:[%s5760 + $0x84] sm:$0xf]
      %v5795 = vld [vmem:[%s5760 + $0x88] sm:$0xf]
      %v5796 = vld [vmem:[%s5760 + $0x8c] sm:$0xf]
      %v5797 = vld [vmem:[%s5760 + $0x90] sm:$0xf]
      %v5798 = vld [vmem:[%s5760 + $0x94] sm:$0xf]
      %v5799 = vld [vmem:[%s5760 + $0x98] sm:$0xf]
      %v5800 = vld [vmem:[%s5760 + $0x9c] sm:$0xf]
      %v5801 = vld [vmem:[%s5760 + $0xa0] sm:$0xf]
      %v5802 = vld [vmem:[%s5760 + $0xa4] sm:$0xf]
      %v5803 = vld [vmem:[%s5760 + $0xa8] sm:$0xf]
      %v5804 = vld [vmem:[%s5760 + $0xac] sm:$0xf]
      %v5805 = vld [vmem:[%s5760 + $0xb0] sm:$0xf]
      %v5806 = vld [vmem:[%s5760 + $0xb4] sm:$0xf]
      %v5807 = vld [vmem:[%s5760 + $0xb8] sm:$0xf]
      %v5808 = vld [vmem:[%s5760 + $0xbc] sm:$0xf]
      %v5905 = vunpack.c.l.b16 %v5664
      %v5906 = vunpack.c.h.b16 %v5664
      %v5907 = vunpack.c.l.b16 %v5665
      %v5908 = vunpack.c.l.b16 %v5666
      %v5909 = vunpack.c.h.b16 %v5666
      %v5910 = vunpack.c.l.b16 %v5667
      %v5911 = vunpack.c.l.b16 %v5668
      %v5912 = vunpack.c.h.b16 %v5668
      %v5913 = vunpack.c.l.b16 %v5669
      %v5914 = vunpack.c.l.b16 %v5670
      %v5915 = vunpack.c.h.b16 %v5670
      %v5916 = vunpack.c.l.b16 %v5671
      %v5917 = vunpack.c.l.b16 %v5672
      %v5918 = vunpack.c.h.b16 %v5672
      %v5919 = vunpack.c.l.b16 %v5673
      %v5920 = vunpack.c.l.b16 %v5674
      %v5921 = vunpack.c.h.b16 %v5674
      %v5922 = vunpack.c.l.b16 %v5675
      %v5923 = vunpack.c.l.b16 %v5676
      %v5924 = vunpack.c.h.b16 %v5676
      %v5925 = vunpack.c.l.b16 %v5677
      %v5926 = vunpack.c.l.b16 %v5678
      %v5927 = vunpack.c.h.b16 %v5678
      %v5928 = vunpack.c.l.b16 %v5679
      %v5929 = vunpack.c.l.b16 %v5680
      %v5930 = vunpack.c.h.b16 %v5680
      %v5931 = vunpack.c.l.b16 %v5681
      %v5932 = vunpack.c.l.b16 %v5682
      %v5933 = vunpack.c.h.b16 %v5682
      %v5934 = vunpack.c.l.b16 %v5683
      %v5935 = vunpack.c.l.b16 %v5684
      %v5936 = vunpack.c.h.b16 %v5684
      %v5937 = vunpack.c.l.b16 %v5685
      %v5938 = vunpack.c.l.b16 %v5686
      %v5939 = vunpack.c.h.b16 %v5686
      %v5940 = vunpack.c.l.b16 %v5687
      %v5941 = vunpack.c.l.b16 %v5688
      %v5942 = vunpack.c.h.b16 %v5688
      %v5943 = vunpack.c.l.b16 %v5689
      %v5944 = vunpack.c.l.b16 %v5690
      %v5945 = vunpack.c.h.b16 %v5690
      %v5946 = vunpack.c.l.b16 %v5691
      %v5947 = vunpack.c.l.b16 %v5692
      %v5948 = vunpack.c.h.b16 %v5692
      %v5949 = vunpack.c.l.b16 %v5693
      %v5950 = vunpack.c.l.b16 %v5694
      %v5951 = vunpack.c.h.b16 %v5694
      %v5952 = vunpack.c.l.b16 %v5695
      %v5953 = vunpack.c.l.b16 %v5696
      %v5954 = vunpack.c.h.b16 %v5696
      %v5955 = vunpack.c.l.b16 %v5697
      %v5956 = vunpack.c.l.b16 %v5698
      %v5957 = vunpack.c.h.b16 %v5698
      %v5958 = vunpack.c.l.b16 %v5699
      %v5959 = vunpack.c.l.b16 %v5700
      %v5960 = vunpack.c.h.b16 %v5700
      %v5961 = vunpack.c.l.b16 %v5701
      %v5962 = vunpack.c.l.b16 %v5702
      %v5963 = vunpack.c.h.b16 %v5702
      %v5964 = vunpack.c.l.b16 %v5703
      %v5965 = vunpack.c.l.b16 %v5704
      %v5966 = vunpack.c.h.b16 %v5704
      %v5967 = vunpack.c.l.b16 %v5705
      %v5968 = vunpack.c.l.b16 %v5706
      %v5969 = vunpack.c.h.b16 %v5706
      %v5970 = vunpack.c.l.b16 %v5707
      %v5971 = vunpack.c.l.b16 %v5708
      %v5972 = vunpack.c.h.b16 %v5708
      %v5973 = vunpack.c.l.b16 %v5709
      %v5974 = vunpack.c.l.b16 %v5710
      %v5975 = vunpack.c.h.b16 %v5710
      %v5976 = vunpack.c.l.b16 %v5711
      %v5977 = vunpack.c.l.b16 %v5712
      %v5978 = vunpack.c.h.b16 %v5712
      %v5979 = vunpack.c.l.b16 %v5713
      %v5980 = vunpack.c.l.b16 %v5714
      %v5981 = vunpack.c.h.b16 %v5714
      %v5982 = vunpack.c.l.b16 %v5715
      %v5983 = vunpack.c.l.b16 %v5716
      %v5984 = vunpack.c.h.b16 %v5716
      %v5985 = vunpack.c.l.b16 %v5717
      %v5986 = vunpack.c.l.b16 %v5718
      %v5987 = vunpack.c.h.b16 %v5718
      %v5988 = vunpack.c.l.b16 %v5719
      %v5989 = vunpack.c.l.b16 %v5720
      %v5990 = vunpack.c.h.b16 %v5720
      %v5991 = vunpack.c.l.b16 %v5721
      %v5992 = vunpack.c.l.b16 %v5722
      %v5993 = vunpack.c.h.b16 %v5722
      %v5994 = vunpack.c.l.b16 %v5723
      %v5995 = vunpack.c.l.b16 %v5724
      %v5996 = vunpack.c.h.b16 %v5724
      %v5997 = vunpack.c.l.b16 %v5725
      %v5998 = vunpack.c.l.b16 %v5726
      %v5999 = vunpack.c.h.b16 %v5726
      %v6000 = vunpack.c.l.b16 %v5727
      %v6001 = vunpack.c.l.b16 %v5728
      %v6002 = vunpack.c.h.b16 %v5728
      %v6003 = vunpack.c.l.b16 %v5729
      %v6004 = vunpack.c.l.b16 %v5730
      %v6005 = vunpack.c.h.b16 %v5730
      %v6006 = vunpack.c.l.b16 %v5731
      %v6007 = vunpack.c.l.b16 %v5732
      %v6008 = vunpack.c.h.b16 %v5732
      %v6009 = vunpack.c.l.b16 %v5733
      %v6010 = vunpack.c.l.b16 %v5734
      %v6011 = vunpack.c.h.b16 %v5734
      %v6012 = vunpack.c.l.b16 %v5735
      %v6013 = vunpack.c.l.b16 %v5736
      %v6014 = vunpack.c.h.b16 %v5736
      %v6015 = vunpack.c.l.b16 %v5737
      %v6016 = vunpack.c.l.b16 %v5738
      %v6017 = vunpack.c.h.b16 %v5738
      %v6018 = vunpack.c.l.b16 %v5739
      %v6019 = vunpack.c.l.b16 %v5740
      %v6020 = vunpack.c.h.b16 %v5740
      %v6021 = vunpack.c.l.b16 %v5741
      %v6022 = vunpack.c.l.b16 %v5742
      %v6023 = vunpack.c.h.b16 %v5742
      %v6024 = vunpack.c.l.b16 %v5743
      %v6025 = vunpack.c.l.b16 %v5744
      %v6026 = vunpack.c.h.b16 %v5744
      %v6027 = vunpack.c.l.b16 %v5745
      %v6028 = vunpack.c.l.b16 %v5746
      %v6029 = vunpack.c.h.b16 %v5746
      %v6030 = vunpack.c.l.b16 %v5747
      %v6031 = vunpack.c.l.b16 %v5748
      %v6032 = vunpack.c.h.b16 %v5748
      %v6033 = vunpack.c.l.b16 %v5749
      %v6034 = vunpack.c.l.b16 %v5750
      %v6035 = vunpack.c.h.b16 %v5750
      %v6036 = vunpack.c.l.b16 %v5751
      %v6037 = vunpack.c.l.b16 %v5752
      %v6038 = vunpack.c.h.b16 %v5752
      %v6039 = vunpack.c.l.b16 %v5753
      %v6040 = vunpack.c.l.b16 %v5754
      %v6041 = vunpack.c.h.b16 %v5754
      %v6042 = vunpack.c.l.b16 %v5755
      %v6043 = vunpack.c.l.b16 %v5756
      %v6044 = vunpack.c.h.b16 %v5756
      %v6045 = vunpack.c.l.b16 %v5757
      %v6046 = vunpack.c.l.b16 %v5758
      %v6047 = vunpack.c.h.b16 %v5758
      %v6048 = vunpack.c.l.b16 %v5759
      %v6049 = vpack.c.b16 %v5908, %v5905
      %v6050 = vpack.c.b16 %v5909, %v5906
      %v6051 = vpack.c.b16 %v5910, %v5907
      %v6052 = vpack.c.b16 %v5914, %v5911
      %v6053 = vpack.c.b16 %v5915, %v5912
      %v6054 = vpack.c.b16 %v5916, %v5913
      %v6055 = vpack.c.b16 %v5920, %v5917
      %v6056 = vpack.c.b16 %v5921, %v5918
      %v6057 = vpack.c.b16 %v5922, %v5919
      %v6058 = vpack.c.b16 %v5926, %v5923
      %v6059 = vpack.c.b16 %v5927, %v5924
      %v6060 = vpack.c.b16 %v5928, %v5925
      %v6061 = vpack.c.b16 %v5932, %v5929
      %v6062 = vpack.c.b16 %v5933, %v5930
      %v6063 = vpack.c.b16 %v5934, %v5931
      %v6064 = vpack.c.b16 %v5938, %v5935
      %v6065 = vpack.c.b16 %v5939, %v5936
      %v6066 = vpack.c.b16 %v5940, %v5937
      %v6067 = vpack.c.b16 %v5944, %v5941
      %v6068 = vpack.c.b16 %v5945, %v5942
      %v6069 = vpack.c.b16 %v5946, %v5943
      %v6070 = vpack.c.b16 %v5950, %v5947
      %v6071 = vpack.c.b16 %v5951, %v5948
      %v6072 = vpack.c.b16 %v5952, %v5949
      %v6073 = vpack.c.b16 %v5956, %v5953
      %v6074 = vpack.c.b16 %v5957, %v5954
      %v6075 = vpack.c.b16 %v5958, %v5955
      %v6076 = vpack.c.b16 %v5962, %v5959
      %v6077 = vpack.c.b16 %v5963, %v5960
      %v6078 = vpack.c.b16 %v5964, %v5961
      %v6079 = vpack.c.b16 %v5968, %v5965
      %v6080 = vpack.c.b16 %v5969, %v5966
      %v6081 = vpack.c.b16 %v5970, %v5967
      %v6082 = vpack.c.b16 %v5974, %v5971
      %v6083 = vpack.c.b16 %v5975, %v5972
      %v6084 = vpack.c.b16 %v5976, %v5973
      %v6085 = vpack.c.b16 %v5980, %v5977
      %v6086 = vpack.c.b16 %v5981, %v5978
      %v6087 = vpack.c.b16 %v5982, %v5979
      %v6088 = vpack.c.b16 %v5986, %v5983
      %v6089 = vpack.c.b16 %v5987, %v5984
      %v6090 = vpack.c.b16 %v5988, %v5985
      %v6091 = vpack.c.b16 %v5992, %v5989
      %v6092 = vpack.c.b16 %v5993, %v5990
      %v6093 = vpack.c.b16 %v5994, %v5991
      %v6094 = vpack.c.b16 %v5998, %v5995
      %v6095 = vpack.c.b16 %v5999, %v5996
      %v6096 = vpack.c.b16 %v6000, %v5997
      %v6097 = vpack.c.b16 %v6004, %v6001
      %v6098 = vpack.c.b16 %v6005, %v6002
      %v6099 = vpack.c.b16 %v6006, %v6003
      %v6100 = vpack.c.b16 %v6010, %v6007
      %v6101 = vpack.c.b16 %v6011, %v6008
      %v6102 = vpack.c.b16 %v6012, %v6009
      %v6103 = vpack.c.b16 %v6016, %v6013
      %v6104 = vpack.c.b16 %v6017, %v6014
      %v6105 = vpack.c.b16 %v6018, %v6015
      %v6106 = vpack.c.b16 %v6022, %v6019
      %v6107 = vpack.c.b16 %v6023, %v6020
      %v6108 = vpack.c.b16 %v6024, %v6021
      %v6109 = vpack.c.b16 %v6028, %v6025
      %v6110 = vpack.c.b16 %v6029, %v6026
      %v6111 = vpack.c.b16 %v6030, %v6027
      %v6112 = vpack.c.b16 %v6034, %v6031
      %v6113 = vpack.c.b16 %v6035, %v6032
      %v6114 = vpack.c.b16 %v6036, %v6033
      %v6115 = vpack.c.b16 %v6040, %v6037
      %v6116 = vpack.c.b16 %v6041, %v6038
      %v6117 = vpack.c.b16 %v6042, %v6039
      %v6118 = vpack.c.b16 %v6046, %v6043
      %v6119 = vpack.c.b16 %v6047, %v6044
      %v6120 = vpack.c.b16 %v6048, %v6045
      %v6241 = vunpack.c.l.b16 %v5761
      %v6242 = vunpack.c.l.b16 %v5762
      %v6243 = vunpack.c.l.b16 %v5763
      %v6244 = vunpack.c.l.b16 %v5764
      %v6245 = vunpack.c.l.b16 %v5765
      %v6246 = vunpack.c.l.b16 %v5766
      %v6247 = vunpack.c.l.b16 %v5767
      %v6248 = vunpack.c.l.b16 %v5768
      %v6249 = vunpack.c.l.b16 %v5769
      %v6250 = vunpack.c.l.b16 %v5770
      %v6251 = vunpack.c.l.b16 %v5771
      %v6252 = vunpack.c.l.b16 %v5772
      %v6253 = vunpack.c.l.b16 %v5773
      %v6254 = vunpack.c.l.b16 %v5774
      %v6255 = vunpack.c.l.b16 %v5775
      %v6256 = vunpack.c.l.b16 %v5776
      %v6257 = vunpack.c.l.b16 %v5777
      %v6258 = vunpack.c.l.b16 %v5778
      %v6259 = vunpack.c.l.b16 %v5779
      %v6260 = vunpack.c.l.b16 %v5780
      %v6261 = vunpack.c.l.b16 %v5781
      %v6262 = vunpack.c.l.b16 %v5782
      %v6263 = vunpack.c.l.b16 %v5783
      %v6264 = vunpack.c.l.b16 %v5784
      %v6265 = vunpack.c.l.b16 %v5785
      %v6266 = vunpack.c.l.b16 %v5786
      %v6267 = vunpack.c.l.b16 %v5787
      %v6268 = vunpack.c.l.b16 %v5788
      %v6269 = vunpack.c.l.b16 %v5789
      %v6270 = vunpack.c.l.b16 %v5790
      %v6271 = vunpack.c.l.b16 %v5791
      %v6272 = vunpack.c.l.b16 %v5792
      %v6273 = vunpack.c.l.b16 %v5793
      %v6274 = vunpack.c.l.b16 %v5794
      %v6275 = vunpack.c.l.b16 %v5795
      %v6276 = vunpack.c.l.b16 %v5796
      %v6277 = vunpack.c.l.b16 %v5797
      %v6278 = vunpack.c.l.b16 %v5798
      %v6279 = vunpack.c.l.b16 %v5799
      %v6280 = vunpack.c.l.b16 %v5800
      %v6281 = vunpack.c.l.b16 %v5801
      %v6282 = vunpack.c.l.b16 %v5802
      %v6283 = vunpack.c.l.b16 %v5803
      %v6284 = vunpack.c.l.b16 %v5804
      %v6285 = vunpack.c.l.b16 %v5805
      %v6286 = vunpack.c.l.b16 %v5806
      %v6287 = vunpack.c.l.b16 %v5807
      %v6288 = vunpack.c.l.b16 %v5808
      %v6289 = vpack.c.b16 %v6242, %v6241
      %v6290 = vpack.c.b16 %v6244, %v6243
      %v6291 = vpack.c.b16 %v6246, %v6245
      %v6292 = vpack.c.b16 %v6248, %v6247
      %v6293 = vpack.c.b16 %v6250, %v6249
      %v6294 = vpack.c.b16 %v6252, %v6251
      %v6295 = vpack.c.b16 %v6254, %v6253
      %v6296 = vpack.c.b16 %v6256, %v6255
      %v6297 = vpack.c.b16 %v6258, %v6257
      %v6298 = vpack.c.b16 %v6260, %v6259
      %v6299 = vpack.c.b16 %v6262, %v6261
      %v6300 = vpack.c.b16 %v6264, %v6263
      %v6301 = vpack.c.b16 %v6266, %v6265
      %v6302 = vpack.c.b16 %v6268, %v6267
      %v6303 = vpack.c.b16 %v6270, %v6269
      %v6304 = vpack.c.b16 %v6272, %v6271
      %v6305 = vpack.c.b16 %v6274, %v6273
      %v6306 = vpack.c.b16 %v6276, %v6275
      %v6307 = vpack.c.b16 %v6278, %v6277
      %v6308 = vpack.c.b16 %v6280, %v6279
      %v6309 = vpack.c.b16 %v6282, %v6281
      %v6310 = vpack.c.b16 %v6284, %v6283
      %v6311 = vpack.c.b16 %v6286, %v6285
      %v6312 = vpack.c.b16 %v6288, %v6287
      %6337 = vmatprep.subr.bf16.mxu0 0
      %6338 = vmatpush1.bf16.msra.mxu0 %v6296
      %6339 = vmatprep.subr.bf16.mxu0 0
      %6340 = vmatpush1.bf16.msra.mxu0 %v6295
      %6341 = vmatprep.subr.bf16.mxu0 0
      %6342 = vmatpush1.bf16.msra.mxu0 %v6294
      %6343 = vmatprep.subr.bf16.mxu0 0
      %6344 = vmatpush1.bf16.msra.mxu0 %v6293
      %6345 = vmatprep.subr.bf16.mxu0 0
      %6346 = vmatpush1.bf16.msra.mxu0 %v6292
      %6347 = vmatprep.subr.bf16.mxu0 0
      %6348 = vmatpush1.bf16.msra.mxu0 %v6291
      %6349 = vmatprep.subr.bf16.mxu0 0
      %6350 = vmatpush1.bf16.msra.mxu0 %v6290
      %6351 = vmatprep.subr.bf16.mxu0 0
      %6352 = vmatpush1.bf16.msra.mxu0 %v6289
      %6353 = vmatprep.subr.bf16.mxu0 0
      %6354 = vmatpush2.bf16.msra.mxu0 %v6304
      %6355 = vmatprep.subr.bf16.mxu0 0
      %6356 = vmatpush2.bf16.msra.mxu0 %v6303
      %6357 = vmatprep.subr.bf16.mxu0 0
      %6358 = vmatpush2.bf16.msra.mxu0 %v6302
      %6359 = vmatprep.subr.bf16.mxu0 0
      %6360 = vmatpush2.bf16.msra.mxu0 %v6301
      %6361 = vmatprep.subr.bf16.mxu0 0
      %6362 = vmatpush2.bf16.msra.mxu0 %v6300
      %6363 = vmatprep.subr.bf16.mxu0 0
      %6364 = vmatpush2.bf16.msra.mxu0 %v6299
      %6365 = vmatprep.subr.bf16.mxu0 0
      %6366 = vmatpush2.bf16.msra.mxu0 %v6298
      %6367 = vmatprep.subr.bf16.mxu0 0
      %6368 = vmatpush2.bf16.msra.mxu0 %v6297
      %6369 = vmatprep.mubr.bf16.mxu0 %v6050
      %6370 = vmatmul.mubr.bf16.gmra.mxu0 %v6049
      %v6371 = vpop.f32.mrf.mxu0
      %v6372 = vadd.f32 0.0, %v6371
      %v6373 = vpop.f32.mrf.mxu0
      %v6374 = vpop.f32.mrf.mxu0
      %v6375 = vadd.f32 0.0, %v6374
      %v6376 = vpop.f32.mrf.mxu0
      %6377 = vmatprep.mubr.bf16.mxu0 %v6053
      %6378 = vmatmul.mubr.bf16.gmra.mxu0 %v6052
      %v6379 = vpop.f32.mrf.mxu0
      %v6380 = vadd.f32 0.0, %v6379
      %v6381 = vpop.f32.mrf.mxu0
      %v6382 = vpop.f32.mrf.mxu0
      %v6383 = vadd.f32 0.0, %v6382
      %v6384 = vpop.f32.mrf.mxu0
      %6385 = vmatprep.mubr.bf16.mxu0 %v6056
      %6386 = vmatmul.mubr.bf16.gmra.mxu0 %v6055
      %v6387 = vpop.f32.mrf.mxu0
      %v6388 = vadd.f32 0.0, %v6387
      %v6389 = vpop.f32.mrf.mxu0
      %v6390 = vpop.f32.mrf.mxu0
      %v6391 = vadd.f32 0.0, %v6390
      %v6392 = vpop.f32.mrf.mxu0
      %6393 = vmatprep.mubr.bf16.mxu0 %v6059
      %6394 = vmatmul.mubr.bf16.gmra.mxu0 %v6058
      %v6395 = vpop.f32.mrf.mxu0
      %v6396 = vadd.f32 0.0, %v6395
      %v6397 = vpop.f32.mrf.mxu0
      %v6398 = vpop.f32.mrf.mxu0
      %v6399 = vadd.f32 0.0, %v6398
      %v6400 = vpop.f32.mrf.mxu0
      %6401 = vmatprep.mubr.bf16.mxu0 %v6062
      %6402 = vmatmul.mubr.bf16.gmra.mxu0 %v6061
      %v6403 = vpop.f32.mrf.mxu0
      %v6404 = vadd.f32 0.0, %v6403
      %v6405 = vpop.f32.mrf.mxu0
      %v6406 = vpop.f32.mrf.mxu0
      %v6407 = vadd.f32 0.0, %v6406
      %v6408 = vpop.f32.mrf.mxu0
      %6409 = vmatprep.mubr.bf16.mxu0 %v6065
      %6410 = vmatmul.mubr.bf16.gmra.mxu0 %v6064
      %v6411 = vpop.f32.mrf.mxu0
      %v6412 = vadd.f32 0.0, %v6411
      %v6413 = vpop.f32.mrf.mxu0
      %v6414 = vpop.f32.mrf.mxu0
      %v6415 = vadd.f32 0.0, %v6414
      %v6416 = vpop.f32.mrf.mxu0
      %6417 = vmatprep.mubr.bf16.mxu0 %v6068
      %6418 = vmatmul.mubr.bf16.gmra.mxu0 %v6067
      %v6419 = vpop.f32.mrf.mxu0
      %v6420 = vadd.f32 0.0, %v6419
      %v6421 = vpop.f32.mrf.mxu0
      %v6422 = vpop.f32.mrf.mxu0
      %v6423 = vadd.f32 0.0, %v6422
      %v6424 = vpop.f32.mrf.mxu0
      %6425 = vmatprep.mubr.bf16.mxu0 %v6071
      %6426 = vmatmul.mubr.bf16.gmra.mxu0 %v6070
      %v6427 = vpop.f32.mrf.mxu0
      %v6428 = vadd.f32 0.0, %v6427
      %v6429 = vpop.f32.mrf.mxu0
      %v6430 = vpop.f32.mrf.mxu0
      %v6431 = vadd.f32 0.0, %v6430
      %v6432 = vpop.f32.mrf.mxu0
      %6433 = vmatprep.mubr.bf16.mxu0 %v6074
      %6434 = vmatmul.mubr.bf16.gmra.mxu0 %v6073
      %v6435 = vpop.f32.mrf.mxu0
      %v6436 = vadd.f32 0.0, %v6435
      %v6437 = vpop.f32.mrf.mxu0
      %v6438 = vpop.f32.mrf.mxu0
      %v6439 = vadd.f32 0.0, %v6438
      %v6440 = vpop.f32.mrf.mxu0
      %6441 = vmatprep.mubr.bf16.mxu0 %v6077
      %6442 = vmatmul.mubr.bf16.gmra.mxu0 %v6076
      %v6443 = vpop.f32.mrf.mxu0
      %v6444 = vadd.f32 0.0, %v6443
      %v6445 = vpop.f32.mrf.mxu0
      %v6446 = vpop.f32.mrf.mxu0
      %v6447 = vadd.f32 0.0, %v6446
      %v6448 = vpop.f32.mrf.mxu0
      %6449 = vmatprep.mubr.bf16.mxu0 %v6080
      %6450 = vmatmul.mubr.bf16.gmra.mxu0 %v6079
      %v6451 = vpop.f32.mrf.mxu0
      %v6452 = vadd.f32 0.0, %v6451
      %v6453 = vpop.f32.mrf.mxu0
      %v6454 = vpop.f32.mrf.mxu0
      %v6455 = vadd.f32 0.0, %v6454
      %v6456 = vpop.f32.mrf.mxu0
      %6457 = vmatprep.mubr.bf16.mxu0 %v6083
      %6458 = vmatmul.mubr.bf16.gmra.mxu0 %v6082
      %v6459 = vpop.f32.mrf.mxu0
      %v6460 = vadd.f32 0.0, %v6459
      %v6461 = vpop.f32.mrf.mxu0
      %v6462 = vpop.f32.mrf.mxu0
      %v6463 = vadd.f32 0.0, %v6462
      %v6464 = vpop.f32.mrf.mxu0
      %6465 = vmatprep.mubr.bf16.mxu0 %v6086
      %6466 = vmatmul.mubr.bf16.gmra.mxu0 %v6085
      %v6467 = vpop.f32.mrf.mxu0
      %v6468 = vadd.f32 0.0, %v6467
      %v6469 = vpop.f32.mrf.mxu0
      %v6470 = vpop.f32.mrf.mxu0
      %v6471 = vadd.f32 0.0, %v6470
      %v6472 = vpop.f32.mrf.mxu0
      %6473 = vmatprep.mubr.bf16.mxu0 %v6089
      %6474 = vmatmul.mubr.bf16.gmra.mxu0 %v6088
      %v6475 = vpop.f32.mrf.mxu0
      %v6476 = vadd.f32 0.0, %v6475
      %v6477 = vpop.f32.mrf.mxu0
      %v6478 = vpop.f32.mrf.mxu0
      %v6479 = vadd.f32 0.0, %v6478
      %v6480 = vpop.f32.mrf.mxu0
      %6481 = vmatprep.mubr.bf16.mxu0 %v6092
      %6482 = vmatmul.mubr.bf16.gmra.mxu0 %v6091
      %v6483 = vpop.f32.mrf.mxu0
      %v6484 = vadd.f32 0.0, %v6483
      %v6485 = vpop.f32.mrf.mxu0
      %v6486 = vpop.f32.mrf.mxu0
      %v6487 = vadd.f32 0.0, %v6486
      %v6488 = vpop.f32.mrf.mxu0
      %6489 = vmatprep.mubr.bf16.mxu0 %v6095
      %6490 = vmatmul.mubr.bf16.gmra.mxu0 %v6094
      %v6491 = vpop.f32.mrf.mxu0
      %v6492 = vadd.f32 0.0, %v6491
      %v6493 = vpop.f32.mrf.mxu0
      %v6494 = vpop.f32.mrf.mxu0
      %v6495 = vadd.f32 0.0, %v6494
      %v6496 = vpop.f32.mrf.mxu0
      %6497 = vmatprep.mubr.bf16.mxu0 %v6098
      %6498 = vmatmul.mubr.bf16.gmra.mxu0 %v6097
      %v6499 = vpop.f32.mrf.mxu0
      %v6500 = vadd.f32 0.0, %v6499
      %v6501 = vpop.f32.mrf.mxu0
      %v6502 = vpop.f32.mrf.mxu0
      %v6503 = vadd.f32 0.0, %v6502
      %v6504 = vpop.f32.mrf.mxu0
      %6505 = vmatprep.mubr.bf16.mxu0 %v6101
      %6506 = vmatmul.mubr.bf16.gmra.mxu0 %v6100
      %v6507 = vpop.f32.mrf.mxu0
      %v6508 = vadd.f32 0.0, %v6507
      %v6509 = vpop.f32.mrf.mxu0
      %v6510 = vpop.f32.mrf.mxu0
      %v6511 = vadd.f32 0.0, %v6510
      %v6512 = vpop.f32.mrf.mxu0
      %6513 = vmatprep.mubr.bf16.mxu0 %v6104
      %6514 = vmatmul.mubr.bf16.gmra.mxu0 %v6103
      %v6515 = vpop.f32.mrf.mxu0
      %v6516 = vadd.f32 0.0, %v6515
      %v6517 = vpop.f32.mrf.mxu0
      %v6518 = vpop.f32.mrf.mxu0
      %v6519 = vadd.f32 0.0, %v6518
      %v6520 = vpop.f32.mrf.mxu0
      %6521 = vmatprep.mubr.bf16.mxu0 %v6107
      %6522 = vmatmul.mubr.bf16.gmra.mxu0 %v6106
      %v6523 = vpop.f32.mrf.mxu0
      %v6524 = vadd.f32 0.0, %v6523
      %v6525 = vpop.f32.mrf.mxu0
      %v6526 = vpop.f32.mrf.mxu0
      %v6527 = vadd.f32 0.0, %v6526
      %v6528 = vpop.f32.mrf.mxu0
      %6529 = vmatprep.mubr.bf16.mxu0 %v6110
      %6530 = vmatmul.mubr.bf16.gmra.mxu0 %v6109
      %v6531 = vpop.f32.mrf.mxu0
      %v6532 = vadd.f32 0.0, %v6531
      %v6533 = vpop.f32.mrf.mxu0
      %v6534 = vpop.f32.mrf.mxu0
      %v6535 = vadd.f32 0.0, %v6534
      %v6536 = vpop.f32.mrf.mxu0
      %6537 = vmatprep.mubr.bf16.mxu0 %v6113
      %6538 = vmatmul.mubr.bf16.gmra.mxu0 %v6112
      %v6539 = vpop.f32.mrf.mxu0
      %v6540 = vadd.f32 0.0, %v6539
      %v6541 = vpop.f32.mrf.mxu0
      %v6542 = vpop.f32.mrf.mxu0
      %v6543 = vadd.f32 0.0, %v6542
      %v6544 = vpop.f32.mrf.mxu0
      %6545 = vmatprep.mubr.bf16.mxu0 %v6116
      %6546 = vmatmul.mubr.bf16.gmra.mxu0 %v6115
      %v6547 = vpop.f32.mrf.mxu0
      %v6548 = vadd.f32 0.0, %v6547
      %v6549 = vpop.f32.mrf.mxu0
      %v6550 = vpop.f32.mrf.mxu0
      %v6551 = vadd.f32 0.0, %v6550
      %v6552 = vpop.f32.mrf.mxu0
      %6553 = vmatprep.mubr.bf16.mxu0 %v6119
      %6554 = vmatmul.mubr.bf16.gmra.mxu0 %v6118
      %v6555 = vpop.f32.mrf.mxu0
      %v6556 = vadd.f32 0.0, %v6555
      %v6557 = vpop.f32.mrf.mxu0
      %v6558 = vpop.f32.mrf.mxu0
      %v6559 = vadd.f32 0.0, %v6558
      %v6560 = vpop.f32.mrf.mxu0
      %6561 = vdwg.mxu0
      %6562 = vmatprep.subr.bf16.mxu0 0
      %6563 = vmatpush1.bf16.msra.mxu0 %v6312
      %6564 = vmatprep.subr.bf16.mxu0 0
      %6565 = vmatpush1.bf16.msra.mxu0 %v6311
      %6566 = vmatprep.subr.bf16.mxu0 0
      %6567 = vmatpush1.bf16.msra.mxu0 %v6310
      %6568 = vmatprep.subr.bf16.mxu0 0
      %6569 = vmatpush1.bf16.msra.mxu0 %v6309
      %6570 = vmatprep.subr.bf16.mxu0 0
      %6571 = vmatpush1.bf16.msra.mxu0 %v6308
      %6572 = vmatprep.subr.bf16.mxu0 0
      %6573 = vmatpush1.bf16.msra.mxu0 %v6307
      %6574 = vmatprep.subr.bf16.mxu0 0
      %6575 = vmatpush1.bf16.msra.mxu0 %v6306
      %6576 = vmatprep.subr.bf16.mxu0 0
      %6577 = vmatpush1.bf16.msra.mxu0 %v6305
      %6578 = vmatprep.subr.bf16.mxu0 0
      %6579 = vmatpush2.bf16.msra.mxu0 0
      %6580 = vmatprep.subr.bf16.mxu0 0
      %6581 = vmatpush2.bf16.msra.mxu0 0
      %6582 = vmatprep.subr.bf16.mxu0 0
      %6583 = vmatpush2.bf16.msra.mxu0 0
      %6584 = vmatprep.subr.bf16.mxu0 0
      %6585 = vmatpush2.bf16.msra.mxu0 0
      %6586 = vmatprep.subr.bf16.mxu0 0
      %6587 = vmatpush2.bf16.msra.mxu0 0
      %6588 = vmatprep.subr.bf16.mxu0 0
      %6589 = vmatpush2.bf16.msra.mxu0 0
      %6590 = vmatprep.subr.bf16.mxu0 0
      %6591 = vmatpush2.bf16.msra.mxu0 0
      %6592 = vmatprep.subr.bf16.mxu0 0
      %6593 = vmatpush2.bf16.msra.mxu0 0
      %6594 = vmatprep.mubr.bf16.mxu0 0
      %6595 = vmatmul.mubr.bf16.gmra.mxu0 %v6051
      %v6596 = vpop.f32.mrf.mxu0
      %v6597 = vadd.f32 %v6372, %v6596
      %v6598 = vpop.f32.mrf.mxu0
      %v6599 = vpop.f32.mrf.mxu0
      %v6600 = vadd.f32 %v6375, %v6599
      %v6601 = vpop.f32.mrf.mxu0
      %6602 = vmatprep.mubr.bf16.mxu0 0
      %6603 = vmatmul.mubr.bf16.gmra.mxu0 %v6054
      %v6604 = vpop.f32.mrf.mxu0
      %v6605 = vadd.f32 %v6380, %v6604
      %v6606 = vpop.f32.mrf.mxu0
      %v6607 = vpop.f32.mrf.mxu0
      %v6608 = vadd.f32 %v6383, %v6607
      %v6609 = vpop.f32.mrf.mxu0
      %6610 = vmatprep.mubr.bf16.mxu0 0
      %6611 = vmatmul.mubr.bf16.gmra.mxu0 %v6057
      %v6612 = vpop.f32.mrf.mxu0
      %v6613 = vadd.f32 %v6388, %v6612
      %v6614 = vpop.f32.mrf.mxu0
      %v6615 = vpop.f32.mrf.mxu0
      %v6616 = vadd.f32 %v6391, %v6615
      %v6617 = vpop.f32.mrf.mxu0
      %6618 = vmatprep.mubr.bf16.mxu0 0
      %6619 = vmatmul.mubr.bf16.gmra.mxu0 %v6060
      %v6620 = vpop.f32.mrf.mxu0
      %v6621 = vadd.f32 %v6396, %v6620
      %v6622 = vpop.f32.mrf.mxu0
      %v6623 = vpop.f32.mrf.mxu0
      %v6624 = vadd.f32 %v6399, %v6623
      %v6625 = vpop.f32.mrf.mxu0
      %6626 = vmatprep.mubr.bf16.mxu0 0
      %6627 = vmatmul.mubr.bf16.gmra.mxu0 %v6063
      %v6628 = vpop.f32.mrf.mxu0
      %v6629 = vadd.f32 %v6404, %v6628
      %v6630 = vpop.f32.mrf.mxu0
      %v6631 = vpop.f32.mrf.mxu0
      %v6632 = vadd.f32 %v6407, %v6631
      %v6633 = vpop.f32.mrf.mxu0
      %6634 = vmatprep.mubr.bf16.mxu0 0
      %6635 = vmatmul.mubr.bf16.gmra.mxu0 %v6066
      %v6636 = vpop.f32.mrf.mxu0
      %v6637 = vadd.f32 %v6412, %v6636
      %v6638 = vpop.f32.mrf.mxu0
      %v6639 = vpop.f32.mrf.mxu0
      %v6640 = vadd.f32 %v6415, %v6639
      %v6641 = vpop.f32.mrf.mxu0
      %6642 = vmatprep.mubr.bf16.mxu0 0
      %6643 = vmatmul.mubr.bf16.gmra.mxu0 %v6069
      %v6644 = vpop.f32.mrf.mxu0
      %v6645 = vadd.f32 %v6420, %v6644
      %v6646 = vpop.f32.mrf.mxu0
      %v6647 = vpop.f32.mrf.mxu0
      %v6648 = vadd.f32 %v6423, %v6647
      %v6649 = vpop.f32.mrf.mxu0
      %6650 = vmatprep.mubr.bf16.mxu0 0
      %6651 = vmatmul.mubr.bf16.gmra.mxu0 %v6072
      %v6652 = vpop.f32.mrf.mxu0
      %v6653 = vadd.f32 %v6428, %v6652
      %v6654 = vpop.f32.mrf.mxu0
      %v6655 = vpop.f32.mrf.mxu0
      %v6656 = vadd.f32 %v6431, %v6655
      %v6657 = vpop.f32.mrf.mxu0
      %6658 = vmatprep.mubr.bf16.mxu0 0
      %6659 = vmatmul.mubr.bf16.gmra.mxu0 %v6075
      %v6660 = vpop.f32.mrf.mxu0
      %v6661 = vadd.f32 %v6436, %v6660
      %v6662 = vpop.f32.mrf.mxu0
      %v6663 = vpop.f32.mrf.mxu0
      %v6664 = vadd.f32 %v6439, %v6663
      %v6665 = vpop.f32.mrf.mxu0
      %6666 = vmatprep.mubr.bf16.mxu0 0
      %6667 = vmatmul.mubr.bf16.gmra.mxu0 %v6078
      %v6668 = vpop.f32.mrf.mxu0
      %v6669 = vadd.f32 %v6444, %v6668
      %v6670 = vpop.f32.mrf.mxu0
      %v6671 = vpop.f32.mrf.mxu0
      %v6672 = vadd.f32 %v6447, %v6671
      %v6673 = vpop.f32.mrf.mxu0
      %6674 = vmatprep.mubr.bf16.mxu0 0
      %6675 = vmatmul.mubr.bf16.gmra.mxu0 %v6081
      %v6676 = vpop.f32.mrf.mxu0
      %v6677 = vadd.f32 %v6452, %v6676
      %v6678 = vpop.f32.mrf.mxu0
      %v6679 = vpop.f32.mrf.mxu0
      %v6680 = vadd.f32 %v6455, %v6679
      %v6681 = vpop.f32.mrf.mxu0
      %6682 = vmatprep.mubr.bf16.mxu0 0
      %6683 = vmatmul.mubr.bf16.gmra.mxu0 %v6084
      %v6684 = vpop.f32.mrf.mxu0
      %v6685 = vadd.f32 %v6460, %v6684
      %v6686 = vpop.f32.mrf.mxu0
      %v6687 = vpop.f32.mrf.mxu0
      %v6688 = vadd.f32 %v6463, %v6687
      %v6689 = vpop.f32.mrf.mxu0
      %6690 = vmatprep.mubr.bf16.mxu0 0
      %6691 = vmatmul.mubr.bf16.gmra.mxu0 %v6087
      %v6692 = vpop.f32.mrf.mxu0
      %v6693 = vadd.f32 %v6468, %v6692
      %v6694 = vpop.f32.mrf.mxu0
      %v6695 = vpop.f32.mrf.mxu0
      %v6696 = vadd.f32 %v6471, %v6695
      %v6697 = vpop.f32.mrf.mxu0
      %6698 = vmatprep.mubr.bf16.mxu0 0
      %6699 = vmatmul.mubr.bf16.gmra.mxu0 %v6090
      %v6700 = vpop.f32.mrf.mxu0
      %v6701 = vadd.f32 %v6476, %v6700
      %v6702 = vpop.f32.mrf.mxu0
      %v6703 = vpop.f32.mrf.mxu0
      %v6704 = vadd.f32 %v6479, %v6703
      %v6705 = vpop.f32.mrf.mxu0
      %6706 = vmatprep.mubr.bf16.mxu0 0
      %6707 = vmatmul.mubr.bf16.gmra.mxu0 %v6093
      %v6708 = vpop.f32.mrf.mxu0
      %v6709 = vadd.f32 %v6484, %v6708
      %v6710 = vpop.f32.mrf.mxu0
      %v6711 = vpop.f32.mrf.mxu0
      %v6712 = vadd.f32 %v6487, %v6711
      %v6713 = vpop.f32.mrf.mxu0
      %6714 = vmatprep.mubr.bf16.mxu0 0
      %6715 = vmatmul.mubr.bf16.gmra.mxu0 %v6096
      %v6716 = vpop.f32.mrf.mxu0
      %v6717 = vadd.f32 %v6492, %v6716
      %v6718 = vpop.f32.mrf.mxu0
      %v6719 = vpop.f32.mrf.mxu0
      %v6720 = vadd.f32 %v6495, %v6719
      %v6721 = vpop.f32.mrf.mxu0
      %6722 = vmatprep.mubr.bf16.mxu0 0
      %6723 = vmatmul.mubr.bf16.gmra.mxu0 %v6099
      %v6724 = vpop.f32.mrf.mxu0
      %v6725 = vadd.f32 %v6500, %v6724
      %v6726 = vpop.f32.mrf.mxu0
      %v6727 = vpop.f32.mrf.mxu0
      %v6728 = vadd.f32 %v6503, %v6727
      %v6729 = vpop.f32.mrf.mxu0
      %6730 = vmatprep.mubr.bf16.mxu0 0
      %6731 = vmatmul.mubr.bf16.gmra.mxu0 %v6102
      %v6732 = vpop.f32.mrf.mxu0
      %v6733 = vadd.f32 %v6508, %v6732
      %v6734 = vpop.f32.mrf.mxu0
      %v6735 = vpop.f32.mrf.mxu0
      %v6736 = vadd.f32 %v6511, %v6735
      %v6737 = vpop.f32.mrf.mxu0
      %6738 = vmatprep.mubr.bf16.mxu0 0
      %6739 = vmatmul.mubr.bf16.gmra.mxu0 %v6105
      %v6740 = vpop.f32.mrf.mxu0
      %v6741 = vadd.f32 %v6516, %v6740
      %v6742 = vpop.f32.mrf.mxu0
      %v6743 = vpop.f32.mrf.mxu0
      %v6744 = vadd.f32 %v6519, %v6743
      %v6745 = vpop.f32.mrf.mxu0
      %6746 = vmatprep.mubr.bf16.mxu0 0
      %6747 = vmatmul.mubr.bf16.gmra.mxu0 %v6108
      %v6748 = vpop.f32.mrf.mxu0
      %v6749 = vadd.f32 %v6524, %v6748
      %v6750 = vpop.f32.mrf.mxu0
      %v6751 = vpop.f32.mrf.mxu0
      %v6752 = vadd.f32 %v6527, %v6751
      %v6753 = vpop.f32.mrf.mxu0
      %6754 = vmatprep.mubr.bf16.mxu0 0
      %6755 = vmatmul.mubr.bf16.gmra.mxu0 %v6111
      %v6756 = vpop.f32.mrf.mxu0
      %v6757 = vadd.f32 %v6532, %v6756
      %v6758 = vpop.f32.mrf.mxu0
      %v6759 = vpop.f32.mrf.mxu0
      %v6760 = vadd.f32 %v6535, %v6759
      %v6761 = vpop.f32.mrf.mxu0
      %6762 = vmatprep.mubr.bf16.mxu0 0
      %6763 = vmatmul.mubr.bf16.gmra.mxu0 %v6114
      %v6764 = vpop.f32.mrf.mxu0
      %v6765 = vadd.f32 %v6540, %v6764
      %v6766 = vpop.f32.mrf.mxu0
      %v6767 = vpop.f32.mrf.mxu0
      %v6768 = vadd.f32 %v6543, %v6767
      %v6769 = vpop.f32.mrf.mxu0
      %6770 = vmatprep.mubr.bf16.mxu0 0
      %6771 = vmatmul.mubr.bf16.gmra.mxu0 %v6117
      %v6772 = vpop.f32.mrf.mxu0
      %v6773 = vadd.f32 %v6548, %v6772
      %v6774 = vpop.f32.mrf.mxu0
      %v6775 = vpop.f32.mrf.mxu0
      %v6776 = vadd.f32 %v6551, %v6775
      %v6777 = vpop.f32.mrf.mxu0
      %6778 = vmatprep.mubr.bf16.mxu0 0
      %6779 = vmatmul.mubr.bf16.gmra.mxu0 %v6120
      %v6780 = vpop.f32.mrf.mxu0
      %v6781 = vadd.f32 %v6556, %v6780
      %v6782 = vpop.f32.mrf.mxu0
      %v6783 = vpop.f32.mrf.mxu0
      %v6784 = vadd.f32 %v6559, %v6783
      %v6785 = vpop.f32.mrf.mxu0
      %6786 = vdwg.mxu0
      %v6883 = vunpack.c.l.b16 %v5520
      %v6884 = vunpack.c.h.b16 %v5520
      %v6885 = vunpack.c.l.b16 %v5521
      %v6886 = vunpack.c.l.b16 %v5522
      %v6887 = vunpack.c.h.b16 %v5522
      %v6888 = vunpack.c.l.b16 %v5523
      %v6889 = vunpack.c.l.b16 %v5524
      %v6890 = vunpack.c.h.b16 %v5524
      %v6891 = vunpack.c.l.b16 %v5525
      %v6892 = vunpack.c.l.b16 %v5526
      %v6893 = vunpack.c.h.b16 %v5526
      %v6894 = vunpack.c.l.b16 %v5527
      %v6895 = vunpack.c.l.b16 %v5528
      %v6896 = vunpack.c.h.b16 %v5528
      %v6897 = vunpack.c.l.b16 %v5529
      %v6898 = vunpack.c.l.b16 %v5530
      %v6899 = vunpack.c.h.b16 %v5530
      %v6900 = vunpack.c.l.b16 %v5531
      %v6901 = vunpack.c.l.b16 %v5532
      %v6902 = vunpack.c.h.b16 %v5532
      %v6903 = vunpack.c.l.b16 %v5533
      %v6904 = vunpack.c.l.b16 %v5534
      %v6905 = vunpack.c.h.b16 %v5534
      %v6906 = vunpack.c.l.b16 %v5535
      %v6907 = vunpack.c.l.b16 %v5536
      %v6908 = vunpack.c.h.b16 %v5536
      %v6909 = vunpack.c.l.b16 %v5537
      %v6910 = vunpack.c.l.b16 %v5538
      %v6911 = vunpack.c.h.b16 %v5538
      %v6912 = vunpack.c.l.b16 %v5539
      %v6913 = vunpack.c.l.b16 %v5540
      %v6914 = vunpack.c.h.b16 %v5540
      %v6915 = vunpack.c.l.b16 %v5541
      %v6916 = vunpack.c.l.b16 %v5542
      %v6917 = vunpack.c.h.b16 %v5542
      %v6918 = vunpack.c.l.b16 %v5543
      %v6919 = vunpack.c.l.b16 %v5544
      %v6920 = vunpack.c.h.b16 %v5544
      %v6921 = vunpack.c.l.b16 %v5545
      %v6922 = vunpack.c.l.b16 %v5546
      %v6923 = vunpack.c.h.b16 %v5546
      %v6924 = vunpack.c.l.b16 %v5547
      %v6925 = vunpack.c.l.b16 %v5548
      %v6926 = vunpack.c.h.b16 %v5548
      %v6927 = vunpack.c.l.b16 %v5549
      %v6928 = vunpack.c.l.b16 %v5550
      %v6929 = vunpack.c.h.b16 %v5550
      %v6930 = vunpack.c.l.b16 %v5551
      %v6931 = vunpack.c.l.b16 %v5552
      %v6932 = vunpack.c.h.b16 %v5552
      %v6933 = vunpack.c.l.b16 %v5553
      %v6934 = vunpack.c.l.b16 %v5554
      %v6935 = vunpack.c.h.b16 %v5554
      %v6936 = vunpack.c.l.b16 %v5555
      %v6937 = vunpack.c.l.b16 %v5556
      %v6938 = vunpack.c.h.b16 %v5556
      %v6939 = vunpack.c.l.b16 %v5557
      %v6940 = vunpack.c.l.b16 %v5558
      %v6941 = vunpack.c.h.b16 %v5558
      %v6942 = vunpack.c.l.b16 %v5559
      %v6943 = vunpack.c.l.b16 %v5560
      %v6944 = vunpack.c.h.b16 %v5560
      %v6945 = vunpack.c.l.b16 %v5561
      %v6946 = vunpack.c.l.b16 %v5562
      %v6947 = vunpack.c.h.b16 %v5562
      %v6948 = vunpack.c.l.b16 %v5563
      %v6949 = vunpack.c.l.b16 %v5564
      %v6950 = vunpack.c.h.b16 %v5564
      %v6951 = vunpack.c.l.b16 %v5565
      %v6952 = vunpack.c.l.b16 %v5566
      %v6953 = vunpack.c.h.b16 %v5566
      %v6954 = vunpack.c.l.b16 %v5567
      %v6955 = vunpack.c.l.b16 %v5568
      %v6956 = vunpack.c.h.b16 %v5568
      %v6957 = vunpack.c.l.b16 %v5569
      %v6958 = vunpack.c.l.b16 %v5570
      %v6959 = vunpack.c.h.b16 %v5570
      %v6960 = vunpack.c.l.b16 %v5571
      %v6961 = vunpack.c.l.b16 %v5572
      %v6962 = vunpack.c.h.b16 %v5572
      %v6963 = vunpack.c.l.b16 %v5573
      %v6964 = vunpack.c.l.b16 %v5574
      %v6965 = vunpack.c.h.b16 %v5574
      %v6966 = vunpack.c.l.b16 %v5575
      %v6967 = vunpack.c.l.b16 %v5576
      %v6968 = vunpack.c.h.b16 %v5576
      %v6969 = vunpack.c.l.b16 %v5577
      %v6970 = vunpack.c.l.b16 %v5578
      %v6971 = vunpack.c.h.b16 %v5578
      %v6972 = vunpack.c.l.b16 %v5579
      %v6973 = vunpack.c.l.b16 %v5580
      %v6974 = vunpack.c.h.b16 %v5580
      %v6975 = vunpack.c.l.b16 %v5581
      %v6976 = vunpack.c.l.b16 %v5582
      %v6977 = vunpack.c.h.b16 %v5582
      %v6978 = vunpack.c.l.b16 %v5583
      %v6979 = vunpack.c.l.b16 %v5584
      %v6980 = vunpack.c.h.b16 %v5584
      %v6981 = vunpack.c.l.b16 %v5585
      %v6982 = vunpack.c.l.b16 %v5586
      %v6983 = vunpack.c.h.b16 %v5586
      %v6984 = vunpack.c.l.b16 %v5587
      %v6985 = vunpack.c.l.b16 %v5588
      %v6986 = vunpack.c.h.b16 %v5588
      %v6987 = vunpack.c.l.b16 %v5589
      %v6988 = vunpack.c.l.b16 %v5590
      %v6989 = vunpack.c.h.b16 %v5590
      %v6990 = vunpack.c.l.b16 %v5591
      %v6991 = vunpack.c.l.b16 %v5592
      %v6992 = vunpack.c.h.b16 %v5592
      %v6993 = vunpack.c.l.b16 %v5593
      %v6994 = vunpack.c.l.b16 %v5594
      %v6995 = vunpack.c.h.b16 %v5594
      %v6996 = vunpack.c.l.b16 %v5595
      %v6997 = vunpack.c.l.b16 %v5596
      %v6998 = vunpack.c.h.b16 %v5596
      %v6999 = vunpack.c.l.b16 %v5597
      %v7000 = vunpack.c.l.b16 %v5598
      %v7001 = vunpack.c.h.b16 %v5598
      %v7002 = vunpack.c.l.b16 %v5599
      %v7003 = vunpack.c.l.b16 %v5600
      %v7004 = vunpack.c.h.b16 %v5600
      %v7005 = vunpack.c.l.b16 %v5601
      %v7006 = vunpack.c.l.b16 %v5602
      %v7007 = vunpack.c.h.b16 %v5602
      %v7008 = vunpack.c.l.b16 %v5603
      %v7009 = vunpack.c.l.b16 %v5604
      %v7010 = vunpack.c.h.b16 %v5604
      %v7011 = vunpack.c.l.b16 %v5605
      %v7012 = vunpack.c.l.b16 %v5606
      %v7013 = vunpack.c.h.b16 %v5606
      %v7014 = vunpack.c.l.b16 %v5607
      %v7015 = vunpack.c.l.b16 %v5608
      %v7016 = vunpack.c.h.b16 %v5608
      %v7017 = vunpack.c.l.b16 %v5609
      %v7018 = vunpack.c.l.b16 %v5610
      %v7019 = vunpack.c.h.b16 %v5610
      %v7020 = vunpack.c.l.b16 %v5611
      %v7021 = vunpack.c.l.b16 %v5612
      %v7022 = vunpack.c.h.b16 %v5612
      %v7023 = vunpack.c.l.b16 %v5613
      %v7024 = vunpack.c.l.b16 %v5614
      %v7025 = vunpack.c.h.b16 %v5614
      %v7026 = vunpack.c.l.b16 %v5615
      %v7027 = vpack.c.b16 %v6886, %v6883
      %v7028 = vpack.c.b16 %v6887, %v6884
      %v7029 = vpack.c.b16 %v6888, %v6885
      %v7030 = vpack.c.b16 %v6892, %v6889
      %v7031 = vpack.c.b16 %v6893, %v6890
      %v7032 = vpack.c.b16 %v6894, %v6891
      %v7033 = vpack.c.b16 %v6898, %v6895
      %v7034 = vpack.c.b16 %v6899, %v6896
      %v7035 = vpack.c.b16 %v6900, %v6897
      %v7036 = vpack.c.b16 %v6904, %v6901
      %v7037 = vpack.c.b16 %v6905, %v6902
      %v7038 = vpack.c.b16 %v6906, %v6903
      %v7039 = vpack.c.b16 %v6910, %v6907
      %v7040 = vpack.c.b16 %v6911, %v6908
      %v7041 = vpack.c.b16 %v6912, %v6909
      %v7042 = vpack.c.b16 %v6916, %v6913
      %v7043 = vpack.c.b16 %v6917, %v6914
      %v7044 = vpack.c.b16 %v6918, %v6915
      %v7045 = vpack.c.b16 %v6922, %v6919
      %v7046 = vpack.c.b16 %v6923, %v6920
      %v7047 = vpack.c.b16 %v6924, %v6921
      %v7048 = vpack.c.b16 %v6928, %v6925
      %v7049 = vpack.c.b16 %v6929, %v6926
      %v7050 = vpack.c.b16 %v6930, %v6927
      %v7051 = vpack.c.b16 %v6934, %v6931
      %v7052 = vpack.c.b16 %v6935, %v6932
      %v7053 = vpack.c.b16 %v6936, %v6933
      %v7054 = vpack.c.b16 %v6940, %v6937
      %v7055 = vpack.c.b16 %v6941, %v6938
      %v7056 = vpack.c.b16 %v6942, %v6939
      %v7057 = vpack.c.b16 %v6946, %v6943
      %v7058 = vpack.c.b16 %v6947, %v6944
      %v7059 = vpack.c.b16 %v6948, %v6945
      %v7060 = vpack.c.b16 %v6952, %v6949
      %v7061 = vpack.c.b16 %v6953, %v6950
      %v7062 = vpack.c.b16 %v6954, %v6951
      %v7063 = vpack.c.b16 %v6958, %v6955
      %v7064 = vpack.c.b16 %v6959, %v6956
      %v7065 = vpack.c.b16 %v6960, %v6957
      %v7066 = vpack.c.b16 %v6964, %v6961
      %v7067 = vpack.c.b16 %v6965, %v6962
      %v7068 = vpack.c.b16 %v6966, %v6963
      %v7069 = vpack.c.b16 %v6970, %v6967
      %v7070 = vpack.c.b16 %v6971, %v6968
      %v7071 = vpack.c.b16 %v6972, %v6969
      %v7072 = vpack.c.b16 %v6976, %v6973
      %v7073 = vpack.c.b16 %v6977, %v6974
      %v7074 = vpack.c.b16 %v6978, %v6975
      %v7075 = vpack.c.b16 %v6982, %v6979
      %v7076 = vpack.c.b16 %v6983, %v6980
      %v7077 = vpack.c.b16 %v6984, %v6981
      %v7078 = vpack.c.b16 %v6988, %v6985
      %v7079 = vpack.c.b16 %v6989, %v6986
      %v7080 = vpack.c.b16 %v6990, %v6987
      %v7081 = vpack.c.b16 %v6994, %v6991
      %v7082 = vpack.c.b16 %v6995, %v6992
      %v7083 = vpack.c.b16 %v6996, %v6993
      %v7084 = vpack.c.b16 %v7000, %v6997
      %v7085 = vpack.c.b16 %v7001, %v6998
      %v7086 = vpack.c.b16 %v7002, %v6999
      %v7087 = vpack.c.b16 %v7006, %v7003
      %v7088 = vpack.c.b16 %v7007, %v7004
      %v7089 = vpack.c.b16 %v7008, %v7005
      %v7090 = vpack.c.b16 %v7012, %v7009
      %v7091 = vpack.c.b16 %v7013, %v7010
      %v7092 = vpack.c.b16 %v7014, %v7011
      %v7093 = vpack.c.b16 %v7018, %v7015
      %v7094 = vpack.c.b16 %v7019, %v7016
      %v7095 = vpack.c.b16 %v7020, %v7017
      %v7096 = vpack.c.b16 %v7024, %v7021
      %v7097 = vpack.c.b16 %v7025, %v7022
      %v7098 = vpack.c.b16 %v7026, %v7023
      %v7219 = vunpack.c.l.b16 %v5616
      %v7220 = vunpack.c.l.b16 %v5617
      %v7221 = vunpack.c.l.b16 %v5618
      %v7222 = vunpack.c.l.b16 %v5619
      %v7223 = vunpack.c.l.b16 %v5620
      %v7224 = vunpack.c.l.b16 %v5621
      %v7225 = vunpack.c.l.b16 %v5622
      %v7226 = vunpack.c.l.b16 %v5623
      %v7227 = vunpack.c.l.b16 %v5624
      %v7228 = vunpack.c.l.b16 %v5625
      %v7229 = vunpack.c.l.b16 %v5626
      %v7230 = vunpack.c.l.b16 %v5627
      %v7231 = vunpack.c.l.b16 %v5628
      %v7232 = vunpack.c.l.b16 %v5629
      %v7233 = vunpack.c.l.b16 %v5630
      %v7234 = vunpack.c.l.b16 %v5631
      %v7235 = vunpack.c.l.b16 %v5632
      %v7236 = vunpack.c.l.b16 %v5633
      %v7237 = vunpack.c.l.b16 %v5634
      %v7238 = vunpack.c.l.b16 %v5635
      %v7239 = vunpack.c.l.b16 %v5636
      %v7240 = vunpack.c.l.b16 %v5637
      %v7241 = vunpack.c.l.b16 %v5638
      %v7242 = vunpack.c.l.b16 %v5639
      %v7243 = vunpack.c.l.b16 %v5640
      %v7244 = vunpack.c.l.b16 %v5641
      %v7245 = vunpack.c.l.b16 %v5642
      %v7246 = vunpack.c.l.b16 %v5643
      %v7247 = vunpack.c.l.b16 %v5644
      %v7248 = vunpack.c.l.b16 %v5645
      %v7249 = vunpack.c.l.b16 %v5646
      %v7250 = vunpack.c.l.b16 %v5647
      %v7251 = vunpack.c.l.b16 %v5648
      %v7252 = vunpack.c.l.b16 %v5649
      %v7253 = vunpack.c.l.b16 %v5650
      %v7254 = vunpack.c.l.b16 %v5651
      %v7255 = vunpack.c.l.b16 %v5652
      %v7256 = vunpack.c.l.b16 %v5653
      %v7257 = vunpack.c.l.b16 %v5654
      %v7258 = vunpack.c.l.b16 %v5655
      %v7259 = vunpack.c.l.b16 %v5656
      %v7260 = vunpack.c.l.b16 %v5657
      %v7261 = vunpack.c.l.b16 %v5658
      %v7262 = vunpack.c.l.b16 %v5659
      %v7263 = vunpack.c.l.b16 %v5660
      %v7264 = vunpack.c.l.b16 %v5661
      %v7265 = vunpack.c.l.b16 %v5662
      %v7266 = vunpack.c.l.b16 %v5663
      %v7267 = vpack.c.b16 %v7220, %v7219
      %v7268 = vpack.c.b16 %v7222, %v7221
      %v7269 = vpack.c.b16 %v7224, %v7223
      %v7270 = vpack.c.b16 %v7226, %v7225
      %v7271 = vpack.c.b16 %v7228, %v7227
      %v7272 = vpack.c.b16 %v7230, %v7229
      %v7273 = vpack.c.b16 %v7232, %v7231
      %v7274 = vpack.c.b16 %v7234, %v7233
      %v7275 = vpack.c.b16 %v7236, %v7235
      %v7276 = vpack.c.b16 %v7238, %v7237
      %v7277 = vpack.c.b16 %v7240, %v7239
      %v7278 = vpack.c.b16 %v7242, %v7241
      %v7279 = vpack.c.b16 %v7244, %v7243
      %v7280 = vpack.c.b16 %v7246, %v7245
      %v7281 = vpack.c.b16 %v7248, %v7247
      %v7282 = vpack.c.b16 %v7250, %v7249
      %v7283 = vpack.c.b16 %v7252, %v7251
      %v7284 = vpack.c.b16 %v7254, %v7253
      %v7285 = vpack.c.b16 %v7256, %v7255
      %v7286 = vpack.c.b16 %v7258, %v7257
      %v7287 = vpack.c.b16 %v7260, %v7259
      %v7288 = vpack.c.b16 %v7262, %v7261
      %v7289 = vpack.c.b16 %v7264, %v7263
      %v7290 = vpack.c.b16 %v7266, %v7265
      %7315 = vmatprep.subr.bf16.mxu0 0
      %7316 = vmatpush1.bf16.msra.mxu0 %v7274
      %7317 = vmatprep.subr.bf16.mxu0 0
      %7318 = vmatpush1.bf16.msra.mxu0 %v7273
      %7319 = vmatprep.subr.bf16.mxu0 0
      %7320 = vmatpush1.bf16.msra.mxu0 %v7272
      %7321 = vmatprep.subr.bf16.mxu0 0
      %7322 = vmatpush1.bf16.msra.mxu0 %v7271
      %7323 = vmatprep.subr.bf16.mxu0 0
      %7324 = vmatpush1.bf16.msra.mxu0 %v7270
      %7325 = vmatprep.subr.bf16.mxu0 0
      %7326 = vmatpush1.bf16.msra.mxu0 %v7269
      %7327 = vmatprep.subr.bf16.mxu0 0
      %7328 = vmatpush1.bf16.msra.mxu0 %v7268
      %7329 = vmatprep.subr.bf16.mxu0 0
      %7330 = vmatpush1.bf16.msra.mxu0 %v7267
      %7331 = vmatprep.subr.bf16.mxu0 0
      %7332 = vmatpush2.bf16.msra.mxu0 %v7282
      %7333 = vmatprep.subr.bf16.mxu0 0
      %7334 = vmatpush2.bf16.msra.mxu0 %v7281
      %7335 = vmatprep.subr.bf16.mxu0 0
      %7336 = vmatpush2.bf16.msra.mxu0 %v7280
      %7337 = vmatprep.subr.bf16.mxu0 0
      %7338 = vmatpush2.bf16.msra.mxu0 %v7279
      %7339 = vmatprep.subr.bf16.mxu0 0
      %7340 = vmatpush2.bf16.msra.mxu0 %v7278
      %7341 = vmatprep.subr.bf16.mxu0 0
      %7342 = vmatpush2.bf16.msra.mxu0 %v7277
      %7343 = vmatprep.subr.bf16.mxu0 0
      %7344 = vmatpush2.bf16.msra.mxu0 %v7276
      %7345 = vmatprep.subr.bf16.mxu0 0
      %7346 = vmatpush2.bf16.msra.mxu0 %v7275
      %7347 = vmatprep.mubr.bf16.mxu0 %v7028
      %7348 = vmatmul.mubr.bf16.gmra.mxu0 %v7027
      %v7349 = vpop.f32.mrf.mxu0
      %v7350 = vadd.f32 %v6597, %v7349
      %v7351 = vpop.f32.mrf.mxu0
      %v7352 = vpop.f32.mrf.mxu0
      %v7353 = vadd.f32 %v6600, %v7352
      %v7354 = vpop.f32.mrf.mxu0
      %7355 = vmatprep.mubr.bf16.mxu0 %v7031
      %7356 = vmatmul.mubr.bf16.gmra.mxu0 %v7030
      %v7357 = vpop.f32.mrf.mxu0
      %v7358 = vadd.f32 %v6605, %v7357
      %v7359 = vpop.f32.mrf.mxu0
      %v7360 = vpop.f32.mrf.mxu0
      %v7361 = vadd.f32 %v6608, %v7360
      %v7362 = vpop.f32.mrf.mxu0
      %7363 = vmatprep.mubr.bf16.mxu0 %v7034
      %7364 = vmatmul.mubr.bf16.gmra.mxu0 %v7033
      %v7365 = vpop.f32.mrf.mxu0
      %v7366 = vadd.f32 %v6613, %v7365
      %v7367 = vpop.f32.mrf.mxu0
      %v7368 = vpop.f32.mrf.mxu0
      %v7369 = vadd.f32 %v6616, %v7368
      %v7370 = vpop.f32.mrf.mxu0
      %7371 = vmatprep.mubr.bf16.mxu0 %v7037
      %7372 = vmatmul.mubr.bf16.gmra.mxu0 %v7036
      %v7373 = vpop.f32.mrf.mxu0
      %v7374 = vadd.f32 %v6621, %v7373
      %v7375 = vpop.f32.mrf.mxu0
      %v7376 = vpop.f32.mrf.mxu0
      %v7377 = vadd.f32 %v6624, %v7376
      %v7378 = vpop.f32.mrf.mxu0
      %7379 = vmatprep.mubr.bf16.mxu0 %v7040
      %7380 = vmatmul.mubr.bf16.gmra.mxu0 %v7039
      %v7381 = vpop.f32.mrf.mxu0
      %v7382 = vadd.f32 %v6629, %v7381
      %v7383 = vpop.f32.mrf.mxu0
      %v7384 = vpop.f32.mrf.mxu0
      %v7385 = vadd.f32 %v6632, %v7384
      %v7386 = vpop.f32.mrf.mxu0
      %7387 = vmatprep.mubr.bf16.mxu0 %v7043
      %7388 = vmatmul.mubr.bf16.gmra.mxu0 %v7042
      %v7389 = vpop.f32.mrf.mxu0
      %v7390 = vadd.f32 %v6637, %v7389
      %v7391 = vpop.f32.mrf.mxu0
      %v7392 = vpop.f32.mrf.mxu0
      %v7393 = vadd.f32 %v6640, %v7392
      %v7394 = vpop.f32.mrf.mxu0
      %7395 = vmatprep.mubr.bf16.mxu0 %v7046
      %7396 = vmatmul.mubr.bf16.gmra.mxu0 %v7045
      %v7397 = vpop.f32.mrf.mxu0
      %v7398 = vadd.f32 %v6645, %v7397
      %v7399 = vpop.f32.mrf.mxu0
      %v7400 = vpop.f32.mrf.mxu0
      %v7401 = vadd.f32 %v6648, %v7400
      %v7402 = vpop.f32.mrf.mxu0
      %7403 = vmatprep.mubr.bf16.mxu0 %v7049
      %7404 = vmatmul.mubr.bf16.gmra.mxu0 %v7048
      %v7405 = vpop.f32.mrf.mxu0
      %v7406 = vadd.f32 %v6653, %v7405
      %v7407 = vpop.f32.mrf.mxu0
      %v7408 = vpop.f32.mrf.mxu0
      %v7409 = vadd.f32 %v6656, %v7408
      %v7410 = vpop.f32.mrf.mxu0
      %7411 = vmatprep.mubr.bf16.mxu0 %v7052
      %7412 = vmatmul.mubr.bf16.gmra.mxu0 %v7051
      %v7413 = vpop.f32.mrf.mxu0
      %v7414 = vadd.f32 %v6661, %v7413
      %v7415 = vpop.f32.mrf.mxu0
      %v7416 = vpop.f32.mrf.mxu0
      %v7417 = vadd.f32 %v6664, %v7416
      %v7418 = vpop.f32.mrf.mxu0
      %7419 = vmatprep.mubr.bf16.mxu0 %v7055
      %7420 = vmatmul.mubr.bf16.gmra.mxu0 %v7054
      %v7421 = vpop.f32.mrf.mxu0
      %v7422 = vadd.f32 %v6669, %v7421
      %v7423 = vpop.f32.mrf.mxu0
      %v7424 = vpop.f32.mrf.mxu0
      %v7425 = vadd.f32 %v6672, %v7424
      %v7426 = vpop.f32.mrf.mxu0
      %7427 = vmatprep.mubr.bf16.mxu0 %v7058
      %7428 = vmatmul.mubr.bf16.gmra.mxu0 %v7057
      %v7429 = vpop.f32.mrf.mxu0
      %v7430 = vadd.f32 %v6677, %v7429
      %v7431 = vpop.f32.mrf.mxu0
      %v7432 = vpop.f32.mrf.mxu0
      %v7433 = vadd.f32 %v6680, %v7432
      %v7434 = vpop.f32.mrf.mxu0
      %7435 = vmatprep.mubr.bf16.mxu0 %v7061
      %7436 = vmatmul.mubr.bf16.gmra.mxu0 %v7060
      %v7437 = vpop.f32.mrf.mxu0
      %v7438 = vadd.f32 %v6685, %v7437
      %v7439 = vpop.f32.mrf.mxu0
      %v7440 = vpop.f32.mrf.mxu0
      %v7441 = vadd.f32 %v6688, %v7440
      %v7442 = vpop.f32.mrf.mxu0
      %7443 = vmatprep.mubr.bf16.mxu0 %v7064
      %7444 = vmatmul.mubr.bf16.gmra.mxu0 %v7063
      %v7445 = vpop.f32.mrf.mxu0
      %v7446 = vadd.f32 %v6693, %v7445
      %v7447 = vpop.f32.mrf.mxu0
      %v7448 = vpop.f32.mrf.mxu0
      %v7449 = vadd.f32 %v6696, %v7448
      %v7450 = vpop.f32.mrf.mxu0
      %7451 = vmatprep.mubr.bf16.mxu0 %v7067
      %7452 = vmatmul.mubr.bf16.gmra.mxu0 %v7066
      %v7453 = vpop.f32.mrf.mxu0
      %v7454 = vadd.f32 %v6701, %v7453
      %v7455 = vpop.f32.mrf.mxu0
      %v7456 = vpop.f32.mrf.mxu0
      %v7457 = vadd.f32 %v6704, %v7456
      %v7458 = vpop.f32.mrf.mxu0
      %7459 = vmatprep.mubr.bf16.mxu0 %v7070
      %7460 = vmatmul.mubr.bf16.gmra.mxu0 %v7069
      %v7461 = vpop.f32.mrf.mxu0
      %v7462 = vadd.f32 %v6709, %v7461
      %v7463 = vpop.f32.mrf.mxu0
      %v7464 = vpop.f32.mrf.mxu0
      %v7465 = vadd.f32 %v6712, %v7464
      %v7466 = vpop.f32.mrf.mxu0
      %7467 = vmatprep.mubr.bf16.mxu0 %v7073
      %7468 = vmatmul.mubr.bf16.gmra.mxu0 %v7072
      %v7469 = vpop.f32.mrf.mxu0
      %v7470 = vadd.f32 %v6717, %v7469
      %v7471 = vpop.f32.mrf.mxu0
      %v7472 = vpop.f32.mrf.mxu0
      %v7473 = vadd.f32 %v6720, %v7472
      %v7474 = vpop.f32.mrf.mxu0
      %7475 = vmatprep.mubr.bf16.mxu0 %v7076
      %7476 = vmatmul.mubr.bf16.gmra.mxu0 %v7075
      %v7477 = vpop.f32.mrf.mxu0
      %v7478 = vadd.f32 %v6725, %v7477
      %v7479 = vpop.f32.mrf.mxu0
      %v7480 = vpop.f32.mrf.mxu0
      %v7481 = vadd.f32 %v6728, %v7480
      %v7482 = vpop.f32.mrf.mxu0
      %7483 = vmatprep.mubr.bf16.mxu0 %v7079
      %7484 = vmatmul.mubr.bf16.gmra.mxu0 %v7078
      %v7485 = vpop.f32.mrf.mxu0
      %v7486 = vadd.f32 %v6733, %v7485
      %v7487 = vpop.f32.mrf.mxu0
      %v7488 = vpop.f32.mrf.mxu0
      %v7489 = vadd.f32 %v6736, %v7488
      %v7490 = vpop.f32.mrf.mxu0
      %7491 = vmatprep.mubr.bf16.mxu0 %v7082
      %7492 = vmatmul.mubr.bf16.gmra.mxu0 %v7081
      %v7493 = vpop.f32.mrf.mxu0
      %v7494 = vadd.f32 %v6741, %v7493
      %v7495 = vpop.f32.mrf.mxu0
      %v7496 = vpop.f32.mrf.mxu0
      %v7497 = vadd.f32 %v6744, %v7496
      %v7498 = vpop.f32.mrf.mxu0
      %7499 = vmatprep.mubr.bf16.mxu0 %v7085
      %7500 = vmatmul.mubr.bf16.gmra.mxu0 %v7084
      %v7501 = vpop.f32.mrf.mxu0
      %v7502 = vadd.f32 %v6749, %v7501
      %v7503 = vpop.f32.mrf.mxu0
      %v7504 = vpop.f32.mrf.mxu0
      %v7505 = vadd.f32 %v6752, %v7504
      %v7506 = vpop.f32.mrf.mxu0
      %7507 = vmatprep.mubr.bf16.mxu0 %v7088
      %7508 = vmatmul.mubr.bf16.gmra.mxu0 %v7087
      %v7509 = vpop.f32.mrf.mxu0
      %v7510 = vadd.f32 %v6757, %v7509
      %v7511 = vpop.f32.mrf.mxu0
      %v7512 = vpop.f32.mrf.mxu0
      %v7513 = vadd.f32 %v6760, %v7512
      %v7514 = vpop.f32.mrf.mxu0
      %7515 = vmatprep.mubr.bf16.mxu0 %v7091
      %7516 = vmatmul.mubr.bf16.gmra.mxu0 %v7090
      %v7517 = vpop.f32.mrf.mxu0
      %v7518 = vadd.f32 %v6765, %v7517
      %v7519 = vpop.f32.mrf.mxu0
      %v7520 = vpop.f32.mrf.mxu0
      %v7521 = vadd.f32 %v6768, %v7520
      %v7522 = vpop.f32.mrf.mxu0
      %7523 = vmatprep.mubr.bf16.mxu0 %v7094
      %7524 = vmatmul.mubr.bf16.gmra.mxu0 %v7093
      %v7525 = vpop.f32.mrf.mxu0
      %v7526 = vadd.f32 %v6773, %v7525
      %v7527 = vpop.f32.mrf.mxu0
      %v7528 = vpop.f32.mrf.mxu0
      %v7529 = vadd.f32 %v6776, %v7528
      %v7530 = vpop.f32.mrf.mxu0
      %7531 = vmatprep.mubr.bf16.mxu0 %v7097
      %7532 = vmatmul.mubr.bf16.gmra.mxu0 %v7096
      %v7533 = vpop.f32.mrf.mxu0
      %v7534 = vadd.f32 %v6781, %v7533
      %v7535 = vpop.f32.mrf.mxu0
      %v7536 = vpop.f32.mrf.mxu0
      %v7537 = vadd.f32 %v6784, %v7536
      %v7538 = vpop.f32.mrf.mxu0
      %7539 = vdwg.mxu0
      %7540 = vmatprep.subr.bf16.mxu0 0
      %7541 = vmatpush1.bf16.msra.mxu0 %v7290
      %7542 = vmatprep.subr.bf16.mxu0 0
      %7543 = vmatpush1.bf16.msra.mxu0 %v7289
      %7544 = vmatprep.subr.bf16.mxu0 0
      %7545 = vmatpush1.bf16.msra.mxu0 %v7288
      %7546 = vmatprep.subr.bf16.mxu0 0
      %7547 = vmatpush1.bf16.msra.mxu0 %v7287
      %7548 = vmatprep.subr.bf16.mxu0 0
      %7549 = vmatpush1.bf16.msra.mxu0 %v7286
      %7550 = vmatprep.subr.bf16.mxu0 0
      %7551 = vmatpush1.bf16.msra.mxu0 %v7285
      %7552 = vmatprep.subr.bf16.mxu0 0
      %7553 = vmatpush1.bf16.msra.mxu0 %v7284
      %7554 = vmatprep.subr.bf16.mxu0 0
      %7555 = vmatpush1.bf16.msra.mxu0 %v7283
      %7556 = vmatprep.subr.bf16.mxu0 0
      %7557 = vmatpush2.bf16.msra.mxu0 0
      %7558 = vmatprep.subr.bf16.mxu0 0
      %7559 = vmatpush2.bf16.msra.mxu0 0
      %7560 = vmatprep.subr.bf16.mxu0 0
      %7561 = vmatpush2.bf16.msra.mxu0 0
      %7562 = vmatprep.subr.bf16.mxu0 0
      %7563 = vmatpush2.bf16.msra.mxu0 0
      %7564 = vmatprep.subr.bf16.mxu0 0
      %7565 = vmatpush2.bf16.msra.mxu0 0
      %7566 = vmatprep.subr.bf16.mxu0 0
      %7567 = vmatpush2.bf16.msra.mxu0 0
      %7568 = vmatprep.subr.bf16.mxu0 0
      %7569 = vmatpush2.bf16.msra.mxu0 0
      %7570 = vmatprep.subr.bf16.mxu0 0
      %7571 = vmatpush2.bf16.msra.mxu0 0
      %7572 = vmatprep.mubr.bf16.mxu0 0
      %7573 = vmatmul.mubr.bf16.gmra.mxu0 %v7029
      %v7574 = vpop.f32.mrf.mxu0
      %v7575 = vadd.f32 %v7350, %v7574
      %v7576 = vpop.f32.mrf.mxu0
      %v7577 = vpop.f32.mrf.mxu0
      %v7578 = vadd.f32 %v7353, %v7577
      %v7579 = vpop.f32.mrf.mxu0
      %7580 = vmatprep.mubr.bf16.mxu0 0
      %7581 = vmatmul.mubr.bf16.gmra.mxu0 %v7032
      %v7582 = vpop.f32.mrf.mxu0
      %v7583 = vadd.f32 %v7358, %v7582
      %v7584 = vpop.f32.mrf.mxu0
      %v7585 = vpop.f32.mrf.mxu0
      %v7586 = vadd.f32 %v7361, %v7585
      %v7587 = vpop.f32.mrf.mxu0
      %7588 = vmatprep.mubr.bf16.mxu0 0
      %7589 = vmatmul.mubr.bf16.gmra.mxu0 %v7035
      %v7590 = vpop.f32.mrf.mxu0
      %v7591 = vadd.f32 %v7366, %v7590
      %v7592 = vpop.f32.mrf.mxu0
      %v7593 = vpop.f32.mrf.mxu0
      %v7594 = vadd.f32 %v7369, %v7593
      %v7595 = vpop.f32.mrf.mxu0
      %7596 = vmatprep.mubr.bf16.mxu0 0
      %7597 = vmatmul.mubr.bf16.gmra.mxu0 %v7038
      %v7598 = vpop.f32.mrf.mxu0
      %v7599 = vadd.f32 %v7374, %v7598
      %v7600 = vpop.f32.mrf.mxu0
      %v7601 = vpop.f32.mrf.mxu0
      %v7602 = vadd.f32 %v7377, %v7601
      %v7603 = vpop.f32.mrf.mxu0
      %7604 = vmatprep.mubr.bf16.mxu0 0
      %7605 = vmatmul.mubr.bf16.gmra.mxu0 %v7041
      %v7606 = vpop.f32.mrf.mxu0
      %v7607 = vadd.f32 %v7382, %v7606
      %v7608 = vpop.f32.mrf.mxu0
      %v7609 = vpop.f32.mrf.mxu0
      %v7610 = vadd.f32 %v7385, %v7609
      %v7611 = vpop.f32.mrf.mxu0
      %7612 = vmatprep.mubr.bf16.mxu0 0
      %7613 = vmatmul.mubr.bf16.gmra.mxu0 %v7044
      %v7614 = vpop.f32.mrf.mxu0
      %v7615 = vadd.f32 %v7390, %v7614
      %v7616 = vpop.f32.mrf.mxu0
      %v7617 = vpop.f32.mrf.mxu0
      %v7618 = vadd.f32 %v7393, %v7617
      %v7619 = vpop.f32.mrf.mxu0
      %7620 = vmatprep.mubr.bf16.mxu0 0
      %7621 = vmatmul.mubr.bf16.gmra.mxu0 %v7047
      %v7622 = vpop.f32.mrf.mxu0
      %v7623 = vadd.f32 %v7398, %v7622
      %v7624 = vpop.f32.mrf.mxu0
      %v7625 = vpop.f32.mrf.mxu0
      %v7626 = vadd.f32 %v7401, %v7625
      %v7627 = vpop.f32.mrf.mxu0
      %7628 = vmatprep.mubr.bf16.mxu0 0
      %7629 = vmatmul.mubr.bf16.gmra.mxu0 %v7050
      %v7630 = vpop.f32.mrf.mxu0
      %v7631 = vadd.f32 %v7406, %v7630
      %v7632 = vpop.f32.mrf.mxu0
      %v7633 = vpop.f32.mrf.mxu0
      %v7634 = vadd.f32 %v7409, %v7633
      %v7635 = vpop.f32.mrf.mxu0
      %7636 = vmatprep.mubr.bf16.mxu0 0
      %7637 = vmatmul.mubr.bf16.gmra.mxu0 %v7053
      %v7638 = vpop.f32.mrf.mxu0
      %v7639 = vadd.f32 %v7414, %v7638
      %v7640 = vpop.f32.mrf.mxu0
      %v7641 = vpop.f32.mrf.mxu0
      %v7642 = vadd.f32 %v7417, %v7641
      %v7643 = vpop.f32.mrf.mxu0
      %7644 = vmatprep.mubr.bf16.mxu0 0
      %7645 = vmatmul.mubr.bf16.gmra.mxu0 %v7056
      %v7646 = vpop.f32.mrf.mxu0
      %v7647 = vadd.f32 %v7422, %v7646
      %v7648 = vpop.f32.mrf.mxu0
      %v7649 = vpop.f32.mrf.mxu0
      %v7650 = vadd.f32 %v7425, %v7649
      %v7651 = vpop.f32.mrf.mxu0
      %7652 = vmatprep.mubr.bf16.mxu0 0
      %7653 = vmatmul.mubr.bf16.gmra.mxu0 %v7059
      %v7654 = vpop.f32.mrf.mxu0
      %v7655 = vadd.f32 %v7430, %v7654
      %v7656 = vpop.f32.mrf.mxu0
      %v7657 = vpop.f32.mrf.mxu0
      %v7658 = vadd.f32 %v7433, %v7657
      %v7659 = vpop.f32.mrf.mxu0
      %7660 = vmatprep.mubr.bf16.mxu0 0
      %7661 = vmatmul.mubr.bf16.gmra.mxu0 %v7062
      %v7662 = vpop.f32.mrf.mxu0
      %v7663 = vadd.f32 %v7438, %v7662
      %v7664 = vpop.f32.mrf.mxu0
      %v7665 = vpop.f32.mrf.mxu0
      %v7666 = vadd.f32 %v7441, %v7665
      %v7667 = vpop.f32.mrf.mxu0
      %7668 = vmatprep.mubr.bf16.mxu0 0
      %7669 = vmatmul.mubr.bf16.gmra.mxu0 %v7065
      %v7670 = vpop.f32.mrf.mxu0
      %v7671 = vadd.f32 %v7446, %v7670
      %v7672 = vpop.f32.mrf.mxu0
      %v7673 = vpop.f32.mrf.mxu0
      %v7674 = vadd.f32 %v7449, %v7673
      %v7675 = vpop.f32.mrf.mxu0
      %7676 = vmatprep.mubr.bf16.mxu0 0
      %7677 = vmatmul.mubr.bf16.gmra.mxu0 %v7068
      %v7678 = vpop.f32.mrf.mxu0
      %v7679 = vadd.f32 %v7454, %v7678
      %v7680 = vpop.f32.mrf.mxu0
      %v7681 = vpop.f32.mrf.mxu0
      %v7682 = vadd.f32 %v7457, %v7681
      %v7683 = vpop.f32.mrf.mxu0
      %7684 = vmatprep.mubr.bf16.mxu0 0
      %7685 = vmatmul.mubr.bf16.gmra.mxu0 %v7071
      %v7686 = vpop.f32.mrf.mxu0
      %v7687 = vadd.f32 %v7462, %v7686
      %v7688 = vpop.f32.mrf.mxu0
      %v7689 = vpop.f32.mrf.mxu0
      %v7690 = vadd.f32 %v7465, %v7689
      %v7691 = vpop.f32.mrf.mxu0
      %7692 = vmatprep.mubr.bf16.mxu0 0
      %7693 = vmatmul.mubr.bf16.gmra.mxu0 %v7074
      %v7694 = vpop.f32.mrf.mxu0
      %v7695 = vadd.f32 %v7470, %v7694
      %v7696 = vpop.f32.mrf.mxu0
      %v7697 = vpop.f32.mrf.mxu0
      %v7698 = vadd.f32 %v7473, %v7697
      %v7699 = vpop.f32.mrf.mxu0
      %7700 = vmatprep.mubr.bf16.mxu0 0
      %7701 = vmatmul.mubr.bf16.gmra.mxu0 %v7077
      %v7702 = vpop.f32.mrf.mxu0
      %v7703 = vadd.f32 %v7478, %v7702
      %v7704 = vpop.f32.mrf.mxu0
      %v7705 = vpop.f32.mrf.mxu0
      %v7706 = vadd.f32 %v7481, %v7705
      %v7707 = vpop.f32.mrf.mxu0
      %7708 = vmatprep.mubr.bf16.mxu0 0
      %7709 = vmatmul.mubr.bf16.gmra.mxu0 %v7080
      %v7710 = vpop.f32.mrf.mxu0
      %v7711 = vadd.f32 %v7486, %v7710
      %v7712 = vpop.f32.mrf.mxu0
      %v7713 = vpop.f32.mrf.mxu0
      %v7714 = vadd.f32 %v7489, %v7713
      %v7715 = vpop.f32.mrf.mxu0
      %7716 = vmatprep.mubr.bf16.mxu0 0
      %7717 = vmatmul.mubr.bf16.gmra.mxu0 %v7083
      %v7718 = vpop.f32.mrf.mxu0
      %v7719 = vadd.f32 %v7494, %v7718
      %v7720 = vpop.f32.mrf.mxu0
      %v7721 = vpop.f32.mrf.mxu0
      %v7722 = vadd.f32 %v7497, %v7721
      %v7723 = vpop.f32.mrf.mxu0
      %7724 = vmatprep.mubr.bf16.mxu0 0
      %7725 = vmatmul.mubr.bf16.gmra.mxu0 %v7086
      %v7726 = vpop.f32.mrf.mxu0
      %v7727 = vadd.f32 %v7502, %v7726
      %v7728 = vpop.f32.mrf.mxu0
      %v7729 = vpop.f32.mrf.mxu0
      %v7730 = vadd.f32 %v7505, %v7729
      %v7731 = vpop.f32.mrf.mxu0
      %7732 = vmatprep.mubr.bf16.mxu0 0
      %7733 = vmatmul.mubr.bf16.gmra.mxu0 %v7089
      %v7734 = vpop.f32.mrf.mxu0
      %v7735 = vadd.f32 %v7510, %v7734
      %v7736 = vpop.f32.mrf.mxu0
      %v7737 = vpop.f32.mrf.mxu0
      %v7738 = vadd.f32 %v7513, %v7737
      %v7739 = vpop.f32.mrf.mxu0
      %7740 = vmatprep.mubr.bf16.mxu0 0
      %7741 = vmatmul.mubr.bf16.gmra.mxu0 %v7092
      %v7742 = vpop.f32.mrf.mxu0
      %v7743 = vadd.f32 %v7518, %v7742
      %v7744 = vpop.f32.mrf.mxu0
      %v7745 = vpop.f32.mrf.mxu0
      %v7746 = vadd.f32 %v7521, %v7745
      %v7747 = vpop.f32.mrf.mxu0
      %7748 = vmatprep.mubr.bf16.mxu0 0
      %7749 = vmatmul.mubr.bf16.gmra.mxu0 %v7095
      %v7750 = vpop.f32.mrf.mxu0
      %v7751 = vadd.f32 %v7526, %v7750
      %v7752 = vpop.f32.mrf.mxu0
      %v7753 = vpop.f32.mrf.mxu0
      %v7754 = vadd.f32 %v7529, %v7753
      %v7755 = vpop.f32.mrf.mxu0
      %7756 = vmatprep.mubr.bf16.mxu0 0
      %7757 = vmatmul.mubr.bf16.gmra.mxu0 %v7098
      %v7758 = vpop.f32.mrf.mxu0
      %v7759 = vadd.f32 %v7534, %v7758
      %v7760 = vpop.f32.mrf.mxu0
      %v7761 = vpop.f32.mrf.mxu0
      %v7762 = vadd.f32 %v7537, %v7761
      %v7763 = vpop.f32.mrf.mxu0
      %7764 = vdwg.mxu0
      %v7765 = vld [vmem:[%s3305] sm:$0xff]
      %v7766 = vld [vmem:[%s3305 + $0x8] sm:$0xf]
      %v7767 = vld [vmem:[%s3305 + $0xc] sm:$0xff]
      %v7768 = vld [vmem:[%s3305 + $0x14] sm:$0xf]
      %v7769 = vld [vmem:[%s3305 + $0x18] sm:$0xff]
      %v7770 = vld [vmem:[%s3305 + $0x20] sm:$0xf]
      %v7771 = vld [vmem:[%s3305 + $0x24] sm:$0xff]
      %v7772 = vld [vmem:[%s3305 + $0x2c] sm:$0xf]
      %v7773 = vld [vmem:[%s3305 + $0x30] sm:$0xff]
      %v7774 = vld [vmem:[%s3305 + $0x38] sm:$0xf]
      %v7775 = vld [vmem:[%s3305 + $0x3c] sm:$0xff]
      %v7776 = vld [vmem:[%s3305 + $0x44] sm:$0xf]
      %v7777 = vld [vmem:[%s3305 + $0x48] sm:$0xff]
      %v7778 = vld [vmem:[%s3305 + $0x50] sm:$0xf]
      %v7779 = vld [vmem:[%s3305 + $0x54] sm:$0xff]
      %v7780 = vld [vmem:[%s3305 + $0x5c] sm:$0xf]
      %v7781 = vld [vmem:[%s3305 + $0x60] sm:$0xff]
      %v7782 = vld [vmem:[%s3305 + $0x68] sm:$0xf]
      %v7783 = vld [vmem:[%s3305 + $0x6c] sm:$0xff]
      %v7784 = vld [vmem:[%s3305 + $0x74] sm:$0xf]
      %v7785 = vld [vmem:[%s3305 + $0x78] sm:$0xff]
      %v7786 = vld [vmem:[%s3305 + $0x80] sm:$0xf]
      %v7787 = vld [vmem:[%s3305 + $0x84] sm:$0xff]
      %v7788 = vld [vmem:[%s3305 + $0x8c] sm:$0xf]
      %v7789 = vld [vmem:[%s3305 + $0x90] sm:$0xff]
      %v7790 = vld [vmem:[%s3305 + $0x98] sm:$0xf]
      %v7791 = vld [vmem:[%s3305 + $0x9c] sm:$0xff]
      %v7792 = vld [vmem:[%s3305 + $0xa4] sm:$0xf]
      %v7793 = vld [vmem:[%s3305 + $0xa8] sm:$0xff]
      %v7794 = vld [vmem:[%s3305 + $0xb0] sm:$0xf]
      %v7795 = vld [vmem:[%s3305 + $0xb4] sm:$0xff]
      %v7796 = vld [vmem:[%s3305 + $0xbc] sm:$0xf]
      %v7797 = vld [vmem:[%s3305 + $0xc0] sm:$0xff]
      %v7798 = vld [vmem:[%s3305 + $0xc8] sm:$0xf]
      %v7799 = vld [vmem:[%s3305 + $0xcc] sm:$0xff]
      %v7800 = vld [vmem:[%s3305 + $0xd4] sm:$0xf]
      %v7801 = vld [vmem:[%s3305 + $0xd8] sm:$0xff]
      %v7802 = vld [vmem:[%s3305 + $0xe0] sm:$0xf]
      %v7803 = vld [vmem:[%s3305 + $0xe4] sm:$0xff]
      %v7804 = vld [vmem:[%s3305 + $0xec] sm:$0xf]
      %v7805 = vld [vmem:[%s3305 + $0xf0] sm:$0xff]
      %v7806 = vld [vmem:[%s3305 + $0xf8] sm:$0xf]
      %v7807 = vld [vmem:[%s3305 + $0xfc] sm:$0xff]
      %v7808 = vld [vmem:[%s3305 + $0x104] sm:$0xf]
      %v7809 = vld [vmem:[%s3305 + $0x108] sm:$0xff]
      %v7810 = vld [vmem:[%s3305 + $0x110] sm:$0xf]
      %v7811 = vld [vmem:[%s3305 + $0x114] sm:$0xff]
      %v7812 = vld [vmem:[%s3305 + $0x11c] sm:$0xf]
      %v7813 = vld [vmem:[%s3305 + $0x120] sm:$0xff]
      %v7814 = vld [vmem:[%s3305 + $0x128] sm:$0xf]
      %v7815 = vld [vmem:[%s3305 + $0x12c] sm:$0xff]
      %v7816 = vld [vmem:[%s3305 + $0x134] sm:$0xf]
      %v7817 = vld [vmem:[%s3305 + $0x138] sm:$0xff]
      %v7818 = vld [vmem:[%s3305 + $0x140] sm:$0xf]
      %v7819 = vld [vmem:[%s3305 + $0x144] sm:$0xff]
      %v7820 = vld [vmem:[%s3305 + $0x14c] sm:$0xf]
      %v7821 = vld [vmem:[%s3305 + $0x150] sm:$0xff]
      %v7822 = vld [vmem:[%s3305 + $0x158] sm:$0xf]
      %v7823 = vld [vmem:[%s3305 + $0x15c] sm:$0xff]
      %v7824 = vld [vmem:[%s3305 + $0x164] sm:$0xf]
      %v7825 = vld [vmem:[%s3305 + $0x168] sm:$0xff]
      %v7826 = vld [vmem:[%s3305 + $0x170] sm:$0xf]
      %v7827 = vld [vmem:[%s3305 + $0x174] sm:$0xff]
      %v7828 = vld [vmem:[%s3305 + $0x17c] sm:$0xf]
      %v7829 = vld [vmem:[%s3305 + $0x180] sm:$0xff]
      %v7830 = vld [vmem:[%s3305 + $0x188] sm:$0xf]
      %v7831 = vld [vmem:[%s3305 + $0x18c] sm:$0xff]
      %v7832 = vld [vmem:[%s3305 + $0x194] sm:$0xf]
      %v7833 = vld [vmem:[%s3305 + $0x198] sm:$0xff]
      %v7834 = vld [vmem:[%s3305 + $0x1a0] sm:$0xf]
      %v7835 = vld [vmem:[%s3305 + $0x1a4] sm:$0xff]
      %v7836 = vld [vmem:[%s3305 + $0x1ac] sm:$0xf]
      %v7837 = vld [vmem:[%s3305 + $0x1b0] sm:$0xff]
      %v7838 = vld [vmem:[%s3305 + $0x1b8] sm:$0xf]
      %v7839 = vld [vmem:[%s3305 + $0x1bc] sm:$0xff]
      %v7840 = vld [vmem:[%s3305 + $0x1c4] sm:$0xf]
      %v7841 = vld [vmem:[%s3305 + $0x1c8] sm:$0xff]
      %v7842 = vld [vmem:[%s3305 + $0x1d0] sm:$0xf]
      %v7843 = vld [vmem:[%s3305 + $0x1d4] sm:$0xff]
      %v7844 = vld [vmem:[%s3305 + $0x1dc] sm:$0xf]
      %v7845 = vld [vmem:[%s3305 + $0x1e0] sm:$0xff]
      %v7846 = vld [vmem:[%s3305 + $0x1e8] sm:$0xf]
      %v7847 = vld [vmem:[%s3305 + $0x1ec] sm:$0xff]
      %v7848 = vld [vmem:[%s3305 + $0x1f4] sm:$0xf]
      %v7849 = vld [vmem:[%s3305 + $0x1f8] sm:$0xff]
      %v7850 = vld [vmem:[%s3305 + $0x200] sm:$0xf]
      %v7851 = vld [vmem:[%s3305 + $0x204] sm:$0xff]
      %v7852 = vld [vmem:[%s3305 + $0x20c] sm:$0xf]
      %v7853 = vld [vmem:[%s3305 + $0x210] sm:$0xff]
      %v7854 = vld [vmem:[%s3305 + $0x218] sm:$0xf]
      %v7855 = vld [vmem:[%s3305 + $0x21c] sm:$0xff]
      %v7856 = vld [vmem:[%s3305 + $0x224] sm:$0xf]
      %v7857 = vld [vmem:[%s3305 + $0x228] sm:$0xff]
      %v7858 = vld [vmem:[%s3305 + $0x230] sm:$0xf]
      %v7859 = vld [vmem:[%s3305 + $0x234] sm:$0xff]
      %v7860 = vld [vmem:[%s3305 + $0x23c] sm:$0xf]
      %s7861 = scalar_lea.vmem %s2, 384
      %v7862 = vld [vmem:[%s7861] sm:$0xf]
      %v7863 = vld [vmem:[%s7861 + $0x4] sm:$0xf]
      %v7864 = vld [vmem:[%s7861 + $0x8] sm:$0xf]
      %v7865 = vld [vmem:[%s7861 + $0xc] sm:$0xf]
      %v7866 = vld [vmem:[%s7861 + $0x10] sm:$0xf]
      %v7867 = vld [vmem:[%s7861 + $0x14] sm:$0xf]
      %v7868 = vld [vmem:[%s7861 + $0x18] sm:$0xf]
      %v7869 = vld [vmem:[%s7861 + $0x1c] sm:$0xf]
      %v7870 = vld [vmem:[%s7861 + $0x20] sm:$0xf]
      %v7871 = vld [vmem:[%s7861 + $0x24] sm:$0xf]
      %v7872 = vld [vmem:[%s7861 + $0x28] sm:$0xf]
      %v7873 = vld [vmem:[%s7861 + $0x2c] sm:$0xf]
      %v7874 = vld [vmem:[%s7861 + $0x30] sm:$0xf]
      %v7875 = vld [vmem:[%s7861 + $0x34] sm:$0xf]
      %v7876 = vld [vmem:[%s7861 + $0x38] sm:$0xf]
      %v7877 = vld [vmem:[%s7861 + $0x3c] sm:$0xf]
      %v7878 = vld [vmem:[%s7861 + $0x40] sm:$0xf]
      %v7879 = vld [vmem:[%s7861 + $0x44] sm:$0xf]
      %v7880 = vld [vmem:[%s7861 + $0x48] sm:$0xf]
      %v7881 = vld [vmem:[%s7861 + $0x4c] sm:$0xf]
      %v7882 = vld [vmem:[%s7861 + $0x50] sm:$0xf]
      %v7883 = vld [vmem:[%s7861 + $0x54] sm:$0xf]
      %v7884 = vld [vmem:[%s7861 + $0x58] sm:$0xf]
      %v7885 = vld [vmem:[%s7861 + $0x5c] sm:$0xf]
      %v7886 = vld [vmem:[%s7861 + $0x60] sm:$0xf]
      %v7887 = vld [vmem:[%s7861 + $0x64] sm:$0xf]
      %v7888 = vld [vmem:[%s7861 + $0x68] sm:$0xf]
      %v7889 = vld [vmem:[%s7861 + $0x6c] sm:$0xf]
      %v7890 = vld [vmem:[%s7861 + $0x70] sm:$0xf]
      %v7891 = vld [vmem:[%s7861 + $0x74] sm:$0xf]
      %v7892 = vld [vmem:[%s7861 + $0x78] sm:$0xf]
      %v7893 = vld [vmem:[%s7861 + $0x7c] sm:$0xf]
      %v7894 = vld [vmem:[%s7861 + $0x80] sm:$0xf]
      %v7895 = vld [vmem:[%s7861 + $0x84] sm:$0xf]
      %v7896 = vld [vmem:[%s7861 + $0x88] sm:$0xf]
      %v7897 = vld [vmem:[%s7861 + $0x8c] sm:$0xf]
      %v7898 = vld [vmem:[%s7861 + $0x90] sm:$0xf]
      %v7899 = vld [vmem:[%s7861 + $0x94] sm:$0xf]
      %v7900 = vld [vmem:[%s7861 + $0x98] sm:$0xf]
      %v7901 = vld [vmem:[%s7861 + $0x9c] sm:$0xf]
      %v7902 = vld [vmem:[%s7861 + $0xa0] sm:$0xf]
      %v7903 = vld [vmem:[%s7861 + $0xa4] sm:$0xf]
      %v7904 = vld [vmem:[%s7861 + $0xa8] sm:$0xf]
      %v7905 = vld [vmem:[%s7861 + $0xac] sm:$0xf]
      %v7906 = vld [vmem:[%s7861 + $0xb0] sm:$0xf]
      %v7907 = vld [vmem:[%s7861 + $0xb4] sm:$0xf]
      %v7908 = vld [vmem:[%s7861 + $0xb8] sm:$0xf]
      %v7909 = vld [vmem:[%s7861 + $0xbc] sm:$0xf]
      %v8006 = vunpack.c.l.b16 %v7765
      %v8007 = vunpack.c.h.b16 %v7765
      %v8008 = vunpack.c.l.b16 %v7766
      %v8009 = vunpack.c.l.b16 %v7767
      %v8010 = vunpack.c.h.b16 %v7767
      %v8011 = vunpack.c.l.b16 %v7768
      %v8012 = vunpack.c.l.b16 %v7769
      %v8013 = vunpack.c.h.b16 %v7769
      %v8014 = vunpack.c.l.b16 %v7770
      %v8015 = vunpack.c.l.b16 %v7771
      %v8016 = vunpack.c.h.b16 %v7771
      %v8017 = vunpack.c.l.b16 %v7772
      %v8018 = vunpack.c.l.b16 %v7773
      %v8019 = vunpack.c.h.b16 %v7773
      %v8020 = vunpack.c.l.b16 %v7774
      %v8021 = vunpack.c.l.b16 %v7775
      %v8022 = vunpack.c.h.b16 %v7775
      %v8023 = vunpack.c.l.b16 %v7776
      %v8024 = vunpack.c.l.b16 %v7777
      %v8025 = vunpack.c.h.b16 %v7777
      %v8026 = vunpack.c.l.b16 %v7778
      %v8027 = vunpack.c.l.b16 %v7779
      %v8028 = vunpack.c.h.b16 %v7779
      %v8029 = vunpack.c.l.b16 %v7780
      %v8030 = vunpack.c.l.b16 %v7781
      %v8031 = vunpack.c.h.b16 %v7781
      %v8032 = vunpack.c.l.b16 %v7782
      %v8033 = vunpack.c.l.b16 %v7783
      %v8034 = vunpack.c.h.b16 %v7783
      %v8035 = vunpack.c.l.b16 %v7784
      %v8036 = vunpack.c.l.b16 %v7785
      %v8037 = vunpack.c.h.b16 %v7785
      %v8038 = vunpack.c.l.b16 %v7786
      %v8039 = vunpack.c.l.b16 %v7787
      %v8040 = vunpack.c.h.b16 %v7787
      %v8041 = vunpack.c.l.b16 %v7788
      %v8042 = vunpack.c.l.b16 %v7789
      %v8043 = vunpack.c.h.b16 %v7789
      %v8044 = vunpack.c.l.b16 %v7790
      %v8045 = vunpack.c.l.b16 %v7791
      %v8046 = vunpack.c.h.b16 %v7791
      %v8047 = vunpack.c.l.b16 %v7792
      %v8048 = vunpack.c.l.b16 %v7793
      %v8049 = vunpack.c.h.b16 %v7793
      %v8050 = vunpack.c.l.b16 %v7794
      %v8051 = vunpack.c.l.b16 %v7795
      %v8052 = vunpack.c.h.b16 %v7795
      %v8053 = vunpack.c.l.b16 %v7796
      %v8054 = vunpack.c.l.b16 %v7797
      %v8055 = vunpack.c.h.b16 %v7797
      %v8056 = vunpack.c.l.b16 %v7798
      %v8057 = vunpack.c.l.b16 %v7799
      %v8058 = vunpack.c.h.b16 %v7799
      %v8059 = vunpack.c.l.b16 %v7800
      %v8060 = vunpack.c.l.b16 %v7801
      %v8061 = vunpack.c.h.b16 %v7801
      %v8062 = vunpack.c.l.b16 %v7802
      %v8063 = vunpack.c.l.b16 %v7803
      %v8064 = vunpack.c.h.b16 %v7803
      %v8065 = vunpack.c.l.b16 %v7804
      %v8066 = vunpack.c.l.b16 %v7805
      %v8067 = vunpack.c.h.b16 %v7805
      %v8068 = vunpack.c.l.b16 %v7806
      %v8069 = vunpack.c.l.b16 %v7807
      %v8070 = vunpack.c.h.b16 %v7807
      %v8071 = vunpack.c.l.b16 %v7808
      %v8072 = vunpack.c.l.b16 %v7809
      %v8073 = vunpack.c.h.b16 %v7809
      %v8074 = vunpack.c.l.b16 %v7810
      %v8075 = vunpack.c.l.b16 %v7811
      %v8076 = vunpack.c.h.b16 %v7811
      %v8077 = vunpack.c.l.b16 %v7812
      %v8078 = vunpack.c.l.b16 %v7813
      %v8079 = vunpack.c.h.b16 %v7813
      %v8080 = vunpack.c.l.b16 %v7814
      %v8081 = vunpack.c.l.b16 %v7815
      %v8082 = vunpack.c.h.b16 %v7815
      %v8083 = vunpack.c.l.b16 %v7816
      %v8084 = vunpack.c.l.b16 %v7817
      %v8085 = vunpack.c.h.b16 %v7817
      %v8086 = vunpack.c.l.b16 %v7818
      %v8087 = vunpack.c.l.b16 %v7819
      %v8088 = vunpack.c.h.b16 %v7819
      %v8089 = vunpack.c.l.b16 %v7820
      %v8090 = vunpack.c.l.b16 %v7821
      %v8091 = vunpack.c.h.b16 %v7821
      %v8092 = vunpack.c.l.b16 %v7822
      %v8093 = vunpack.c.l.b16 %v7823
      %v8094 = vunpack.c.h.b16 %v7823
      %v8095 = vunpack.c.l.b16 %v7824
      %v8096 = vunpack.c.l.b16 %v7825
      %v8097 = vunpack.c.h.b16 %v7825
      %v8098 = vunpack.c.l.b16 %v7826
      %v8099 = vunpack.c.l.b16 %v7827
      %v8100 = vunpack.c.h.b16 %v7827
      %v8101 = vunpack.c.l.b16 %v7828
      %v8102 = vunpack.c.l.b16 %v7829
      %v8103 = vunpack.c.h.b16 %v7829
      %v8104 = vunpack.c.l.b16 %v7830
      %v8105 = vunpack.c.l.b16 %v7831
      %v8106 = vunpack.c.h.b16 %v7831
      %v8107 = vunpack.c.l.b16 %v7832
      %v8108 = vunpack.c.l.b16 %v7833
      %v8109 = vunpack.c.h.b16 %v7833
      %v8110 = vunpack.c.l.b16 %v7834
      %v8111 = vunpack.c.l.b16 %v7835
      %v8112 = vunpack.c.h.b16 %v7835
      %v8113 = vunpack.c.l.b16 %v7836
      %v8114 = vunpack.c.l.b16 %v7837
      %v8115 = vunpack.c.h.b16 %v7837
      %v8116 = vunpack.c.l.b16 %v7838
      %v8117 = vunpack.c.l.b16 %v7839
      %v8118 = vunpack.c.h.b16 %v7839
      %v8119 = vunpack.c.l.b16 %v7840
      %v8120 = vunpack.c.l.b16 %v7841
      %v8121 = vunpack.c.h.b16 %v7841
      %v8122 = vunpack.c.l.b16 %v7842
      %v8123 = vunpack.c.l.b16 %v7843
      %v8124 = vunpack.c.h.b16 %v7843
      %v8125 = vunpack.c.l.b16 %v7844
      %v8126 = vunpack.c.l.b16 %v7845
      %v8127 = vunpack.c.h.b16 %v7845
      %v8128 = vunpack.c.l.b16 %v7846
      %v8129 = vunpack.c.l.b16 %v7847
      %v8130 = vunpack.c.h.b16 %v7847
      %v8131 = vunpack.c.l.b16 %v7848
      %v8132 = vunpack.c.l.b16 %v7849
      %v8133 = vunpack.c.h.b16 %v7849
      %v8134 = vunpack.c.l.b16 %v7850
      %v8135 = vunpack.c.l.b16 %v7851
      %v8136 = vunpack.c.h.b16 %v7851
      %v8137 = vunpack.c.l.b16 %v7852
      %v8138 = vunpack.c.l.b16 %v7853
      %v8139 = vunpack.c.h.b16 %v7853
      %v8140 = vunpack.c.l.b16 %v7854
      %v8141 = vunpack.c.l.b16 %v7855
      %v8142 = vunpack.c.h.b16 %v7855
      %v8143 = vunpack.c.l.b16 %v7856
      %v8144 = vunpack.c.l.b16 %v7857
      %v8145 = vunpack.c.h.b16 %v7857
      %v8146 = vunpack.c.l.b16 %v7858
      %v8147 = vunpack.c.l.b16 %v7859
      %v8148 = vunpack.c.h.b16 %v7859
      %v8149 = vunpack.c.l.b16 %v7860
      %v8150 = vpack.c.b16 %v8009, %v8006
      %v8151 = vpack.c.b16 %v8010, %v8007
      %v8152 = vpack.c.b16 %v8011, %v8008
      %v8153 = vpack.c.b16 %v8015, %v8012
      %v8154 = vpack.c.b16 %v8016, %v8013
      %v8155 = vpack.c.b16 %v8017, %v8014
      %v8156 = vpack.c.b16 %v8021, %v8018
      %v8157 = vpack.c.b16 %v8022, %v8019
      %v8158 = vpack.c.b16 %v8023, %v8020
      %v8159 = vpack.c.b16 %v8027, %v8024
      %v8160 = vpack.c.b16 %v8028, %v8025
      %v8161 = vpack.c.b16 %v8029, %v8026
      %v8162 = vpack.c.b16 %v8033, %v8030
      %v8163 = vpack.c.b16 %v8034, %v8031
      %v8164 = vpack.c.b16 %v8035, %v8032
      %v8165 = vpack.c.b16 %v8039, %v8036
      %v8166 = vpack.c.b16 %v8040, %v8037
      %v8167 = vpack.c.b16 %v8041, %v8038
      %v8168 = vpack.c.b16 %v8045, %v8042
      %v8169 = vpack.c.b16 %v8046, %v8043
      %v8170 = vpack.c.b16 %v8047, %v8044
      %v8171 = vpack.c.b16 %v8051, %v8048
      %v8172 = vpack.c.b16 %v8052, %v8049
      %v8173 = vpack.c.b16 %v8053, %v8050
      %v8174 = vpack.c.b16 %v8057, %v8054
      %v8175 = vpack.c.b16 %v8058, %v8055
      %v8176 = vpack.c.b16 %v8059, %v8056
      %v8177 = vpack.c.b16 %v8063, %v8060
      %v8178 = vpack.c.b16 %v8064, %v8061
      %v8179 = vpack.c.b16 %v8065, %v8062
      %v8180 = vpack.c.b16 %v8069, %v8066
      %v8181 = vpack.c.b16 %v8070, %v8067
      %v8182 = vpack.c.b16 %v8071, %v8068
      %v8183 = vpack.c.b16 %v8075, %v8072
      %v8184 = vpack.c.b16 %v8076, %v8073
      %v8185 = vpack.c.b16 %v8077, %v8074
      %v8186 = vpack.c.b16 %v8081, %v8078
      %v8187 = vpack.c.b16 %v8082, %v8079
      %v8188 = vpack.c.b16 %v8083, %v8080
      %v8189 = vpack.c.b16 %v8087, %v8084
      %v8190 = vpack.c.b16 %v8088, %v8085
      %v8191 = vpack.c.b16 %v8089, %v8086
      %v8192 = vpack.c.b16 %v8093, %v8090
      %v8193 = vpack.c.b16 %v8094, %v8091
      %v8194 = vpack.c.b16 %v8095, %v8092
      %v8195 = vpack.c.b16 %v8099, %v8096
      %v8196 = vpack.c.b16 %v8100, %v8097
      %v8197 = vpack.c.b16 %v8101, %v8098
      %v8198 = vpack.c.b16 %v8105, %v8102
      %v8199 = vpack.c.b16 %v8106, %v8103
      %v8200 = vpack.c.b16 %v8107, %v8104
      %v8201 = vpack.c.b16 %v8111, %v8108
      %v8202 = vpack.c.b16 %v8112, %v8109
      %v8203 = vpack.c.b16 %v8113, %v8110
      %v8204 = vpack.c.b16 %v8117, %v8114
      %v8205 = vpack.c.b16 %v8118, %v8115
      %v8206 = vpack.c.b16 %v8119, %v8116
      %v8207 = vpack.c.b16 %v8123, %v8120
      %v8208 = vpack.c.b16 %v8124, %v8121
      %v8209 = vpack.c.b16 %v8125, %v8122
      %v8210 = vpack.c.b16 %v8129, %v8126
      %v8211 = vpack.c.b16 %v8130, %v8127
      %v8212 = vpack.c.b16 %v8131, %v8128
      %v8213 = vpack.c.b16 %v8135, %v8132
      %v8214 = vpack.c.b16 %v8136, %v8133
      %v8215 = vpack.c.b16 %v8137, %v8134
      %v8216 = vpack.c.b16 %v8141, %v8138
      %v8217 = vpack.c.b16 %v8142, %v8139
      %v8218 = vpack.c.b16 %v8143, %v8140
      %v8219 = vpack.c.b16 %v8147, %v8144
      %v8220 = vpack.c.b16 %v8148, %v8145
      %v8221 = vpack.c.b16 %v8149, %v8146
      %v8342 = vunpack.c.l.b16 %v7862
      %v8343 = vunpack.c.l.b16 %v7863
      %v8344 = vunpack.c.l.b16 %v7864
      %v8345 = vunpack.c.l.b16 %v7865
      %v8346 = vunpack.c.l.b16 %v7866
      %v8347 = vunpack.c.l.b16 %v7867
      %v8348 = vunpack.c.l.b16 %v7868
      %v8349 = vunpack.c.l.b16 %v7869
      %v8350 = vunpack.c.l.b16 %v7870
      %v8351 = vunpack.c.l.b16 %v7871
      %v8352 = vunpack.c.l.b16 %v7872
      %v8353 = vunpack.c.l.b16 %v7873
      %v8354 = vunpack.c.l.b16 %v7874
      %v8355 = vunpack.c.l.b16 %v7875
      %v8356 = vunpack.c.l.b16 %v7876
      %v8357 = vunpack.c.l.b16 %v7877
      %v8358 = vunpack.c.l.b16 %v7878
      %v8359 = vunpack.c.l.b16 %v7879
      %v8360 = vunpack.c.l.b16 %v7880
      %v8361 = vunpack.c.l.b16 %v7881
      %v8362 = vunpack.c.l.b16 %v7882
      %v8363 = vunpack.c.l.b16 %v7883
      %v8364 = vunpack.c.l.b16 %v7884
      %v8365 = vunpack.c.l.b16 %v7885
      %v8366 = vunpack.c.l.b16 %v7886
      %v8367 = vunpack.c.l.b16 %v7887
      %v8368 = vunpack.c.l.b16 %v7888
      %v8369 = vunpack.c.l.b16 %v7889
      %v8370 = vunpack.c.l.b16 %v7890
      %v8371 = vunpack.c.l.b16 %v7891
      %v8372 = vunpack.c.l.b16 %v7892
      %v8373 = vunpack.c.l.b16 %v7893
      %v8374 = vunpack.c.l.b16 %v7894
      %v8375 = vunpack.c.l.b16 %v7895
      %v8376 = vunpack.c.l.b16 %v7896
      %v8377 = vunpack.c.l.b16 %v7897
      %v8378 = vunpack.c.l.b16 %v7898
      %v8379 = vunpack.c.l.b16 %v7899
      %v8380 = vunpack.c.l.b16 %v7900
      %v8381 = vunpack.c.l.b16 %v7901
      %v8382 = vunpack.c.l.b16 %v7902
      %v8383 = vunpack.c.l.b16 %v7903
      %v8384 = vunpack.c.l.b16 %v7904
      %v8385 = vunpack.c.l.b16 %v7905
      %v8386 = vunpack.c.l.b16 %v7906
      %v8387 = vunpack.c.l.b16 %v7907
      %v8388 = vunpack.c.l.b16 %v7908
      %v8389 = vunpack.c.l.b16 %v7909
      %v8390 = vpack.c.b16 %v8343, %v8342
      %v8391 = vpack.c.b16 %v8345, %v8344
      %v8392 = vpack.c.b16 %v8347, %v8346
      %v8393 = vpack.c.b16 %v8349, %v8348
      %v8394 = vpack.c.b16 %v8351, %v8350
      %v8395 = vpack.c.b16 %v8353, %v8352
      %v8396 = vpack.c.b16 %v8355, %v8354
      %v8397 = vpack.c.b16 %v8357, %v8356
      %v8398 = vpack.c.b16 %v8359, %v8358
      %v8399 = vpack.c.b16 %v8361, %v8360
      %v8400 = vpack.c.b16 %v8363, %v8362
      %v8401 = vpack.c.b16 %v8365, %v8364
      %v8402 = vpack.c.b16 %v8367, %v8366
      %v8403 = vpack.c.b16 %v8369, %v8368
      %v8404 = vpack.c.b16 %v8371, %v8370
      %v8405 = vpack.c.b16 %v8373, %v8372
      %v8406 = vpack.c.b16 %v8375, %v8374
      %v8407 = vpack.c.b16 %v8377, %v8376
      %v8408 = vpack.c.b16 %v8379, %v8378
      %v8409 = vpack.c.b16 %v8381, %v8380
      %v8410 = vpack.c.b16 %v8383, %v8382
      %v8411 = vpack.c.b16 %v8385, %v8384
      %v8412 = vpack.c.b16 %v8387, %v8386
      %v8413 = vpack.c.b16 %v8389, %v8388
      %8438 = vmatprep.subr.bf16.mxu0 0
      %8439 = vmatpush1.bf16.msra.mxu0 %v8397
      %8440 = vmatprep.subr.bf16.mxu0 0
      %8441 = vmatpush1.bf16.msra.mxu0 %v8396
      %8442 = vmatprep.subr.bf16.mxu0 0
      %8443 = vmatpush1.bf16.msra.mxu0 %v8395
      %8444 = vmatprep.subr.bf16.mxu0 0
      %8445 = vmatpush1.bf16.msra.mxu0 %v8394
      %8446 = vmatprep.subr.bf16.mxu0 0
      %8447 = vmatpush1.bf16.msra.mxu0 %v8393
      %8448 = vmatprep.subr.bf16.mxu0 0
      %8449 = vmatpush1.bf16.msra.mxu0 %v8392
      %8450 = vmatprep.subr.bf16.mxu0 0
      %8451 = vmatpush1.bf16.msra.mxu0 %v8391
      %8452 = vmatprep.subr.bf16.mxu0 0
      %8453 = vmatpush1.bf16.msra.mxu0 %v8390
      %8454 = vmatprep.subr.bf16.mxu0 0
      %8455 = vmatpush2.bf16.msra.mxu0 %v8405
      %8456 = vmatprep.subr.bf16.mxu0 0
      %8457 = vmatpush2.bf16.msra.mxu0 %v8404
      %8458 = vmatprep.subr.bf16.mxu0 0
      %8459 = vmatpush2.bf16.msra.mxu0 %v8403
      %8460 = vmatprep.subr.bf16.mxu0 0
      %8461 = vmatpush2.bf16.msra.mxu0 %v8402
      %8462 = vmatprep.subr.bf16.mxu0 0
      %8463 = vmatpush2.bf16.msra.mxu0 %v8401
      %8464 = vmatprep.subr.bf16.mxu0 0
      %8465 = vmatpush2.bf16.msra.mxu0 %v8400
      %8466 = vmatprep.subr.bf16.mxu0 0
      %8467 = vmatpush2.bf16.msra.mxu0 %v8399
      %8468 = vmatprep.subr.bf16.mxu0 0
      %8469 = vmatpush2.bf16.msra.mxu0 %v8398
      %8470 = vmatprep.mubr.bf16.mxu0 %v8151
      %8471 = vmatmul.mubr.bf16.gmra.mxu0 %v8150
      %v8472 = vpop.f32.mrf.mxu0
      %v8473 = vadd.f32 0.0, %v8472
      %v8474 = vpop.f32.mrf.mxu0
      %v8475 = vpop.f32.mrf.mxu0
      %v8476 = vadd.f32 0.0, %v8475
      %v8477 = vpop.f32.mrf.mxu0
      %8478 = vmatprep.mubr.bf16.mxu0 %v8154
      %8479 = vmatmul.mubr.bf16.gmra.mxu0 %v8153
      %v8480 = vpop.f32.mrf.mxu0
      %v8481 = vadd.f32 0.0, %v8480
      %v8482 = vpop.f32.mrf.mxu0
      %v8483 = vpop.f32.mrf.mxu0
      %v8484 = vadd.f32 0.0, %v8483
      %v8485 = vpop.f32.mrf.mxu0
      %8486 = vmatprep.mubr.bf16.mxu0 %v8157
      %8487 = vmatmul.mubr.bf16.gmra.mxu0 %v8156
      %v8488 = vpop.f32.mrf.mxu0
      %v8489 = vadd.f32 0.0, %v8488
      %v8490 = vpop.f32.mrf.mxu0
      %v8491 = vpop.f32.mrf.mxu0
      %v8492 = vadd.f32 0.0, %v8491
      %v8493 = vpop.f32.mrf.mxu0
      %8494 = vmatprep.mubr.bf16.mxu0 %v8160
      %8495 = vmatmul.mubr.bf16.gmra.mxu0 %v8159
      %v8496 = vpop.f32.mrf.mxu0
      %v8497 = vadd.f32 0.0, %v8496
      %v8498 = vpop.f32.mrf.mxu0
      %v8499 = vpop.f32.mrf.mxu0
      %v8500 = vadd.f32 0.0, %v8499
      %v8501 = vpop.f32.mrf.mxu0
      %8502 = vmatprep.mubr.bf16.mxu0 %v8163
      %8503 = vmatmul.mubr.bf16.gmra.mxu0 %v8162
      %v8504 = vpop.f32.mrf.mxu0
      %v8505 = vadd.f32 0.0, %v8504
      %v8506 = vpop.f32.mrf.mxu0
      %v8507 = vpop.f32.mrf.mxu0
      %v8508 = vadd.f32 0.0, %v8507
      %v8509 = vpop.f32.mrf.mxu0
      %8510 = vmatprep.mubr.bf16.mxu0 %v8166
      %8511 = vmatmul.mubr.bf16.gmra.mxu0 %v8165
      %v8512 = vpop.f32.mrf.mxu0
      %v8513 = vadd.f32 0.0, %v8512
      %v8514 = vpop.f32.mrf.mxu0
      %v8515 = vpop.f32.mrf.mxu0
      %v8516 = vadd.f32 0.0, %v8515
      %v8517 = vpop.f32.mrf.mxu0
      %8518 = vmatprep.mubr.bf16.mxu0 %v8169
      %8519 = vmatmul.mubr.bf16.gmra.mxu0 %v8168
      %v8520 = vpop.f32.mrf.mxu0
      %v8521 = vadd.f32 0.0, %v8520
      %v8522 = vpop.f32.mrf.mxu0
      %v8523 = vpop.f32.mrf.mxu0
      %v8524 = vadd.f32 0.0, %v8523
      %v8525 = vpop.f32.mrf.mxu0
      %8526 = vmatprep.mubr.bf16.mxu0 %v8172
      %8527 = vmatmul.mubr.bf16.gmra.mxu0 %v8171
      %v8528 = vpop.f32.mrf.mxu0
      %v8529 = vadd.f32 0.0, %v8528
      %v8530 = vpop.f32.mrf.mxu0
      %v8531 = vpop.f32.mrf.mxu0
      %v8532 = vadd.f32 0.0, %v8531
      %v8533 = vpop.f32.mrf.mxu0
      %8534 = vmatprep.mubr.bf16.mxu0 %v8175
      %8535 = vmatmul.mubr.bf16.gmra.mxu0 %v8174
      %v8536 = vpop.f32.mrf.mxu0
      %v8537 = vadd.f32 0.0, %v8536
      %v8538 = vpop.f32.mrf.mxu0
      %v8539 = vpop.f32.mrf.mxu0
      %v8540 = vadd.f32 0.0, %v8539
      %v8541 = vpop.f32.mrf.mxu0
      %8542 = vmatprep.mubr.bf16.mxu0 %v8178
      %8543 = vmatmul.mubr.bf16.gmra.mxu0 %v8177
      %v8544 = vpop.f32.mrf.mxu0
      %v8545 = vadd.f32 0.0, %v8544
      %v8546 = vpop.f32.mrf.mxu0
      %v8547 = vpop.f32.mrf.mxu0
      %v8548 = vadd.f32 0.0, %v8547
      %v8549 = vpop.f32.mrf.mxu0
      %8550 = vmatprep.mubr.bf16.mxu0 %v8181
      %8551 = vmatmul.mubr.bf16.gmra.mxu0 %v8180
      %v8552 = vpop.f32.mrf.mxu0
      %v8553 = vadd.f32 0.0, %v8552
      %v8554 = vpop.f32.mrf.mxu0
      %v8555 = vpop.f32.mrf.mxu0
      %v8556 = vadd.f32 0.0, %v8555
      %v8557 = vpop.f32.mrf.mxu0
      %8558 = vmatprep.mubr.bf16.mxu0 %v8184
      %8559 = vmatmul.mubr.bf16.gmra.mxu0 %v8183
      %v8560 = vpop.f32.mrf.mxu0
      %v8561 = vadd.f32 0.0, %v8560
      %v8562 = vpop.f32.mrf.mxu0
      %v8563 = vpop.f32.mrf.mxu0
      %v8564 = vadd.f32 0.0, %v8563
      %v8565 = vpop.f32.mrf.mxu0
      %8566 = vmatprep.mubr.bf16.mxu0 %v8187
      %8567 = vmatmul.mubr.bf16.gmra.mxu0 %v8186
      %v8568 = vpop.f32.mrf.mxu0
      %v8569 = vadd.f32 0.0, %v8568
      %v8570 = vpop.f32.mrf.mxu0
      %v8571 = vpop.f32.mrf.mxu0
      %v8572 = vadd.f32 0.0, %v8571
      %v8573 = vpop.f32.mrf.mxu0
      %8574 = vmatprep.mubr.bf16.mxu0 %v8190
      %8575 = vmatmul.mubr.bf16.gmra.mxu0 %v8189
      %v8576 = vpop.f32.mrf.mxu0
      %v8577 = vadd.f32 0.0, %v8576
      %v8578 = vpop.f32.mrf.mxu0
      %v8579 = vpop.f32.mrf.mxu0
      %v8580 = vadd.f32 0.0, %v8579
      %v8581 = vpop.f32.mrf.mxu0
      %8582 = vmatprep.mubr.bf16.mxu0 %v8193
      %8583 = vmatmul.mubr.bf16.gmra.mxu0 %v8192
      %v8584 = vpop.f32.mrf.mxu0
      %v8585 = vadd.f32 0.0, %v8584
      %v8586 = vpop.f32.mrf.mxu0
      %v8587 = vpop.f32.mrf.mxu0
      %v8588 = vadd.f32 0.0, %v8587
      %v8589 = vpop.f32.mrf.mxu0
      %8590 = vmatprep.mubr.bf16.mxu0 %v8196
      %8591 = vmatmul.mubr.bf16.gmra.mxu0 %v8195
      %v8592 = vpop.f32.mrf.mxu0
      %v8593 = vadd.f32 0.0, %v8592
      %v8594 = vpop.f32.mrf.mxu0
      %v8595 = vpop.f32.mrf.mxu0
      %v8596 = vadd.f32 0.0, %v8595
      %v8597 = vpop.f32.mrf.mxu0
      %8598 = vmatprep.mubr.bf16.mxu0 %v8199
      %8599 = vmatmul.mubr.bf16.gmra.mxu0 %v8198
      %v8600 = vpop.f32.mrf.mxu0
      %v8601 = vadd.f32 0.0, %v8600
      %v8602 = vpop.f32.mrf.mxu0
      %v8603 = vpop.f32.mrf.mxu0
      %v8604 = vadd.f32 0.0, %v8603
      %v8605 = vpop.f32.mrf.mxu0
      %8606 = vmatprep.mubr.bf16.mxu0 %v8202
      %8607 = vmatmul.mubr.bf16.gmra.mxu0 %v8201
      %v8608 = vpop.f32.mrf.mxu0
      %v8609 = vadd.f32 0.0, %v8608
      %v8610 = vpop.f32.mrf.mxu0
      %v8611 = vpop.f32.mrf.mxu0
      %v8612 = vadd.f32 0.0, %v8611
      %v8613 = vpop.f32.mrf.mxu0
      %8614 = vmatprep.mubr.bf16.mxu0 %v8205
      %8615 = vmatmul.mubr.bf16.gmra.mxu0 %v8204
      %v8616 = vpop.f32.mrf.mxu0
      %v8617 = vadd.f32 0.0, %v8616
      %v8618 = vpop.f32.mrf.mxu0
      %v8619 = vpop.f32.mrf.mxu0
      %v8620 = vadd.f32 0.0, %v8619
      %v8621 = vpop.f32.mrf.mxu0
      %8622 = vmatprep.mubr.bf16.mxu0 %v8208
      %8623 = vmatmul.mubr.bf16.gmra.mxu0 %v8207
      %v8624 = vpop.f32.mrf.mxu0
      %v8625 = vadd.f32 0.0, %v8624
      %v8626 = vpop.f32.mrf.mxu0
      %v8627 = vpop.f32.mrf.mxu0
      %v8628 = vadd.f32 0.0, %v8627
      %v8629 = vpop.f32.mrf.mxu0
      %8630 = vmatprep.mubr.bf16.mxu0 %v8211
      %8631 = vmatmul.mubr.bf16.gmra.mxu0 %v8210
      %v8632 = vpop.f32.mrf.mxu0
      %v8633 = vadd.f32 0.0, %v8632
      %v8634 = vpop.f32.mrf.mxu0
      %v8635 = vpop.f32.mrf.mxu0
      %v8636 = vadd.f32 0.0, %v8635
      %v8637 = vpop.f32.mrf.mxu0
      %8638 = vmatprep.mubr.bf16.mxu0 %v8214
      %8639 = vmatmul.mubr.bf16.gmra.mxu0 %v8213
      %v8640 = vpop.f32.mrf.mxu0
      %v8641 = vadd.f32 0.0, %v8640
      %v8642 = vpop.f32.mrf.mxu0
      %v8643 = vpop.f32.mrf.mxu0
      %v8644 = vadd.f32 0.0, %v8643
      %v8645 = vpop.f32.mrf.mxu0
      %8646 = vmatprep.mubr.bf16.mxu0 %v8217
      %8647 = vmatmul.mubr.bf16.gmra.mxu0 %v8216
      %v8648 = vpop.f32.mrf.mxu0
      %v8649 = vadd.f32 0.0, %v8648
      %v8650 = vpop.f32.mrf.mxu0
      %v8651 = vpop.f32.mrf.mxu0
      %v8652 = vadd.f32 0.0, %v8651
      %v8653 = vpop.f32.mrf.mxu0
      %8654 = vmatprep.mubr.bf16.mxu0 %v8220
      %8655 = vmatmul.mubr.bf16.gmra.mxu0 %v8219
      %v8656 = vpop.f32.mrf.mxu0
      %v8657 = vadd.f32 0.0, %v8656
      %v8658 = vpop.f32.mrf.mxu0
      %v8659 = vpop.f32.mrf.mxu0
      %v8660 = vadd.f32 0.0, %v8659
      %v8661 = vpop.f32.mrf.mxu0
      %8662 = vdwg.mxu0
      %8663 = vmatprep.subr.bf16.mxu0 0
      %8664 = vmatpush1.bf16.msra.mxu0 %v8413
      %8665 = vmatprep.subr.bf16.mxu0 0
      %8666 = vmatpush1.bf16.msra.mxu0 %v8412
      %8667 = vmatprep.subr.bf16.mxu0 0
      %8668 = vmatpush1.bf16.msra.mxu0 %v8411
      %8669 = vmatprep.subr.bf16.mxu0 0
      %8670 = vmatpush1.bf16.msra.mxu0 %v8410
      %8671 = vmatprep.subr.bf16.mxu0 0
      %8672 = vmatpush1.bf16.msra.mxu0 %v8409
      %8673 = vmatprep.subr.bf16.mxu0 0
      %8674 = vmatpush1.bf16.msra.mxu0 %v8408
      %8675 = vmatprep.subr.bf16.mxu0 0
      %8676 = vmatpush1.bf16.msra.mxu0 %v8407
      %8677 = vmatprep.subr.bf16.mxu0 0
      %8678 = vmatpush1.bf16.msra.mxu0 %v8406
      %8679 = vmatprep.subr.bf16.mxu0 0
      %8680 = vmatpush2.bf16.msra.mxu0 0
      %8681 = vmatprep.subr.bf16.mxu0 0
      %8682 = vmatpush2.bf16.msra.mxu0 0
      %8683 = vmatprep.subr.bf16.mxu0 0
      %8684 = vmatpush2.bf16.msra.mxu0 0
      %8685 = vmatprep.subr.bf16.mxu0 0
      %8686 = vmatpush2.bf16.msra.mxu0 0
      %8687 = vmatprep.subr.bf16.mxu0 0
      %8688 = vmatpush2.bf16.msra.mxu0 0
      %8689 = vmatprep.subr.bf16.mxu0 0
      %8690 = vmatpush2.bf16.msra.mxu0 0
      %8691 = vmatprep.subr.bf16.mxu0 0
      %8692 = vmatpush2.bf16.msra.mxu0 0
      %8693 = vmatprep.subr.bf16.mxu0 0
      %8694 = vmatpush2.bf16.msra.mxu0 0
      %8695 = vmatprep.mubr.bf16.mxu0 0
      %8696 = vmatmul.mubr.bf16.gmra.mxu0 %v8152
      %v8697 = vpop.f32.mrf.mxu0
      %v8698 = vadd.f32 %v8473, %v8697
      %v8699 = vpop.f32.mrf.mxu0
      %v8700 = vpop.f32.mrf.mxu0
      %v8701 = vadd.f32 %v8476, %v8700
      %v8702 = vpop.f32.mrf.mxu0
      %8703 = vmatprep.mubr.bf16.mxu0 0
      %8704 = vmatmul.mubr.bf16.gmra.mxu0 %v8155
      %v8705 = vpop.f32.mrf.mxu0
      %v8706 = vadd.f32 %v8481, %v8705
      %v8707 = vpop.f32.mrf.mxu0
      %v8708 = vpop.f32.mrf.mxu0
      %v8709 = vadd.f32 %v8484, %v8708
      %v8710 = vpop.f32.mrf.mxu0
      %8711 = vmatprep.mubr.bf16.mxu0 0
      %8712 = vmatmul.mubr.bf16.gmra.mxu0 %v8158
      %v8713 = vpop.f32.mrf.mxu0
      %v8714 = vadd.f32 %v8489, %v8713
      %v8715 = vpop.f32.mrf.mxu0
      %v8716 = vpop.f32.mrf.mxu0
      %v8717 = vadd.f32 %v8492, %v8716
      %v8718 = vpop.f32.mrf.mxu0
      %8719 = vmatprep.mubr.bf16.mxu0 0
      %8720 = vmatmul.mubr.bf16.gmra.mxu0 %v8161
      %v8721 = vpop.f32.mrf.mxu0
      %v8722 = vadd.f32 %v8497, %v8721
      %v8723 = vpop.f32.mrf.mxu0
      %v8724 = vpop.f32.mrf.mxu0
      %v8725 = vadd.f32 %v8500, %v8724
      %v8726 = vpop.f32.mrf.mxu0
      %8727 = vmatprep.mubr.bf16.mxu0 0
      %8728 = vmatmul.mubr.bf16.gmra.mxu0 %v8164
      %v8729 = vpop.f32.mrf.mxu0
      %v8730 = vadd.f32 %v8505, %v8729
      %v8731 = vpop.f32.mrf.mxu0
      %v8732 = vpop.f32.mrf.mxu0
      %v8733 = vadd.f32 %v8508, %v8732
      %v8734 = vpop.f32.mrf.mxu0
      %8735 = vmatprep.mubr.bf16.mxu0 0
      %8736 = vmatmul.mubr.bf16.gmra.mxu0 %v8167
      %v8737 = vpop.f32.mrf.mxu0
      %v8738 = vadd.f32 %v8513, %v8737
      %v8739 = vpop.f32.mrf.mxu0
      %v8740 = vpop.f32.mrf.mxu0
      %v8741 = vadd.f32 %v8516, %v8740
      %v8742 = vpop.f32.mrf.mxu0
      %8743 = vmatprep.mubr.bf16.mxu0 0
      %8744 = vmatmul.mubr.bf16.gmra.mxu0 %v8170
      %v8745 = vpop.f32.mrf.mxu0
      %v8746 = vadd.f32 %v8521, %v8745
      %v8747 = vpop.f32.mrf.mxu0
      %v8748 = vpop.f32.mrf.mxu0
      %v8749 = vadd.f32 %v8524, %v8748
      %v8750 = vpop.f32.mrf.mxu0
      %8751 = vmatprep.mubr.bf16.mxu0 0
      %8752 = vmatmul.mubr.bf16.gmra.mxu0 %v8173
      %v8753 = vpop.f32.mrf.mxu0
      %v8754 = vadd.f32 %v8529, %v8753
      %v8755 = vpop.f32.mrf.mxu0
      %v8756 = vpop.f32.mrf.mxu0
      %v8757 = vadd.f32 %v8532, %v8756
      %v8758 = vpop.f32.mrf.mxu0
      %8759 = vmatprep.mubr.bf16.mxu0 0
      %8760 = vmatmul.mubr.bf16.gmra.mxu0 %v8176
      %v8761 = vpop.f32.mrf.mxu0
      %v8762 = vadd.f32 %v8537, %v8761
      %v8763 = vpop.f32.mrf.mxu0
      %v8764 = vpop.f32.mrf.mxu0
      %v8765 = vadd.f32 %v8540, %v8764
      %v8766 = vpop.f32.mrf.mxu0
      %8767 = vmatprep.mubr.bf16.mxu0 0
      %8768 = vmatmul.mubr.bf16.gmra.mxu0 %v8179
      %v8769 = vpop.f32.mrf.mxu0
      %v8770 = vadd.f32 %v8545, %v8769
      %v8771 = vpop.f32.mrf.mxu0
      %v8772 = vpop.f32.mrf.mxu0
      %v8773 = vadd.f32 %v8548, %v8772
      %v8774 = vpop.f32.mrf.mxu0
      %8775 = vmatprep.mubr.bf16.mxu0 0
      %8776 = vmatmul.mubr.bf16.gmra.mxu0 %v8182
      %v8777 = vpop.f32.mrf.mxu0
      %v8778 = vadd.f32 %v8553, %v8777
      %v8779 = vpop.f32.mrf.mxu0
      %v8780 = vpop.f32.mrf.mxu0
      %v8781 = vadd.f32 %v8556, %v8780
      %v8782 = vpop.f32.mrf.mxu0
      %8783 = vmatprep.mubr.bf16.mxu0 0
      %8784 = vmatmul.mubr.bf16.gmra.mxu0 %v8185
      %v8785 = vpop.f32.mrf.mxu0
      %v8786 = vadd.f32 %v8561, %v8785
      %v8787 = vpop.f32.mrf.mxu0
      %v8788 = vpop.f32.mrf.mxu0
      %v8789 = vadd.f32 %v8564, %v8788
      %v8790 = vpop.f32.mrf.mxu0
      %8791 = vmatprep.mubr.bf16.mxu0 0
      %8792 = vmatmul.mubr.bf16.gmra.mxu0 %v8188
      %v8793 = vpop.f32.mrf.mxu0
      %v8794 = vadd.f32 %v8569, %v8793
      %v8795 = vpop.f32.mrf.mxu0
      %v8796 = vpop.f32.mrf.mxu0
      %v8797 = vadd.f32 %v8572, %v8796
      %v8798 = vpop.f32.mrf.mxu0
      %8799 = vmatprep.mubr.bf16.mxu0 0
      %8800 = vmatmul.mubr.bf16.gmra.mxu0 %v8191
      %v8801 = vpop.f32.mrf.mxu0
      %v8802 = vadd.f32 %v8577, %v8801
      %v8803 = vpop.f32.mrf.mxu0
      %v8804 = vpop.f32.mrf.mxu0
      %v8805 = vadd.f32 %v8580, %v8804
      %v8806 = vpop.f32.mrf.mxu0
      %8807 = vmatprep.mubr.bf16.mxu0 0
      %8808 = vmatmul.mubr.bf16.gmra.mxu0 %v8194
      %v8809 = vpop.f32.mrf.mxu0
      %v8810 = vadd.f32 %v8585, %v8809
      %v8811 = vpop.f32.mrf.mxu0
      %v8812 = vpop.f32.mrf.mxu0
      %v8813 = vadd.f32 %v8588, %v8812
      %v8814 = vpop.f32.mrf.mxu0
      %8815 = vmatprep.mubr.bf16.mxu0 0
      %8816 = vmatmul.mubr.bf16.gmra.mxu0 %v8197
      %v8817 = vpop.f32.mrf.mxu0
      %v8818 = vadd.f32 %v8593, %v8817
      %v8819 = vpop.f32.mrf.mxu0
      %v8820 = vpop.f32.mrf.mxu0
      %v8821 = vadd.f32 %v8596, %v8820
      %v8822 = vpop.f32.mrf.mxu0
      %8823 = vmatprep.mubr.bf16.mxu0 0
      %8824 = vmatmul.mubr.bf16.gmra.mxu0 %v8200
      %v8825 = vpop.f32.mrf.mxu0
      %v8826 = vadd.f32 %v8601, %v8825
      %v8827 = vpop.f32.mrf.mxu0
      %v8828 = vpop.f32.mrf.mxu0
      %v8829 = vadd.f32 %v8604, %v8828
      %v8830 = vpop.f32.mrf.mxu0
      %8831 = vmatprep.mubr.bf16.mxu0 0
      %8832 = vmatmul.mubr.bf16.gmra.mxu0 %v8203
      %v8833 = vpop.f32.mrf.mxu0
      %v8834 = vadd.f32 %v8609, %v8833
      %v8835 = vpop.f32.mrf.mxu0
      %v8836 = vpop.f32.mrf.mxu0
      %v8837 = vadd.f32 %v8612, %v8836
      %v8838 = vpop.f32.mrf.mxu0
      %8839 = vmatprep.mubr.bf16.mxu0 0
      %8840 = vmatmul.mubr.bf16.gmra.mxu0 %v8206
      %v8841 = vpop.f32.mrf.mxu0
      %v8842 = vadd.f32 %v8617, %v8841
      %v8843 = vpop.f32.mrf.mxu0
      %v8844 = vpop.f32.mrf.mxu0
      %v8845 = vadd.f32 %v8620, %v8844
      %v8846 = vpop.f32.mrf.mxu0
      %8847 = vmatprep.mubr.bf16.mxu0 0
      %8848 = vmatmul.mubr.bf16.gmra.mxu0 %v8209
      %v8849 = vpop.f32.mrf.mxu0
      %v8850 = vadd.f32 %v8625, %v8849
      %v8851 = vpop.f32.mrf.mxu0
      %v8852 = vpop.f32.mrf.mxu0
      %v8853 = vadd.f32 %v8628, %v8852
      %v8854 = vpop.f32.mrf.mxu0
      %8855 = vmatprep.mubr.bf16.mxu0 0
      %8856 = vmatmul.mubr.bf16.gmra.mxu0 %v8212
      %v8857 = vpop.f32.mrf.mxu0
      %v8858 = vadd.f32 %v8633, %v8857
      %v8859 = vpop.f32.mrf.mxu0
      %v8860 = vpop.f32.mrf.mxu0
      %v8861 = vadd.f32 %v8636, %v8860
      %v8862 = vpop.f32.mrf.mxu0
      %8863 = vmatprep.mubr.bf16.mxu0 0
      %8864 = vmatmul.mubr.bf16.gmra.mxu0 %v8215
      %v8865 = vpop.f32.mrf.mxu0
      %v8866 = vadd.f32 %v8641, %v8865
      %v8867 = vpop.f32.mrf.mxu0
      %v8868 = vpop.f32.mrf.mxu0
      %v8869 = vadd.f32 %v8644, %v8868
      %v8870 = vpop.f32.mrf.mxu0
      %8871 = vmatprep.mubr.bf16.mxu0 0
      %8872 = vmatmul.mubr.bf16.gmra.mxu0 %v8218
      %v8873 = vpop.f32.mrf.mxu0
      %v8874 = vadd.f32 %v8649, %v8873
      %v8875 = vpop.f32.mrf.mxu0
      %v8876 = vpop.f32.mrf.mxu0
      %v8877 = vadd.f32 %v8652, %v8876
      %v8878 = vpop.f32.mrf.mxu0
      %8879 = vmatprep.mubr.bf16.mxu0 0
      %8880 = vmatmul.mubr.bf16.gmra.mxu0 %v8221
      %v8881 = vpop.f32.mrf.mxu0
      %v8882 = vadd.f32 %v8657, %v8881
      %v8883 = vpop.f32.mrf.mxu0
      %v8884 = vpop.f32.mrf.mxu0
      %v8885 = vadd.f32 %v8660, %v8884
      %v8886 = vpop.f32.mrf.mxu0
      %8887 = vdwg.mxu0
      %v8888 = vadd.f32 %v7575, %v8698
      %v8889 = vadd.f32 %v7578, %v8701
      %v8890 = vadd.f32 %v7583, %v8706
      %v8891 = vadd.f32 %v7586, %v8709
      %v8892 = vadd.f32 %v7591, %v8714
      %v8893 = vadd.f32 %v7594, %v8717
      %v8894 = vadd.f32 %v7599, %v8722
      %v8895 = vadd.f32 %v7602, %v8725
      %v8896 = vadd.f32 %v7607, %v8730
      %v8897 = vadd.f32 %v7610, %v8733
      %v8898 = vadd.f32 %v7615, %v8738
      %v8899 = vadd.f32 %v7618, %v8741
      %v8900 = vadd.f32 %v7623, %v8746
      %v8901 = vadd.f32 %v7626, %v8749
      %v8902 = vadd.f32 %v7631, %v8754
      %v8903 = vadd.f32 %v7634, %v8757
      %v8904 = vadd.f32 %v7639, %v8762
      %v8905 = vadd.f32 %v7642, %v8765
      %v8906 = vadd.f32 %v7647, %v8770
      %v8907 = vadd.f32 %v7650, %v8773
      %v8908 = vadd.f32 %v7655, %v8778
      %v8909 = vadd.f32 %v7658, %v8781
      %v8910 = vadd.f32 %v7663, %v8786
      %v8911 = vadd.f32 %v7666, %v8789
      %v8912 = vadd.f32 %v7671, %v8794
      %v8913 = vadd.f32 %v7674, %v8797
      %v8914 = vadd.f32 %v7679, %v8802
      %v8915 = vadd.f32 %v7682, %v8805
      %v8916 = vadd.f32 %v7687, %v8810
      %v8917 = vadd.f32 %v7690, %v8813
      %v8918 = vadd.f32 %v7695, %v8818
      %v8919 = vadd.f32 %v7698, %v8821
      %v8920 = vadd.f32 %v7703, %v8826
      %v8921 = vadd.f32 %v7706, %v8829
      %v8922 = vadd.f32 %v7711, %v8834
      %v8923 = vadd.f32 %v7714, %v8837
      %v8924 = vadd.f32 %v7719, %v8842
      %v8925 = vadd.f32 %v7722, %v8845
      %v8926 = vadd.f32 %v7727, %v8850
      %v8927 = vadd.f32 %v7730, %v8853
      %v8928 = vadd.f32 %v7735, %v8858
      %v8929 = vadd.f32 %v7738, %v8861
      %v8930 = vadd.f32 %v7743, %v8866
      %v8931 = vadd.f32 %v7746, %v8869
      %v8932 = vadd.f32 %v7751, %v8874
      %v8933 = vadd.f32 %v7754, %v8877
      %v8934 = vadd.f32 %v7759, %v8882
      %v8935 = vadd.f32 %v7762, %v8885
      %vm8968 = vcmask 1040384
      %v8969 = vrot.slane %v250, 7
      %v8970 = vrot.slane %v251, 7
      %v8971 = vsel %vm8968, %v8969, %v8970
      %v8972 = vrot.slane %v252, 7
      %v8973 = vrot.slane %v253, 7
      %v8974 = vsel %vm8968, %v8972, %v8973
      %v8975 = vrot.slane %v254, 7
      %v8976 = vrot.slane %v255, 7
      %v8977 = vsel %vm8968, %v8975, %v8976
      %v8978 = vrot.slane %v256, 7
      %v8979 = vrot.slane %v257, 7
      %v8980 = vsel %vm8968, %v8978, %v8979
      %v8981 = vrot.slane %v258, 7
      %v8982 = vrot.slane %v259, 7
      %v8983 = vsel %vm8968, %v8981, %v8982
      %v8984 = vrot.slane %v260, 7
      %v8985 = vrot.slane %v261, 7
      %v8986 = vsel %vm8968, %v8984, %v8985
      %v8987 = vrot.slane %v262, 7
      %v8988 = vrot.slane %v263, 7
      %v8989 = vsel %vm8968, %v8987, %v8988
      %v8990 = vrot.slane %v264, 7
      %v8991 = vrot.slane %v265, 7
      %v8992 = vsel %vm8968, %v8990, %v8991
      %v8993 = vrot.slane %v266, 7
      %v8994 = vrot.slane %v267, 7
      %v8995 = vsel %vm8968, %v8993, %v8994
      %v8996 = vrot.slane %v268, 7
      %v8997 = vrot.slane %v269, 7
      %v8998 = vsel %vm8968, %v8996, %v8997
      %v8999 = vrot.slane %v270, 7
      %v9000 = vrot.slane %v271, 7
      %v9001 = vsel %vm8968, %v8999, %v9000
      %v9002 = vrot.slane %v272, 7
      %v9003 = vrot.slane %v273, 7
      %v9004 = vsel %vm8968, %v9002, %v9003
      %v9005 = vrot.slane %v274, 7
      %v9006 = vrot.slane %v275, 7
      %v9007 = vsel %vm8968, %v9005, %v9006
      %v9008 = vrot.slane %v276, 7
      %v9009 = vrot.slane %v277, 7
      %v9010 = vsel %vm8968, %v9008, %v9009
      %v9011 = vrot.slane %v278, 7
      %v9012 = vrot.slane %v279, 7
      %v9013 = vsel %vm8968, %v9011, %v9012
      %v9014 = vrot.slane %v280, 7
      %v9015 = vrot.slane %v281, 7
      %v9016 = vsel %vm8968, %v9014, %v9015
      %v9065 = vadd.f32 %v8888, %v8969
      %v9066 = vadd.f32 %v8889, %v8971
      %v9067 = vadd.f32 %v8890, %v8970
      %v9068 = vadd.f32 %v8891, %v8972
      %v9069 = vadd.f32 %v8892, %v8974
      %v9070 = vadd.f32 %v8893, %v8973
      %v9071 = vadd.f32 %v8894, %v8975
      %v9072 = vadd.f32 %v8895, %v8977
      %v9073 = vadd.f32 %v8896, %v8976
      %v9074 = vadd.f32 %v8897, %v8978
      %v9075 = vadd.f32 %v8898, %v8980
      %v9076 = vadd.f32 %v8899, %v8979
      %v9077 = vadd.f32 %v8900, %v8981
      %v9078 = vadd.f32 %v8901, %v8983
      %v9079 = vadd.f32 %v8902, %v8982
      %v9080 = vadd.f32 %v8903, %v8984
      %v9081 = vadd.f32 %v8904, %v8986
      %v9082 = vadd.f32 %v8905, %v8985
      %v9083 = vadd.f32 %v8906, %v8987
      %v9084 = vadd.f32 %v8907, %v8989
      %v9085 = vadd.f32 %v8908, %v8988
      %v9086 = vadd.f32 %v8909, %v8990
      %v9087 = vadd.f32 %v8910, %v8992
      %v9088 = vadd.f32 %v8911, %v8991
      %v9089 = vadd.f32 %v8912, %v8993
      %v9090 = vadd.f32 %v8913, %v8995
      %v9091 = vadd.f32 %v8914, %v8994
      %v9092 = vadd.f32 %v8915, %v8996
      %v9093 = vadd.f32 %v8916, %v8998
      %v9094 = vadd.f32 %v8917, %v8997
      %v9095 = vadd.f32 %v8918, %v8999
      %v9096 = vadd.f32 %v8919, %v9001
      %v9097 = vadd.f32 %v8920, %v9000
      %v9098 = vadd.f32 %v8921, %v9002
      %v9099 = vadd.f32 %v8922, %v9004
      %v9100 = vadd.f32 %v8923, %v9003
      %v9101 = vadd.f32 %v8924, %v9005
      %v9102 = vadd.f32 %v8925, %v9007
      %v9103 = vadd.f32 %v8926, %v9006
      %v9104 = vadd.f32 %v8927, %v9008
      %v9105 = vadd.f32 %v8928, %v9010
      %v9106 = vadd.f32 %v8929, %v9009
      %v9107 = vadd.f32 %v8930, %v9011
      %v9108 = vadd.f32 %v8931, %v9013
      %v9109 = vadd.f32 %v8932, %v9012
      %v9110 = vadd.f32 %v8933, %v9014
      %v9111 = vadd.f32 %v8934, %v9016
      %v9112 = vadd.f32 %v8935, %v9015
      %v9113 = vmax.f32 %v9065, 0.0
      %v9114 = vmax.f32 %v9066, 0.0
      %v9115 = vmax.f32 %v9067, 0.0
      %v9116 = vmax.f32 %v9068, 0.0
      %v9117 = vmax.f32 %v9069, 0.0
      %v9118 = vmax.f32 %v9070, 0.0
      %v9119 = vmax.f32 %v9071, 0.0
      %v9120 = vmax.f32 %v9072, 0.0
      %v9121 = vmax.f32 %v9073, 0.0
      %v9122 = vmax.f32 %v9074, 0.0
      %v9123 = vmax.f32 %v9075, 0.0
      %v9124 = vmax.f32 %v9076, 0.0
      %v9125 = vmax.f32 %v9077, 0.0
      %v9126 = vmax.f32 %v9078, 0.0
      %v9127 = vmax.f32 %v9079, 0.0
      %v9128 = vmax.f32 %v9080, 0.0
      %v9129 = vmax.f32 %v9081, 0.0
      %v9130 = vmax.f32 %v9082, 0.0
      %v9131 = vmax.f32 %v9083, 0.0
      %v9132 = vmax.f32 %v9084, 0.0
      %v9133 = vmax.f32 %v9085, 0.0
      %v9134 = vmax.f32 %v9086, 0.0
      %v9135 = vmax.f32 %v9087, 0.0
      %v9136 = vmax.f32 %v9088, 0.0
      %v9137 = vmax.f32 %v9089, 0.0
      %v9138 = vmax.f32 %v9090, 0.0
      %v9139 = vmax.f32 %v9091, 0.0
      %v9140 = vmax.f32 %v9092, 0.0
      %v9141 = vmax.f32 %v9093, 0.0
      %v9142 = vmax.f32 %v9094, 0.0
      %v9143 = vmax.f32 %v9095, 0.0
      %v9144 = vmax.f32 %v9096, 0.0
      %v9145 = vmax.f32 %v9097, 0.0
      %v9146 = vmax.f32 %v9098, 0.0
      %v9147 = vmax.f32 %v9099, 0.0
      %v9148 = vmax.f32 %v9100, 0.0
      %v9149 = vmax.f32 %v9101, 0.0
      %v9150 = vmax.f32 %v9102, 0.0
      %v9151 = vmax.f32 %v9103, 0.0
      %v9152 = vmax.f32 %v9104, 0.0
      %v9153 = vmax.f32 %v9105, 0.0
      %v9154 = vmax.f32 %v9106, 0.0
      %v9155 = vmax.f32 %v9107, 0.0
      %v9156 = vmax.f32 %v9108, 0.0
      %v9157 = vmax.f32 %v9109, 0.0
      %v9158 = vmax.f32 %v9110, 0.0
      %v9159 = vmax.f32 %v9111, 0.0
      %v9160 = vmax.f32 %v9112, 0.0
      %9161 = vst [vmem:[%s170 - $0x1] sm:$0xfe] %v9113
      %9162 = vst [vmem:[%s170 + $0x7] sm:$0xff] %v9114
      %9163 = vst [vmem:[%s170 + $0xf] sm:$0x1] %v9115
      %9164 = vst [vmem:[%s170 + $0xf] sm:$0xfe] %v9116
      %9165 = vst [vmem:[%s170 + $0x17] sm:$0xff] %v9117
      %9166 = vst [vmem:[%s170 + $0x1f] sm:$0x1] %v9118
      %9167 = vst [vmem:[%s170 + $0x1f] sm:$0xfe] %v9119
      %9168 = vst [vmem:[%s170 + $0x27] sm:$0xff] %v9120
      %9169 = vst [vmem:[%s170 + $0x2f] sm:$0x1] %v9121
      %9170 = vst [vmem:[%s170 + $0x2f] sm:$0xfe] %v9122
      %9171 = vst [vmem:[%s170 + $0x37] sm:$0xff] %v9123
      %9172 = vst [vmem:[%s170 + $0x3f] sm:$0x1] %v9124
      %9173 = vst [vmem:[%s170 + $0x3f] sm:$0xfe] %v9125
      %9174 = vst [vmem:[%s170 + $0x47] sm:$0xff] %v9126
      %9175 = vst [vmem:[%s170 + $0x4f] sm:$0x1] %v9127
      %9176 = vst [vmem:[%s170 + $0x4f] sm:$0xfe] %v9128
      %9177 = vst [vmem:[%s170 + $0x57] sm:$0xff] %v9129
      %9178 = vst [vmem:[%s170 + $0x5f] sm:$0x1] %v9130
      %9179 = vst [vmem:[%s170 + $0x5f] sm:$0xfe] %v9131
      %9180 = vst [vmem:[%s170 + $0x67] sm:$0xff] %v9132
      %9181 = vst [vmem:[%s170 + $0x6f] sm:$0x1] %v9133
      %9182 = vst [vmem:[%s170 + $0x6f] sm:$0xfe] %v9134
      %9183 = vst [vmem:[%s170 + $0x77] sm:$0xff] %v9135
      %9184 = vst [vmem:[%s170 + $0x7f] sm:$0x1] %v9136
      %9185 = vst [vmem:[%s170 + $0x7f] sm:$0xfe] %v9137
      %9186 = vst [vmem:[%s170 + $0x87] sm:$0xff] %v9138
      %9187 = vst [vmem:[%s170 + $0x8f] sm:$0x1] %v9139
      %9188 = vst [vmem:[%s170 + $0x8f] sm:$0xfe] %v9140
      %9189 = vst [vmem:[%s170 + $0x97] sm:$0xff] %v9141
      %9190 = vst [vmem:[%s170 + $0x9f] sm:$0x1] %v9142
      %9191 = vst [vmem:[%s170 + $0x9f] sm:$0xfe] %v9143
      %9192 = vst [vmem:[%s170 + $0xa7] sm:$0xff] %v9144
      %9193 = vst [vmem:[%s170 + $0xaf] sm:$0x1] %v9145
      %9194 = vst [vmem:[%s170 + $0xaf] sm:$0xfe] %v9146
      %9195 = vst [vmem:[%s170 + $0xb7] sm:$0xff] %v9147
      %9196 = vst [vmem:[%s170 + $0xbf] sm:$0x1] %v9148
      %9197 = vst [vmem:[%s170 + $0xbf] sm:$0xfe] %v9149
      %9198 = vst [vmem:[%s170 + $0xc7] sm:$0xff] %v9150
      %9199 = vst [vmem:[%s170 + $0xcf] sm:$0x1] %v9151
      %9200 = vst [vmem:[%s170 + $0xcf] sm:$0xfe] %v9152
      %9201 = vst [vmem:[%s170 + $0xd7] sm:$0xff] %v9153
      %9202 = vst [vmem:[%s170 + $0xdf] sm:$0x1] %v9154
      %9203 = vst [vmem:[%s170 + $0xdf] sm:$0xfe] %v9155
      %9204 = vst [vmem:[%s170 + $0xe7] sm:$0xff] %v9156
      %9205 = vst [vmem:[%s170 + $0xef] sm:$0x1] %v9157
      %9206 = vst [vmem:[%s170 + $0xef] sm:$0xfe] %v9158
      %9207 = vst [vmem:[%s170 + $0xf7] sm:$0xff] %v9159
      %9208 = vst [vmem:[%s170 + $0xff] sm:$0x1] %v9160
      %p9209 = scmp.lt.s32.totalorder %s14, 1
      %s9210 = scalar_select %p9209, %s14, 1
      %s9211 = smul.addr %s9210, 32
      %s9212 = smul.addr %s9211, 8
      %s9213 = scalar_lea.vmem %s3, %s9212
      // Predicated region
      $region33: #{resblock_nchw.1} parent=31 // pred_check
        %p9214 = pneg %p100
      $region34: #{resblock_nchw.1} parent=31 // pred_check_branch
        %9216 = sbr.rel (%p9214) target = $region36
      $region35: #{resblock_nchw.1} parent=31 // pred_region
        _
      $region36: #{resblock_nchw.1} parent=31 // pred_fallthru
        _
    $region32: #{resblock_nchw.1} parent=5 // pred_fallthru
      _
    %p9217 = scmp.le.s32.totalorder 2, %s9
    // Predicated region
    $region37: #{resblock_nchw.1} parent=5 // pred_check
      %p9218 = pneg %p9217
    $region38: #{resblock_nchw.1} parent=5 // pred_check_branch
      %9220 = sbr.rel (%p9218) target = $region40
    $region39: #{resblock_nchw.1} parent=5 // pred_region
      %s9221 = ssub.s32 %s9, 2
      // Predicated region
      $region41: #{resblock_nchw.1} parent=39 // pred_check
        %p9222 = pneg %p106
      $region42: #{resblock_nchw.1} parent=39 // pred_check_branch
        %9224 = sbr.rel (%p9222) target = $region44
      $region43: #{resblock_nchw.1} parent=39 // pred_region
        %p9225 = scmp.lt.s32.totalorder %s15, 1
        %s9226 = scalar_select %p9225, %s15, 1
        %s9227 = smul.addr %s9226, 32
        %s9228 = smul.addr %s9227, 8
        %s9229 = scalar_lea.vmem %s3, %s9228
      $region44: #{resblock_nchw.1} parent=39 // pred_fallthru
        _
    $region40: #{resblock_nchw.1} parent=5 // pred_fallthru
      _
  $region6: #{resblock_nchw.1} parent=0 // loop_footer
    %s13 = sadd.s32 1, %s9
  $region7: #{resblock_nchw.1} parent=0 // loop_footer_branch
    %8 = sbr.rel target = $region3
  $region8: #{resblock_nchw.1} parent=0 // loop_exit
    _

</llo_original>
